<compile_context>
chip_gen: v5e
topology: v5e:2x2
jax: 0.10.0
libtpu: 0.0.40
codegen_flags: <defaults>
</compile_context>

<pallas_src>
import functools

import jax
import jax.numpy as jnp
from jax.experimental import pallas as pl
from jax.experimental.pallas import tpu as pltpu

HIDDEN = 768          # fixed by fc1 = nn.Linear(768, 512)
NUM_HEADS = 12
HEAD_DIM = 64
INTERMEDIATE = 3072
NUM_LAYERS = 2        # scaled-down synthetic backbone
VOCAB = 100
MAX_POS = 32
FC1_OUT = 512
NUM_CLASSES = 20              # len(set(df['label'])) for 20newsgroups
NUM_CLASSES_PADDED = 128      # lane-dense head output; slice [:, :20] outside
LN_EPS = 1e-12

VMEM_LIMIT_BYTES = 32 * 1024 * 1024   # safe on v5e/v6e/v7x; well above our tile needs


def _pick_tile(dim, preferred, align):
    """Largest tile <= preferred that divides dim and is a multiple of align
    (or the full dim, which is always a legal block extent)."""
    if dim <= preferred:
        return dim
    t = (preferred // align) * align
    while t >= align:
        if dim % t == 0:
            return t
        t -= align
    return dim


# ----------------------------- tiled linear --------------------------------

def linear_kernel(x_ref, w_ref, b_ref, o_ref, acc_ref, *, activation):
    @pl.when(pl.program_id(2) == 0)
    def _():
        acc_ref[...] = jnp.zeros_like(acc_ref)

    acc_ref[...] += jnp.dot(x_ref[...], w_ref[...],
                            preferred_element_type=jnp.float32)

    @pl.when(pl.program_id(2) == pl.num_programs(2) - 1)
    def _():
        y = acc_ref[...] + b_ref[...]
        if activation == "relu":
            y = jnp.maximum(y, 0.0)
        elif activation == "gelu":
            # TODO(synk): HF BERT uses exact erf-GELU; tanh approximation kept here.
            y = 0.5 * y * (1.0 + jnp.tanh(0.7978845608028654
                                          * (y + 0.044715 * y * y * y)))
        elif activation == "tanh":
            y = jnp.tanh(y)
        o_ref[...] = y.astype(o_ref.dtype)


def linear(x, w, b, activation="none", out_dtype=jnp.bfloat16):
    M, K = x.shape
    _, N = w.shape
    tm = _pick_tile(M, 256, 8)
    tk = _pick_tile(K, 512, 128)
    tn = _pick_tile(N, 512, 128)
    grid = (M // tm, N // tn, K // tk)
    return pl.pallas_call(
        functools.partial(linear_kernel, activation=activation),
        out_shape=jax.ShapeDtypeStruct((M, N), out_dtype),
        grid_spec=pltpu.PrefetchScalarGridSpec(
            num_scalar_prefetch=0, grid=grid,
            in_specs=[pl.BlockSpec((tm, tk), lambda i, j, k: (i, k)),
                      pl.BlockSpec((tk, tn), lambda i, j, k: (k, j)),
                      pl.BlockSpec((1, tn), lambda i, j, k: (0, j))],
            out_specs=pl.BlockSpec((tm, tn), lambda i, j, k: (i, j)),
            scratch_shapes=[pltpu.VMEM((tm, tn), jnp.float32)]),
        compiler_params=pltpu.CompilerParams(
            dimension_semantics=("parallel", "parallel", "arbitrary"),
            vmem_limit_bytes=VMEM_LIMIT_BYTES),
    )(x, w, b)


# ---------------- linear + bias + residual + LayerNorm (fused) -------------

def linear_res_ln_kernel(x_ref, w_ref, b_ref, res_ref, g_ref, beta_ref,
                         o_ref, acc_ref, *, eps):
    @pl.when(pl.program_id(1) == 0)
    def _():
        acc_ref[...] = jnp.zeros_like(acc_ref)

    acc_ref[...] += jnp.dot(x_ref[...], w_ref[...],
                            preferred_element_type=jnp.float32)

    @pl.when(pl.program_id(1) == pl.num_programs(1) - 1)
    def _():
        y = acc_ref[...] + b_ref[...] + res_ref[...].astype(jnp.float32)
        mu = jnp.mean(y, axis=-1, keepdims=True)
        var = jnp.mean(jnp.square(y - mu), axis=-1, keepdims=True)
        o_ref[...] = ((y - mu) * jax.lax.rsqrt(var + eps) * g_ref[...]
                      + beta_ref[...]).astype(o_ref.dtype)


def linear_res_ln(x, w, b, res, g, beta, out_dtype=jnp.bfloat16):
    M, K = x.shape
    _, N = w.shape               # LayerNorm over full N -> single N tile
    tm = _pick_tile(M, 256, 8)
    tk = _pick_tile(K, 512, 128)
    grid = (M // tm, K // tk)
    return pl.pallas_call(
        functools.partial(linear_res_ln_kernel, eps=LN_EPS),
        out_shape=jax.ShapeDtypeStruct((M, N), out_dtype),
        grid_spec=pltpu.PrefetchScalarGridSpec(
            num_scalar_prefetch=0, grid=grid,
            in_specs=[pl.BlockSpec((tm, tk), lambda i, k: (i, k)),
                      pl.BlockSpec((tk, N), lambda i, k: (k, 0)),
                      pl.BlockSpec((1, N), lambda i, k: (0, 0)),
                      pl.BlockSpec((tm, N), lambda i, k: (i, 0)),
                      pl.BlockSpec((1, N), lambda i, k: (0, 0)),
                      pl.BlockSpec((1, N), lambda i, k: (0, 0))],
            out_specs=pl.BlockSpec((tm, N), lambda i, k: (i, 0)),
            scratch_shapes=[pltpu.VMEM((tm, N), jnp.float32)]),
        compiler_params=pltpu.CompilerParams(
            dimension_semantics=("parallel", "arbitrary"),
            vmem_limit_bytes=VMEM_LIMIT_BYTES),
    )(x, w, b, res, g, beta)


# ------------------------------- LayerNorm ---------------------------------

def layernorm_kernel(x_ref, g_ref, b_ref, o_ref, *, eps):
    x = x_ref[...].astype(jnp.float32)
    mu = jnp.mean(x, axis=-1, keepdims=True)
    var = jnp.mean(jnp.square(x - mu), axis=-1, keepdims=True)
    o_ref[...] = ((x - mu) * jax.lax.rsqrt(var + eps) * g_ref[...]
                  + b_ref[...]).astype(o_ref.dtype)


def layernorm(x, g, b, out_dtype=jnp.bfloat16):
    M, H = x.shape
    tm = _pick_tile(M, 512, 8)
    return pl.pallas_call(
        functools.partial(layernorm_kernel, eps=LN_EPS),
        out_shape=jax.ShapeDtypeStruct((M, H), out_dtype),
        grid=(M // tm,),
        in_specs=[pl.BlockSpec((tm, H), lambda i: (i, 0)),
                  pl.BlockSpec((1, H), lambda i: (0, 0)),
                  pl.BlockSpec((1, H), lambda i: (0, 0))],
        out_specs=pl.BlockSpec((tm, H), lambda i: (i, 0)),
        compiler_params=pltpu.CompilerParams(
            dimension_semantics=("parallel",),
            vmem_limit_bytes=VMEM_LIMIT_BYTES),
    )(x, g, b)


# ------------------------------- attention ---------------------------------

def attention_kernel(q_ref, k_ref, v_ref, bias_ref, o_ref, *, head_dim):
    # Each grid step handles one batch element and one 128-lane head pair.
    q = q_ref[0].astype(jnp.float32)     # (S, 2*head_dim)
    k = k_ref[0].astype(jnp.float32)
    v = v_ref[0]                         # bf16 (S, 2*head_dim)
    bias = bias_ref[0]                   # (1, S) additive mask bias, f32
    scale = 1.0 / (head_dim ** 0.5)
    dims = (((1,), (1,)), ((), ()))      # contract the head_dim axes (q @ k^T)
    outs = []
    for i in range(2):                   # two heads per 128-lane group
        sl = slice(i * head_dim, (i + 1) * head_dim)
        qi, ki, vi = q[:, sl], k[:, sl], v[:, sl]
        s = jax.lax.dot_general(qi, ki, dims,
                                preferred_element_type=jnp.float32) * scale + bias
        m = jnp.max(s, axis=-1, keepdims=True)
        p = jnp.exp(s - m)
        p = p / jnp.sum(p, axis=-1, keepdims=True)
        outs.append(jnp.dot(p.astype(vi.dtype), vi,
                            preferred_element_type=jnp.float32))
    o_ref[0] = jnp.concatenate(outs, axis=-1).astype(o_ref.dtype)


def attention(qkv, bias):
    # qkv: (B, S, 3*HIDDEN) laid out [q | k | v]; heads are 64-wide slices.
    B, S, _ = qkv.shape
    head_pairs = NUM_HEADS // 2
    lane_blk = 2 * HEAD_DIM                 # 128 lanes = 2 heads
    blocks_per_region = HIDDEN // lane_blk  # 6

    def region_spec(off):
        return pl.BlockSpec((1, S, lane_blk), lambda b, h: (b, 0, off + h))

    return pl.pallas_call(
        functools.partial(attention_kernel, head_dim=HEAD_DIM),
        out_shape=jax.ShapeDtypeStruct((B, S, HIDDEN), jnp.bfloat16),
        grid=(B, head_pairs),
        in_specs=[region_spec(0),
                  region_spec(blocks_per_region),
                  region_spec(2 * blocks_per_region),
                  pl.BlockSpec((1, 1, S), lambda b, h: (b, 0, 0))],
        out_specs=pl.BlockSpec((1, S, lane_blk), lambda b, h: (b, 0, h)),
        compiler_params=pltpu.CompilerParams(
            dimension_semantics=("parallel", "parallel"),
            vmem_limit_bytes=VMEM_LIMIT_BYTES),
    )(qkv, qkv, qkv, bias)


# -------------------- pooler + classification head (fused) -----------------

def pooled_head_kernel(cls_ref, pw_ref, pb_ref, f1w_ref, f1b_ref,
                       f2w_ref, f2b_ref, o_ref):
    # BERT pooler: CLS -> dense -> tanh
    pooled = jnp.tanh(jnp.dot(cls_ref[...], pw_ref[...],
                              preferred_element_type=jnp.float32) + pb_ref[...])
    # fc1 -> relu
    x = jnp.dot(pooled.astype(jnp.bfloat16), f1w_ref[...],
                preferred_element_type=jnp.float32) + f1b_ref[...]
    x = jnp.maximum(x, 0.0)
    # TODO(synk): nn.Dropout(0.1) is identity in eval mode; training RNG mask omitted.
    # fc2 (lane-padded to 128 classes; pad biases are -1e30) -> log_softmax
    logits = jnp.dot(x.astype(jnp.bfloat16), f2w_ref[...],
                     preferred_element_type=jnp.float32) + f2b_ref[...]
    m = jnp.max(logits, axis=-1, keepdims=True)
    shifted = logits - m
    lse = jnp.log(jnp.sum(jnp.exp(shifted), axis=-1, keepdims=True))
    o_ref[...] = shifted - lse


def pooled_head(cls, pw, pb, f1w, f1b, f2w, f2b):
    B = cls.shape[0]
    vs = pl.BlockSpec(memory_space=pltpu.MemorySpace.VMEM)
    return pl.pallas_call(
        pooled_head_kernel,
        out_shape=jax.ShapeDtypeStruct((B, NUM_CLASSES_PADDED), jnp.float32),
        in_specs=[vs] * 7,
        out_specs=vs,
        compiler_params=pltpu.CompilerParams(vmem_limit_bytes=VMEM_LIMIT_BYTES),
    )(cls, pw, pb, f1w, f1b, f2w, f2b)


# ------------------------------ model wrapper ------------------------------

def bert_arch_forward(params, sent_id, mask):
    B, S = sent_id.shape
    M = B * S

    # embeddings (gather is XLA glue), then LayerNorm in Pallas (bf16 out)
    emb = (params["word_emb"][sent_id]
           + params["pos_emb"][:S][None, :, :]
           + params["type_emb"][0][None, None, :])
    h = layernorm(emb.reshape(M, HIDDEN), params["emb_ln_g"], params["emb_ln_b"])

    bias = ((1.0 - mask.astype(jnp.float32)) * -1e9).reshape(B, 1, S)

    for lp in params["layers"]:
        # fused QKV projection: one 768x2304 matmul
        qkv = linear(h, lp["wqkv"], lp["bqkv"])                  # (M, 2304) bf16
        ctx = attention(qkv.reshape(B, S, 3 * HIDDEN), bias)     # (B, S, 768) bf16
        # attention output projection + residual + LayerNorm, fused
        h = linear_res_ln(ctx.reshape(M, HIDDEN), lp["wo"], lp["bo"],
                          h, lp["ln1_g"], lp["ln1_b"])
        # FFN: matmul+GELU, then matmul + residual + LayerNorm fused
        ffn = linear(h, lp["w1"], lp["b1"], activation="gelu")   # (M, 3072) bf16
        h = linear_res_ln(ffn, lp["w2"], lp["b2"],
                          h, lp["ln2_g"], lp["ln2_b"])

    # BERT pooler + classification head in one fused kernel (lane-dense output)
    cls = h.reshape(B, S, HIDDEN)[:, 0, :]
    logp = pooled_head(cls, params["pool_w"], params["pool_b"],
                       params["fc1_w"], params["fc1_b"],
                       params["fc2_w"], params["fc2_b"])
    return logp[:, :NUM_CLASSES]


# ------------------------------ parameter init -----------------------------

def init_params(key):
    keys = list(jax.random.split(key, 64))
    kit = iter(keys)

    def nrm(shape, dtype=jnp.bfloat16):
        return (0.02 * jax.random.normal(next(kit), shape, jnp.float32)).astype(dtype)

    def zeros(shape):
        return jnp.zeros(shape, jnp.float32)

    def ones(shape):
        return jnp.ones(shape, jnp.float32)

    # fc2 padded to 128 lane-dense classes: zero weight cols / -1e30 bias for pads
    fc2_w = jnp.zeros((FC1_OUT, NUM_CLASSES_PADDED), jnp.float32)
    fc2_w = fc2_w.at[:, :NUM_CLASSES].set(
        0.02 * jax.random.normal(next(kit), (FC1_OUT, NUM_CLASSES), jnp.float32))
    fc2_b = jnp.full((1, NUM_CLASSES_PADDED), -1e30, jnp.float32)
    fc2_b = fc2_b.at[:, :NUM_CLASSES].set(0.0)

    params = {
        "word_emb": nrm((VOCAB, HIDDEN), jnp.float32),
        "pos_emb": nrm((MAX_POS, HIDDEN), jnp.float32),
        "type_emb": nrm((2, HIDDEN), jnp.float32),
        "emb_ln_g": ones((1, HIDDEN)),
        "emb_ln_b": zeros((1, HIDDEN)),
        "layers": [],
        "pool_w": nrm((HIDDEN, HIDDEN)),
        "pool_b": zeros((1, HIDDEN)),
        "fc1_w": nrm((HIDDEN, FC1_OUT)),
        "fc1_b": zeros((1, FC1_OUT)),
        "fc2_w": fc2_w.astype(jnp.bfloat16),
        "fc2_b": fc2_b,
    }
    for _ in range(NUM_LAYERS):
        params["layers"].append({
            "wqkv": nrm((HIDDEN, 3 * HIDDEN)), "bqkv": zeros((1, 3 * HIDDEN)),
            "wo": nrm((HIDDEN, HIDDEN)), "bo": zeros((1, HIDDEN)),
            "ln1_g": ones((1, HIDDEN)), "ln1_b": zeros((1, HIDDEN)),
            "w1": nrm((HIDDEN, INTERMEDIATE)), "b1": zeros((1, INTERMEDIATE)),
            "w2": nrm((INTERMEDIATE, HIDDEN)), "b2": zeros((1, HIDDEN)),
            "ln2_g": ones((1, HIDDEN)), "ln2_b": zeros((1, HIDDEN)),
        })
    return params


if __name__ == "__main__":
    key = jax.random.PRNGKey(0)
    pkey, dkey = jax.random.split(key)
    params = init_params(pkey)

    B, S = 2, 8
    sent_id = jax.random.randint(dkey, (B, S), 0, VOCAB, dtype=jnp.int32)
    mask = jnp.ones((B, S), dtype=jnp.int32)

    out = jax.jit(bert_arch_forward)(params, sent_id, mask)
    out = jax.block_until_ready(out)

    assert out.shape == (B, NUM_CLASSES)
    assert bool(jnp.all(jnp.isfinite(out)))
    # rows of log_softmax must exp-sum to 1
    assert bool(jnp.allclose(jnp.sum(jnp.exp(out), axis=1), 1.0, atol=1e-4))
    print("KERNEL_OK")
</pallas_src>

<mosaic_0001>
module attributes {stable_mosaic.version = 11 : i64} {
  func.func @layernorm_kernel(%arg0: i32, %arg1: memref<16x768xf32, #tpu.memory_space<vmem>>, %arg2: memref<1x768xf32, #tpu.memory_space<vmem>>, %arg3: memref<1x768xf32, #tpu.memory_space<vmem>>, %arg4: memref<16x768xbf16, #tpu.memory_space<vmem>>) attributes {dimension_semantics = [#tpu.dimension_semantics<parallel>], iteration_bounds = array<i64: 1>, scalar_prefetch = 0 : i64, scratch_operands = 0 : i64, tpu.core_type = #tpu.core_type<tc>, window_params = [{transform_indices = @transform_0, window_bounds = array<i64: 16, 768>}, {pipeline_mode = #tpu.pipeline_mode<synchronous>, transform_indices = @transform_1, window_bounds = array<i64: 1, 768>}, {pipeline_mode = #tpu.pipeline_mode<synchronous>, transform_indices = @transform_2, window_bounds = array<i64: 1, 768>}, {transform_indices = @transform_3, window_bounds = array<i64: 16, 768>}]} {
    %c0 = arith.constant 0 : index
    %c0_0 = arith.constant 0 : index
    %0 = vector.load %arg1[%c0, %c0_0] : memref<16x768xf32, #tpu.memory_space<vmem>>, vector<16x768xf32>
    %cst = arith.constant dense<0.000000e+00> : vector<16xf32>
    %1 = vector.multi_reduction <add>, %0, %cst [1] : vector<16x768xf32> to vector<16xf32>
    %2 = vector.shape_cast %1 : vector<16xf32> to vector<16x1xf32>
    %cst_1 = arith.constant 7.680000e+02 : f32
    %3 = vector.broadcast %cst_1 : f32 to vector<16x1xf32>
    %4 = arith.divf %2, %3 : vector<16x1xf32>
    %5 = vector.broadcast %4 : vector<16x1xf32> to vector<16x768xf32>
    %6 = arith.subf %0, %5 : vector<16x768xf32>
    %7 = arith.mulf %6, %6 : vector<16x768xf32>
    %cst_2 = arith.constant dense<0.000000e+00> : vector<16xf32>
    %8 = vector.multi_reduction <add>, %7, %cst_2 [1] : vector<16x768xf32> to vector<16xf32>
    %9 = vector.shape_cast %8 : vector<16xf32> to vector<16x1xf32>
    %cst_3 = arith.constant 7.680000e+02 : f32
    %10 = vector.broadcast %cst_3 : f32 to vector<16x1xf32>
    %11 = arith.divf %9, %10 : vector<16x1xf32>
    %12 = vector.broadcast %4 : vector<16x1xf32> to vector<16x768xf32>
    %13 = arith.subf %0, %12 : vector<16x768xf32>
    %cst_4 = arith.constant 9.99999996E-13 : f32
    %14 = vector.broadcast %cst_4 : f32 to vector<16x1xf32>
    %15 = arith.addf %11, %14 : vector<16x1xf32>
    %16 = math.rsqrt %15 : vector<16x1xf32>
    %17 = vector.broadcast %16 : vector<16x1xf32> to vector<16x768xf32>
    %18 = arith.mulf %13, %17 : vector<16x768xf32>
    %c0_5 = arith.constant 0 : index
    %c0_6 = arith.constant 0 : index
    %19 = vector.load %arg2[%c0_5, %c0_6] : memref<1x768xf32, #tpu.memory_space<vmem>>, vector<1x768xf32>
    %20 = vector.broadcast %19 : vector<1x768xf32> to vector<16x768xf32>
    %21 = arith.mulf %18, %20 : vector<16x768xf32>
    %c0_7 = arith.constant 0 : index
    %c0_8 = arith.constant 0 : index
    %22 = vector.load %arg3[%c0_7, %c0_8] : memref<1x768xf32, #tpu.memory_space<vmem>>, vector<1x768xf32>
    %23 = vector.broadcast %22 : vector<1x768xf32> to vector<16x768xf32>
    %24 = arith.addf %21, %23 : vector<16x768xf32>
    %25 = arith.truncf %24 : vector<16x768xf32> to vector<16x768xbf16>
    %c0_9 = arith.constant 0 : index
    %c0_10 = arith.constant 0 : index
    %26 = vector.load %arg4[%c0_9, %c0_10] : memref<16x768xbf16, #tpu.memory_space<vmem>>, vector<16x768xbf16>
    tpu.vector_store %arg4[%c0_9, %c0_10], %25 {strides = array<i32>} : memref<16x768xbf16, #tpu.memory_space<vmem>>, vector<16x768xbf16>,
    return
  }
  func.func @transform_0(%arg0: i32) -> (i32, i32) {
    %c0_i32 = arith.constant 0 : i32
    %c0_i32_0 = arith.constant 0 : i32
    return %arg0, %c0_i32 : i32, i32
  }
  func.func @transform_1(%arg0: i32) -> (i32, i32) {
    %c0_i32 = arith.constant 0 : i32
    %c0_i32_0 = arith.constant 0 : i32
    %c0_i32_1 = arith.constant 0 : i32
    return %c0_i32, %c0_i32_0 : i32, i32
  }
  func.func @transform_2(%arg0: i32) -> (i32, i32) {
    %c0_i32 = arith.constant 0 : i32
    %c0_i32_0 = arith.constant 0 : i32
    %c0_i32_1 = arith.constant 0 : i32
    return %c0_i32, %c0_i32_0 : i32, i32
  }
  func.func @transform_3(%arg0: i32) -> (i32, i32) {
    %c0_i32 = arith.constant 0 : i32
    %c0_i32_0 = arith.constant 0 : i32
    return %arg0, %c0_i32 : i32, i32
  }
}

module attributes {stable_mosaic.version = 11 : i64} {
  func.func @linear_res_ln_kernel(%arg0: i32, %arg1: i32, %arg2: memref<16x384xbf16, #tpu.memory_space<vmem>>, %arg3: memref<384x768xbf16, #tpu.memory_space<vmem>>, %arg4: memref<1x768xf32, #tpu.memory_space<vmem>>, %arg5: memref<16x768xbf16, #tpu.memory_space<vmem>>, %arg6: memref<1x768xf32, #tpu.memory_space<vmem>>, %arg7: memref<1x768xf32, #tpu.memory_space<vmem>>, %arg8: memref<16x768xbf16, #tpu.memory_space<vmem>>, %arg9: memref<16x768xf32, #tpu.memory_space<vmem>>) attributes {dimension_semantics = [#tpu.dimension_semantics<parallel>, #tpu.dimension_semantics<arbitrary>], iteration_bounds = array<i64: 1, 2>, scalar_prefetch = 0 : i64, scratch_operands = 1 : i64, tpu.core_type = #tpu.core_type<tc>, window_params = [{transform_indices = @transform_0, window_bounds = array<i64: 16, 384>}, {transform_indices = @transform_1, window_bounds = array<i64: 384, 768>}, {pipeline_mode = #tpu.pipeline_mode<synchronous>, transform_indices = @transform_2, window_bounds = array<i64: 1, 768>}, {transform_indices = @transform_3, window_bounds = array<i64: 16, 768>}, {pipeline_mode = #tpu.pipeline_mode<synchronous>, transform_indices = @transform_4, window_bounds = array<i64: 1, 768>}, {pipeline_mode = #tpu.pipeline_mode<synchronous>, transform_indices = @transform_5, window_bounds = array<i64: 1, 768>}, {transform_indices = @transform_6, window_bounds = array<i64: 16, 768>}]} {
    %c0_i32 = arith.constant 0 : i32
    %0 = arith.cmpi eq, %arg1, %c0_i32 : i32
    %1 = arith.extui %0 : i1 to i32
    %c0_i32_0 = arith.constant 0 : i32
    %2 = arith.cmpi ne, %1, %c0_i32_0 : i32
    scf.if %2 {
      %cst_9 = arith.constant 0.000000e+00 : f32
      %12 = vector.broadcast %cst_9 : f32 to vector<16x768xf32>
      %c0_10 = arith.constant 0 : index
      %c0_11 = arith.constant 0 : index
      %13 = vector.load %arg9[%c0_10, %c0_11] : memref<16x768xf32, #tpu.memory_space<vmem>>, vector<16x768xf32>
      tpu.vector_store %arg9[%c0_10, %c0_11], %12 {strides = array<i32>} : memref<16x768xf32, #tpu.memory_space<vmem>>, vector<16x768xf32>,
    } else {
    }
    %c0 = arith.constant 0 : index
    %c0_1 = arith.constant 0 : index
    %3 = vector.load %arg9[%c0, %c0_1] : memref<16x768xf32, #tpu.memory_space<vmem>>, vector<16x768xf32>
    %c0_2 = arith.constant 0 : index
    %c0_3 = arith.constant 0 : index
    %4 = vector.load %arg2[%c0_2, %c0_3] : memref<16x384xbf16, #tpu.memory_space<vmem>>, vector<16x384xbf16>
    %c0_4 = arith.constant 0 : index
    %c0_5 = arith.constant 0 : index
    %5 = vector.load %arg3[%c0_4, %c0_5] : memref<384x768xbf16, #tpu.memory_space<vmem>>, vector<384x768xbf16>
    %cst = arith.constant dense<0.000000e+00> : vector<16x768xf32>
    %6 = tpu.matmul %4, %5, %cst {dimension_numbers = #tpu.dot_dimension_numbers<[1], [0], [0], [1], [0, 0, 1, 1], [], []>} : vector<16x384xbf16>, vector<384x768xbf16>, vector<16x768xf32> -> vector<16x768xf32>
    %7 = arith.addf %3, %6 : vector<16x768xf32>
    %c0_6 = arith.constant 0 : index
    %c0_7 = arith.constant 0 : index
    %8 = vector.load %arg9[%c0_6, %c0_7] : memref<16x768xf32, #tpu.memory_space<vmem>>, vector<16x768xf32>
    tpu.vector_store %arg9[%c0_6, %c0_7], %7 {strides = array<i32>} : memref<16x768xf32, #tpu.memory_space<vmem>>, vector<16x768xf32>,
    %c1_i32 = arith.constant 1 : i32
    %9 = arith.cmpi eq, %arg1, %c1_i32 : i32
    %10 = arith.extui %9 : i1 to i32
    %c0_i32_8 = arith.constant 0 : i32
    %11 = arith.cmpi ne, %10, %c0_i32_8 : i32
    scf.if %11 {
      %c0_9 = arith.constant 0 : index
      %c0_10 = arith.constant 0 : index
      %12 = vector.load %arg9[%c0_9, %c0_10] : memref<16x768xf32, #tpu.memory_space<vmem>>, vector<16x768xf32>
      %c0_11 = arith.constant 0 : index
      %c0_12 = arith.constant 0 : index
      %13 = vector.load %arg4[%c0_11, %c0_12] : memref<1x768xf32, #tpu.memory_space<vmem>>, vector<1x768xf32>
      %14 = vector.broadcast %13 : vector<1x768xf32> to vector<16x768xf32>
      %15 = arith.addf %12, %14 : vector<16x768xf32>
      %c0_13 = arith.constant 0 : index
      %c0_14 = arith.constant 0 : index
      %16 = vector.load %arg5[%c0_13, %c0_14] : memref<16x768xbf16, #tpu.memory_space<vmem>>, vector<16x768xbf16>
      %17 = arith.extf %16 : vector<16x768xbf16> to vector<16x768xf32>
      %18 = arith.addf %15, %17 : vector<16x768xf32>
      %cst_15 = arith.constant dense<0.000000e+00> : vector<16xf32>
      %19 = vector.multi_reduction <add>, %18, %cst_15 [1] : vector<16x768xf32> to vector<16xf32>
      %20 = vector.shape_cast %19 : vector<16xf32> to vector<16x1xf32>
      %cst_16 = arith.constant 7.680000e+02 : f32
      %21 = vector.broadcast %cst_16 : f32 to vector<16x1xf32>
      %22 = arith.divf %20, %21 : vector<16x1xf32>
      %23 = vector.broadcast %22 : vector<16x1xf32> to vector<16x768xf32>
      %24 = arith.subf %18, %23 : vector<16x768xf32>
      %25 = arith.mulf %24, %24 : vector<16x768xf32>
      %cst_17 = arith.constant dense<0.000000e+00> : vector<16xf32>
      %26 = vector.multi_reduction <add>, %25, %cst_17 [1] : vector<16x768xf32> to vector<16xf32>
      %27 = vector.shape_cast %26 : vector<16xf32> to vector<16x1xf32>
      %cst_18 = arith.constant 7.680000e+02 : f32
      %28 = vector.broadcast %cst_18 : f32 to vector<16x1xf32>
      %29 = arith.divf %27, %28 : vector<16x1xf32>
      %30 = vector.broadcast %22 : vector<16x1xf32> to vector<16x768xf32>
      %31 = arith.subf %18, %30 : vector<16x768xf32>
      %cst_19 = arith.constant 9.99999996E-13 : f32
      %32 = vector.broadcast %cst_19 : f32 to vector<16x1xf32>
      %33 = arith.addf %29, %32 : vector<16x1xf32>
      %34 = math.rsqrt %33 : vector<16x1xf32>
      %35 = vector.broadcast %34 : vector<16x1xf32> to vector<16x768xf32>
      %36 = arith.mulf %31, %35 : vector<16x768xf32>
      %c0_20 = arith.constant 0 : index
      %c0_21 = arith.constant 0 : index
      %37 = vector.load %arg6[%c0_20, %c0_21] : memref<1x768xf32, #tpu.memory_space<vmem>>, vector<1x768xf32>
      %38 = vector.broadcast %37 : vector<1x768xf32> to vector<16x768xf32>
      %39 = arith.mulf %36, %38 : vector<16x768xf32>
      %c0_22 = arith.constant 0 : index
      %c0_23 = arith.constant 0 : index
      %40 = vector.load %arg7[%c0_22, %c0_23] : memref<1x768xf32, #tpu.memory_space<vmem>>, vector<1x768xf32>
      %41 = vector.broadcast %40 : vector<1x768xf32> to vector<16x768xf32>
      %42 = arith.addf %39, %41 : vector<16x768xf32>
      %43 = arith.truncf %42 : vector<16x768xf32> to vector<16x768xbf16>
      %c0_24 = arith.constant 0 : index
      %c0_25 = arith.constant 0 : index
      %44 = vector.load %arg8[%c0_24, %c0_25] : memref<16x768xbf16, #tpu.memory_space<vmem>>, vector<16x768xbf16>
      tpu.vector_store %arg8[%c0_24, %c0_25], %43 {strides = array<i32>} : memref<16x768xbf16, #tpu.memory_space<vmem>>, vector<16x768xbf16>,
    } else {
    }
    return
  }
  func.func @transform_0(%arg0: i32, %arg1: i32) -> (i32, i32) {
    %c0_i32 = arith.constant 0 : i32
    return %arg0, %arg1 : i32, i32
  }
  func.func @transform_1(%arg0: i32, %arg1: i32) -> (i32, i32) {
    %c0_i32 = arith.constant 0 : i32
    %c0_i32_0 = arith.constant 0 : i32
    return %arg1, %c0_i32 : i32, i32
  }
  func.func @transform_2(%arg0: i32, %arg1: i32) -> (i32, i32) {
    %c0_i32 = arith.constant 0 : i32
    %c0_i32_0 = arith.constant 0 : i32
    %c0_i32_1 = arith.constant 0 : i32
    return %c0_i32, %c0_i32_0 : i32, i32
  }
  func.func @transform_3(%arg0: i32, %arg1: i32) -> (i32, i32) {
    %c0_i32 = arith.constant 0 : i32
    %c0_i32_0 = arith.constant 0 : i32
    return %arg0, %c0_i32 : i32, i32
  }
  func.func @transform_4(%arg0: i32, %arg1: i32) -> (i32, i32) {
    %c0_i32 = arith.constant 0 : i32
    %c0_i32_0 = arith.constant 0 : i32
    %c0_i32_1 = arith.constant 0 : i32
    return %c0_i32, %c0_i32_0 : i32, i32
  }
  func.func @transform_5(%arg0: i32, %arg1: i32) -> (i32, i32) {
    %c0_i32 = arith.constant 0 : i32
    %c0_i32_0 = arith.constant 0 : i32
    %c0_i32_1 = arith.constant 0 : i32
    return %c0_i32, %c0_i32_0 : i32, i32
  }
  func.func @transform_6(%arg0: i32, %arg1: i32) -> (i32, i32) {
    %c0_i32 = arith.constant 0 : i32
    %c0_i32_0 = arith.constant 0 : i32
    return %arg0, %c0_i32 : i32, i32
  }
}

module attributes {stable_mosaic.version = 11 : i64} {
  func.func @linear_kernel(%arg0: i32, %arg1: i32, %arg2: i32, %arg3: memref<16x384xbf16, #tpu.memory_space<vmem>>, %arg4: memref<384x384xbf16, #tpu.memory_space<vmem>>, %arg5: memref<1x384xf32, #tpu.memory_space<vmem>>, %arg6: memref<16x384xbf16, #tpu.memory_space<vmem>>, %arg7: memref<16x384xf32, #tpu.memory_space<vmem>>) attributes {dimension_semantics = [#tpu.dimension_semantics<parallel>, #tpu.dimension_semantics<parallel>, #tpu.dimension_semantics<arbitrary>], iteration_bounds = array<i64: 1, 6, 2>, scalar_prefetch = 0 : i64, scratch_operands = 1 : i64, tpu.core_type = #tpu.core_type<tc>, window_params = [{transform_indices = @transform_0, window_bounds = array<i64: 16, 384>}, {transform_indices = @transform_1, window_bounds = array<i64: 384, 384>}, {transform_indices = @transform_2, window_bounds = array<i64: 1, 384>}, {transform_indices = @transform_3, window_bounds = array<i64: 16, 384>}]} {
    %c0_i32 = arith.constant 0 : i32
    %0 = arith.cmpi eq, %arg2, %c0_i32 : i32
    %1 = arith.extui %0 : i1 to i32
    %c0_i32_0 = arith.constant 0 : i32
    %2 = arith.cmpi ne, %1, %c0_i32_0 : i32
    scf.if %2 {
      %cst_9 = arith.constant 0.000000e+00 : f32
      %12 = vector.broadcast %cst_9 : f32 to vector<16x384xf32>
      %c0_10 = arith.constant 0 : index
      %c0_11 = arith.constant 0 : index
      %13 = vector.load %arg7[%c0_10, %c0_11] : memref<16x384xf32, #tpu.memory_space<vmem>>, vector<16x384xf32>
      tpu.vector_store %arg7[%c0_10, %c0_11], %12 {strides = array<i32>} : memref<16x384xf32, #tpu.memory_space<vmem>>, vector<16x384xf32>,
    } else {
    }
    %c0 = arith.constant 0 : index
    %c0_1 = arith.constant 0 : index
    %3 = vector.load %arg7[%c0, %c0_1] : memref<16x384xf32, #tpu.memory_space<vmem>>, vector<16x384xf32>
    %c0_2 = arith.constant 0 : index
    %c0_3 = arith.constant 0 : index
    %4 = vector.load %arg3[%c0_2, %c0_3] : memref<16x384xbf16, #tpu.memory_space<vmem>>, vector<16x384xbf16>
    %c0_4 = arith.constant 0 : index
    %c0_5 = arith.constant 0 : index
    %5 = vector.load %arg4[%c0_4, %c0_5] : memref<384x384xbf16, #tpu.memory_space<vmem>>, vector<384x384xbf16>
    %cst = arith.constant dense<0.000000e+00> : vector<16x384xf32>
    %6 = tpu.matmul %4, %5, %cst {dimension_numbers = #tpu.dot_dimension_numbers<[1], [0], [0], [1], [0, 0, 1, 1], [], []>} : vector<16x384xbf16>, vector<384x384xbf16>, vector<16x384xf32> -> vector<16x384xf32>
    %7 = arith.addf %3, %6 : vector<16x384xf32>
    %c0_6 = arith.constant 0 : index
    %c0_7 = arith.constant 0 : index
    %8 = vector.load %arg7[%c0_6, %c0_7] : memref<16x384xf32, #tpu.memory_space<vmem>>, vector<16x384xf32>
    tpu.vector_store %arg7[%c0_6, %c0_7], %7 {strides = array<i32>} : memref<16x384xf32, #tpu.memory_space<vmem>>, vector<16x384xf32>,
    %c1_i32 = arith.constant 1 : i32
    %9 = arith.cmpi eq, %arg2, %c1_i32 : i32
    %10 = arith.extui %9 : i1 to i32
    %c0_i32_8 = arith.constant 0 : i32
    %11 = arith.cmpi ne, %10, %c0_i32_8 : i32
    scf.if %11 {
      %c0_9 = arith.constant 0 : index
      %c0_10 = arith.constant 0 : index
      %12 = vector.load %arg7[%c0_9, %c0_10] : memref<16x384xf32, #tpu.memory_space<vmem>>, vector<16x384xf32>
      %c0_11 = arith.constant 0 : index
      %c0_12 = arith.constant 0 : index
      %13 = vector.load %arg5[%c0_11, %c0_12] : memref<1x384xf32, #tpu.memory_space<vmem>>, vector<1x384xf32>
      %14 = vector.broadcast %13 : vector<1x384xf32> to vector<16x384xf32>
      %15 = arith.addf %12, %14 : vector<16x384xf32>
      %16 = arith.truncf %15 : vector<16x384xf32> to vector<16x384xbf16>
      %c0_13 = arith.constant 0 : index
      %c0_14 = arith.constant 0 : index
      %17 = vector.load %arg6[%c0_13, %c0_14] : memref<16x384xbf16, #tpu.memory_space<vmem>>, vector<16x384xbf16>
      tpu.vector_store %arg6[%c0_13, %c0_14], %16 {strides = array<i32>} : memref<16x384xbf16, #tpu.memory_space<vmem>>, vector<16x384xbf16>,
    } else {
    }
    return
  }
  func.func @transform_0(%arg0: i32, %arg1: i32, %arg2: i32) -> (i32, i32) {
    %c0_i32 = arith.constant 0 : i32
    return %arg0, %arg2 : i32, i32
  }
  func.func @transform_1(%arg0: i32, %arg1: i32, %arg2: i32) -> (i32, i32) {
    %c0_i32 = arith.constant 0 : i32
    return %arg2, %arg1 : i32, i32
  }
  func.func @transform_2(%arg0: i32, %arg1: i32, %arg2: i32) -> (i32, i32) {
    %c0_i32 = arith.constant 0 : i32
    %c0_i32_0 = arith.constant 0 : i32
    return %c0_i32, %arg1 : i32, i32
  }
  func.func @transform_3(%arg0: i32, %arg1: i32, %arg2: i32) -> (i32, i32) {
    %c0_i32 = arith.constant 0 : i32
    return %arg0, %arg1 : i32, i32
  }
}

module attributes {stable_mosaic.version = 11 : i64} {
  func.func @attention_kernel(%arg0: i32, %arg1: i32, %arg2: memref<1x8x128xbf16, #tpu.memory_space<vmem>>, %arg3: memref<1x8x128xbf16, #tpu.memory_space<vmem>>, %arg4: memref<1x8x128xbf16, #tpu.memory_space<vmem>>, %arg5: memref<1x1x8xf32, #tpu.memory_space<vmem>>, %arg6: memref<1x8x128xbf16, #tpu.memory_space<vmem>>) attributes {dimension_semantics = [#tpu.dimension_semantics<parallel>, #tpu.dimension_semantics<parallel>], iteration_bounds = array<i64: 2, 6>, scalar_prefetch = 0 : i64, scratch_operands = 0 : i64, tpu.core_type = #tpu.core_type<tc>, window_params = [{transform_indices = @transform_0, window_bounds = array<i64: 1, 8, 128>}, {transform_indices = @transform_1, window_bounds = array<i64: 1, 8, 128>}, {transform_indices = @transform_2, window_bounds = array<i64: 1, 8, 128>}, {transform_indices = @transform_3, window_bounds = array<i64: 1, 1, 8>}, {transform_indices = @transform_4, window_bounds = array<i64: 1, 8, 128>}]} {
    %c0 = arith.constant 0 : index
    %c0_0 = arith.constant 0 : index
    %c0_1 = arith.constant 0 : index
    %0 = vector.load %arg2[%c0, %c0_0, %c0_1] : memref<1x8x128xbf16, #tpu.memory_space<vmem>>, vector<1x8x128xbf16>
    %1 = vector.shape_cast %0 : vector<1x8x128xbf16> to vector<8x128xbf16>
    %2 = arith.extf %1 : vector<8x128xbf16> to vector<8x128xf32>
    %c0_2 = arith.constant 0 : index
    %c0_3 = arith.constant 0 : index
    %c0_4 = arith.constant 0 : index
    %3 = vector.load %arg3[%c0_2, %c0_3, %c0_4] : memref<1x8x128xbf16, #tpu.memory_space<vmem>>, vector<1x8x128xbf16>
    %4 = vector.shape_cast %3 : vector<1x8x128xbf16> to vector<8x128xbf16>
    %5 = arith.extf %4 : vector<8x128xbf16> to vector<8x128xf32>
    %c0_5 = arith.constant 0 : index
    %c0_6 = arith.constant 0 : index
    %c0_7 = arith.constant 0 : index
    %6 = vector.load %arg4[%c0_5, %c0_6, %c0_7] : memref<1x8x128xbf16, #tpu.memory_space<vmem>>, vector<1x8x128xbf16>
    %7 = vector.shape_cast %6 : vector<1x8x128xbf16> to vector<8x128xbf16>
    %c0_8 = arith.constant 0 : index
    %c0_9 = arith.constant 0 : index
    %c0_10 = arith.constant 0 : index
    %8 = vector.load %arg5[%c0_8, %c0_9, %c0_10] : memref<1x1x8xf32, #tpu.memory_space<vmem>>, vector<1x1x8xf32>
    %9 = vector.shape_cast %8 : vector<1x1x8xf32> to vector<1x8xf32>
    %10 = vector.extract_strided_slice %2 {offsets = [0, 0], sizes = [8, 64], strides = [1, 1]} : vector<8x128xf32> to vector<8x64xf32>
    %11 = vector.extract_strided_slice %5 {offsets = [0, 0], sizes = [8, 64], strides = [1, 1]} : vector<8x128xf32> to vector<8x64xf32>
    %12 = vector.extract_strided_slice %7 {offsets = [0, 0], sizes = [8, 64], strides = [1, 1]} : vector<8x128xbf16> to vector<8x64xbf16>
    %cst = arith.constant dense<0.000000e+00> : vector<8x8xf32>
    %13 = tpu.matmul %10, %11, %cst {dimension_numbers = #tpu.dot_dimension_numbers<[1], [1], [0], [0], [0, 0, 1, 0], [], []>} : vector<8x64xf32>, vector<8x64xf32>, vector<8x8xf32> -> vector<8x8xf32>
    %cst_11 = arith.constant 1.250000e-01 : f32
    %14 = vector.broadcast %cst_11 : f32 to vector<8x8xf32>
    %15 = arith.mulf %13, %14 : vector<8x8xf32>
    %16 = vector.broadcast %9 : vector<1x8xf32> to vector<8x8xf32>
    %17 = arith.addf %15, %16 : vector<8x8xf32>
    %cst_12 = arith.constant dense<0xFF800000> : vector<8xf32>
    %18 = vector.multi_reduction <maximumf>, %17, %cst_12 [1] : vector<8x8xf32> to vector<8xf32>
    %19 = vector.shape_cast %18 : vector<8xf32> to vector<8x1xf32>
    %20 = vector.broadcast %19 : vector<8x1xf32> to vector<8x8xf32>
    %21 = arith.subf %17, %20 : vector<8x8xf32>
    %22 = math.exp %21 : vector<8x8xf32>
    %cst_13 = arith.constant dense<0.000000e+00> : vector<8xf32>
    %23 = vector.multi_reduction <add>, %22, %cst_13 [1] : vector<8x8xf32> to vector<8xf32>
    %24 = vector.shape_cast %23 : vector<8xf32> to vector<8x1xf32>
    %25 = vector.broadcast %24 : vector<8x1xf32> to vector<8x8xf32>
    %26 = arith.divf %22, %25 : vector<8x8xf32>
    %27 = arith.truncf %26 : vector<8x8xf32> to vector<8x8xbf16>
    %cst_14 = arith.constant dense<0.000000e+00> : vector<8x64xf32>
    %28 = tpu.matmul %27, %12, %cst_14 {dimension_numbers = #tpu.dot_dimension_numbers<[1], [0], [0], [1], [0, 0, 1, 1], [], []>} : vector<8x8xbf16>, vector<8x64xbf16>, vector<8x64xf32> -> vector<8x64xf32>
    %29 = vector.extract_strided_slice %2 {offsets = [0, 64], sizes = [8, 64], strides = [1, 1]} : vector<8x128xf32> to vector<8x64xf32>
    %30 = vector.extract_strided_slice %5 {offsets = [0, 64], sizes = [8, 64], strides = [1, 1]} : vector<8x128xf32> to vector<8x64xf32>
    %31 = vector.extract_strided_slice %7 {offsets = [0, 64], sizes = [8, 64], strides = [1, 1]} : vector<8x128xbf16> to vector<8x64xbf16>
    %cst_15 = arith.constant dense<0.000000e+00> : vector<8x8xf32>
    %32 = tpu.matmul %29, %30, %cst_15 {dimension_numbers = #tpu.dot_dimension_numbers<[1], [1], [0], [0], [0, 0, 1, 0], [], []>} : vector<8x64xf32>, vector<8x64xf32>, vector<8x8xf32> -> vector<8x8xf32>
    %cst_16 = arith.constant 1.250000e-01 : f32
    %33 = vector.broadcast %cst_16 : f32 to vector<8x8xf32>
    %34 = arith.mulf %32, %33 : vector<8x8xf32>
    %35 = vector.broadcast %9 : vector<1x8xf32> to vector<8x8xf32>
    %36 = arith.addf %34, %35 : vector<8x8xf32>
    %cst_17 = arith.constant dense<0xFF800000> : vector<8xf32>
    %37 = vector.multi_reduction <maximumf>, %36, %cst_17 [1] : vector<8x8xf32> to vector<8xf32>
    %38 = vector.shape_cast %37 : vector<8xf32> to vector<8x1xf32>
    %39 = vector.broadcast %38 : vector<8x1xf32> to vector<8x8xf32>
    %40 = arith.subf %36, %39 : vector<8x8xf32>
    %41 = math.exp %40 : vector<8x8xf32>
    %cst_18 = arith.constant dense<0.000000e+00> : vector<8xf32>
    %42 = vector.multi_reduction <add>, %41, %cst_18 [1] : vector<8x8xf32> to vector<8xf32>
    %43 = vector.shape_cast %42 : vector<8xf32> to vector<8x1xf32>
    %44 = vector.broadcast %43 : vector<8x1xf32> to vector<8x8xf32>
    %45 = arith.divf %41, %44 : vector<8x8xf32>
    %46 = arith.truncf %45 : vector<8x8xf32> to vector<8x8xbf16>
    %cst_19 = arith.constant dense<0.000000e+00> : vector<8x64xf32>
    %47 = tpu.matmul %46, %31, %cst_19 {dimension_numbers = #tpu.dot_dimension_numbers<[1], [0], [0], [1], [0, 0, 1, 1], [], []>} : vector<8x8xbf16>, vector<8x64xbf16>, vector<8x64xf32> -> vector<8x64xf32>
    %48 = tpu.concatenate %28, %47 in 1 : vector<8x64xf32>, vector<8x64xf32> -> vector<8x128xf32>
    %49 = arith.truncf %48 : vector<8x128xf32> to vector<8x128xbf16>
    %c0_20 = arith.constant 0 : index
    %c0_21 = arith.constant 0 : index
    %c0_22 = arith.constant 0 : index
    %50 = vector.load %arg6[%c0_20, %c0_21, %c0_22] : memref<1x8x128xbf16, #tpu.memory_space<vmem>>, vector<1x8x128xbf16>
    %51 = vector.shape_cast %50 : vector<1x8x128xbf16> to vector<8x128xbf16>
    %52 = vector.shape_cast %49 : vector<8x128xbf16> to vector<1x8x128xbf16>
    tpu.vector_store %arg6[%c0_20, %c0_21, %c0_22], %52 {strides = array<i32>} : memref<1x8x128xbf16, #tpu.memory_space<vmem>>, vector<1x8x128xbf16>,
    return
  }
  func.func @transform_0(%arg0: i32, %arg1: i32) -> (i32, i32, i32) {
    %c0_i32 = arith.constant 0 : i32
    %0 = arith.addi %c0_i32, %arg1 : i32
    %c0_i32_0 = arith.constant 0 : i32
    %c0_i32_1 = arith.constant 0 : i32
    return %arg0, %c0_i32_0, %0 : i32, i32, i32
  }
  func.func @transform_1(%arg0: i32, %arg1: i32) -> (i32, i32, i32) {
    %c6_i32 = arith.constant 6 : i32
    %0 = arith.addi %c6_i32, %arg1 : i32
    %c0_i32 = arith.constant 0 : i32
    %c0_i32_0 = arith.constant 0 : i32
    return %arg0, %c0_i32, %0 : i32, i32, i32
  }
  func.func @transform_2(%arg0: i32, %arg1: i32) -> (i32, i32, i32) {
    %c12_i32 = arith.constant 12 : i32
    %0 = arith.addi %c12_i32, %arg1 : i32
    %c0_i32 = arith.constant 0 : i32
    %c0_i32_0 = arith.constant 0 : i32
    return %arg0, %c0_i32, %0 : i32, i32, i32
  }
  func.func @transform_3(%arg0: i32, %arg1: i32) -> (i32, i32, i32) {
    %c0_i32 = arith.constant 0 : i32
    %c0_i32_0 = arith.constant 0 : i32
    %c0_i32_1 = arith.constant 0 : i32
    return %arg0, %c0_i32, %c0_i32_0 : i32, i32, i32
  }
  func.func @transform_4(%arg0: i32, %arg1: i32) -> (i32, i32, i32) {
    %c0_i32 = arith.constant 0 : i32
    %c0_i32_0 = arith.constant 0 : i32
    return %arg0, %c0_i32, %arg1 : i32, i32, i32
  }
}

module attributes {stable_mosaic.version = 11 : i64} {
  func.func @linear_kernel(%arg0: i32, %arg1: i32, %arg2: i32, %arg3: memref<16x384xbf16, #tpu.memory_space<vmem>>, %arg4: memref<384x512xbf16, #tpu.memory_space<vmem>>, %arg5: memref<1x512xf32, #tpu.memory_space<vmem>>, %arg6: memref<16x512xbf16, #tpu.memory_space<vmem>>, %arg7: memref<16x512xf32, #tpu.memory_space<vmem>>) attributes {dimension_semantics = [#tpu.dimension_semantics<parallel>, #tpu.dimension_semantics<parallel>, #tpu.dimension_semantics<arbitrary>], iteration_bounds = array<i64: 1, 6, 2>, scalar_prefetch = 0 : i64, scratch_operands = 1 : i64, tpu.core_type = #tpu.core_type<tc>, window_params = [{transform_indices = @transform_0, window_bounds = array<i64: 16, 384>}, {transform_indices = @transform_1, window_bounds = array<i64: 384, 512>}, {transform_indices = @transform_2, window_bounds = array<i64: 1, 512>}, {transform_indices = @transform_3, window_bounds = array<i64: 16, 512>}]} {
    %c0_i32 = arith.constant 0 : i32
    %0 = arith.cmpi eq, %arg2, %c0_i32 : i32
    %1 = arith.extui %0 : i1 to i32
    %c0_i32_0 = arith.constant 0 : i32
    %2 = arith.cmpi ne, %1, %c0_i32_0 : i32
    scf.if %2 {
      %cst_9 = arith.constant 0.000000e+00 : f32
      %12 = vector.broadcast %cst_9 : f32 to vector<16x512xf32>
      %c0_10 = arith.constant 0 : index
      %c0_11 = arith.constant 0 : index
      %13 = vector.load %arg7[%c0_10, %c0_11] : memref<16x512xf32, #tpu.memory_space<vmem>>, vector<16x512xf32>
      tpu.vector_store %arg7[%c0_10, %c0_11], %12 {strides = array<i32>} : memref<16x512xf32, #tpu.memory_space<vmem>>, vector<16x512xf32>,
    } else {
    }
    %c0 = arith.constant 0 : index
    %c0_1 = arith.constant 0 : index
    %3 = vector.load %arg7[%c0, %c0_1] : memref<16x512xf32, #tpu.memory_space<vmem>>, vector<16x512xf32>
    %c0_2 = arith.constant 0 : index
    %c0_3 = arith.constant 0 : index
    %4 = vector.load %arg3[%c0_2, %c0_3] : memref<16x384xbf16, #tpu.memory_space<vmem>>, vector<16x384xbf16>
    %c0_4 = arith.constant 0 : index
    %c0_5 = arith.constant 0 : index
    %5 = vector.load %arg4[%c0_4, %c0_5] : memref<384x512xbf16, #tpu.memory_space<vmem>>, vector<384x512xbf16>
    %cst = arith.constant dense<0.000000e+00> : vector<16x512xf32>
    %6 = tpu.matmul %4, %5, %cst {dimension_numbers = #tpu.dot_dimension_numbers<[1], [0], [0], [1], [0, 0, 1, 1], [], []>} : vector<16x384xbf16>, vector<384x512xbf16>, vector<16x512xf32> -> vector<16x512xf32>
    %7 = arith.addf %3, %6 : vector<16x512xf32>
    %c0_6 = arith.constant 0 : index
    %c0_7 = arith.constant 0 : index
    %8 = vector.load %arg7[%c0_6, %c0_7] : memref<16x512xf32, #tpu.memory_space<vmem>>, vector<16x512xf32>
    tpu.vector_store %arg7[%c0_6, %c0_7], %7 {strides = array<i32>} : memref<16x512xf32, #tpu.memory_space<vmem>>, vector<16x512xf32>,
    %c1_i32 = arith.constant 1 : i32
    %9 = arith.cmpi eq, %arg2, %c1_i32 : i32
    %10 = arith.extui %9 : i1 to i32
    %c0_i32_8 = arith.constant 0 : i32
    %11 = arith.cmpi ne, %10, %c0_i32_8 : i32
    scf.if %11 {
      %c0_9 = arith.constant 0 : index
      %c0_10 = arith.constant 0 : index
      %12 = vector.load %arg7[%c0_9, %c0_10] : memref<16x512xf32, #tpu.memory_space<vmem>>, vector<16x512xf32>
      %c0_11 = arith.constant 0 : index
      %c0_12 = arith.constant 0 : index
      %13 = vector.load %arg5[%c0_11, %c0_12] : memref<1x512xf32, #tpu.memory_space<vmem>>, vector<1x512xf32>
      %14 = vector.broadcast %13 : vector<1x512xf32> to vector<16x512xf32>
      %15 = arith.addf %12, %14 : vector<16x512xf32>
      %cst_13 = arith.constant 5.000000e-01 : f32
      %16 = vector.broadcast %cst_13 : f32 to vector<16x512xf32>
      %17 = arith.mulf %16, %15 : vector<16x512xf32>
      %cst_14 = arith.constant 4.471500e-02 : f32
      %18 = vector.broadcast %cst_14 : f32 to vector<16x512xf32>
      %19 = arith.mulf %18, %15 : vector<16x512xf32>
      %20 = arith.mulf %19, %15 : vector<16x512xf32>
      %21 = arith.mulf %20, %15 : vector<16x512xf32>
      %22 = arith.addf %15, %21 : vector<16x512xf32>
      %cst_15 = arith.constant 0.797884583 : f32
      %23 = vector.broadcast %cst_15 : f32 to vector<16x512xf32>
      %24 = arith.mulf %23, %22 : vector<16x512xf32>
      %25 = math.tanh %24 : vector<16x512xf32>
      %cst_16 = arith.constant 1.000000e+00 : f32
      %26 = vector.broadcast %cst_16 : f32 to vector<16x512xf32>
      %27 = arith.addf %26, %25 : vector<16x512xf32>
      %28 = arith.mulf %17, %27 : vector<16x512xf32>
      %29 = arith.truncf %28 : vector<16x512xf32> to vector<16x512xbf16>
      %c0_17 = arith.constant 0 : index
      %c0_18 = arith.constant 0 : index
      %30 = vector.load %arg6[%c0_17, %c0_18] : memref<16x512xbf16, #tpu.memory_space<vmem>>, vector<16x512xbf16>
      tpu.vector_store %arg6[%c0_17, %c0_18], %29 {strides = array<i32>} : memref<16x512xbf16, #tpu.memory_space<vmem>>, vector<16x512xbf16>,
    } else {
    }
    return
  }
  func.func @transform_0(%arg0: i32, %arg1: i32, %arg2: i32) -> (i32, i32) {
    %c0_i32 = arith.constant 0 : i32
    return %arg0, %arg2 : i32, i32
  }
  func.func @transform_1(%arg0: i32, %arg1: i32, %arg2: i32) -> (i32, i32) {
    %c0_i32 = arith.constant 0 : i32
    return %arg2, %arg1 : i32, i32
  }
  func.func @transform_2(%arg0: i32, %arg1: i32, %arg2: i32) -> (i32, i32) {
    %c0_i32 = arith.constant 0 : i32
    %c0_i32_0 = arith.constant 0 : i32
    return %c0_i32, %arg1 : i32, i32
  }
  func.func @transform_3(%arg0: i32, %arg1: i32, %arg2: i32) -> (i32, i32) {
    %c0_i32 = arith.constant 0 : i32
    return %arg0, %arg1 : i32, i32
  }
}

module attributes {stable_mosaic.version = 11 : i64} {
  func.func @linear_res_ln_kernel(%arg0: i32, %arg1: i32, %arg2: memref<16x512xbf16, #tpu.memory_space<vmem>>, %arg3: memref<512x768xbf16, #tpu.memory_space<vmem>>, %arg4: memref<1x768xf32, #tpu.memory_space<vmem>>, %arg5: memref<16x768xbf16, #tpu.memory_space<vmem>>, %arg6: memref<1x768xf32, #tpu.memory_space<vmem>>, %arg7: memref<1x768xf32, #tpu.memory_space<vmem>>, %arg8: memref<16x768xbf16, #tpu.memory_space<vmem>>, %arg9: memref<16x768xf32, #tpu.memory_space<vmem>>) attributes {dimension_semantics = [#tpu.dimension_semantics<parallel>, #tpu.dimension_semantics<arbitrary>], iteration_bounds = array<i64: 1, 6>, scalar_prefetch = 0 : i64, scratch_operands = 1 : i64, tpu.core_type = #tpu.core_type<tc>, window_params = [{transform_indices = @transform_0, window_bounds = array<i64: 16, 512>}, {transform_indices = @transform_1, window_bounds = array<i64: 512, 768>}, {pipeline_mode = #tpu.pipeline_mode<synchronous>, transform_indices = @transform_2, window_bounds = array<i64: 1, 768>}, {transform_indices = @transform_3, window_bounds = array<i64: 16, 768>}, {pipeline_mode = #tpu.pipeline_mode<synchronous>, transform_indices = @transform_4, window_bounds = array<i64: 1, 768>}, {pipeline_mode = #tpu.pipeline_mode<synchronous>, transform_indices = @transform_5, window_bounds = array<i64: 1, 768>}, {transform_indices = @transform_6, window_bounds = array<i64: 16, 768>}]} {
    %c0_i32 = arith.constant 0 : i32
    %0 = arith.cmpi eq, %arg1, %c0_i32 : i32
    %1 = arith.extui %0 : i1 to i32
    %c0_i32_0 = arith.constant 0 : i32
    %2 = arith.cmpi ne, %1, %c0_i32_0 : i32
    scf.if %2 {
      %cst_9 = arith.constant 0.000000e+00 : f32
      %12 = vector.broadcast %cst_9 : f32 to vector<16x768xf32>
      %c0_10 = arith.constant 0 : index
      %c0_11 = arith.constant 0 : index
      %13 = vector.load %arg9[%c0_10, %c0_11] : memref<16x768xf32, #tpu.memory_space<vmem>>, vector<16x768xf32>
      tpu.vector_store %arg9[%c0_10, %c0_11], %12 {strides = array<i32>} : memref<16x768xf32, #tpu.memory_space<vmem>>, vector<16x768xf32>,
    } else {
    }
    %c0 = arith.constant 0 : index
    %c0_1 = arith.constant 0 : index
    %3 = vector.load %arg9[%c0, %c0_1] : memref<16x768xf32, #tpu.memory_space<vmem>>, vector<16x768xf32>
    %c0_2 = arith.constant 0 : index
    %c0_3 = arith.constant 0 : index
    %4 = vector.load %arg2[%c0_2, %c0_3] : memref<16x512xbf16, #tpu.memory_space<vmem>>, vector<16x512xbf16>
    %c0_4 = arith.constant 0 : index
    %c0_5 = arith.constant 0 : index
    %5 = vector.load %arg3[%c0_4, %c0_5] : memref<512x768xbf16, #tpu.memory_space<vmem>>, vector<512x768xbf16>
    %cst = arith.constant dense<0.000000e+00> : vector<16x768xf32>
    %6 = tpu.matmul %4, %5, %cst {dimension_numbers = #tpu.dot_dimension_numbers<[1], [0], [0], [1], [0, 0, 1, 1], [], []>} : vector<16x512xbf16>, vector<512x768xbf16>, vector<16x768xf32> -> vector<16x768xf32>
    %7 = arith.addf %3, %6 : vector<16x768xf32>
    %c0_6 = arith.constant 0 : index
    %c0_7 = arith.constant 0 : index
    %8 = vector.load %arg9[%c0_6, %c0_7] : memref<16x768xf32, #tpu.memory_space<vmem>>, vector<16x768xf32>
    tpu.vector_store %arg9[%c0_6, %c0_7], %7 {strides = array<i32>} : memref<16x768xf32, #tpu.memory_space<vmem>>, vector<16x768xf32>,
    %c5_i32 = arith.constant 5 : i32
    %9 = arith.cmpi eq, %arg1, %c5_i32 : i32
    %10 = arith.extui %9 : i1 to i32
    %c0_i32_8 = arith.constant 0 : i32
    %11 = arith.cmpi ne, %10, %c0_i32_8 : i32
    scf.if %11 {
      %c0_9 = arith.constant 0 : index
      %c0_10 = arith.constant 0 : index
      %12 = vector.load %arg9[%c0_9, %c0_10] : memref<16x768xf32, #tpu.memory_space<vmem>>, vector<16x768xf32>
      %c0_11 = arith.constant 0 : index
      %c0_12 = arith.constant 0 : index
      %13 = vector.load %arg4[%c0_11, %c0_12] : memref<1x768xf32, #tpu.memory_space<vmem>>, vector<1x768xf32>
      %14 = vector.broadcast %13 : vector<1x768xf32> to vector<16x768xf32>
      %15 = arith.addf %12, %14 : vector<16x768xf32>
      %c0_13 = arith.constant 0 : index
      %c0_14 = arith.constant 0 : index
      %16 = vector.load %arg5[%c0_13, %c0_14] : memref<16x768xbf16, #tpu.memory_space<vmem>>, vector<16x768xbf16>
      %17 = arith.extf %16 : vector<16x768xbf16> to vector<16x768xf32>
      %18 = arith.addf %15, %17 : vector<16x768xf32>
      %cst_15 = arith.constant dense<0.000000e+00> : vector<16xf32>
      %19 = vector.multi_reduction <add>, %18, %cst_15 [1] : vector<16x768xf32> to vector<16xf32>
      %20 = vector.shape_cast %19 : vector<16xf32> to vector<16x1xf32>
      %cst_16 = arith.constant 7.680000e+02 : f32
      %21 = vector.broadcast %cst_16 : f32 to vector<16x1xf32>
      %22 = arith.divf %20, %21 : vector<16x1xf32>
      %23 = vector.broadcast %22 : vector<16x1xf32> to vector<16x768xf32>
      %24 = arith.subf %18, %23 : vector<16x768xf32>
      %25 = arith.mulf %24, %24 : vector<16x768xf32>
      %cst_17 = arith.constant dense<0.000000e+00> : vector<16xf32>
      %26 = vector.multi_reduction <add>, %25, %cst_17 [1] : vector<16x768xf32> to vector<16xf32>
      %27 = vector.shape_cast %26 : vector<16xf32> to vector<16x1xf32>
      %cst_18 = arith.constant 7.680000e+02 : f32
      %28 = vector.broadcast %cst_18 : f32 to vector<16x1xf32>
      %29 = arith.divf %27, %28 : vector<16x1xf32>
      %30 = vector.broadcast %22 : vector<16x1xf32> to vector<16x768xf32>
      %31 = arith.subf %18, %30 : vector<16x768xf32>
      %cst_19 = arith.constant 9.99999996E-13 : f32
      %32 = vector.broadcast %cst_19 : f32 to vector<16x1xf32>
      %33 = arith.addf %29, %32 : vector<16x1xf32>
      %34 = math.rsqrt %33 : vector<16x1xf32>
      %35 = vector.broadcast %34 : vector<16x1xf32> to vector<16x768xf32>
      %36 = arith.mulf %31, %35 : vector<16x768xf32>
      %c0_20 = arith.constant 0 : index
      %c0_21 = arith.constant 0 : index
      %37 = vector.load %arg6[%c0_20, %c0_21] : memref<1x768xf32, #tpu.memory_space<vmem>>, vector<1x768xf32>
      %38 = vector.broadcast %37 : vector<1x768xf32> to vector<16x768xf32>
      %39 = arith.mulf %36, %38 : vector<16x768xf32>
      %c0_22 = arith.constant 0 : index
      %c0_23 = arith.constant 0 : index
      %40 = vector.load %arg7[%c0_22, %c0_23] : memref<1x768xf32, #tpu.memory_space<vmem>>, vector<1x768xf32>
      %41 = vector.broadcast %40 : vector<1x768xf32> to vector<16x768xf32>
      %42 = arith.addf %39, %41 : vector<16x768xf32>
      %43 = arith.truncf %42 : vector<16x768xf32> to vector<16x768xbf16>
      %c0_24 = arith.constant 0 : index
      %c0_25 = arith.constant 0 : index
      %44 = vector.load %arg8[%c0_24, %c0_25] : memref<16x768xbf16, #tpu.memory_space<vmem>>, vector<16x768xbf16>
      tpu.vector_store %arg8[%c0_24, %c0_25], %43 {strides = array<i32>} : memref<16x768xbf16, #tpu.memory_space<vmem>>, vector<16x768xbf16>,
    } else {
    }
    return
  }
  func.func @transform_0(%arg0: i32, %arg1: i32) -> (i32, i32) {
    %c0_i32 = arith.constant 0 : i32
    return %arg0, %arg1 : i32, i32
  }
  func.func @transform_1(%arg0: i32, %arg1: i32) -> (i32, i32) {
    %c0_i32 = arith.constant 0 : i32
    %c0_i32_0 = arith.constant 0 : i32
    return %arg1, %c0_i32 : i32, i32
  }
  func.func @transform_2(%arg0: i32, %arg1: i32) -> (i32, i32) {
    %c0_i32 = arith.constant 0 : i32
    %c0_i32_0 = arith.constant 0 : i32
    %c0_i32_1 = arith.constant 0 : i32
    return %c0_i32, %c0_i32_0 : i32, i32
  }
  func.func @transform_3(%arg0: i32, %arg1: i32) -> (i32, i32) {
    %c0_i32 = arith.constant 0 : i32
    %c0_i32_0 = arith.constant 0 : i32
    return %arg0, %c0_i32 : i32, i32
  }
  func.func @transform_4(%arg0: i32, %arg1: i32) -> (i32, i32) {
    %c0_i32 = arith.constant 0 : i32
    %c0_i32_0 = arith.constant 0 : i32
    %c0_i32_1 = arith.constant 0 : i32
    return %c0_i32, %c0_i32_0 : i32, i32
  }
  func.func @transform_5(%arg0: i32, %arg1: i32) -> (i32, i32) {
    %c0_i32 = arith.constant 0 : i32
    %c0_i32_0 = arith.constant 0 : i32
    %c0_i32_1 = arith.constant 0 : i32
    return %c0_i32, %c0_i32_0 : i32, i32
  }
  func.func @transform_6(%arg0: i32, %arg1: i32) -> (i32, i32) {
    %c0_i32 = arith.constant 0 : i32
    %c0_i32_0 = arith.constant 0 : i32
    return %arg0, %c0_i32 : i32, i32
  }
}

module attributes {stable_mosaic.version = 11 : i64} {
  func.func @pooled_head_kernel(%arg0: memref<2x768xbf16, #tpu.memory_space<vmem>>, %arg1: memref<768x768xbf16, #tpu.memory_space<vmem>>, %arg2: memref<1x768xf32, #tpu.memory_space<vmem>>, %arg3: memref<768x512xbf16, #tpu.memory_space<vmem>>, %arg4: memref<1x512xf32, #tpu.memory_space<vmem>>, %arg5: memref<512x128xbf16, #tpu.memory_space<vmem>>, %arg6: memref<1x128xf32, #tpu.memory_space<vmem>>, %arg7: memref<2x128xf32, #tpu.memory_space<vmem>>) attributes {dimension_semantics = [], scalar_prefetch = 0 : i64, scratch_operands = 0 : i64, tpu.core_type = #tpu.core_type<tc>} {
    %c0 = arith.constant 0 : index
    %c0_0 = arith.constant 0 : index
    %0 = vector.load %arg0[%c0, %c0_0] : memref<2x768xbf16, #tpu.memory_space<vmem>>, vector<2x768xbf16>
    %c0_1 = arith.constant 0 : index
    %c0_2 = arith.constant 0 : index
    %1 = vector.load %arg1[%c0_1, %c0_2] : memref<768x768xbf16, #tpu.memory_space<vmem>>, vector<768x768xbf16>
    %cst = arith.constant dense<0.000000e+00> : vector<2x768xf32>
    %2 = tpu.matmul %0, %1, %cst {dimension_numbers = #tpu.dot_dimension_numbers<[1], [0], [0], [1], [0, 0, 1, 1], [], []>} : vector<2x768xbf16>, vector<768x768xbf16>, vector<2x768xf32> -> vector<2x768xf32>
    %c0_3 = arith.constant 0 : index
    %c0_4 = arith.constant 0 : index
    %3 = vector.load %arg2[%c0_3, %c0_4] : memref<1x768xf32, #tpu.memory_space<vmem>>, vector<1x768xf32>
    %4 = vector.broadcast %3 : vector<1x768xf32> to vector<2x768xf32>
    %5 = arith.addf %2, %4 : vector<2x768xf32>
    %6 = math.tanh %5 : vector<2x768xf32>
    %7 = arith.truncf %6 : vector<2x768xf32> to vector<2x768xbf16>
    %c0_5 = arith.constant 0 : index
    %c0_6 = arith.constant 0 : index
    %8 = vector.load %arg3[%c0_5, %c0_6] : memref<768x512xbf16, #tpu.memory_space<vmem>>, vector<768x512xbf16>
    %cst_7 = arith.constant dense<0.000000e+00> : vector<2x512xf32>
    %9 = tpu.matmul %7, %8, %cst_7 {dimension_numbers = #tpu.dot_dimension_numbers<[1], [0], [0], [1], [0, 0, 1, 1], [], []>} : vector<2x768xbf16>, vector<768x512xbf16>, vector<2x512xf32> -> vector<2x512xf32>
    %c0_8 = arith.constant 0 : index
    %c0_9 = arith.constant 0 : index
    %10 = vector.load %arg4[%c0_8, %c0_9] : memref<1x512xf32, #tpu.memory_space<vmem>>, vector<1x512xf32>
    %11 = vector.broadcast %10 : vector<1x512xf32> to vector<2x512xf32>
    %12 = arith.addf %9, %11 : vector<2x512xf32>
    %cst_10 = arith.constant 0.000000e+00 : f32
    %13 = vector.broadcast %cst_10 : f32 to vector<2x512xf32>
    %14 = arith.maximumf %12, %13 : vector<2x512xf32>
    %15 = arith.truncf %14 : vector<2x512xf32> to vector<2x512xbf16>
    %c0_11 = arith.constant 0 : index
    %c0_12 = arith.constant 0 : index
    %16 = vector.load %arg5[%c0_11, %c0_12] : memref<512x128xbf16, #tpu.memory_space<vmem>>, vector<512x128xbf16>
    %cst_13 = arith.constant dense<0.000000e+00> : vector<2x128xf32>
    %17 = tpu.matmul %15, %16, %cst_13 {dimension_numbers = #tpu.dot_dimension_numbers<[1], [0], [0], [1], [0, 0, 1, 1], [], []>} : vector<2x512xbf16>, vector<512x128xbf16>, vector<2x128xf32> -> vector<2x128xf32>
    %c0_14 = arith.constant 0 : index
    %c0_15 = arith.constant 0 : index
    %18 = vector.load %arg6[%c0_14, %c0_15] : memref<1x128xf32, #tpu.memory_space<vmem>>, vector<1x128xf32>
    %19 = vector.broadcast %18 : vector<1x128xf32> to vector<2x128xf32>
    %20 = arith.addf %17, %19 : vector<2x128xf32>
    %cst_16 = arith.constant dense<0xFF800000> : vector<2xf32>
    %21 = vector.multi_reduction <maximumf>, %20, %cst_16 [1] : vector<2x128xf32> to vector<2xf32>
    %22 = vector.shape_cast %21 : vector<2xf32> to vector<2x1xf32>
    %23 = vector.broadcast %22 : vector<2x1xf32> to vector<2x128xf32>
    %24 = arith.subf %20, %23 : vector<2x128xf32>
    %25 = math.exp %24 : vector<2x128xf32>
    %cst_17 = arith.constant dense<0.000000e+00> : vector<2xf32>
    %26 = vector.multi_reduction <add>, %25, %cst_17 [1] : vector<2x128xf32> to vector<2xf32>
    %27 = vector.shape_cast %26 : vector<2xf32> to vector<2x1xf32>
    %28 = math.log %27 : vector<2x1xf32>
    %29 = vector.broadcast %28 : vector<2x1xf32> to vector<2x128xf32>
    %30 = arith.subf %24, %29 : vector<2x128xf32>
    %c0_18 = arith.constant 0 : index
    %c0_19 = arith.constant 0 : index
    %31 = vector.load %arg7[%c0_18, %c0_19] : memref<2x128xf32, #tpu.memory_space<vmem>>, vector<2x128xf32>
    tpu.vector_store %arg7[%c0_18, %c0_19], %30 {strides = array<i32>} : memref<2x128xf32, #tpu.memory_space<vmem>>, vector<2x128xf32>,
    return
  }
}

</mosaic_0001>

<llo_original>
// kernel: bert_arch_forward.12
$region0: #{bert_arch_forward.12}
  #allocation0 [shape = 'u32[]', space=smem, size = 0x4, offset = 0x4, fixed_abs, tag = 'smem constant byte address 0x4 - core index']
  #allocation1 [shape = 'u32[72,128]{1,0:T(1,128)}', space=vmem, size = 0x9000, scoped, tag = 'internal scratch']
  %s0 = inlined_call_operand.vmem [shape: f32[16,768], index: 0, kind: input, shape index: {}]
  %s1 = inlined_call_operand.hbm [shape: f32[1,768], index: 1, kind: input, shape index: {}]
  %s2 = inlined_call_operand.hbm [shape: f32[1,768], index: 2, kind: input, shape index: {}]
  %s3 = inlined_call_operand.vmem [shape: bf16[16,768], index: 3, kind: output, shape index: {}]
  %s4 = sld [smem:[#allocation0]]
  $region30: #{bert_arch_forward.12} parent=0
    _
  %s6 = ssub.s32 1, %s4
  %s7 = scalar_select 0, %s6, %s4
  $region1: #{bert_arch_forward.12} parent=0
    #allocation2 [shape = 'u8[3072]{0}', space=vmem, size = 0xc00, scoped, tag = 'input window, operand 1, single buffered']
    #allocation3 [shape = 's32[1]{0}', space=sflag, size = 0x4, scoped, tag = 'scoped memory for bert_arch_forward.12']
    #allocation4 [shape = 'u8[3072]{0}', space=vmem, size = 0xc00, scoped, tag = 'input window, operand 2, single buffered']
    #allocation5 [shape = 's32[1]{0}', space=sflag, size = 0x4, scoped, tag = 'scoped memory for bert_arch_forward.12']
    %8 = vsyncpa [#allocation3], 0
    %9 = vsyncpa [#allocation5], 0
    // Predicated region
    $region2: #{bert_arch_forward.12} parent=1 // pred_check
      _
    $region3: #{bert_arch_forward.12} parent=1 // pred_check_branch
      %11 = sbr.rel (0) target = $region5
    $region4: #{bert_arch_forward.12} parent=1 // pred_region
      _
    $region5: #{bert_arch_forward.12} parent=1 // pred_fallthru
      _
    // Predicated region
    $region6: #{bert_arch_forward.12} parent=1 // pred_check
      _
    $region7: #{bert_arch_forward.12} parent=1 // pred_check_branch
      %13 = sbr.rel (0) target = $region9
    $region8: #{bert_arch_forward.12} parent=1 // pred_region
      %15 = vsyncadd [#allocation3], 0
      %s17 = sshll.u32 %s1, 4
      %s18 = int_to_ptr.hbm [resolvable:$true] %s17
      %s19 = sshll.u32 [#allocation2], 4
      %s20 = int_to_ptr.vmem [resolvable:$true] %s19
      %22 = dma.hbm_to_vmem [thread:$0]  %s18, 96, %s20, [#allocation3]
    $region9: #{bert_arch_forward.12} parent=1 // pred_fallthru
      _
    // Predicated region
    $region10: #{bert_arch_forward.12} parent=1 // pred_check
      _
    $region11: #{bert_arch_forward.12} parent=1 // pred_check_branch
      %24 = sbr.rel (0) target = $region13
    $region12: #{bert_arch_forward.12} parent=1 // pred_region
      %26 = vsyncadd [#allocation5], 0
      %s28 = sshll.u32 %s2, 4
      %s29 = int_to_ptr.hbm [resolvable:$true] %s28
      %s30 = sshll.u32 [#allocation4], 4
      %s31 = int_to_ptr.vmem [resolvable:$true] %s30
      %33 = dma.hbm_to_vmem [thread:$0]  %s29, 96, %s31, [#allocation5]
    $region13: #{bert_arch_forward.12} parent=1 // pred_fallthru
      _
    // Predicated region
    $region14: #{bert_arch_forward.12} parent=1 // pred_check
      _
    $region15: #{bert_arch_forward.12} parent=1 // pred_check_branch
      %35 = sbr.rel (0) target = $region17
    $region16: #{bert_arch_forward.12} parent=1 // pred_region
      %37 = dma.done [#allocation3], 96
    $region17: #{bert_arch_forward.12} parent=1 // pred_fallthru
      _
    // Predicated region
    $region18: #{bert_arch_forward.12} parent=1 // pred_check
      _
    $region19: #{bert_arch_forward.12} parent=1 // pred_check_branch
      %39 = sbr.rel (0) target = $region21
    $region20: #{bert_arch_forward.12} parent=1 // pred_region
      %41 = dma.done [#allocation5], 96
    $region21: #{bert_arch_forward.12} parent=1 // pred_fallthru
      _
    %v42 = vld [vmem:[%s0] sm:$0xff]
    %v43 = vld [vmem:[%s0 + $0x8] sm:$0xff]
    %v44 = vld [vmem:[%s0 + $0x10] sm:$0xff]
    %v45 = vld [vmem:[%s0 + $0x18] sm:$0xff]
    %v46 = vld [vmem:[%s0 + $0x20] sm:$0xff]
    %v47 = vld [vmem:[%s0 + $0x28] sm:$0xff]
    %v48 = vld [vmem:[%s0 + $0x30] sm:$0xff]
    %v49 = vld [vmem:[%s0 + $0x38] sm:$0xff]
    %v50 = vld [vmem:[%s0 + $0x40] sm:$0xff]
    %v51 = vld [vmem:[%s0 + $0x48] sm:$0xff]
    %v52 = vld [vmem:[%s0 + $0x50] sm:$0xff]
    %v53 = vld [vmem:[%s0 + $0x58] sm:$0xff]
    %v54 = vadd.f32 %v42, %v43
    %v55 = vadd.f32 %v54, %v44
    %v56 = vadd.f32 %v55, %v45
    %v57 = vadd.f32 %v56, %v46
    %v58 = vadd.f32 %v57, %v47
    %59 = vadd.xlane.f32.xlu0 %v58
    %v60 = vpop.xlane.xlu0 %59
    %v61 = vadd.f32 %v48, %v49
    %v62 = vadd.f32 %v61, %v50
    %v63 = vadd.f32 %v62, %v51
    %v64 = vadd.f32 %v63, %v52
    %v65 = vadd.f32 %v64, %v53
    %66 = vadd.xlane.f32.xlu0 %v65
    %v67 = vpop.xlane.xlu0 %66
    %v68 = vrcp.pop 768.0
    %v69 = vmul.f32 768.0, %v68
    %v70 = vsub.f32 1.0, %v69
    %v71 = vmul.f32 %v68, %v70
    %v72 = vadd.f32 %v68, %v71
    %vm73 = vweird.f32 %v68
    %v74 = vsel %vm73, %v68, %v72
    %v75 = vmul.f32 %v60, %v74
    %v76 = vmul.f32 %v67, %v74
    %v77 = vsub.f32 %v42, %v75
    %v78 = vsub.f32 %v43, %v75
    %v79 = vsub.f32 %v44, %v75
    %v80 = vsub.f32 %v45, %v75
    %v81 = vsub.f32 %v46, %v75
    %v82 = vsub.f32 %v47, %v75
    %v83 = vsub.f32 %v48, %v76
    %v84 = vsub.f32 %v49, %v76
    %v85 = vsub.f32 %v50, %v76
    %v86 = vsub.f32 %v51, %v76
    %v87 = vsub.f32 %v52, %v76
    %v88 = vsub.f32 %v53, %v76
    %v89 = vmul.f32 %v77, %v77
    %v90 = vmul.f32 %v78, %v78
    %v91 = vmul.f32 %v79, %v79
    %v92 = vmul.f32 %v80, %v80
    %v93 = vmul.f32 %v81, %v81
    %v94 = vmul.f32 %v82, %v82
    %v95 = vmul.f32 %v83, %v83
    %v96 = vmul.f32 %v84, %v84
    %v97 = vmul.f32 %v85, %v85
    %v98 = vmul.f32 %v86, %v86
    %v99 = vmul.f32 %v87, %v87
    %v100 = vmul.f32 %v88, %v88
    %v101 = vadd.f32 %v89, %v90
    %v102 = vadd.f32 %v101, %v91
    %v103 = vadd.f32 %v102, %v92
    %v104 = vadd.f32 %v103, %v93
    %v105 = vadd.f32 %v104, %v94
    %106 = vadd.xlane.f32.xlu0 %v105
    %v107 = vpop.xlane.xlu0 %106
    %v108 = vadd.f32 %v95, %v96
    %v109 = vadd.f32 %v108, %v97
    %v110 = vadd.f32 %v109, %v98
    %v111 = vadd.f32 %v110, %v99
    %v112 = vadd.f32 %v111, %v100
    %113 = vadd.xlane.f32.xlu0 %v112
    %v114 = vpop.xlane.xlu0 %113
    %v115 = vmul.f32 %v107, %v74
    %v116 = vmul.f32 %v114, %v74
    %v117 = vadd.f32 %v115, 1e-12
    %v118 = vadd.f32 %v116, 1e-12
    %v119 = vrsqrt.pop %v117
    %v120 = vmul.f32 %v119, %v117
    %v121 = vmul.f32 %v120, %v119
    %v122 = vmul.f32 0.5, %v121
    %v123 = vsub.f32 1.5, %v122
    %v124 = vmul.f32 %v119, %v123
    %vm125 = vweird.f32 %v117
    %vm126 = vweird.f32 %v119
    %vm127 = vmor %vm125, %vm126
    %v128 = vsel %vm127, %v119, %v124
    %v129 = vrsqrt.pop %v118
    %v130 = vmul.f32 %v129, %v118
    %v131 = vmul.f32 %v130, %v129
    %v132 = vmul.f32 0.5, %v131
    %v133 = vsub.f32 1.5, %v132
    %v134 = vmul.f32 %v129, %v133
    %vm135 = vweird.f32 %v118
    %vm136 = vweird.f32 %v129
    %vm137 = vmor %vm135, %vm136
    %v138 = vsel %vm137, %v129, %v134
    %v139 = vmul.f32 %v77, %v128
    %v140 = vmul.f32 %v78, %v128
    %v141 = vmul.f32 %v79, %v128
    %v142 = vmul.f32 %v80, %v128
    %v143 = vmul.f32 %v81, %v128
    %v144 = vmul.f32 %v82, %v128
    %v145 = vmul.f32 %v83, %v138
    %v146 = vmul.f32 %v84, %v138
    %v147 = vmul.f32 %v85, %v138
    %v148 = vmul.f32 %v86, %v138
    %v149 = vmul.f32 %v87, %v138
    %v150 = vmul.f32 %v88, %v138
    %v151 = vld [vmem:[#allocation2] sm:$0x3f]
    %v153 = vperm.slane %v151, 0
    %v154 = vperm.slane %v151, 1
    %v155 = vperm.slane %v151, 2
    %v156 = vperm.slane %v151, 3
    %v157 = vperm.slane %v151, 4
    %v158 = vperm.slane %v151, 5
    %v165 = vmul.f32 %v139, %v153
    %v166 = vmul.f32 %v140, %v154
    %v167 = vmul.f32 %v141, %v155
    %v168 = vmul.f32 %v142, %v156
    %v169 = vmul.f32 %v143, %v157
    %v170 = vmul.f32 %v144, %v158
    %v171 = vmul.f32 %v145, %v153
    %v172 = vmul.f32 %v146, %v154
    %v173 = vmul.f32 %v147, %v155
    %v174 = vmul.f32 %v148, %v156
    %v175 = vmul.f32 %v149, %v157
    %v176 = vmul.f32 %v150, %v158
    %v177 = vld [vmem:[#allocation4] sm:$0x3f]
    %v179 = vperm.slane %v177, 0
    %v180 = vperm.slane %v177, 1
    %v181 = vperm.slane %v177, 2
    %v182 = vperm.slane %v177, 3
    %v183 = vperm.slane %v177, 4
    %v184 = vperm.slane %v177, 5
    %v191 = vadd.f32 %v165, %v179
    %v192 = vadd.f32 %v166, %v180
    %v193 = vadd.f32 %v167, %v181
    %v194 = vadd.f32 %v168, %v182
    %v195 = vadd.f32 %v169, %v183
    %v196 = vadd.f32 %v170, %v184
    %v197 = vadd.f32 %v171, %v179
    %v198 = vadd.f32 %v172, %v180
    %v199 = vadd.f32 %v173, %v181
    %v200 = vadd.f32 %v174, %v182
    %v201 = vadd.f32 %v175, %v183
    %v202 = vadd.f32 %v176, %v184
    %v203 = vpack.c.bf16 %v192, %v191
    %v204 = vpack.c.bf16 %v194, %v193
    %v205 = vpack.c.bf16 %v196, %v195
    %v206 = vpack.c.bf16 %v198, %v197
    %v207 = vpack.c.bf16 %v200, %v199
    %v208 = vpack.c.bf16 %v202, %v201
    %209 = vst [vmem:[%s3] sm:$0xff] %v203
    %210 = vst [vmem:[%s3 + $0x8] sm:$0xff] %v204
    %211 = vst [vmem:[%s3 + $0x10] sm:$0xff] %v205
    %212 = vst [vmem:[%s3 + $0x18] sm:$0xff] %v206
    %213 = vst [vmem:[%s3 + $0x20] sm:$0xff] %v207
    %214 = vst [vmem:[%s3 + $0x28] sm:$0xff] %v208
    // Predicated region
    $region22: #{bert_arch_forward.12} parent=1 // pred_check
      _
    $region23: #{bert_arch_forward.12} parent=1 // pred_check_branch
      %216 = sbr.rel (0) target = $region25
    $region24: #{bert_arch_forward.12} parent=1 // pred_region
      _
    $region25: #{bert_arch_forward.12} parent=1 // pred_fallthru
      _
    // Predicated region
    $region26: #{bert_arch_forward.12} parent=1 // pred_check
      _
    $region27: #{bert_arch_forward.12} parent=1 // pred_check_branch
      %218 = sbr.rel (0) target = $region29
    $region28: #{bert_arch_forward.12} parent=1 // pred_region
      _
    $region29: #{bert_arch_forward.12} parent=1 // pred_fallthru
      _
    %219 = vsyncpa [#allocation3], 1
    %220 = vsyncpa [#allocation5], 1

// kernel: bert_arch_forward.14
$region0: #{bert_arch_forward.14}
  #allocation0 [shape = 'u32[]', space=smem, size = 0x4, offset = 0x4, fixed_abs, tag = 'smem constant byte address 0x4 - core index']
  #allocation1 [shape = 'u32[72,128]{1,0:T(1,128)}', space=vmem, size = 0x9000, scoped, tag = 'internal scratch']
  %s0 = inlined_call_operand.vmem [shape: bf16[2,8,2304], index: 0, kind: input, shape index: {}, may-alias: {0,1,2}]
  %s1 = inlined_call_operand.vmem [shape: bf16[2,8,2304], index: 1, kind: input, shape index: {}, may-alias: {0,1,2}]
  %s2 = inlined_call_operand.vmem [shape: bf16[2,8,2304], index: 2, kind: input, shape index: {}, may-alias: {0,1,2}]
  %s3 = inlined_call_operand.vmem [shape: f32[2,1,8], index: 3, kind: input, shape index: {}]
  %s4 = inlined_call_operand.vmem [shape: bf16[2,8,768], index: 4, kind: output, shape index: {}]
  %s5 = sld [smem:[#allocation0]]
  $region49: #{bert_arch_forward.14} parent=0
    _
  %s7 = ssub.s32 1, %s5
  %s8 = scalar_select 0, %s7, %s5
  loop: start=0, step=1, limit=14
  $region2: #{bert_arch_forward.14} parent=0 // loop_pre_header
    _
  $region3: #{bert_arch_forward.14} parent=0 // loop_header
    %s10 = sphi 0, %s14
    %p11 = scmp.ge.s32.totalorder %s10, 14
    %s17 = sphi 0, %s29
    %s18 = sphi 0, %s25
    %s19 = sphi 0, %s17
    %s20 = sphi 0, %s18
    %s21 = sphi 0, %s19
    %s22 = sphi 0, %s20
    %s34 = sphi 0, %s36
    %s37 = sphi 0, %s34
    %s38 = sphi 0, %s37
    %s54 = sphi 0, %s38
    %s64 = sphi 0, %s66
    %s67 = sphi 0, %s64
    %s68 = sphi 0, %s67
    %s84 = sphi 0, %s68
    %s94 = sphi 0, %s96
    %s97 = sphi 0, %s94
    %s98 = sphi 0, %s97
    %s114 = sphi 0, %s98
    %s120 = sphi 0, %s122
    %s123 = sphi 0, %s120
    %s124 = sphi 0, %s123
    %s140 = sphi 0, %s124
    %s148 = sphi 0, %s150
    %s151 = sphi 0, %s148
    %s152 = sphi 0, %s151
    %s168 = sphi 0, %s152
  $region4: #{bert_arch_forward.14} parent=0 // loop_header_branch
    %13 = sbr.rel (%p11) target = $region8
  $region5: #{bert_arch_forward.14} parent=0 // loop_body
    %s15 = ssub.s32 %s10, 1
    %s16 = ssub.s32 %s10, 2
    %s23 = sadd.s32 1, %s18
    %p24 = scmp.ge.s32.totalorder %s23, 6
    %s25 = scalar_select %p24, 0, %s23
    %s26 = sadd.s32 1, %s17
    %s27 = scalar_select %p24, %s26, %s17
    %p28 = scmp.ge.s32.totalorder %s27, 2
    %s29 = scalar_select %p28, 0, %s27
    %s30 = ssub.s32 %s17, %s29
    %s31 = ssub.s32 %s18, %s25
    %s32 = sor.u32 %s30, %s31
    %p33 = scmp.eq.s32.totalorder %s32, 0
    %s35 = sadd.s32 %s34, 1
    %s36 = scalar_select %p33, %s34, %s35
    %p39 = pneg %p33
    %p40 = scmp.eq.s32.totalorder %s10, 11
    %p41 = por %p39, %p40
    %p42 = scmp.ne.s32.totalorder %s34, %s37
    %p43 = scmp.eq.s32.totalorder %s10, 0
    %p44 = por %p42, %p43
    %p45 = scmp.ne.s32.totalorder %s34, %s37
    %p46 = scmp.eq.s32.totalorder %s15, 11
    %p47 = por %p45, %p46
    %p48 = scmp.ne.s32.totalorder %s37, %s38
    %p49 = scmp.eq.s32.totalorder %s15, 0
    %p50 = por %p48, %p49
    %p51 = scmp.ne.s32.totalorder %s37, %s38
    %p52 = scmp.eq.s32.totalorder %s16, 11
    %p53 = por %p51, %p52
    %p55 = scmp.ne.s32.totalorder %s38, %s54
    %p56 = scmp.eq.s32.totalorder %s16, 0
    %p57 = por %p55, %p56
    %s58 = sadd.s32 %s18, 6
    %s59 = sadd.s32 %s25, 6
    %s60 = ssub.s32 %s17, %s29
    %s61 = ssub.s32 %s58, %s59
    %s62 = sor.u32 %s60, %s61
    %p63 = scmp.eq.s32.totalorder %s62, 0
    %s65 = sadd.s32 %s64, 1
    %s66 = scalar_select %p63, %s64, %s65
    %p69 = pneg %p63
    %p70 = scmp.eq.s32.totalorder %s10, 11
    %p71 = por %p69, %p70
    %p72 = scmp.ne.s32.totalorder %s64, %s67
    %p73 = scmp.eq.s32.totalorder %s10, 0
    %p74 = por %p72, %p73
    %p75 = scmp.ne.s32.totalorder %s64, %s67
    %p76 = scmp.eq.s32.totalorder %s15, 11
    %p77 = por %p75, %p76
    %p78 = scmp.ne.s32.totalorder %s67, %s68
    %p79 = scmp.eq.s32.totalorder %s15, 0
    %p80 = por %p78, %p79
    %p81 = scmp.ne.s32.totalorder %s67, %s68
    %p82 = scmp.eq.s32.totalorder %s16, 11
    %p83 = por %p81, %p82
    %p85 = scmp.ne.s32.totalorder %s68, %s84
    %p86 = scmp.eq.s32.totalorder %s16, 0
    %p87 = por %p85, %p86
    %s88 = sadd.s32 %s18, 12
    %s89 = sadd.s32 %s25, 12
    %s90 = ssub.s32 %s17, %s29
    %s91 = ssub.s32 %s88, %s89
    %s92 = sor.u32 %s90, %s91
    %p93 = scmp.eq.s32.totalorder %s92, 0
    %s95 = sadd.s32 %s94, 1
    %s96 = scalar_select %p93, %s94, %s95
    %p99 = pneg %p93
    %p100 = scmp.eq.s32.totalorder %s10, 11
    %p101 = por %p99, %p100
    %p102 = scmp.ne.s32.totalorder %s94, %s97
    %p103 = scmp.eq.s32.totalorder %s10, 0
    %p104 = por %p102, %p103
    %p105 = scmp.ne.s32.totalorder %s94, %s97
    %p106 = scmp.eq.s32.totalorder %s15, 11
    %p107 = por %p105, %p106
    %p108 = scmp.ne.s32.totalorder %s97, %s98
    %p109 = scmp.eq.s32.totalorder %s15, 0
    %p110 = por %p108, %p109
    %p111 = scmp.ne.s32.totalorder %s97, %s98
    %p112 = scmp.eq.s32.totalorder %s16, 11
    %p113 = por %p111, %p112
    %p115 = scmp.ne.s32.totalorder %s98, %s114
    %p116 = scmp.eq.s32.totalorder %s16, 0
    %p117 = por %p115, %p116
    %s118 = ssub.s32 %s17, %s29
    %p119 = scmp.eq.s32.totalorder %s118, 0
    %s121 = sadd.s32 %s120, 1
    %s122 = scalar_select %p119, %s120, %s121
    %p125 = pneg %p119
    %p126 = scmp.eq.s32.totalorder %s10, 11
    %p127 = por %p125, %p126
    %p128 = scmp.ne.s32.totalorder %s120, %s123
    %p129 = scmp.eq.s32.totalorder %s10, 0
    %p130 = por %p128, %p129
    %p131 = scmp.ne.s32.totalorder %s120, %s123
    %p132 = scmp.eq.s32.totalorder %s15, 11
    %p133 = por %p131, %p132
    %p134 = scmp.ne.s32.totalorder %s123, %s124
    %p135 = scmp.eq.s32.totalorder %s15, 0
    %p136 = por %p134, %p135
    %p137 = scmp.ne.s32.totalorder %s123, %s124
    %p138 = scmp.eq.s32.totalorder %s16, 11
    %p139 = por %p137, %p138
    %p141 = scmp.ne.s32.totalorder %s124, %s140
    %p142 = scmp.eq.s32.totalorder %s16, 0
    %p143 = por %p141, %p142
    %s144 = ssub.s32 %s17, %s29
    %s145 = ssub.s32 %s18, %s25
    %s146 = sor.u32 %s144, %s145
    %p147 = scmp.eq.s32.totalorder %s146, 0
    %s149 = sadd.s32 %s148, 1
    %s150 = scalar_select %p147, %s148, %s149
    %p153 = pneg %p147
    %p154 = scmp.eq.s32.totalorder %s10, 11
    %p155 = por %p153, %p154
    %p156 = scmp.ne.s32.totalorder %s148, %s151
    %p157 = scmp.eq.s32.totalorder %s10, 0
    %p158 = por %p156, %p157
    %p159 = scmp.ne.s32.totalorder %s148, %s151
    %p160 = scmp.eq.s32.totalorder %s15, 11
    %p161 = por %p159, %p160
    %p162 = scmp.ne.s32.totalorder %s151, %s152
    %p163 = scmp.eq.s32.totalorder %s15, 0
    %p164 = por %p162, %p163
    %p165 = scmp.ne.s32.totalorder %s151, %s152
    %p166 = scmp.eq.s32.totalorder %s16, 11
    %p167 = por %p165, %p166
    %p169 = scmp.ne.s32.totalorder %s152, %s168
    %p170 = scmp.eq.s32.totalorder %s16, 0
    %p171 = por %p169, %p170
    %p172 = scmp.le.s32.totalorder 1, %s10
    %p173 = scmp.lt.s32.totalorder %s10, 13
    %p174 = pnand %p172, %p173
    %p175 = pneg %p174
    // Predicated region
    $region9: #{bert_arch_forward.14} parent=5 // pred_check
      _
    $region10: #{bert_arch_forward.14} parent=5 // pred_check_branch
      %177 = sbr.rel (%p174) target = $region12
    $region11: #{bert_arch_forward.14} parent=5 // pred_region
      %s178 = ssub.s32 %s10, 1
    $region12: #{bert_arch_forward.14} parent=5 // pred_fallthru
      _
    %p179 = scmp.lt.s32.totalorder %s10, 12
    // Predicated region
    $region13: #{bert_arch_forward.14} parent=5 // pred_check
      %p180 = pneg %p179
    $region14: #{bert_arch_forward.14} parent=5 // pred_check_branch
      %182 = sbr.rel (%p180) target = $region16
    $region15: #{bert_arch_forward.14} parent=5 // pred_region
      // Predicated region
      $region17: #{bert_arch_forward.14} parent=15 // pred_check
        %p183 = pneg %p44
      $region18: #{bert_arch_forward.14} parent=15 // pred_check_branch
        %185 = sbr.rel (%p183) target = $region20
      $region19: #{bert_arch_forward.14} parent=15 // pred_region
        %p186 = scmp.lt.s32.totalorder %s17, 1
        %s187 = scalar_select %p186, %s17, 1
        %p188 = scmp.lt.s32.totalorder %s18, 17
        %s189 = scalar_select %p188, %s18, 17
        %s190 = smul.addr %s187, 18
        %s191 = sadd.s32 %s189, %s190
        %s192 = smul.addr %s191, 4
        %s193 = scalar_lea.vmem %s0, %s192
      $region20: #{bert_arch_forward.14} parent=15 // pred_fallthru
        _
      // Predicated region
      $region21: #{bert_arch_forward.14} parent=15 // pred_check
        %p194 = pneg %p74
      $region22: #{bert_arch_forward.14} parent=15 // pred_check_branch
        %196 = sbr.rel (%p194) target = $region24
      $region23: #{bert_arch_forward.14} parent=15 // pred_region
        %s197 = sadd.s32 %s18, 6
        %p198 = scmp.lt.s32.totalorder %s17, 1
        %s199 = scalar_select %p198, %s17, 1
        %p200 = scmp.lt.s32.totalorder %s197, 17
        %s201 = scalar_select %p200, %s197, 17
        %s202 = smul.addr %s199, 18
        %s203 = sadd.s32 %s201, %s202
        %s204 = smul.addr %s203, 4
        %s205 = scalar_lea.vmem %s1, %s204
        %s206 = sadd.s32 %s18, 6
      $region24: #{bert_arch_forward.14} parent=15 // pred_fallthru
        _
      // Predicated region
      $region25: #{bert_arch_forward.14} parent=15 // pred_check
        %p207 = pneg %p104
      $region26: #{bert_arch_forward.14} parent=15 // pred_check_branch
        %209 = sbr.rel (%p207) target = $region28
      $region27: #{bert_arch_forward.14} parent=15 // pred_region
        %s210 = sadd.s32 %s18, 12
        %p211 = scmp.lt.s32.totalorder %s17, 1
        %s212 = scalar_select %p211, %s17, 1
        %p213 = scmp.lt.s32.totalorder %s210, 17
        %s214 = scalar_select %p213, %s210, 17
        %s215 = smul.addr %s212, 18
        %s216 = sadd.s32 %s214, %s215
        %s217 = smul.addr %s216, 4
        %s218 = scalar_lea.vmem %s2, %s217
        %s219 = sadd.s32 %s18, 12
      $region28: #{bert_arch_forward.14} parent=15 // pred_fallthru
        _
      // Predicated region
      $region29: #{bert_arch_forward.14} parent=15 // pred_check
        %p220 = pneg %p130
      $region30: #{bert_arch_forward.14} parent=15 // pred_check_branch
        %222 = sbr.rel (%p220) target = $region32
      $region31: #{bert_arch_forward.14} parent=15 // pred_region
        %p223 = scmp.lt.s32.totalorder %s17, 1
        %s224 = scalar_select %p223, %s17, 1
        %s225 = scalar_lea.vmem %s3, %s224
      $region32: #{bert_arch_forward.14} parent=15 // pred_fallthru
        _
    $region16: #{bert_arch_forward.14} parent=5 // pred_fallthru
      _
    %p226 = scmp.le.s32.totalorder 1, %s10
    %p227 = scmp.lt.s32.totalorder %s10, 13
    %p228 = pnand %p226, %p227
    %p229 = pneg %p228
    // Predicated region
    $region33: #{bert_arch_forward.14} parent=5 // pred_check
      _
    $region34: #{bert_arch_forward.14} parent=5 // pred_check_branch
      %231 = sbr.rel (%p228) target = $region36
    $region35: #{bert_arch_forward.14} parent=5 // pred_region
      %s232 = ssub.s32 %s10, 1
      %p233 = scmp.lt.s32.totalorder %s19, 1
      %s234 = scalar_select %p233, %s19, 1
      %p235 = scmp.lt.s32.totalorder %s20, 17
      %s236 = scalar_select %p235, %s20, 17
      %s237 = smul.addr %s234, 18
      %s238 = sadd.s32 %s236, %s237
      %s239 = smul.addr %s238, 4
      %s240 = scalar_lea.vmem %s0, %s239
      %p241 = pneg %p50
      %p242 = pneg %p47
      %s243 = sadd.s32 %s20, 6
      %p244 = scmp.lt.s32.totalorder %s19, 1
      %s245 = scalar_select %p244, %s19, 1
      %p246 = scmp.lt.s32.totalorder %s243, 17
      %s247 = scalar_select %p246, %s243, 17
      %s248 = smul.addr %s245, 18
      %s249 = sadd.s32 %s247, %s248
      %s250 = smul.addr %s249, 4
      %s251 = scalar_lea.vmem %s1, %s250
      %p252 = pneg %p80
      %p253 = pneg %p77
      %s254 = sadd.s32 %s20, 12
      %p255 = scmp.lt.s32.totalorder %s19, 1
      %s256 = scalar_select %p255, %s19, 1
      %p257 = scmp.lt.s32.totalorder %s254, 17
      %s258 = scalar_select %p257, %s254, 17
      %s259 = smul.addr %s256, 18
      %s260 = sadd.s32 %s258, %s259
      %s261 = smul.addr %s260, 4
      %s262 = scalar_lea.vmem %s2, %s261
      %p263 = pneg %p110
      %p264 = pneg %p107
      %p265 = scmp.lt.s32.totalorder %s19, 1
      %s266 = scalar_select %p265, %s19, 1
      %s267 = scalar_lea.vmem %s3, %s266
      %p268 = pneg %p136
      %p269 = pneg %p133
      %p270 = pneg %p164
      %p271 = pneg %p161
      %p272 = scmp.lt.s32.totalorder %s19, 1
      %s273 = scalar_select %p272, %s19, 1
      %p274 = scmp.lt.s32.totalorder %s20, 5
      %s275 = scalar_select %p274, %s20, 5
      %s276 = smul.addr %s273, 6
      %s277 = sadd.s32 %s275, %s276
      %s278 = smul.addr %s277, 4
      %s279 = scalar_lea.vmem %s4, %s278
      %p280 = scmp.lt.s32.totalorder %s19, 1
      %s281 = scalar_select %p280, %s19, 1
      %p282 = scmp.lt.s32.totalorder %s20, 17
      %s283 = scalar_select %p282, %s20, 17
      %s284 = smul.addr %s281, 18
      %s285 = sadd.s32 %s283, %s284
      %s286 = smul.addr %s285, 4
      %s287 = scalar_lea.vmem %s0, %s286
      %s288 = sadd.s32 %s20, 6
      %p289 = scmp.lt.s32.totalorder %s19, 1
      %s290 = scalar_select %p289, %s19, 1
      %p291 = scmp.lt.s32.totalorder %s288, 17
      %s292 = scalar_select %p291, %s288, 17
      %s293 = smul.addr %s290, 18
      %s294 = sadd.s32 %s292, %s293
      %s295 = smul.addr %s294, 4
      %s296 = scalar_lea.vmem %s1, %s295
      %s297 = sadd.s32 %s20, 6
      %s298 = sadd.s32 %s20, 12
      %p299 = scmp.lt.s32.totalorder %s19, 1
      %s300 = scalar_select %p299, %s19, 1
      %p301 = scmp.lt.s32.totalorder %s298, 17
      %s302 = scalar_select %p301, %s298, 17
      %s303 = smul.addr %s300, 18
      %s304 = sadd.s32 %s302, %s303
      %s305 = smul.addr %s304, 4
      %s306 = scalar_lea.vmem %s2, %s305
      %s307 = sadd.s32 %s20, 12
      %p308 = scmp.lt.s32.totalorder %s19, 1
      %s309 = scalar_select %p308, %s19, 1
      %s310 = scalar_lea.vmem %s3, %s309
      %p311 = scmp.lt.s32.totalorder %s19, 1
      %s312 = scalar_select %p311, %s19, 1
      %p313 = scmp.lt.s32.totalorder %s20, 5
      %s314 = scalar_select %p313, %s20, 5
      %s315 = smul.addr %s312, 6
      %s316 = sadd.s32 %s314, %s315
      %s317 = smul.addr %s316, 4
      %s318 = scalar_lea.vmem %s4, %s317
      %v320 = vld [vmem:[%s287] sm:$0xf]
      %v321 = vunpack.c.l.bf16 %v320
      %v322 = vld [vmem:[%s296] sm:$0xf]
      %v323 = vunpack.c.l.bf16 %v322
      %v324 = vld [vmem:[%s306] sm:$0xf]
      %v325 = vld [vmem:[%s310] sm:$0x1]
      %vm326 = vcmask 523264
      %v328 = vsel %vm326, %v321, 0
      %v331 = vsel %vm326, %v323, 0
      %333 = vmatpush.xpose.msra.mxu0 0.0
      %334 = vmatpush.xpose.msra.mxu0 0.0
      %335 = vmatpush.xpose.msra.mxu0 0.0
      %336 = vmatpush.xpose.msra.mxu0 0.0
      %337 = vmatpush.xpose.msra.mxu0 0.0
      %338 = vmatpush.xpose.msra.mxu0 0.0
      %339 = vmatpush.xpose.msra.mxu0 0.0
      %340 = vmatpush.xpose.msra.mxu0 0.0
      %341 = vmatpush.xpose.msra.mxu0 0.0
      %342 = vmatpush.xpose.msra.mxu0 0.0
      %343 = vmatpush.xpose.msra.mxu0 0.0
      %344 = vmatpush.xpose.msra.mxu0 0.0
      %345 = vmatpush.xpose.msra.mxu0 0.0
      %346 = vmatpush.xpose.msra.mxu0 0.0
      %347 = vmatpush.xpose.msra.mxu0 0.0
      %348 = vmatpush.xpose.msra.mxu0 %v331
      %349 = vmatmul.f32.gmra.mxu0 %v328
      %v350 = vpop.f32.mrf.mxu0
      %v351 = vadd.f32 0.0, %v350
      %352 = vdwg.mxu0
      %v353 = vmul.f32 %v351, 0.125
      %v355 = vperm.slane %v325, 0
      %v357 = vadd.f32 %v353, %v355
      %vm358 = vcmask 64512
      %v359 = vsel %vm358, %v357, -inf
      %360 = vmax.xlane.f32.xlu0 %v359
      %v361 = vpop.xlane.xlu0 %360
      %v362 = vsub.f32 %v357, %v361
      %v363 = vmul.f32 %v362, 1.442695
      %v364 = vpow.pop %v363
      %v365 = vsel %vm358, %v364, 0.0
      %366 = vadd.xlane.f32.xlu0 %v365
      %v367 = vpop.xlane.xlu0 %366
      %v368 = vrcp.pop %v367
      %v369 = vmul.f32 %v367, %v368
      %v370 = vsub.f32 1.0, %v369
      %v371 = vmul.f32 %v368, %v370
      %v372 = vadd.f32 %v368, %v371
      %vm373 = vweird.f32 %v367
      %vm374 = vweird.f32 %v368
      %vm375 = vmor %vm373, %vm374
      %v376 = vsel %vm375, %v368, %v372
      %v377 = vand.u32 2147483647, %v367
      %vm378 = vcmp.eq.f32.partialorder %v377, 8.507059e+37
      %v379 = vand.u32 %v367, 2147483648
      %v380 = vor.u32 1.1754944e-38, %v379
      %v381 = vsel %vm378, %v380, %v376
      %v382 = vmul.f32 %v364, %v381
      %v383 = vpack.c.bf16 %v382, %v382
      %v385 = vsel %vm358, %v383, 0
      %vm387 = vcmask 1043456
      %v389 = vsel %vm387, %v324, 0
      %391 = vmatpush.bf16.msra.mxu0 0
      %392 = vmatpush.bf16.msra.mxu0 0
      %393 = vmatpush.bf16.msra.mxu0 0
      %394 = vmatpush.bf16.msra.mxu0 0
      %395 = vmatpush.bf16.msra.mxu0 0
      %396 = vmatpush.bf16.msra.mxu0 0
      %397 = vmatpush.bf16.msra.mxu0 0
      %398 = vmatpush.bf16.msra.mxu0 %v389
      %399 = vmatmul.bf16.gmra.mxu0 %v385
      %v400 = vpop.f32.mrf.mxu0
      %v401 = vadd.f32 0.0, %v400
      %v402 = vpop.f32.mrf.mxu0
      %403 = vdwg.mxu0
      %404 = vrot.lane.b32.xlu0 %v321, 64
      %v405 = vpop.permute.xlu0 %404
      %406 = vrot.lane.b32.xlu0 %v323, 64
      %v407 = vpop.permute.xlu0 %406
      %v408 = vsel %vm326, %v405, 0
      %v410 = vsel %vm326, %v407, 0
      %412 = vmatpush.xpose.msra.mxu0 0.0
      %413 = vmatpush.xpose.msra.mxu0 0.0
      %414 = vmatpush.xpose.msra.mxu0 0.0
      %415 = vmatpush.xpose.msra.mxu0 0.0
      %416 = vmatpush.xpose.msra.mxu0 0.0
      %417 = vmatpush.xpose.msra.mxu0 0.0
      %418 = vmatpush.xpose.msra.mxu0 0.0
      %419 = vmatpush.xpose.msra.mxu0 0.0
      %420 = vmatpush.xpose.msra.mxu0 0.0
      %421 = vmatpush.xpose.msra.mxu0 0.0
      %422 = vmatpush.xpose.msra.mxu0 0.0
      %423 = vmatpush.xpose.msra.mxu0 0.0
      %424 = vmatpush.xpose.msra.mxu0 0.0
      %425 = vmatpush.xpose.msra.mxu0 0.0
      %426 = vmatpush.xpose.msra.mxu0 0.0
      %427 = vmatpush.xpose.msra.mxu0 %v410
      %428 = vmatmul.f32.gmra.mxu0 %v408
      %v429 = vpop.f32.mrf.mxu0
      %v430 = vadd.f32 0.0, %v429
      %431 = vdwg.mxu0
      %v432 = vmul.f32 %v430, 0.125
      %v433 = vadd.f32 %v432, %v355
      %v434 = vsel %vm358, %v433, -inf
      %435 = vmax.xlane.f32.xlu0 %v434
      %v436 = vpop.xlane.xlu0 %435
      %v437 = vsub.f32 %v433, %v436
      %v438 = vmul.f32 %v437, 1.442695
      %v439 = vpow.pop %v438
      %v440 = vsel %vm358, %v439, 0.0
      %441 = vadd.xlane.f32.xlu0 %v440
      %v442 = vpop.xlane.xlu0 %441
      %v443 = vrcp.pop %v442
      %v444 = vmul.f32 %v442, %v443
      %v445 = vsub.f32 1.0, %v444
      %v446 = vmul.f32 %v443, %v445
      %v447 = vadd.f32 %v443, %v446
      %vm448 = vweird.f32 %v442
      %vm449 = vweird.f32 %v443
      %vm450 = vmor %vm448, %vm449
      %v451 = vsel %vm450, %v443, %v447
      %v452 = vand.u32 2147483647, %v442
      %vm453 = vcmp.eq.f32.partialorder %v452, 8.507059e+37
      %v454 = vand.u32 %v442, 2147483648
      %v455 = vor.u32 1.1754944e-38, %v454
      %v456 = vsel %vm453, %v455, %v451
      %v457 = vmul.f32 %v439, %v456
      %v458 = vpack.c.bf16 %v457, %v457
      %v460 = vunpack.c.l.b16 %v324
      %v461 = vpack.c.b16 %v460, %v460
      %462 = vrot.lane.b32.xlu0 %v461, 64
      %v463 = vpop.permute.xlu0 %462
      %v465 = vsel %vm358, %v458, 0
      %v468 = vsel %vm387, %v463, 0
      %470 = vmatpush.bf16.msra.mxu0 0
      %471 = vmatpush.bf16.msra.mxu0 0
      %472 = vmatpush.bf16.msra.mxu0 0
      %473 = vmatpush.bf16.msra.mxu0 0
      %474 = vmatpush.bf16.msra.mxu0 0
      %475 = vmatpush.bf16.msra.mxu0 0
      %476 = vmatpush.bf16.msra.mxu0 0
      %477 = vmatpush.bf16.msra.mxu0 %v468
      %478 = vmatmul.bf16.gmra.mxu0 %v465
      %v479 = vpop.f32.mrf.mxu0
      %v480 = vadd.f32 0.0, %v479
      %v481 = vpop.f32.mrf.mxu0
      %482 = vdwg.mxu0
      %484 = vrot.lane.b32.xlu0 %v480, 64
      %v485 = vpop.permute.xlu0 %484
      %v487 = vsel %vm326, %v401, %v485
      %v488 = vpack.c.bf16 %v487, %v487
      %489 = vst [vmem:[%s318] sm:$0xf] %v488
      %p490 = scmp.lt.s32.totalorder %s19, 1
      %s491 = scalar_select %p490, %s19, 1
      %p492 = scmp.lt.s32.totalorder %s20, 5
      %s493 = scalar_select %p492, %s20, 5
      %s494 = smul.addr %s491, 6
      %s495 = sadd.s32 %s493, %s494
      %s496 = smul.addr %s495, 4
      %s497 = scalar_lea.vmem %s4, %s496
      // Predicated region
      $region37: #{bert_arch_forward.14} parent=35 // pred_check
        %p498 = pneg %p161
      $region38: #{bert_arch_forward.14} parent=35 // pred_check_branch
        %500 = sbr.rel (%p498) target = $region40
      $region39: #{bert_arch_forward.14} parent=35 // pred_region
        _
      $region40: #{bert_arch_forward.14} parent=35 // pred_fallthru
        _
    $region36: #{bert_arch_forward.14} parent=5 // pred_fallthru
      _
    %p501 = scmp.le.s32.totalorder 2, %s10
    // Predicated region
    $region41: #{bert_arch_forward.14} parent=5 // pred_check
      %p502 = pneg %p501
    $region42: #{bert_arch_forward.14} parent=5 // pred_check_branch
      %504 = sbr.rel (%p502) target = $region44
    $region43: #{bert_arch_forward.14} parent=5 // pred_region
      %s505 = ssub.s32 %s10, 2
      // Predicated region
      $region45: #{bert_arch_forward.14} parent=43 // pred_check
        %p506 = pneg %p167
      $region46: #{bert_arch_forward.14} parent=43 // pred_check_branch
        %508 = sbr.rel (%p506) target = $region48
      $region47: #{bert_arch_forward.14} parent=43 // pred_region
        %p509 = scmp.lt.s32.totalorder %s21, 1
        %s510 = scalar_select %p509, %s21, 1
        %p511 = scmp.lt.s32.totalorder %s22, 5
        %s512 = scalar_select %p511, %s22, 5
        %s513 = smul.addr %s510, 6
        %s514 = sadd.s32 %s512, %s513
        %s515 = smul.addr %s514, 4
        %s516 = scalar_lea.vmem %s4, %s515
      $region48: #{bert_arch_forward.14} parent=43 // pred_fallthru
        _
    $region44: #{bert_arch_forward.14} parent=5 // pred_fallthru
      _
  $region6: #{bert_arch_forward.14} parent=0 // loop_footer
    %s14 = sadd.s32 1, %s10
  $region7: #{bert_arch_forward.14} parent=0 // loop_footer_branch
    %9 = sbr.rel target = $region3
  $region8: #{bert_arch_forward.14} parent=0 // loop_exit
    _

// kernel: bert_arch_forward.13
$region0: #{bert_arch_forward.13}
  #allocation0 [shape = 'u32[]', space=smem, size = 0x4, offset = 0x4, fixed_abs, tag = 'smem constant byte address 0x4 - core index']
  #allocation1 [shape = 'u32[72,128]{1,0:T(1,128)}', space=vmem, size = 0x9000, scoped, tag = 'internal scratch']
  #allocation2 [shape = 'f32[16,384]{1,0:T(8,128)}', space=vmem, size = 0x6000, scoped, tag = 'scratch operand']
  %s0 = inlined_call_operand.vmem [shape: bf16[16,768], index: 0, kind: input, shape index: {}]
  %s1 = inlined_call_operand.hbm [shape: bf16[768,2304], index: 1, kind: input, shape index: {}]
  %s2 = inlined_call_operand.hbm [shape: f32[1,2304], index: 2, kind: input, shape index: {}]
  %s3 = inlined_call_operand.vmem [shape: bf16[16,2304], index: 3, kind: output, shape index: {}]
  %s4 = sld [smem:[#allocation0]]
  $region109: #{bert_arch_forward.13} parent=0
    _
  %s6 = ssub.s32 1, %s4
  %s7 = scalar_select 0, %s6, %s4
  $region1: #{bert_arch_forward.13} parent=0
    #allocation3 [shape = 'u8[24576]{0}', space=vmem, size = 0x6000, scoped, tag = 'input window, operand 0']
    #allocation4 [shape = 'u8[589824]{0}', space=vmem, size = 0x90000, scoped, tag = 'input window, operand 1']
    #allocation5 [shape = 's32[2]{0}', space=sflag, size = 0x8, scoped, tag = 'scoped memory for bert_arch_forward.13']
    #allocation6 [shape = 'u8[3072]{0}', space=vmem, size = 0xc00, scoped, tag = 'input window, operand 2']
    #allocation7 [shape = 's32[2]{0}', space=sflag, size = 0x8, scoped, tag = 'scoped memory for bert_arch_forward.13']
    #allocation8 [shape = 'u8[24576]{0}', space=vmem, size = 0x6000, scoped, tag = 'output window, operand 0']
    %8 = vsyncpa [#allocation5], 0
    %s9 = scalar_lea.sflag [#allocation5], 1
    %10 = vsyncpa %s9, 0
    %11 = vsyncpa [#allocation7], 0
    %s12 = scalar_lea.sflag [#allocation7], 1
    %13 = vsyncpa %s12, 0
    loop: start=0, step=1, limit=14
    $region2: #{bert_arch_forward.13} parent=1 // loop_pre_header
      _
    $region3: #{bert_arch_forward.13} parent=1 // loop_header
      %s15 = sphi 0, %s19
      %p16 = scmp.ge.s32.totalorder %s15, 14
      %s22 = sphi 0, %s41
      %s23 = sphi 0, %s37
      %s24 = sphi 0, %s33
      %s25 = sphi 0, %s22
      %s26 = sphi 0, %s23
      %s27 = sphi 0, %s24
      %s28 = sphi 0, %s25
      %s29 = sphi 0, %s26
      %s30 = sphi 0, %s27
      %s46 = sphi 0, %s48
      %s49 = sphi 0, %s46
      %s50 = sphi 0, %s49
      %s66 = sphi 0, %s50
      %s74 = sphi 0, %s76
      %s77 = sphi 0, %s74
      %s78 = sphi 0, %s77
      %s94 = sphi 0, %s78
      %s100 = sphi 0, %s102
      %s103 = sphi 0, %s100
      %s104 = sphi 0, %s103
      %s120 = sphi 0, %s104
      %s128 = sphi 0, %s130
      %s131 = sphi 0, %s128
      %s132 = sphi 0, %s131
      %s148 = sphi 0, %s132
    $region4: #{bert_arch_forward.13} parent=1 // loop_header_branch
      %18 = sbr.rel (%p16) target = $region8
    $region5: #{bert_arch_forward.13} parent=1 // loop_body
      %s20 = ssub.s32 %s15, 1
      %s21 = ssub.s32 %s15, 2
      %s31 = sadd.s32 1, %s24
      %p32 = scmp.ge.s32.totalorder %s31, 2
      %s33 = scalar_select %p32, 0, %s31
      %s34 = sadd.s32 1, %s23
      %s35 = scalar_select %p32, %s34, %s23
      %p36 = scmp.ge.s32.totalorder %s35, 6
      %s37 = scalar_select %p36, 0, %s35
      %s38 = sadd.s32 1, %s22
      %s39 = scalar_select %p36, %s38, %s22
      %p40 = scmp.ge.s32.totalorder %s39, 1
      %s41 = scalar_select %p40, 0, %s39
      %s42 = ssub.s32 %s22, %s41
      %s43 = ssub.s32 %s24, %s33
      %s44 = sor.u32 %s42, %s43
      %p45 = scmp.eq.s32.totalorder %s44, 0
      %s47 = sadd.s32 %s46, 1
      %s48 = scalar_select %p45, %s46, %s47
      %p51 = pneg %p45
      %p52 = scmp.eq.s32.totalorder %s15, 11
      %p53 = por %p51, %p52
      %p54 = scmp.ne.s32.totalorder %s46, %s49
      %p55 = scmp.eq.s32.totalorder %s15, 0
      %p56 = por %p54, %p55
      %p57 = scmp.ne.s32.totalorder %s46, %s49
      %p58 = scmp.eq.s32.totalorder %s20, 11
      %p59 = por %p57, %p58
      %p60 = scmp.ne.s32.totalorder %s49, %s50
      %p61 = scmp.eq.s32.totalorder %s20, 0
      %p62 = por %p60, %p61
      %p63 = scmp.ne.s32.totalorder %s49, %s50
      %p64 = scmp.eq.s32.totalorder %s21, 11
      %p65 = por %p63, %p64
      %p67 = scmp.ne.s32.totalorder %s50, %s66
      %p68 = scmp.eq.s32.totalorder %s21, 0
      %p69 = por %p67, %p68
      %s70 = ssub.s32 %s24, %s33
      %s71 = ssub.s32 %s23, %s37
      %s72 = sor.u32 %s70, %s71
      %p73 = scmp.eq.s32.totalorder %s72, 0
      %s75 = sadd.s32 %s74, 1
      %s76 = scalar_select %p73, %s74, %s75
      %p79 = pneg %p73
      %p80 = scmp.eq.s32.totalorder %s15, 11
      %p81 = por %p79, %p80
      %p82 = scmp.ne.s32.totalorder %s74, %s77
      %p83 = scmp.eq.s32.totalorder %s15, 0
      %p84 = por %p82, %p83
      %p85 = scmp.ne.s32.totalorder %s74, %s77
      %p86 = scmp.eq.s32.totalorder %s20, 11
      %p87 = por %p85, %p86
      %p88 = scmp.ne.s32.totalorder %s77, %s78
      %p89 = scmp.eq.s32.totalorder %s20, 0
      %p90 = por %p88, %p89
      %p91 = scmp.ne.s32.totalorder %s77, %s78
      %p92 = scmp.eq.s32.totalorder %s21, 11
      %p93 = por %p91, %p92
      %p95 = scmp.ne.s32.totalorder %s78, %s94
      %p96 = scmp.eq.s32.totalorder %s21, 0
      %p97 = por %p95, %p96
      %s98 = ssub.s32 %s23, %s37
      %p99 = scmp.eq.s32.totalorder %s98, 0
      %s101 = sadd.s32 %s100, 1
      %s102 = scalar_select %p99, %s100, %s101
      %p105 = pneg %p99
      %p106 = scmp.eq.s32.totalorder %s15, 11
      %p107 = por %p105, %p106
      %p108 = scmp.ne.s32.totalorder %s100, %s103
      %p109 = scmp.eq.s32.totalorder %s15, 0
      %p110 = por %p108, %p109
      %p111 = scmp.ne.s32.totalorder %s100, %s103
      %p112 = scmp.eq.s32.totalorder %s20, 11
      %p113 = por %p111, %p112
      %p114 = scmp.ne.s32.totalorder %s103, %s104
      %p115 = scmp.eq.s32.totalorder %s20, 0
      %p116 = por %p114, %p115
      %p117 = scmp.ne.s32.totalorder %s103, %s104
      %p118 = scmp.eq.s32.totalorder %s21, 11
      %p119 = por %p117, %p118
      %p121 = scmp.ne.s32.totalorder %s104, %s120
      %p122 = scmp.eq.s32.totalorder %s21, 0
      %p123 = por %p121, %p122
      %s124 = ssub.s32 %s22, %s41
      %s125 = ssub.s32 %s23, %s37
      %s126 = sor.u32 %s124, %s125
      %p127 = scmp.eq.s32.totalorder %s126, 0
      %s129 = sadd.s32 %s128, 1
      %s130 = scalar_select %p127, %s128, %s129
      %p133 = pneg %p127
      %p134 = scmp.eq.s32.totalorder %s15, 11
      %p135 = por %p133, %p134
      %p136 = scmp.ne.s32.totalorder %s128, %s131
      %p137 = scmp.eq.s32.totalorder %s15, 0
      %p138 = por %p136, %p137
      %p139 = scmp.ne.s32.totalorder %s128, %s131
      %p140 = scmp.eq.s32.totalorder %s20, 11
      %p141 = por %p139, %p140
      %p142 = scmp.ne.s32.totalorder %s131, %s132
      %p143 = scmp.eq.s32.totalorder %s20, 0
      %p144 = por %p142, %p143
      %p145 = scmp.ne.s32.totalorder %s131, %s132
      %p146 = scmp.eq.s32.totalorder %s21, 11
      %p147 = por %p145, %p146
      %p149 = scmp.ne.s32.totalorder %s132, %s148
      %p150 = scmp.eq.s32.totalorder %s21, 0
      %p151 = por %p149, %p150
      %p152 = scmp.le.s32.totalorder 1, %s15
      %p153 = scmp.lt.s32.totalorder %s15, 13
      %p154 = pnand %p152, %p153
      %p155 = pneg %p154
      // Predicated region
      $region9: #{bert_arch_forward.13} parent=5 // pred_check
        _
      $region10: #{bert_arch_forward.13} parent=5 // pred_check_branch
        %157 = sbr.rel (%p154) target = $region12
      $region11: #{bert_arch_forward.13} parent=5 // pred_region
        %s158 = ssub.s32 %s15, 1
      $region12: #{bert_arch_forward.13} parent=5 // pred_fallthru
        _
      %p159 = scmp.lt.s32.totalorder %s15, 12
      // Predicated region
      $region13: #{bert_arch_forward.13} parent=5 // pred_check
        %p160 = pneg %p159
      $region14: #{bert_arch_forward.13} parent=5 // pred_check_branch
        %162 = sbr.rel (%p160) target = $region16
      $region15: #{bert_arch_forward.13} parent=5 // pred_region
        // Predicated region
        $region17: #{bert_arch_forward.13} parent=15 // pred_check
          %p163 = pneg %p56
        $region18: #{bert_arch_forward.13} parent=15 // pred_check_branch
          %165 = sbr.rel (%p163) target = $region20
        $region19: #{bert_arch_forward.13} parent=15 // pred_region
          %s166 = sand.u32 %s46, 1
          %s167 = sand.u32 %s46, 1
          %s168 = smul.addr %s167, 24
          %s169 = scalar_lea.vmem [#allocation3], %s168
          %s170 = smul.u32 2, %s22
          %s171 = smul.u32 3, %s24
          %s172 = smul.addr %s170, 6
          %s173 = sadd.s32 %s171, %s172
          %s174 = smul.addr %s173, 4
          %s175 = scalar_lea.vmem %s0, %s174
          // Predicated region
          $region21: #{bert_arch_forward.13} parent=19 // pred_check
            _
          $region22: #{bert_arch_forward.13} parent=19 // pred_check_branch
            %177 = sbr.rel (0) target = $region24
          $region23: #{bert_arch_forward.13} parent=19 // pred_region
            // Predicated region
            $region25: #{bert_arch_forward.13} parent=23 // pred_check
              _
            $region26: #{bert_arch_forward.13} parent=23 // pred_check_branch
              %179 = sbr.rel (0) target = $region28
            $region27: #{bert_arch_forward.13} parent=23 // pred_region
              %s180 = scalar_lea.vmem %s175, 8
              %s181 = scalar_lea.vmem %s169, 8 [#allocation3]
              loop: start=0, step=1, limit=1
              $region29: #{bert_arch_forward.13} parent=27 // loop_pre_header
                _
              $region30: #{bert_arch_forward.13} parent=27 // loop_header
                %s183 = sphi 0, %s187
                %p184 = scmp.ge.s32.totalorder %s183, 1
                %s188 = sphi %s175, %s175
                %s189 = sphi %s169, %s169
              $region31: #{bert_arch_forward.13} parent=27 // loop_header_branch
                %186 = sbr.rel (%p184) target = $region35
              $region32: #{bert_arch_forward.13} parent=27 // loop_body
                %v190 = vld [vmem:[%s188] sm:$0xff]
                %191 = vst [vmem:[%s189] sm:$0xff] %v190
                %v192 = vld [vmem:[%s188 + $0x18] sm:$0xff]
                %193 = vst [vmem:[%s189 + $0xc] sm:$0xff] %v192
              $region33: #{bert_arch_forward.13} parent=27 // loop_footer
                %s187 = sadd.s32 1, %s183
              $region34: #{bert_arch_forward.13} parent=27 // loop_footer_branch
                %182 = sbr.rel target = $region30
              $region35: #{bert_arch_forward.13} parent=27 // loop_exit
                _
              %s195 = ssub.s32 16, 1
              loop: start=0, step=1, limit=1
              $region36: #{bert_arch_forward.13} parent=27 // loop_pre_header
                _
              $region37: #{bert_arch_forward.13} parent=27 // loop_header
                %s197 = sphi 0, %s201
                %p198 = scmp.ge.s32.totalorder %s197, 1
                %s202 = sphi %s180, %s180
                %s203 = sphi %s181, %s181
              $region38: #{bert_arch_forward.13} parent=27 // loop_header_branch
                %200 = sbr.rel (%p198) target = $region42
              $region39: #{bert_arch_forward.13} parent=27 // loop_body
                %v204 = vld [vmem:[%s202] sm:%s195]
                %205 = vst [vmem:[%s203] sm:%s195] %v204
                %v206 = vld [vmem:[%s202 + $0x18] sm:%s195]
                %207 = vst [vmem:[%s203 + $0xc] sm:%s195] %v206
              $region40: #{bert_arch_forward.13} parent=27 // loop_footer
                %s201 = sadd.s32 1, %s197
              $region41: #{bert_arch_forward.13} parent=27 // loop_footer_branch
                %196 = sbr.rel target = $region37
              $region42: #{bert_arch_forward.13} parent=27 // loop_exit
                _
            $region28: #{bert_arch_forward.13} parent=23 // pred_fallthru
              _
          $region24: #{bert_arch_forward.13} parent=19 // pred_fallthru
            _
          %208 = vnop
        $region20: #{bert_arch_forward.13} parent=15 // pred_fallthru
          _
        // Predicated region
        $region43: #{bert_arch_forward.13} parent=15 // pred_check
          %p209 = pneg %p84
        $region44: #{bert_arch_forward.13} parent=15 // pred_check_branch
          %211 = sbr.rel (%p209) target = $region46
        $region45: #{bert_arch_forward.13} parent=15 // pred_region
          %s212 = sand.u32 %s74, 1
          %s213 = scalar_lea.sflag [#allocation5], %s212
          %s214 = sand.u32 %s74, 1
          %s215 = smul.addr %s214, 576
          %s216 = scalar_lea.vmem [#allocation4], %s215
          %s217 = smul.u32 48, %s24
          %s218 = smul.u32 3, %s23
          %220 = vsyncadd %s213, 0
          %s221 = smul.addr %s217, 18
          %s222 = sadd.s32 %s218, %s221
          %s223 = smul.addr %s222, 4
          %s224 = scalar_lea.hbm %s1, %s223
          %s225 = sshll.u32 %s224, 4
          %s226 = int_to_ptr.hbm [resolvable:$true] %s225
          %s227 = sshll.u32 %s216, 4
          %s228 = int_to_ptr.vmem [resolvable:$true] %s227
          %233 = dma.hbm_to_vmem [thread:$0]  %s226, 9216, %s228, %s213, 1152, 192, 12
        $region46: #{bert_arch_forward.13} parent=15 // pred_fallthru
          _
        // Predicated region
        $region47: #{bert_arch_forward.13} parent=15 // pred_check
          %p234 = pneg %p110
        $region48: #{bert_arch_forward.13} parent=15 // pred_check_branch
          %236 = sbr.rel (%p234) target = $region50
        $region49: #{bert_arch_forward.13} parent=15 // pred_region
          %s237 = sand.u32 %s100, 1
          %s238 = scalar_lea.sflag [#allocation7], %s237
          %s239 = sand.u32 %s100, 1
          %s240 = smul.addr %s239, 3
          %s241 = scalar_lea.vmem [#allocation6], %s240
          %s242 = smul.u32 3, %s23
          %244 = vsyncadd %s238, 0
          %s245 = scalar_lea.hbm %s2, %s242
          %s247 = sshll.u32 %s245, 4
          %s248 = int_to_ptr.hbm [resolvable:$true] %s247
          %s249 = sshll.u32 %s241, 4
          %s250 = int_to_ptr.vmem [resolvable:$true] %s249
          %252 = dma.hbm_to_vmem [thread:$0]  %s248, 48, %s250, %s238
        $region50: #{bert_arch_forward.13} parent=15 // pred_fallthru
          _
      $region16: #{bert_arch_forward.13} parent=5 // pred_fallthru
        _
      %p253 = scmp.le.s32.totalorder 1, %s15
      %p254 = scmp.lt.s32.totalorder %s15, 13
      %p255 = pnand %p253, %p254
      %p256 = pneg %p255
      // Predicated region
      $region51: #{bert_arch_forward.13} parent=5 // pred_check
        _
      $region52: #{bert_arch_forward.13} parent=5 // pred_check_branch
        %258 = sbr.rel (%p255) target = $region54
      $region53: #{bert_arch_forward.13} parent=5 // pred_region
        %s259 = ssub.s32 %s15, 1
        %s260 = sand.u32 %s49, 1
        %s261 = sand.u32 %s49, 1
        %s262 = smul.addr %s261, 24
        %s263 = scalar_lea.vmem [#allocation3], %s262
        // Predicated region
        $region55: #{bert_arch_forward.13} parent=53 // pred_check
          %p264 = pneg %p62
        $region56: #{bert_arch_forward.13} parent=53 // pred_check_branch
          %266 = sbr.rel (%p264) target = $region58
        $region57: #{bert_arch_forward.13} parent=53 // pred_region
          _
        $region58: #{bert_arch_forward.13} parent=53 // pred_fallthru
          _
        %s267 = sand.u32 %s77, 1
        %s268 = scalar_lea.sflag [#allocation5], %s267
        %s269 = sand.u32 %s77, 1
        %s270 = smul.addr %s269, 576
        %s271 = scalar_lea.vmem [#allocation4], %s270
        // Predicated region
        $region59: #{bert_arch_forward.13} parent=53 // pred_check
          %p272 = pneg %p90
        $region60: #{bert_arch_forward.13} parent=53 // pred_check_branch
          %274 = sbr.rel (%p272) target = $region62
        $region61: #{bert_arch_forward.13} parent=53 // pred_region
          %276 = dma.done %s268, 9216
        $region62: #{bert_arch_forward.13} parent=53 // pred_fallthru
          _
        %s277 = sand.u32 %s103, 1
        %s278 = scalar_lea.sflag [#allocation7], %s277
        %s279 = sand.u32 %s103, 1
        %s280 = smul.addr %s279, 3
        %s281 = scalar_lea.vmem [#allocation6], %s280
        // Predicated region
        $region63: #{bert_arch_forward.13} parent=53 // pred_check
          %p282 = pneg %p116
        $region64: #{bert_arch_forward.13} parent=53 // pred_check_branch
          %284 = sbr.rel (%p282) target = $region66
        $region65: #{bert_arch_forward.13} parent=53 // pred_region
          %286 = dma.done %s278, 48
        $region66: #{bert_arch_forward.13} parent=53 // pred_fallthru
          _
        %s287 = sand.u32 %s49, 1
        %s288 = sand.u32 %s49, 1
        %s289 = smul.addr %s288, 24
        %s290 = scalar_lea.vmem [#allocation3], %s289
        %p291 = pneg %p62
        %p292 = pneg %p59
        %s293 = sand.u32 %s77, 1
        %s294 = scalar_lea.sflag [#allocation5], %s293
        %s295 = sand.u32 %s77, 1
        %s296 = smul.addr %s295, 576
        %s297 = scalar_lea.vmem [#allocation4], %s296
        %p298 = pneg %p90
        %p299 = pneg %p87
        %s300 = sand.u32 %s103, 1
        %s301 = scalar_lea.sflag [#allocation7], %s300
        %s302 = sand.u32 %s103, 1
        %s303 = smul.addr %s302, 3
        %s304 = scalar_lea.vmem [#allocation6], %s303
        %p305 = pneg %p116
        %p306 = pneg %p113
        %p307 = pneg %p144
        %p308 = pneg %p141
        %s309 = sand.u32 %s131, 1
        %s310 = sand.u32 %s131, 1
        %s311 = smul.addr %s310, 24
        %s312 = scalar_lea.vmem [#allocation8], %s311
        %s313 = smul.u32 2, %s25
        %s314 = smul.u32 3, %s27
        %s315 = smul.u32 48, %s27
        %s316 = smul.u32 3, %s26
        %s317 = smul.u32 3, %s26
        %s318 = smul.u32 2, %s25
        %s319 = smul.u32 3, %s26
        %p320 = scmp.eq.s32.totalorder %s27, 0
        // Predicated region
        $region67: #{bert_arch_forward.13} parent=53 // pred_check
          %p321 = pneg %p320
        $region68: #{bert_arch_forward.13} parent=53 // pred_check_branch
          %323 = sbr.rel (%p321) target = $region70
        $region69: #{bert_arch_forward.13} parent=53 // pred_region
          %324 = vst [vmem:[#allocation2] sm:$0xff] 0.0
          %325 = vst [vmem:[#allocation2 + $0x8] sm:$0xff] 0.0
          %326 = vst [vmem:[#allocation2 + $0x10] sm:$0xff] 0.0
          %327 = vst [vmem:[#allocation2 + $0x18] sm:$0xff] 0.0
          %328 = vst [vmem:[#allocation2 + $0x20] sm:$0xff] 0.0
          %329 = vst [vmem:[#allocation2 + $0x28] sm:$0xff] 0.0
        $region70: #{bert_arch_forward.13} parent=53 // pred_fallthru
          _
        %v330 = vld [vmem:[#allocation2] sm:$0xff]
        %v331 = vld [vmem:[#allocation2 + $0x8] sm:$0xff]
        %v332 = vld [vmem:[#allocation2 + $0x10] sm:$0xff]
        %v333 = vld [vmem:[#allocation2 + $0x18] sm:$0xff]
        %v334 = vld [vmem:[#allocation2 + $0x20] sm:$0xff]
        %v335 = vld [vmem:[#allocation2 + $0x28] sm:$0xff]
        %v336 = vld [vmem:[%s263] sm:$0xff]
        %v337 = vld [vmem:[%s263 + $0x8] sm:$0xf]
        %v338 = vld [vmem:[%s263 + $0xc] sm:$0xff]
        %v339 = vld [vmem:[%s263 + $0x14] sm:$0xf]
        %v340 = vld [vmem:[%s271] sm:$0xff]
        %v341 = vld [vmem:[%s271 + $0x8] sm:$0xf]
        %v342 = vld [vmem:[%s271 + $0xc] sm:$0xff]
        %v343 = vld [vmem:[%s271 + $0x14] sm:$0xf]
        %v344 = vld [vmem:[%s271 + $0x18] sm:$0xff]
        %v345 = vld [vmem:[%s271 + $0x20] sm:$0xf]
        %v346 = vld [vmem:[%s271 + $0x24] sm:$0xff]
        %v347 = vld [vmem:[%s271 + $0x2c] sm:$0xf]
        %v348 = vld [vmem:[%s271 + $0x30] sm:$0xff]
        %v349 = vld [vmem:[%s271 + $0x38] sm:$0xf]
        %v350 = vld [vmem:[%s271 + $0x3c] sm:$0xff]
        %v351 = vld [vmem:[%s271 + $0x44] sm:$0xf]
        %v352 = vld [vmem:[%s271 + $0x48] sm:$0xff]
        %v353 = vld [vmem:[%s271 + $0x50] sm:$0xf]
        %v354 = vld [vmem:[%s271 + $0x54] sm:$0xff]
        %v355 = vld [vmem:[%s271 + $0x5c] sm:$0xf]
        %v356 = vld [vmem:[%s271 + $0x60] sm:$0xff]
        %v357 = vld [vmem:[%s271 + $0x68] sm:$0xf]
        %v358 = vld [vmem:[%s271 + $0x6c] sm:$0xff]
        %v359 = vld [vmem:[%s271 + $0x74] sm:$0xf]
        %v360 = vld [vmem:[%s271 + $0x78] sm:$0xff]
        %v361 = vld [vmem:[%s271 + $0x80] sm:$0xf]
        %v362 = vld [vmem:[%s271 + $0x84] sm:$0xff]
        %v363 = vld [vmem:[%s271 + $0x8c] sm:$0xf]
        %v364 = vld [vmem:[%s271 + $0x90] sm:$0xff]
        %v365 = vld [vmem:[%s271 + $0x98] sm:$0xf]
        %v366 = vld [vmem:[%s271 + $0x9c] sm:$0xff]
        %v367 = vld [vmem:[%s271 + $0xa4] sm:$0xf]
        %v368 = vld [vmem:[%s271 + $0xa8] sm:$0xff]
        %v369 = vld [vmem:[%s271 + $0xb0] sm:$0xf]
        %v370 = vld [vmem:[%s271 + $0xb4] sm:$0xff]
        %v371 = vld [vmem:[%s271 + $0xbc] sm:$0xf]
        %v372 = vld [vmem:[%s271 + $0xc0] sm:$0xff]
        %v373 = vld [vmem:[%s271 + $0xc8] sm:$0xf]
        %v374 = vld [vmem:[%s271 + $0xcc] sm:$0xff]
        %v375 = vld [vmem:[%s271 + $0xd4] sm:$0xf]
        %v376 = vld [vmem:[%s271 + $0xd8] sm:$0xff]
        %v377 = vld [vmem:[%s271 + $0xe0] sm:$0xf]
        %v378 = vld [vmem:[%s271 + $0xe4] sm:$0xff]
        %v379 = vld [vmem:[%s271 + $0xec] sm:$0xf]
        %v380 = vld [vmem:[%s271 + $0xf0] sm:$0xff]
        %v381 = vld [vmem:[%s271 + $0xf8] sm:$0xf]
        %v382 = vld [vmem:[%s271 + $0xfc] sm:$0xff]
        %v383 = vld [vmem:[%s271 + $0x104] sm:$0xf]
        %v384 = vld [vmem:[%s271 + $0x108] sm:$0xff]
        %v385 = vld [vmem:[%s271 + $0x110] sm:$0xf]
        %v386 = vld [vmem:[%s271 + $0x114] sm:$0xff]
        %v387 = vld [vmem:[%s271 + $0x11c] sm:$0xf]
        %v388 = vld [vmem:[%s271 + $0x120] sm:$0xff]
        %v389 = vld [vmem:[%s271 + $0x128] sm:$0xf]
        %v390 = vld [vmem:[%s271 + $0x12c] sm:$0xff]
        %v391 = vld [vmem:[%s271 + $0x134] sm:$0xf]
        %v392 = vld [vmem:[%s271 + $0x138] sm:$0xff]
        %v393 = vld [vmem:[%s271 + $0x140] sm:$0xf]
        %v394 = vld [vmem:[%s271 + $0x144] sm:$0xff]
        %v395 = vld [vmem:[%s271 + $0x14c] sm:$0xf]
        %v396 = vld [vmem:[%s271 + $0x150] sm:$0xff]
        %v397 = vld [vmem:[%s271 + $0x158] sm:$0xf]
        %v398 = vld [vmem:[%s271 + $0x15c] sm:$0xff]
        %v399 = vld [vmem:[%s271 + $0x164] sm:$0xf]
        %v400 = vld [vmem:[%s271 + $0x168] sm:$0xff]
        %v401 = vld [vmem:[%s271 + $0x170] sm:$0xf]
        %v402 = vld [vmem:[%s271 + $0x174] sm:$0xff]
        %v403 = vld [vmem:[%s271 + $0x17c] sm:$0xf]
        %v404 = vld [vmem:[%s271 + $0x180] sm:$0xff]
        %v405 = vld [vmem:[%s271 + $0x188] sm:$0xf]
        %v406 = vld [vmem:[%s271 + $0x18c] sm:$0xff]
        %v407 = vld [vmem:[%s271 + $0x194] sm:$0xf]
        %v408 = vld [vmem:[%s271 + $0x198] sm:$0xff]
        %v409 = vld [vmem:[%s271 + $0x1a0] sm:$0xf]
        %v410 = vld [vmem:[%s271 + $0x1a4] sm:$0xff]
        %v411 = vld [vmem:[%s271 + $0x1ac] sm:$0xf]
        %v412 = vld [vmem:[%s271 + $0x1b0] sm:$0xff]
        %v413 = vld [vmem:[%s271 + $0x1b8] sm:$0xf]
        %v414 = vld [vmem:[%s271 + $0x1bc] sm:$0xff]
        %v415 = vld [vmem:[%s271 + $0x1c4] sm:$0xf]
        %v416 = vld [vmem:[%s271 + $0x1c8] sm:$0xff]
        %v417 = vld [vmem:[%s271 + $0x1d0] sm:$0xf]
        %v418 = vld [vmem:[%s271 + $0x1d4] sm:$0xff]
        %v419 = vld [vmem:[%s271 + $0x1dc] sm:$0xf]
        %v420 = vld [vmem:[%s271 + $0x1e0] sm:$0xff]
        %v421 = vld [vmem:[%s271 + $0x1e8] sm:$0xf]
        %v422 = vld [vmem:[%s271 + $0x1ec] sm:$0xff]
        %v423 = vld [vmem:[%s271 + $0x1f4] sm:$0xf]
        %v424 = vld [vmem:[%s271 + $0x1f8] sm:$0xff]
        %v425 = vld [vmem:[%s271 + $0x200] sm:$0xf]
        %v426 = vld [vmem:[%s271 + $0x204] sm:$0xff]
        %v427 = vld [vmem:[%s271 + $0x20c] sm:$0xf]
        %v428 = vld [vmem:[%s271 + $0x210] sm:$0xff]
        %v429 = vld [vmem:[%s271 + $0x218] sm:$0xf]
        %v430 = vld [vmem:[%s271 + $0x21c] sm:$0xff]
        %v431 = vld [vmem:[%s271 + $0x224] sm:$0xf]
        %v432 = vld [vmem:[%s271 + $0x228] sm:$0xff]
        %v433 = vld [vmem:[%s271 + $0x230] sm:$0xf]
        %v434 = vld [vmem:[%s271 + $0x234] sm:$0xff]
        %v435 = vld [vmem:[%s271 + $0x23c] sm:$0xf]
        %v440 = vunpack.c.l.b16 %v336
        %v441 = vunpack.c.h.b16 %v336
        %v442 = vunpack.c.l.b16 %v337
        %v443 = vunpack.c.l.b16 %v338
        %v444 = vunpack.c.h.b16 %v338
        %v445 = vunpack.c.l.b16 %v339
        %v446 = vpack.c.b16 %v443, %v440
        %v447 = vpack.c.b16 %v444, %v441
        %v448 = vpack.c.b16 %v445, %v442
        %v548 = vunpack.c.l.b16 %v340
        %v549 = vunpack.c.h.b16 %v340
        %v550 = vunpack.c.l.b16 %v341
        %v551 = vunpack.c.l.b16 %v342
        %v552 = vunpack.c.h.b16 %v342
        %v553 = vunpack.c.l.b16 %v343
        %v554 = vunpack.c.l.b16 %v344
        %v555 = vunpack.c.h.b16 %v344
        %v556 = vunpack.c.l.b16 %v345
        %v557 = vunpack.c.l.b16 %v346
        %v558 = vunpack.c.h.b16 %v346
        %v559 = vunpack.c.l.b16 %v347
        %v560 = vunpack.c.l.b16 %v348
        %v561 = vunpack.c.h.b16 %v348
        %v562 = vunpack.c.l.b16 %v349
        %v563 = vunpack.c.l.b16 %v350
        %v564 = vunpack.c.h.b16 %v350
        %v565 = vunpack.c.l.b16 %v351
        %v566 = vunpack.c.l.b16 %v352
        %v567 = vunpack.c.h.b16 %v352
        %v568 = vunpack.c.l.b16 %v353
        %v569 = vunpack.c.l.b16 %v354
        %v570 = vunpack.c.h.b16 %v354
        %v571 = vunpack.c.l.b16 %v355
        %v572 = vunpack.c.l.b16 %v356
        %v573 = vunpack.c.h.b16 %v356
        %v574 = vunpack.c.l.b16 %v357
        %v575 = vunpack.c.l.b16 %v358
        %v576 = vunpack.c.h.b16 %v358
        %v577 = vunpack.c.l.b16 %v359
        %v578 = vunpack.c.l.b16 %v360
        %v579 = vunpack.c.h.b16 %v360
        %v580 = vunpack.c.l.b16 %v361
        %v581 = vunpack.c.l.b16 %v362
        %v582 = vunpack.c.h.b16 %v362
        %v583 = vunpack.c.l.b16 %v363
        %v584 = vunpack.c.l.b16 %v364
        %v585 = vunpack.c.h.b16 %v364
        %v586 = vunpack.c.l.b16 %v365
        %v587 = vunpack.c.l.b16 %v366
        %v588 = vunpack.c.h.b16 %v366
        %v589 = vunpack.c.l.b16 %v367
        %v590 = vunpack.c.l.b16 %v368
        %v591 = vunpack.c.h.b16 %v368
        %v592 = vunpack.c.l.b16 %v369
        %v593 = vunpack.c.l.b16 %v370
        %v594 = vunpack.c.h.b16 %v370
        %v595 = vunpack.c.l.b16 %v371
        %v596 = vunpack.c.l.b16 %v372
        %v597 = vunpack.c.h.b16 %v372
        %v598 = vunpack.c.l.b16 %v373
        %v599 = vunpack.c.l.b16 %v374
        %v600 = vunpack.c.h.b16 %v374
        %v601 = vunpack.c.l.b16 %v375
        %v602 = vunpack.c.l.b16 %v376
        %v603 = vunpack.c.h.b16 %v376
        %v604 = vunpack.c.l.b16 %v377
        %v605 = vunpack.c.l.b16 %v378
        %v606 = vunpack.c.h.b16 %v378
        %v607 = vunpack.c.l.b16 %v379
        %v608 = vunpack.c.l.b16 %v380
        %v609 = vunpack.c.h.b16 %v380
        %v610 = vunpack.c.l.b16 %v381
        %v611 = vunpack.c.l.b16 %v382
        %v612 = vunpack.c.h.b16 %v382
        %v613 = vunpack.c.l.b16 %v383
        %v614 = vunpack.c.l.b16 %v384
        %v615 = vunpack.c.h.b16 %v384
        %v616 = vunpack.c.l.b16 %v385
        %v617 = vunpack.c.l.b16 %v386
        %v618 = vunpack.c.h.b16 %v386
        %v619 = vunpack.c.l.b16 %v387
        %v620 = vunpack.c.l.b16 %v388
        %v621 = vunpack.c.h.b16 %v388
        %v622 = vunpack.c.l.b16 %v389
        %v623 = vunpack.c.l.b16 %v390
        %v624 = vunpack.c.h.b16 %v390
        %v625 = vunpack.c.l.b16 %v391
        %v626 = vunpack.c.l.b16 %v392
        %v627 = vunpack.c.h.b16 %v392
        %v628 = vunpack.c.l.b16 %v393
        %v629 = vunpack.c.l.b16 %v394
        %v630 = vunpack.c.h.b16 %v394
        %v631 = vunpack.c.l.b16 %v395
        %v632 = vunpack.c.l.b16 %v396
        %v633 = vunpack.c.h.b16 %v396
        %v634 = vunpack.c.l.b16 %v397
        %v635 = vunpack.c.l.b16 %v398
        %v636 = vunpack.c.h.b16 %v398
        %v637 = vunpack.c.l.b16 %v399
        %v638 = vunpack.c.l.b16 %v400
        %v639 = vunpack.c.h.b16 %v400
        %v640 = vunpack.c.l.b16 %v401
        %v641 = vunpack.c.l.b16 %v402
        %v642 = vunpack.c.h.b16 %v402
        %v643 = vunpack.c.l.b16 %v403
        %v644 = vunpack.c.l.b16 %v404
        %v645 = vunpack.c.h.b16 %v404
        %v646 = vunpack.c.l.b16 %v405
        %v647 = vunpack.c.l.b16 %v406
        %v648 = vunpack.c.h.b16 %v406
        %v649 = vunpack.c.l.b16 %v407
        %v650 = vunpack.c.l.b16 %v408
        %v651 = vunpack.c.h.b16 %v408
        %v652 = vunpack.c.l.b16 %v409
        %v653 = vunpack.c.l.b16 %v410
        %v654 = vunpack.c.h.b16 %v410
        %v655 = vunpack.c.l.b16 %v411
        %v656 = vunpack.c.l.b16 %v412
        %v657 = vunpack.c.h.b16 %v412
        %v658 = vunpack.c.l.b16 %v413
        %v659 = vunpack.c.l.b16 %v414
        %v660 = vunpack.c.h.b16 %v414
        %v661 = vunpack.c.l.b16 %v415
        %v662 = vunpack.c.l.b16 %v416
        %v663 = vunpack.c.h.b16 %v416
        %v664 = vunpack.c.l.b16 %v417
        %v665 = vunpack.c.l.b16 %v418
        %v666 = vunpack.c.h.b16 %v418
        %v667 = vunpack.c.l.b16 %v419
        %v668 = vunpack.c.l.b16 %v420
        %v669 = vunpack.c.h.b16 %v420
        %v670 = vunpack.c.l.b16 %v421
        %v671 = vunpack.c.l.b16 %v422
        %v672 = vunpack.c.h.b16 %v422
        %v673 = vunpack.c.l.b16 %v423
        %v674 = vunpack.c.l.b16 %v424
        %v675 = vunpack.c.h.b16 %v424
        %v676 = vunpack.c.l.b16 %v425
        %v677 = vunpack.c.l.b16 %v426
        %v678 = vunpack.c.h.b16 %v426
        %v679 = vunpack.c.l.b16 %v427
        %v680 = vunpack.c.l.b16 %v428
        %v681 = vunpack.c.h.b16 %v428
        %v682 = vunpack.c.l.b16 %v429
        %v683 = vunpack.c.l.b16 %v430
        %v684 = vunpack.c.h.b16 %v430
        %v685 = vunpack.c.l.b16 %v431
        %v686 = vunpack.c.l.b16 %v432
        %v687 = vunpack.c.h.b16 %v432
        %v688 = vunpack.c.l.b16 %v433
        %v689 = vunpack.c.l.b16 %v434
        %v690 = vunpack.c.h.b16 %v434
        %v691 = vunpack.c.l.b16 %v435
        %v692 = vpack.c.b16 %v551, %v548
        %v693 = vpack.c.b16 %v552, %v549
        %v694 = vpack.c.b16 %v553, %v550
        %v695 = vpack.c.b16 %v557, %v554
        %v696 = vpack.c.b16 %v558, %v555
        %v697 = vpack.c.b16 %v559, %v556
        %v698 = vpack.c.b16 %v563, %v560
        %v699 = vpack.c.b16 %v564, %v561
        %v700 = vpack.c.b16 %v565, %v562
        %v701 = vpack.c.b16 %v569, %v566
        %v702 = vpack.c.b16 %v570, %v567
        %v703 = vpack.c.b16 %v571, %v568
        %v704 = vpack.c.b16 %v575, %v572
        %v705 = vpack.c.b16 %v576, %v573
        %v706 = vpack.c.b16 %v577, %v574
        %v707 = vpack.c.b16 %v581, %v578
        %v708 = vpack.c.b16 %v582, %v579
        %v709 = vpack.c.b16 %v583, %v580
        %v710 = vpack.c.b16 %v587, %v584
        %v711 = vpack.c.b16 %v588, %v585
        %v712 = vpack.c.b16 %v589, %v586
        %v713 = vpack.c.b16 %v593, %v590
        %v714 = vpack.c.b16 %v594, %v591
        %v715 = vpack.c.b16 %v595, %v592
        %v716 = vpack.c.b16 %v599, %v596
        %v717 = vpack.c.b16 %v600, %v597
        %v718 = vpack.c.b16 %v601, %v598
        %v719 = vpack.c.b16 %v605, %v602
        %v720 = vpack.c.b16 %v606, %v603
        %v721 = vpack.c.b16 %v607, %v604
        %v722 = vpack.c.b16 %v611, %v608
        %v723 = vpack.c.b16 %v612, %v609
        %v724 = vpack.c.b16 %v613, %v610
        %v725 = vpack.c.b16 %v617, %v614
        %v726 = vpack.c.b16 %v618, %v615
        %v727 = vpack.c.b16 %v619, %v616
        %v728 = vpack.c.b16 %v623, %v620
        %v729 = vpack.c.b16 %v624, %v621
        %v730 = vpack.c.b16 %v625, %v622
        %v731 = vpack.c.b16 %v629, %v626
        %v732 = vpack.c.b16 %v630, %v627
        %v733 = vpack.c.b16 %v631, %v628
        %v734 = vpack.c.b16 %v635, %v632
        %v735 = vpack.c.b16 %v636, %v633
        %v736 = vpack.c.b16 %v637, %v634
        %v737 = vpack.c.b16 %v641, %v638
        %v738 = vpack.c.b16 %v642, %v639
        %v739 = vpack.c.b16 %v643, %v640
        %v740 = vpack.c.b16 %v647, %v644
        %v741 = vpack.c.b16 %v648, %v645
        %v742 = vpack.c.b16 %v649, %v646
        %v743 = vpack.c.b16 %v653, %v650
        %v744 = vpack.c.b16 %v654, %v651
        %v745 = vpack.c.b16 %v655, %v652
        %v746 = vpack.c.b16 %v659, %v656
        %v747 = vpack.c.b16 %v660, %v657
        %v748 = vpack.c.b16 %v661, %v658
        %v749 = vpack.c.b16 %v665, %v662
        %v750 = vpack.c.b16 %v666, %v663
        %v751 = vpack.c.b16 %v667, %v664
        %v752 = vpack.c.b16 %v671, %v668
        %v753 = vpack.c.b16 %v672, %v669
        %v754 = vpack.c.b16 %v673, %v670
        %v755 = vpack.c.b16 %v677, %v674
        %v756 = vpack.c.b16 %v678, %v675
        %v757 = vpack.c.b16 %v679, %v676
        %v758 = vpack.c.b16 %v683, %v680
        %v759 = vpack.c.b16 %v684, %v681
        %v760 = vpack.c.b16 %v685, %v682
        %v761 = vpack.c.b16 %v689, %v686
        %v762 = vpack.c.b16 %v690, %v687
        %v763 = vpack.c.b16 %v691, %v688
        %836 = vmatpush.bf16.msra.mxu0 %v713
        %837 = vmatpush.bf16.msra.mxu0 %v710
        %838 = vmatpush.bf16.msra.mxu0 %v707
        %839 = vmatpush.bf16.msra.mxu0 %v704
        %840 = vmatpush.bf16.msra.mxu0 %v701
        %841 = vmatpush.bf16.msra.mxu0 %v698
        %842 = vmatpush.bf16.msra.mxu0 %v695
        %843 = vmatpush.bf16.msra.mxu0 %v692
        %844 = vmatmul.bf16.gmra.mxu0 %v446
        %v845 = vpop.f32.mrf.mxu0
        %v846 = vadd.f32 0.0, %v845
        %v847 = vpop.f32.mrf.mxu0
        %v848 = vadd.f32 0.0, %v847
        %849 = vdwg.mxu0
        %850 = vmatpush.bf16.msra.mxu0 %v737
        %851 = vmatpush.bf16.msra.mxu0 %v734
        %852 = vmatpush.bf16.msra.mxu0 %v731
        %853 = vmatpush.bf16.msra.mxu0 %v728
        %854 = vmatpush.bf16.msra.mxu0 %v725
        %855 = vmatpush.bf16.msra.mxu0 %v722
        %856 = vmatpush.bf16.msra.mxu0 %v719
        %857 = vmatpush.bf16.msra.mxu0 %v716
        %858 = vmatmul.bf16.gmra.mxu0 %v447
        %v859 = vpop.f32.mrf.mxu0
        %v860 = vadd.f32 %v846, %v859
        %v861 = vpop.f32.mrf.mxu0
        %v862 = vadd.f32 %v848, %v861
        %863 = vdwg.mxu0
        %864 = vmatpush.bf16.msra.mxu0 %v761
        %865 = vmatpush.bf16.msra.mxu0 %v758
        %866 = vmatpush.bf16.msra.mxu0 %v755
        %867 = vmatpush.bf16.msra.mxu0 %v752
        %868 = vmatpush.bf16.msra.mxu0 %v749
        %869 = vmatpush.bf16.msra.mxu0 %v746
        %870 = vmatpush.bf16.msra.mxu0 %v743
        %871 = vmatpush.bf16.msra.mxu0 %v740
        %872 = vmatmul.bf16.gmra.mxu0 %v448
        %v873 = vpop.f32.mrf.mxu0
        %v874 = vadd.f32 %v860, %v873
        %v875 = vpop.f32.mrf.mxu0
        %v876 = vadd.f32 %v862, %v875
        %877 = vdwg.mxu0
        %878 = vmatpush.bf16.msra.mxu0 %v714
        %879 = vmatpush.bf16.msra.mxu0 %v711
        %880 = vmatpush.bf16.msra.mxu0 %v708
        %881 = vmatpush.bf16.msra.mxu0 %v705
        %882 = vmatpush.bf16.msra.mxu0 %v702
        %883 = vmatpush.bf16.msra.mxu0 %v699
        %884 = vmatpush.bf16.msra.mxu0 %v696
        %885 = vmatpush.bf16.msra.mxu0 %v693
        %886 = vmatmul.bf16.gmra.mxu0 %v446
        %v887 = vpop.f32.mrf.mxu0
        %v888 = vadd.f32 0.0, %v887
        %v889 = vpop.f32.mrf.mxu0
        %v890 = vadd.f32 0.0, %v889
        %891 = vdwg.mxu0
        %892 = vmatpush.bf16.msra.mxu0 %v738
        %893 = vmatpush.bf16.msra.mxu0 %v735
        %894 = vmatpush.bf16.msra.mxu0 %v732
        %895 = vmatpush.bf16.msra.mxu0 %v729
        %896 = vmatpush.bf16.msra.mxu0 %v726
        %897 = vmatpush.bf16.msra.mxu0 %v723
        %898 = vmatpush.bf16.msra.mxu0 %v720
        %899 = vmatpush.bf16.msra.mxu0 %v717
        %900 = vmatmul.bf16.gmra.mxu0 %v447
        %v901 = vpop.f32.mrf.mxu0
        %v902 = vadd.f32 %v888, %v901
        %v903 = vpop.f32.mrf.mxu0
        %v904 = vadd.f32 %v890, %v903
        %905 = vdwg.mxu0
        %906 = vmatpush.bf16.msra.mxu0 %v762
        %907 = vmatpush.bf16.msra.mxu0 %v759
        %908 = vmatpush.bf16.msra.mxu0 %v756
        %909 = vmatpush.bf16.msra.mxu0 %v753
        %910 = vmatpush.bf16.msra.mxu0 %v750
        %911 = vmatpush.bf16.msra.mxu0 %v747
        %912 = vmatpush.bf16.msra.mxu0 %v744
        %913 = vmatpush.bf16.msra.mxu0 %v741
        %914 = vmatmul.bf16.gmra.mxu0 %v448
        %v915 = vpop.f32.mrf.mxu0
        %v916 = vadd.f32 %v902, %v915
        %v917 = vpop.f32.mrf.mxu0
        %v918 = vadd.f32 %v904, %v917
        %919 = vdwg.mxu0
        %920 = vmatpush.bf16.msra.mxu0 %v715
        %921 = vmatpush.bf16.msra.mxu0 %v712
        %922 = vmatpush.bf16.msra.mxu0 %v709
        %923 = vmatpush.bf16.msra.mxu0 %v706
        %924 = vmatpush.bf16.msra.mxu0 %v703
        %925 = vmatpush.bf16.msra.mxu0 %v700
        %926 = vmatpush.bf16.msra.mxu0 %v697
        %927 = vmatpush.bf16.msra.mxu0 %v694
        %928 = vmatmul.bf16.gmra.mxu0 %v446
        %v929 = vpop.f32.mrf.mxu0
        %v930 = vadd.f32 0.0, %v929
        %v931 = vpop.f32.mrf.mxu0
        %v932 = vadd.f32 0.0, %v931
        %933 = vdwg.mxu0
        %934 = vmatpush.bf16.msra.mxu0 %v739
        %935 = vmatpush.bf16.msra.mxu0 %v736
        %936 = vmatpush.bf16.msra.mxu0 %v733
        %937 = vmatpush.bf16.msra.mxu0 %v730
        %938 = vmatpush.bf16.msra.mxu0 %v727
        %939 = vmatpush.bf16.msra.mxu0 %v724
        %940 = vmatpush.bf16.msra.mxu0 %v721
        %941 = vmatpush.bf16.msra.mxu0 %v718
        %942 = vmatmul.bf16.gmra.mxu0 %v447
        %v943 = vpop.f32.mrf.mxu0
        %v944 = vadd.f32 %v930, %v943
        %v945 = vpop.f32.mrf.mxu0
        %v946 = vadd.f32 %v932, %v945
        %947 = vdwg.mxu0
        %948 = vmatpush.bf16.msra.mxu0 %v763
        %949 = vmatpush.bf16.msra.mxu0 %v760
        %950 = vmatpush.bf16.msra.mxu0 %v757
        %951 = vmatpush.bf16.msra.mxu0 %v754
        %952 = vmatpush.bf16.msra.mxu0 %v751
        %953 = vmatpush.bf16.msra.mxu0 %v748
        %954 = vmatpush.bf16.msra.mxu0 %v745
        %955 = vmatpush.bf16.msra.mxu0 %v742
        %956 = vmatmul.bf16.gmra.mxu0 %v448
        %v957 = vpop.f32.mrf.mxu0
        %v958 = vadd.f32 %v944, %v957
        %v959 = vpop.f32.mrf.mxu0
        %v960 = vadd.f32 %v946, %v959
        %961 = vdwg.mxu0
        %v962 = vadd.f32 %v330, %v874
        %v963 = vadd.f32 %v331, %v916
        %v964 = vadd.f32 %v332, %v958
        %v965 = vadd.f32 %v333, %v876
        %v966 = vadd.f32 %v334, %v918
        %v967 = vadd.f32 %v335, %v960
        %968 = vst [vmem:[#allocation2] sm:$0xff] %v962
        %969 = vst [vmem:[#allocation2 + $0x8] sm:$0xff] %v963
        %970 = vst [vmem:[#allocation2 + $0x10] sm:$0xff] %v964
        %971 = vst [vmem:[#allocation2 + $0x18] sm:$0xff] %v965
        %972 = vst [vmem:[#allocation2 + $0x20] sm:$0xff] %v966
        %973 = vst [vmem:[#allocation2 + $0x28] sm:$0xff] %v967
        %p974 = scmp.eq.s32.totalorder %s27, 1
        // Predicated region
        $region71: #{bert_arch_forward.13} parent=53 // pred_check
          %p975 = pneg %p974
        $region72: #{bert_arch_forward.13} parent=53 // pred_check_branch
          %977 = sbr.rel (%p975) target = $region74
        $region73: #{bert_arch_forward.13} parent=53 // pred_region
          %v978 = vld [vmem:[#allocation2] sm:$0xff]
          %v979 = vld [vmem:[#allocation2 + $0x8] sm:$0xff]
          %v980 = vld [vmem:[#allocation2 + $0x10] sm:$0xff]
          %v981 = vld [vmem:[#allocation2 + $0x18] sm:$0xff]
          %v982 = vld [vmem:[#allocation2 + $0x20] sm:$0xff]
          %v983 = vld [vmem:[#allocation2 + $0x28] sm:$0xff]
          %v984 = vld [vmem:[%s281] sm:$0x7]
          %v986 = vperm.slane %v984, 0
          %v987 = vperm.slane %v984, 1
          %v988 = vperm.slane %v984, 2
          %v992 = vadd.f32 %v978, %v986
          %v993 = vadd.f32 %v979, %v987
          %v994 = vadd.f32 %v980, %v988
          %v995 = vadd.f32 %v981, %v986
          %v996 = vadd.f32 %v982, %v987
          %v997 = vadd.f32 %v983, %v988
          %v998 = vpack.c.bf16 %v993, %v992
          %v999 = vpack.c.bf16 %v994, %v994
          %v1000 = vpack.c.bf16 %v996, %v995
          %v1001 = vpack.c.bf16 %v997, %v997
          %1002 = vst [vmem:[%s312] sm:$0xff] %v998
          %1003 = vst [vmem:[%s312 + $0x8] sm:$0xf] %v999
          %1004 = vst [vmem:[%s312 + $0xc] sm:$0xff] %v1000
          %1005 = vst [vmem:[%s312 + $0x14] sm:$0xf] %v1001
        $region74: #{bert_arch_forward.13} parent=53 // pred_fallthru
          _
        %s1006 = sand.u32 %s131, 1
        %s1007 = sand.u32 %s131, 1
        %s1008 = smul.addr %s1007, 24
        %s1009 = scalar_lea.vmem [#allocation8], %s1008
        // Predicated region
        $region75: #{bert_arch_forward.13} parent=53 // pred_check
          %p1010 = pneg %p141
        $region76: #{bert_arch_forward.13} parent=53 // pred_check_branch
          %1012 = sbr.rel (%p1010) target = $region78
        $region77: #{bert_arch_forward.13} parent=53 // pred_region
          %s1013 = smul.u32 2, %s25
          %s1014 = smul.u32 3, %s26
          %s1015 = smul.addr %s1013, 18
          %s1016 = sadd.s32 %s1014, %s1015
          %s1017 = smul.addr %s1016, 4
          %s1018 = scalar_lea.vmem %s3, %s1017
          // Predicated region
          $region79: #{bert_arch_forward.13} parent=77 // pred_check
            _
          $region80: #{bert_arch_forward.13} parent=77 // pred_check_branch
            %1020 = sbr.rel (0) target = $region82
          $region81: #{bert_arch_forward.13} parent=77 // pred_region
            // Predicated region
            $region83: #{bert_arch_forward.13} parent=81 // pred_check
              _
            $region84: #{bert_arch_forward.13} parent=81 // pred_check_branch
              %1022 = sbr.rel (0) target = $region86
            $region85: #{bert_arch_forward.13} parent=81 // pred_region
              %s1023 = scalar_lea.vmem %s1009, 8 [#allocation8]
              %s1024 = scalar_lea.vmem %s1018, 8
              loop: start=0, step=1, limit=1
              $region87: #{bert_arch_forward.13} parent=85 // loop_pre_header
                _
              $region88: #{bert_arch_forward.13} parent=85 // loop_header
                %s1026 = sphi 0, %s1030
                %p1027 = scmp.ge.s32.totalorder %s1026, 1
                %s1031 = sphi %s1009, %s1009
                %s1032 = sphi %s1018, %s1018
              $region89: #{bert_arch_forward.13} parent=85 // loop_header_branch
                %1029 = sbr.rel (%p1027) target = $region93
              $region90: #{bert_arch_forward.13} parent=85 // loop_body
                %v1033 = vld [vmem:[%s1031] sm:$0xff]
                %1034 = vst [vmem:[%s1032] sm:$0xff] %v1033
                %v1035 = vld [vmem:[%s1031 + $0xc] sm:$0xff]
                %1036 = vst [vmem:[%s1032 + $0x48] sm:$0xff] %v1035
              $region91: #{bert_arch_forward.13} parent=85 // loop_footer
                %s1030 = sadd.s32 1, %s1026
              $region92: #{bert_arch_forward.13} parent=85 // loop_footer_branch
                %1025 = sbr.rel target = $region88
              $region93: #{bert_arch_forward.13} parent=85 // loop_exit
                _
              %s1038 = ssub.s32 16, 1
              loop: start=0, step=1, limit=1
              $region94: #{bert_arch_forward.13} parent=85 // loop_pre_header
                _
              $region95: #{bert_arch_forward.13} parent=85 // loop_header
                %s1040 = sphi 0, %s1044
                %p1041 = scmp.ge.s32.totalorder %s1040, 1
                %s1045 = sphi %s1023, %s1023
                %s1046 = sphi %s1024, %s1024
              $region96: #{bert_arch_forward.13} parent=85 // loop_header_branch
                %1043 = sbr.rel (%p1041) target = $region100
              $region97: #{bert_arch_forward.13} parent=85 // loop_body
                %v1047 = vld [vmem:[%s1045] sm:%s1038]
                %1048 = vst [vmem:[%s1046] sm:%s1038] %v1047
                %v1049 = vld [vmem:[%s1045 + $0xc] sm:%s1038]
                %1050 = vst [vmem:[%s1046 + $0x48] sm:%s1038] %v1049
              $region98: #{bert_arch_forward.13} parent=85 // loop_footer
                %s1044 = sadd.s32 1, %s1040
              $region99: #{bert_arch_forward.13} parent=85 // loop_footer_branch
                %1039 = sbr.rel target = $region95
              $region100: #{bert_arch_forward.13} parent=85 // loop_exit
                _
            $region86: #{bert_arch_forward.13} parent=81 // pred_fallthru
              _
          $region82: #{bert_arch_forward.13} parent=77 // pred_fallthru
            _
          %1051 = vnop
        $region78: #{bert_arch_forward.13} parent=53 // pred_fallthru
          _
      $region54: #{bert_arch_forward.13} parent=5 // pred_fallthru
        _
      %p1052 = scmp.le.s32.totalorder 2, %s15
      // Predicated region
      $region101: #{bert_arch_forward.13} parent=5 // pred_check
        %p1053 = pneg %p1052
      $region102: #{bert_arch_forward.13} parent=5 // pred_check_branch
        %1055 = sbr.rel (%p1053) target = $region104
      $region103: #{bert_arch_forward.13} parent=5 // pred_region
        %s1056 = ssub.s32 %s15, 2
        // Predicated region
        $region105: #{bert_arch_forward.13} parent=103 // pred_check
          %p1057 = pneg %p147
        $region106: #{bert_arch_forward.13} parent=103 // pred_check_branch
          %1059 = sbr.rel (%p1057) target = $region108
        $region107: #{bert_arch_forward.13} parent=103 // pred_region
          %s1060 = sand.u32 %s132, 1
          %s1061 = sand.u32 %s132, 1
          %s1062 = smul.addr %s1061, 24
          %s1063 = scalar_lea.vmem [#allocation8], %s1062
        $region108: #{bert_arch_forward.13} parent=103 // pred_fallthru
          _
      $region104: #{bert_arch_forward.13} parent=5 // pred_fallthru
        _
    $region6: #{bert_arch_forward.13} parent=1 // loop_footer
      %s19 = sadd.s32 1, %s15
    $region7: #{bert_arch_forward.13} parent=1 // loop_footer_branch
      %14 = sbr.rel target = $region3
    $region8: #{bert_arch_forward.13} parent=1 // loop_exit
      _
    %1064 = vsyncpa [#allocation5], 1
    %s1065 = scalar_lea.sflag [#allocation5], 1
    %1066 = vsyncpa %s1065, 1
    %1067 = vsyncpa [#allocation7], 1
    %s1068 = scalar_lea.sflag [#allocation7], 1
    %1069 = vsyncpa %s1068, 1

// kernel: bert_arch_forward.15
$region0: #{bert_arch_forward.15}
  #allocation0 [shape = 'u32[]', space=smem, size = 0x4, offset = 0x4, fixed_abs, tag = 'smem constant byte address 0x4 - core index']
  #allocation1 [shape = 'u32[72,128]{1,0:T(1,128)}', space=vmem, size = 0x9000, scoped, tag = 'internal scratch']
  #allocation2 [shape = 'f32[16,768]{1,0:T(8,128)}', space=vmem, size = 0xc000, scoped, tag = 'scratch operand']
  %s0 = inlined_call_operand.vmem [shape: bf16[16,768], index: 0, kind: input, shape index: {}]
  %s1 = inlined_call_operand.hbm [shape: bf16[768,768], index: 1, kind: input, shape index: {}]
  %s2 = inlined_call_operand.hbm [shape: f32[1,768], index: 2, kind: input, shape index: {}]
  %s3 = inlined_call_operand.vmem [shape: bf16[16,768], index: 3, kind: input, shape index: {}]
  %s4 = inlined_call_operand.hbm [shape: f32[1,768], index: 4, kind: input, shape index: {}]
  %s5 = inlined_call_operand.hbm [shape: f32[1,768], index: 5, kind: input, shape index: {}]
  %s6 = inlined_call_operand.vmem [shape: bf16[16,768], index: 6, kind: output, shape index: {}]
  %s7 = sld [smem:[#allocation0]]
  $region107: #{bert_arch_forward.15} parent=0
    _
  %s9 = ssub.s32 1, %s7
  %s10 = scalar_select 0, %s9, %s7
  $region1: #{bert_arch_forward.15} parent=0
    #allocation3 [shape = 'u8[24576]{0}', space=vmem, size = 0x6000, scoped, tag = 'input window, operand 0']
    #allocation4 [shape = 'u8[1179648]{0}', space=vmem, size = 0x120000, scoped, tag = 'input window, operand 1']
    #allocation5 [shape = 's32[2]{0}', space=sflag, size = 0x8, scoped, tag = 'scoped memory for bert_arch_forward.15']
    #allocation6 [shape = 'u8[3072]{0}', space=vmem, size = 0xc00, scoped, tag = 'input window, operand 2, single buffered']
    #allocation7 [shape = 's32[1]{0}', space=sflag, size = 0x4, scoped, tag = 'scoped memory for bert_arch_forward.15']
    #allocation8 [shape = 'u8[3072]{0}', space=vmem, size = 0xc00, scoped, tag = 'input window, operand 4, single buffered']
    #allocation9 [shape = 'u8[3072]{0}', space=vmem, size = 0xc00, scoped, tag = 'input window, operand 5, single buffered']
    #allocation10 [shape = 's32[1]{0}', space=sflag, size = 0x4, scoped, tag = 'scoped memory for bert_arch_forward.15']
    %11 = vsyncpa [#allocation5], 0
    %s12 = scalar_lea.sflag [#allocation5], 1
    %13 = vsyncpa %s12, 0
    %14 = vsyncpa [#allocation7], 0
    %15 = vsyncpa [#allocation10], 0
    loop: start=0, step=1, limit=4
    $region2: #{bert_arch_forward.15} parent=1 // loop_pre_header
      _
    $region3: #{bert_arch_forward.15} parent=1 // loop_header
      %s17 = sphi 0, %s21
      %p18 = scmp.ge.s32.totalorder %s17, 4
      %s24 = sphi 0, %s36
      %s25 = sphi 0, %s32
      %s26 = sphi 0, %s24
      %s27 = sphi 0, %s25
      %s28 = sphi 0, %s26
      %s29 = sphi 0, %s27
      %s41 = sphi 0, %s43
      %s44 = sphi 0, %s41
      %s45 = sphi 0, %s44
      %s61 = sphi 0, %s45
      %s67 = sphi 0, %s69
      %s70 = sphi 0, %s67
      %s71 = sphi 0, %s70
      %s87 = sphi 0, %s71
      %s91 = sphi 0, %s91
      %s93 = sphi 0, %s91
      %s94 = sphi 0, %s93
      %s108 = sphi 0, %s94
      %s114 = sphi 0, %s116
      %s117 = sphi 0, %s114
      %s118 = sphi 0, %s117
      %s134 = sphi 0, %s118
      %s138 = sphi 0, %s138
      %s140 = sphi 0, %s138
      %s141 = sphi 0, %s140
      %s155 = sphi 0, %s141
      %s159 = sphi 0, %s159
      %s161 = sphi 0, %s159
      %s162 = sphi 0, %s161
      %s176 = sphi 0, %s162
      %s182 = sphi 0, %s184
      %s185 = sphi 0, %s182
      %s186 = sphi 0, %s185
      %s202 = sphi 0, %s186
    $region4: #{bert_arch_forward.15} parent=1 // loop_header_branch
      %20 = sbr.rel (%p18) target = $region8
    $region5: #{bert_arch_forward.15} parent=1 // loop_body
      %s22 = ssub.s32 %s17, 1
      %s23 = ssub.s32 %s17, 2
      %s30 = sadd.s32 1, %s25
      %p31 = scmp.ge.s32.totalorder %s30, 2
      %s32 = scalar_select %p31, 0, %s30
      %s33 = sadd.s32 1, %s24
      %s34 = scalar_select %p31, %s33, %s24
      %p35 = scmp.ge.s32.totalorder %s34, 1
      %s36 = scalar_select %p35, 0, %s34
      %s37 = ssub.s32 %s24, %s36
      %s38 = ssub.s32 %s25, %s32
      %s39 = sor.u32 %s37, %s38
      %p40 = scmp.eq.s32.totalorder %s39, 0
      %s42 = sadd.s32 %s41, 1
      %s43 = scalar_select %p40, %s41, %s42
      %p46 = pneg %p40
      %p47 = scmp.eq.s32.totalorder %s17, 1
      %p48 = por %p46, %p47
      %p49 = scmp.ne.s32.totalorder %s41, %s44
      %p50 = scmp.eq.s32.totalorder %s17, 0
      %p51 = por %p49, %p50
      %p52 = scmp.ne.s32.totalorder %s41, %s44
      %p53 = scmp.eq.s32.totalorder %s22, 1
      %p54 = por %p52, %p53
      %p55 = scmp.ne.s32.totalorder %s44, %s45
      %p56 = scmp.eq.s32.totalorder %s22, 0
      %p57 = por %p55, %p56
      %p58 = scmp.ne.s32.totalorder %s44, %s45
      %p59 = scmp.eq.s32.totalorder %s23, 1
      %p60 = por %p58, %p59
      %p62 = scmp.ne.s32.totalorder %s45, %s61
      %p63 = scmp.eq.s32.totalorder %s23, 0
      %p64 = por %p62, %p63
      %s65 = ssub.s32 %s25, %s32
      %p66 = scmp.eq.s32.totalorder %s65, 0
      %s68 = sadd.s32 %s67, 1
      %s69 = scalar_select %p66, %s67, %s68
      %p72 = pneg %p66
      %p73 = scmp.eq.s32.totalorder %s17, 1
      %p74 = por %p72, %p73
      %p75 = scmp.ne.s32.totalorder %s67, %s70
      %p76 = scmp.eq.s32.totalorder %s17, 0
      %p77 = por %p75, %p76
      %p78 = scmp.ne.s32.totalorder %s67, %s70
      %p79 = scmp.eq.s32.totalorder %s22, 1
      %p80 = por %p78, %p79
      %p81 = scmp.ne.s32.totalorder %s70, %s71
      %p82 = scmp.eq.s32.totalorder %s22, 0
      %p83 = por %p81, %p82
      %p84 = scmp.ne.s32.totalorder %s70, %s71
      %p85 = scmp.eq.s32.totalorder %s23, 1
      %p86 = por %p84, %p85
      %p88 = scmp.ne.s32.totalorder %s71, %s87
      %p89 = scmp.eq.s32.totalorder %s23, 0
      %p90 = por %p88, %p89
      %s92 = sadd.s32 %s91, 1
      %p95 = scmp.eq.s32.totalorder %s17, 1
      %p96 = scmp.ne.s32.totalorder %s91, %s93
      %p97 = scmp.eq.s32.totalorder %s17, 0
      %p98 = por %p96, %p97
      %p99 = scmp.ne.s32.totalorder %s91, %s93
      %p100 = scmp.eq.s32.totalorder %s22, 1
      %p101 = por %p99, %p100
      %p102 = scmp.ne.s32.totalorder %s93, %s94
      %p103 = scmp.eq.s32.totalorder %s22, 0
      %p104 = por %p102, %p103
      %p105 = scmp.ne.s32.totalorder %s93, %s94
      %p106 = scmp.eq.s32.totalorder %s23, 1
      %p107 = por %p105, %p106
      %p109 = scmp.ne.s32.totalorder %s94, %s108
      %p110 = scmp.eq.s32.totalorder %s23, 0
      %p111 = por %p109, %p110
      %s112 = ssub.s32 %s24, %s36
      %p113 = scmp.eq.s32.totalorder %s112, 0
      %s115 = sadd.s32 %s114, 1
      %s116 = scalar_select %p113, %s114, %s115
      %p119 = pneg %p113
      %p120 = scmp.eq.s32.totalorder %s17, 1
      %p121 = por %p119, %p120
      %p122 = scmp.ne.s32.totalorder %s114, %s117
      %p123 = scmp.eq.s32.totalorder %s17, 0
      %p124 = por %p122, %p123
      %p125 = scmp.ne.s32.totalorder %s114, %s117
      %p126 = scmp.eq.s32.totalorder %s22, 1
      %p127 = por %p125, %p126
      %p128 = scmp.ne.s32.totalorder %s117, %s118
      %p129 = scmp.eq.s32.totalorder %s22, 0
      %p130 = por %p128, %p129
      %p131 = scmp.ne.s32.totalorder %s117, %s118
      %p132 = scmp.eq.s32.totalorder %s23, 1
      %p133 = por %p131, %p132
      %p135 = scmp.ne.s32.totalorder %s118, %s134
      %p136 = scmp.eq.s32.totalorder %s23, 0
      %p137 = por %p135, %p136
      %s139 = sadd.s32 %s138, 1
      %p142 = scmp.eq.s32.totalorder %s17, 1
      %p143 = scmp.ne.s32.totalorder %s138, %s140
      %p144 = scmp.eq.s32.totalorder %s17, 0
      %p145 = por %p143, %p144
      %p146 = scmp.ne.s32.totalorder %s138, %s140
      %p147 = scmp.eq.s32.totalorder %s22, 1
      %p148 = por %p146, %p147
      %p149 = scmp.ne.s32.totalorder %s140, %s141
      %p150 = scmp.eq.s32.totalorder %s22, 0
      %p151 = por %p149, %p150
      %p152 = scmp.ne.s32.totalorder %s140, %s141
      %p153 = scmp.eq.s32.totalorder %s23, 1
      %p154 = por %p152, %p153
      %p156 = scmp.ne.s32.totalorder %s141, %s155
      %p157 = scmp.eq.s32.totalorder %s23, 0
      %p158 = por %p156, %p157
      %s160 = sadd.s32 %s159, 1
      %p163 = scmp.eq.s32.totalorder %s17, 1
      %p164 = scmp.ne.s32.totalorder %s159, %s161
      %p165 = scmp.eq.s32.totalorder %s17, 0
      %p166 = por %p164, %p165
      %p167 = scmp.ne.s32.totalorder %s159, %s161
      %p168 = scmp.eq.s32.totalorder %s22, 1
      %p169 = por %p167, %p168
      %p170 = scmp.ne.s32.totalorder %s161, %s162
      %p171 = scmp.eq.s32.totalorder %s22, 0
      %p172 = por %p170, %p171
      %p173 = scmp.ne.s32.totalorder %s161, %s162
      %p174 = scmp.eq.s32.totalorder %s23, 1
      %p175 = por %p173, %p174
      %p177 = scmp.ne.s32.totalorder %s162, %s176
      %p178 = scmp.eq.s32.totalorder %s23, 0
      %p179 = por %p177, %p178
      %s180 = ssub.s32 %s24, %s36
      %p181 = scmp.eq.s32.totalorder %s180, 0
      %s183 = sadd.s32 %s182, 1
      %s184 = scalar_select %p181, %s182, %s183
      %p187 = pneg %p181
      %p188 = scmp.eq.s32.totalorder %s17, 1
      %p189 = por %p187, %p188
      %p190 = scmp.ne.s32.totalorder %s182, %s185
      %p191 = scmp.eq.s32.totalorder %s17, 0
      %p192 = por %p190, %p191
      %p193 = scmp.ne.s32.totalorder %s182, %s185
      %p194 = scmp.eq.s32.totalorder %s22, 1
      %p195 = por %p193, %p194
      %p196 = scmp.ne.s32.totalorder %s185, %s186
      %p197 = scmp.eq.s32.totalorder %s22, 0
      %p198 = por %p196, %p197
      %p199 = scmp.ne.s32.totalorder %s185, %s186
      %p200 = scmp.eq.s32.totalorder %s23, 1
      %p201 = por %p199, %p200
      %p203 = scmp.ne.s32.totalorder %s186, %s202
      %p204 = scmp.eq.s32.totalorder %s23, 0
      %p205 = por %p203, %p204
      %p206 = scmp.le.s32.totalorder 1, %s17
      %p207 = scmp.lt.s32.totalorder %s17, 3
      %p208 = pnand %p206, %p207
      %p209 = pneg %p208
      // Predicated region
      $region9: #{bert_arch_forward.15} parent=5 // pred_check
        _
      $region10: #{bert_arch_forward.15} parent=5 // pred_check_branch
        %211 = sbr.rel (%p208) target = $region12
      $region11: #{bert_arch_forward.15} parent=5 // pred_region
        %s212 = ssub.s32 %s17, 1
        // Predicated region
        $region13: #{bert_arch_forward.15} parent=11 // pred_check
          %p213 = pneg %p104
        $region14: #{bert_arch_forward.15} parent=11 // pred_check_branch
          %215 = sbr.rel (%p213) target = $region16
        $region15: #{bert_arch_forward.15} parent=11 // pred_region
          %217 = vsyncadd [#allocation7], 0
          %s219 = sshll.u32 %s2, 4
          %s220 = int_to_ptr.hbm [resolvable:$true] %s219
          %s221 = sshll.u32 [#allocation6], 4
          %s222 = int_to_ptr.vmem [resolvable:$true] %s221
          %224 = dma.hbm_to_vmem [thread:$0]  %s220, 96, %s222, [#allocation7]
        $region16: #{bert_arch_forward.15} parent=11 // pred_fallthru
          _
        // Predicated region
        $region17: #{bert_arch_forward.15} parent=11 // pred_check
          %p225 = pneg %p130
        $region18: #{bert_arch_forward.15} parent=11 // pred_check_branch
          %227 = sbr.rel (%p225) target = $region20
        $region19: #{bert_arch_forward.15} parent=11 // pred_region
          %s228 = smul.u32 2, %s26
          %p229 = scmp.lt.s32.totalorder %s228, 1
          %s230 = scalar_select %p229, %s228, 1
          %s231 = smul.addr %s230, 6
          %s232 = smul.addr %s231, 4
          %s233 = scalar_lea.vmem %s3, %s232
          %s234 = smul.u32 2, %s26
        $region20: #{bert_arch_forward.15} parent=11 // pred_fallthru
          _
        // Predicated region
        $region21: #{bert_arch_forward.15} parent=11 // pred_check
          %p235 = pneg %p151
        $region22: #{bert_arch_forward.15} parent=11 // pred_check_branch
          %237 = sbr.rel (%p235) target = $region24
        $region23: #{bert_arch_forward.15} parent=11 // pred_region
          %239 = vsyncadd [#allocation7], 0
          %s241 = sshll.u32 %s4, 4
          %s242 = int_to_ptr.hbm [resolvable:$true] %s241
          %s243 = sshll.u32 [#allocation8], 4
          %s244 = int_to_ptr.vmem [resolvable:$true] %s243
          %246 = dma.hbm_to_vmem [thread:$0]  %s242, 96, %s244, [#allocation7]
        $region24: #{bert_arch_forward.15} parent=11 // pred_fallthru
          _
        // Predicated region
        $region25: #{bert_arch_forward.15} parent=11 // pred_check
          %p247 = pneg %p172
        $region26: #{bert_arch_forward.15} parent=11 // pred_check_branch
          %249 = sbr.rel (%p247) target = $region28
        $region27: #{bert_arch_forward.15} parent=11 // pred_region
          %251 = vsyncadd [#allocation10], 0
          %s253 = sshll.u32 %s5, 4
          %s254 = int_to_ptr.hbm [resolvable:$true] %s253
          %s255 = sshll.u32 [#allocation9], 4
          %s256 = int_to_ptr.vmem [resolvable:$true] %s255
          %258 = dma.hbm_to_vmem [thread:$0]  %s254, 96, %s256, [#allocation10]
        $region28: #{bert_arch_forward.15} parent=11 // pred_fallthru
          _
      $region12: #{bert_arch_forward.15} parent=5 // pred_fallthru
        _
      %p259 = scmp.lt.s32.totalorder %s17, 2
      // Predicated region
      $region29: #{bert_arch_forward.15} parent=5 // pred_check
        %p260 = pneg %p259
      $region30: #{bert_arch_forward.15} parent=5 // pred_check_branch
        %262 = sbr.rel (%p260) target = $region32
      $region31: #{bert_arch_forward.15} parent=5 // pred_region
        // Predicated region
        $region33: #{bert_arch_forward.15} parent=31 // pred_check
          %p263 = pneg %p51
        $region34: #{bert_arch_forward.15} parent=31 // pred_check_branch
          %265 = sbr.rel (%p263) target = $region36
        $region35: #{bert_arch_forward.15} parent=31 // pred_region
          %s266 = sand.u32 %s41, 1
          %s267 = sand.u32 %s41, 1
          %s268 = smul.addr %s267, 24
          %s269 = scalar_lea.vmem [#allocation3], %s268
          %s270 = smul.u32 2, %s24
          %s271 = smul.u32 3, %s25
          %s272 = smul.addr %s270, 6
          %s273 = sadd.s32 %s271, %s272
          %s274 = smul.addr %s273, 4
          %s275 = scalar_lea.vmem %s0, %s274
          // Predicated region
          $region37: #{bert_arch_forward.15} parent=35 // pred_check
            _
          $region38: #{bert_arch_forward.15} parent=35 // pred_check_branch
            %277 = sbr.rel (0) target = $region40
          $region39: #{bert_arch_forward.15} parent=35 // pred_region
            // Predicated region
            $region41: #{bert_arch_forward.15} parent=39 // pred_check
              _
            $region42: #{bert_arch_forward.15} parent=39 // pred_check_branch
              %279 = sbr.rel (0) target = $region44
            $region43: #{bert_arch_forward.15} parent=39 // pred_region
              %s280 = scalar_lea.vmem %s275, 8
              %s281 = scalar_lea.vmem %s269, 8 [#allocation3]
              loop: start=0, step=1, limit=1
              $region45: #{bert_arch_forward.15} parent=43 // loop_pre_header
                _
              $region46: #{bert_arch_forward.15} parent=43 // loop_header
                %s283 = sphi 0, %s287
                %p284 = scmp.ge.s32.totalorder %s283, 1
                %s288 = sphi %s275, %s275
                %s289 = sphi %s269, %s269
              $region47: #{bert_arch_forward.15} parent=43 // loop_header_branch
                %286 = sbr.rel (%p284) target = $region51
              $region48: #{bert_arch_forward.15} parent=43 // loop_body
                %v290 = vld [vmem:[%s288] sm:$0xff]
                %291 = vst [vmem:[%s289] sm:$0xff] %v290
                %v292 = vld [vmem:[%s288 + $0x18] sm:$0xff]
                %293 = vst [vmem:[%s289 + $0xc] sm:$0xff] %v292
              $region49: #{bert_arch_forward.15} parent=43 // loop_footer
                %s287 = sadd.s32 1, %s283
              $region50: #{bert_arch_forward.15} parent=43 // loop_footer_branch
                %282 = sbr.rel target = $region46
              $region51: #{bert_arch_forward.15} parent=43 // loop_exit
                _
              %s295 = ssub.s32 16, 1
              loop: start=0, step=1, limit=1
              $region52: #{bert_arch_forward.15} parent=43 // loop_pre_header
                _
              $region53: #{bert_arch_forward.15} parent=43 // loop_header
                %s297 = sphi 0, %s301
                %p298 = scmp.ge.s32.totalorder %s297, 1
                %s302 = sphi %s280, %s280
                %s303 = sphi %s281, %s281
              $region54: #{bert_arch_forward.15} parent=43 // loop_header_branch
                %300 = sbr.rel (%p298) target = $region58
              $region55: #{bert_arch_forward.15} parent=43 // loop_body
                %v304 = vld [vmem:[%s302] sm:%s295]
                %305 = vst [vmem:[%s303] sm:%s295] %v304
                %v306 = vld [vmem:[%s302 + $0x18] sm:%s295]
                %307 = vst [vmem:[%s303 + $0xc] sm:%s295] %v306
              $region56: #{bert_arch_forward.15} parent=43 // loop_footer
                %s301 = sadd.s32 1, %s297
              $region57: #{bert_arch_forward.15} parent=43 // loop_footer_branch
                %296 = sbr.rel target = $region53
              $region58: #{bert_arch_forward.15} parent=43 // loop_exit
                _
            $region44: #{bert_arch_forward.15} parent=39 // pred_fallthru
              _
          $region40: #{bert_arch_forward.15} parent=35 // pred_fallthru
            _
          %308 = vnop
        $region36: #{bert_arch_forward.15} parent=31 // pred_fallthru
          _
        // Predicated region
        $region59: #{bert_arch_forward.15} parent=31 // pred_check
          %p309 = pneg %p77
        $region60: #{bert_arch_forward.15} parent=31 // pred_check_branch
          %311 = sbr.rel (%p309) target = $region62
        $region61: #{bert_arch_forward.15} parent=31 // pred_region
          %s312 = sand.u32 %s67, 1
          %s313 = scalar_lea.sflag [#allocation5], %s312
          %s314 = sand.u32 %s67, 1
          %s315 = smul.addr %s314, 1152
          %s316 = scalar_lea.vmem [#allocation4], %s315
          %s317 = smul.u32 48, %s25
          %319 = vsyncadd %s313, 0
          %s320 = smul.addr %s317, 6
          %s321 = smul.addr %s320, 4
          %s322 = scalar_lea.hbm %s1, %s321
          %s323 = sshll.u32 %s322, 4
          %s324 = int_to_ptr.hbm [resolvable:$true] %s323
          %s325 = sshll.u32 %s316, 4
          %s326 = int_to_ptr.vmem [resolvable:$true] %s325
          %331 = dma.hbm_to_vmem [thread:$0]  %s324, 18432, %s326, %s313, 384, 384, 24
        $region62: #{bert_arch_forward.15} parent=31 // pred_fallthru
          _
      $region32: #{bert_arch_forward.15} parent=5 // pred_fallthru
        _
      %p332 = scmp.le.s32.totalorder 1, %s17
      %p333 = scmp.lt.s32.totalorder %s17, 3
      %p334 = pnand %p332, %p333
      %p335 = pneg %p334
      // Predicated region
      $region63: #{bert_arch_forward.15} parent=5 // pred_check
        _
      $region64: #{bert_arch_forward.15} parent=5 // pred_check_branch
        %337 = sbr.rel (%p334) target = $region66
      $region65: #{bert_arch_forward.15} parent=5 // pred_region
        %s338 = ssub.s32 %s17, 1
        %s339 = sand.u32 %s44, 1
        %s340 = sand.u32 %s44, 1
        %s341 = smul.addr %s340, 24
        %s342 = scalar_lea.vmem [#allocation3], %s341
        // Predicated region
        $region67: #{bert_arch_forward.15} parent=65 // pred_check
          %p343 = pneg %p57
        $region68: #{bert_arch_forward.15} parent=65 // pred_check_branch
          %345 = sbr.rel (%p343) target = $region70
        $region69: #{bert_arch_forward.15} parent=65 // pred_region
          _
        $region70: #{bert_arch_forward.15} parent=65 // pred_fallthru
          _
        %s346 = sand.u32 %s70, 1
        %s347 = scalar_lea.sflag [#allocation5], %s346
        %s348 = sand.u32 %s70, 1
        %s349 = smul.addr %s348, 1152
        %s350 = scalar_lea.vmem [#allocation4], %s349
        // Predicated region
        $region71: #{bert_arch_forward.15} parent=65 // pred_check
          %p351 = pneg %p83
        $region72: #{bert_arch_forward.15} parent=65 // pred_check_branch
          %353 = sbr.rel (%p351) target = $region74
        $region73: #{bert_arch_forward.15} parent=65 // pred_region
          %355 = dma.done %s347, 18432
        $region74: #{bert_arch_forward.15} parent=65 // pred_fallthru
          _
        // Predicated region
        $region75: #{bert_arch_forward.15} parent=65 // pred_check
          %p356 = pneg %p104
        $region76: #{bert_arch_forward.15} parent=65 // pred_check_branch
          %358 = sbr.rel (%p356) target = $region78
        $region77: #{bert_arch_forward.15} parent=65 // pred_region
          %360 = dma.done [#allocation7], 96
        $region78: #{bert_arch_forward.15} parent=65 // pred_fallthru
          _
        // Predicated region
        $region79: #{bert_arch_forward.15} parent=65 // pred_check
          %p361 = pneg %p151
        $region80: #{bert_arch_forward.15} parent=65 // pred_check_branch
          %363 = sbr.rel (%p361) target = $region82
        $region81: #{bert_arch_forward.15} parent=65 // pred_region
          %365 = dma.done [#allocation7], 96
        $region82: #{bert_arch_forward.15} parent=65 // pred_fallthru
          _
        // Predicated region
        $region83: #{bert_arch_forward.15} parent=65 // pred_check
          %p366 = pneg %p172
        $region84: #{bert_arch_forward.15} parent=65 // pred_check_branch
          %368 = sbr.rel (%p366) target = $region86
        $region85: #{bert_arch_forward.15} parent=65 // pred_region
          %370 = dma.done [#allocation10], 96
        $region86: #{bert_arch_forward.15} parent=65 // pred_fallthru
          _
        %s371 = sand.u32 %s44, 1
        %s372 = sand.u32 %s44, 1
        %s373 = smul.addr %s372, 24
        %s374 = scalar_lea.vmem [#allocation3], %s373
        %p375 = pneg %p57
        %p376 = pneg %p54
        %s377 = sand.u32 %s70, 1
        %s378 = scalar_lea.sflag [#allocation5], %s377
        %s379 = sand.u32 %s70, 1
        %s380 = smul.addr %s379, 1152
        %s381 = scalar_lea.vmem [#allocation4], %s380
        %p382 = pneg %p83
        %p383 = pneg %p80
        %p384 = pneg %p104
        %p385 = pneg %p101
        %s386 = smul.u32 2, %s26
        %p387 = scmp.lt.s32.totalorder %s386, 1
        %s388 = scalar_select %p387, %s386, 1
        %s389 = smul.addr %s388, 6
        %s390 = smul.addr %s389, 4
        %s391 = scalar_lea.vmem %s3, %s390
        %p392 = pneg %p130
        %p393 = pneg %p127
        %p394 = pneg %p151
        %p395 = pneg %p148
        %p396 = pneg %p172
        %p397 = pneg %p169
        %p398 = pneg %p198
        %p399 = pneg %p195
        %s400 = smul.u32 2, %s26
        %p401 = scmp.lt.s32.totalorder %s400, 1
        %s402 = scalar_select %p401, %s400, 1
        %s403 = smul.addr %s402, 6
        %s404 = smul.addr %s403, 4
        %s405 = scalar_lea.vmem %s6, %s404
        %s406 = smul.u32 2, %s26
        %s407 = smul.u32 3, %s27
        %s408 = smul.u32 48, %s27
        %s409 = smul.u32 2, %s26
        %p410 = scmp.lt.s32.totalorder %s409, 1
        %s411 = scalar_select %p410, %s409, 1
        %s412 = smul.addr %s411, 6
        %s413 = smul.addr %s412, 4
        %s414 = scalar_lea.vmem %s3, %s413
        %s415 = smul.u32 2, %s26
        %s416 = smul.u32 2, %s26
        %p417 = scmp.lt.s32.totalorder %s416, 1
        %s418 = scalar_select %p417, %s416, 1
        %s419 = smul.addr %s418, 6
        %s420 = smul.addr %s419, 4
        %s421 = scalar_lea.vmem %s6, %s420
        %s422 = smul.u32 2, %s26
        %p423 = scmp.eq.s32.totalorder %s27, 0
        // Predicated region
        $region87: #{bert_arch_forward.15} parent=65 // pred_check
          %p424 = pneg %p423
        $region88: #{bert_arch_forward.15} parent=65 // pred_check_branch
          %426 = sbr.rel (%p424) target = $region90
        $region89: #{bert_arch_forward.15} parent=65 // pred_region
          %427 = vst [vmem:[#allocation2] sm:$0xff] 0.0
          %428 = vst [vmem:[#allocation2 + $0x8] sm:$0xff] 0.0
          %429 = vst [vmem:[#allocation2 + $0x10] sm:$0xff] 0.0
          %430 = vst [vmem:[#allocation2 + $0x18] sm:$0xff] 0.0
          %431 = vst [vmem:[#allocation2 + $0x20] sm:$0xff] 0.0
          %432 = vst [vmem:[#allocation2 + $0x28] sm:$0xff] 0.0
          %433 = vst [vmem:[#allocation2 + $0x30] sm:$0xff] 0.0
          %434 = vst [vmem:[#allocation2 + $0x38] sm:$0xff] 0.0
          %435 = vst [vmem:[#allocation2 + $0x40] sm:$0xff] 0.0
          %436 = vst [vmem:[#allocation2 + $0x48] sm:$0xff] 0.0
          %437 = vst [vmem:[#allocation2 + $0x50] sm:$0xff] 0.0
          %438 = vst [vmem:[#allocation2 + $0x58] sm:$0xff] 0.0
        $region90: #{bert_arch_forward.15} parent=65 // pred_fallthru
          _
        %v439 = vld [vmem:[#allocation2] sm:$0xff]
        %v440 = vld [vmem:[#allocation2 + $0x8] sm:$0xff]
        %v441 = vld [vmem:[#allocation2 + $0x10] sm:$0xff]
        %v442 = vld [vmem:[#allocation2 + $0x18] sm:$0xff]
        %v443 = vld [vmem:[#allocation2 + $0x20] sm:$0xff]
        %v444 = vld [vmem:[#allocation2 + $0x28] sm:$0xff]
        %v445 = vld [vmem:[#allocation2 + $0x30] sm:$0xff]
        %v446 = vld [vmem:[#allocation2 + $0x38] sm:$0xff]
        %v447 = vld [vmem:[#allocation2 + $0x40] sm:$0xff]
        %v448 = vld [vmem:[#allocation2 + $0x48] sm:$0xff]
        %v449 = vld [vmem:[#allocation2 + $0x50] sm:$0xff]
        %v450 = vld [vmem:[#allocation2 + $0x58] sm:$0xff]
        %v451 = vld [vmem:[%s342] sm:$0xff]
        %v452 = vld [vmem:[%s342 + $0x8] sm:$0xf]
        %v453 = vld [vmem:[%s342 + $0xc] sm:$0xff]
        %v454 = vld [vmem:[%s342 + $0x14] sm:$0xf]
        %v455 = vld [vmem:[%s350] sm:$0xff]
        %v456 = vld [vmem:[%s350 + $0x8] sm:$0xff]
        %v457 = vld [vmem:[%s350 + $0x10] sm:$0xff]
        %v458 = vld [vmem:[%s350 + $0x18] sm:$0xff]
        %v459 = vld [vmem:[%s350 + $0x20] sm:$0xff]
        %v460 = vld [vmem:[%s350 + $0x28] sm:$0xff]
        %v461 = vld [vmem:[%s350 + $0x30] sm:$0xff]
        %v462 = vld [vmem:[%s350 + $0x38] sm:$0xff]
        %v463 = vld [vmem:[%s350 + $0x40] sm:$0xff]
        %v464 = vld [vmem:[%s350 + $0x48] sm:$0xff]
        %v465 = vld [vmem:[%s350 + $0x50] sm:$0xff]
        %v466 = vld [vmem:[%s350 + $0x58] sm:$0xff]
        %v467 = vld [vmem:[%s350 + $0x60] sm:$0xff]
        %v468 = vld [vmem:[%s350 + $0x68] sm:$0xff]
        %v469 = vld [vmem:[%s350 + $0x70] sm:$0xff]
        %v470 = vld [vmem:[%s350 + $0x78] sm:$0xff]
        %v471 = vld [vmem:[%s350 + $0x80] sm:$0xff]
        %v472 = vld [vmem:[%s350 + $0x88] sm:$0xff]
        %v473 = vld [vmem:[%s350 + $0x90] sm:$0xff]
        %v474 = vld [vmem:[%s350 + $0x98] sm:$0xff]
        %v475 = vld [vmem:[%s350 + $0xa0] sm:$0xff]
        %v476 = vld [vmem:[%s350 + $0xa8] sm:$0xff]
        %v477 = vld [vmem:[%s350 + $0xb0] sm:$0xff]
        %v478 = vld [vmem:[%s350 + $0xb8] sm:$0xff]
        %v479 = vld [vmem:[%s350 + $0xc0] sm:$0xff]
        %v480 = vld [vmem:[%s350 + $0xc8] sm:$0xff]
        %v481 = vld [vmem:[%s350 + $0xd0] sm:$0xff]
        %v482 = vld [vmem:[%s350 + $0xd8] sm:$0xff]
        %v483 = vld [vmem:[%s350 + $0xe0] sm:$0xff]
        %v484 = vld [vmem:[%s350 + $0xe8] sm:$0xff]
        %v485 = vld [vmem:[%s350 + $0xf0] sm:$0xff]
        %v486 = vld [vmem:[%s350 + $0xf8] sm:$0xff]
        %v487 = vld [vmem:[%s350 + $0x100] sm:$0xff]
        %v488 = vld [vmem:[%s350 + $0x108] sm:$0xff]
        %v489 = vld [vmem:[%s350 + $0x110] sm:$0xff]
        %v490 = vld [vmem:[%s350 + $0x118] sm:$0xff]
        %v491 = vld [vmem:[%s350 + $0x120] sm:$0xff]
        %v492 = vld [vmem:[%s350 + $0x128] sm:$0xff]
        %v493 = vld [vmem:[%s350 + $0x130] sm:$0xff]
        %v494 = vld [vmem:[%s350 + $0x138] sm:$0xff]
        %v495 = vld [vmem:[%s350 + $0x140] sm:$0xff]
        %v496 = vld [vmem:[%s350 + $0x148] sm:$0xff]
        %v497 = vld [vmem:[%s350 + $0x150] sm:$0xff]
        %v498 = vld [vmem:[%s350 + $0x158] sm:$0xff]
        %v499 = vld [vmem:[%s350 + $0x160] sm:$0xff]
        %v500 = vld [vmem:[%s350 + $0x168] sm:$0xff]
        %v501 = vld [vmem:[%s350 + $0x170] sm:$0xff]
        %v502 = vld [vmem:[%s350 + $0x178] sm:$0xff]
        %v503 = vld [vmem:[%s350 + $0x180] sm:$0xff]
        %v504 = vld [vmem:[%s350 + $0x188] sm:$0xff]
        %v505 = vld [vmem:[%s350 + $0x190] sm:$0xff]
        %v506 = vld [vmem:[%s350 + $0x198] sm:$0xff]
        %v507 = vld [vmem:[%s350 + $0x1a0] sm:$0xff]
        %v508 = vld [vmem:[%s350 + $0x1a8] sm:$0xff]
        %v509 = vld [vmem:[%s350 + $0x1b0] sm:$0xff]
        %v510 = vld [vmem:[%s350 + $0x1b8] sm:$0xff]
        %v511 = vld [vmem:[%s350 + $0x1c0] sm:$0xff]
        %v512 = vld [vmem:[%s350 + $0x1c8] sm:$0xff]
        %v513 = vld [vmem:[%s350 + $0x1d0] sm:$0xff]
        %v514 = vld [vmem:[%s350 + $0x1d8] sm:$0xff]
        %v515 = vld [vmem:[%s350 + $0x1e0] sm:$0xff]
        %v516 = vld [vmem:[%s350 + $0x1e8] sm:$0xff]
        %v517 = vld [vmem:[%s350 + $0x1f0] sm:$0xff]
        %v518 = vld [vmem:[%s350 + $0x1f8] sm:$0xff]
        %v519 = vld [vmem:[%s350 + $0x200] sm:$0xff]
        %v520 = vld [vmem:[%s350 + $0x208] sm:$0xff]
        %v521 = vld [vmem:[%s350 + $0x210] sm:$0xff]
        %v522 = vld [vmem:[%s350 + $0x218] sm:$0xff]
        %v523 = vld [vmem:[%s350 + $0x220] sm:$0xff]
        %v524 = vld [vmem:[%s350 + $0x228] sm:$0xff]
        %v525 = vld [vmem:[%s350 + $0x230] sm:$0xff]
        %v526 = vld [vmem:[%s350 + $0x238] sm:$0xff]
        %v527 = vld [vmem:[%s350 + $0x240] sm:$0xff]
        %v528 = vld [vmem:[%s350 + $0x248] sm:$0xff]
        %v529 = vld [vmem:[%s350 + $0x250] sm:$0xff]
        %v530 = vld [vmem:[%s350 + $0x258] sm:$0xff]
        %v531 = vld [vmem:[%s350 + $0x260] sm:$0xff]
        %v532 = vld [vmem:[%s350 + $0x268] sm:$0xff]
        %v533 = vld [vmem:[%s350 + $0x270] sm:$0xff]
        %v534 = vld [vmem:[%s350 + $0x278] sm:$0xff]
        %v535 = vld [vmem:[%s350 + $0x280] sm:$0xff]
        %v536 = vld [vmem:[%s350 + $0x288] sm:$0xff]
        %v537 = vld [vmem:[%s350 + $0x290] sm:$0xff]
        %v538 = vld [vmem:[%s350 + $0x298] sm:$0xff]
        %v539 = vld [vmem:[%s350 + $0x2a0] sm:$0xff]
        %v540 = vld [vmem:[%s350 + $0x2a8] sm:$0xff]
        %v541 = vld [vmem:[%s350 + $0x2b0] sm:$0xff]
        %v542 = vld [vmem:[%s350 + $0x2b8] sm:$0xff]
        %v543 = vld [vmem:[%s350 + $0x2c0] sm:$0xff]
        %v544 = vld [vmem:[%s350 + $0x2c8] sm:$0xff]
        %v545 = vld [vmem:[%s350 + $0x2d0] sm:$0xff]
        %v546 = vld [vmem:[%s350 + $0x2d8] sm:$0xff]
        %v547 = vld [vmem:[%s350 + $0x2e0] sm:$0xff]
        %v548 = vld [vmem:[%s350 + $0x2e8] sm:$0xff]
        %v549 = vld [vmem:[%s350 + $0x2f0] sm:$0xff]
        %v550 = vld [vmem:[%s350 + $0x2f8] sm:$0xff]
        %v551 = vld [vmem:[%s350 + $0x300] sm:$0xff]
        %v552 = vld [vmem:[%s350 + $0x308] sm:$0xff]
        %v553 = vld [vmem:[%s350 + $0x310] sm:$0xff]
        %v554 = vld [vmem:[%s350 + $0x318] sm:$0xff]
        %v555 = vld [vmem:[%s350 + $0x320] sm:$0xff]
        %v556 = vld [vmem:[%s350 + $0x328] sm:$0xff]
        %v557 = vld [vmem:[%s350 + $0x330] sm:$0xff]
        %v558 = vld [vmem:[%s350 + $0x338] sm:$0xff]
        %v559 = vld [vmem:[%s350 + $0x340] sm:$0xff]
        %v560 = vld [vmem:[%s350 + $0x348] sm:$0xff]
        %v561 = vld [vmem:[%s350 + $0x350] sm:$0xff]
        %v562 = vld [vmem:[%s350 + $0x358] sm:$0xff]
        %v563 = vld [vmem:[%s350 + $0x360] sm:$0xff]
        %v564 = vld [vmem:[%s350 + $0x368] sm:$0xff]
        %v565 = vld [vmem:[%s350 + $0x370] sm:$0xff]
        %v566 = vld [vmem:[%s350 + $0x378] sm:$0xff]
        %v567 = vld [vmem:[%s350 + $0x380] sm:$0xff]
        %v568 = vld [vmem:[%s350 + $0x388] sm:$0xff]
        %v569 = vld [vmem:[%s350 + $0x390] sm:$0xff]
        %v570 = vld [vmem:[%s350 + $0x398] sm:$0xff]
        %v571 = vld [vmem:[%s350 + $0x3a0] sm:$0xff]
        %v572 = vld [vmem:[%s350 + $0x3a8] sm:$0xff]
        %v573 = vld [vmem:[%s350 + $0x3b0] sm:$0xff]
        %v574 = vld [vmem:[%s350 + $0x3b8] sm:$0xff]
        %v575 = vld [vmem:[%s350 + $0x3c0] sm:$0xff]
        %v576 = vld [vmem:[%s350 + $0x3c8] sm:$0xff]
        %v577 = vld [vmem:[%s350 + $0x3d0] sm:$0xff]
        %v578 = vld [vmem:[%s350 + $0x3d8] sm:$0xff]
        %v579 = vld [vmem:[%s350 + $0x3e0] sm:$0xff]
        %v580 = vld [vmem:[%s350 + $0x3e8] sm:$0xff]
        %v581 = vld [vmem:[%s350 + $0x3f0] sm:$0xff]
        %v582 = vld [vmem:[%s350 + $0x3f8] sm:$0xff]
        %v583 = vld [vmem:[%s350 + $0x400] sm:$0xff]
        %v584 = vld [vmem:[%s350 + $0x408] sm:$0xff]
        %v585 = vld [vmem:[%s350 + $0x410] sm:$0xff]
        %v586 = vld [vmem:[%s350 + $0x418] sm:$0xff]
        %v587 = vld [vmem:[%s350 + $0x420] sm:$0xff]
        %v588 = vld [vmem:[%s350 + $0x428] sm:$0xff]
        %v589 = vld [vmem:[%s350 + $0x430] sm:$0xff]
        %v590 = vld [vmem:[%s350 + $0x438] sm:$0xff]
        %v591 = vld [vmem:[%s350 + $0x440] sm:$0xff]
        %v592 = vld [vmem:[%s350 + $0x448] sm:$0xff]
        %v593 = vld [vmem:[%s350 + $0x450] sm:$0xff]
        %v594 = vld [vmem:[%s350 + $0x458] sm:$0xff]
        %v595 = vld [vmem:[%s350 + $0x460] sm:$0xff]
        %v596 = vld [vmem:[%s350 + $0x468] sm:$0xff]
        %v597 = vld [vmem:[%s350 + $0x470] sm:$0xff]
        %v598 = vld [vmem:[%s350 + $0x478] sm:$0xff]
        %v603 = vunpack.c.l.b16 %v451
        %v604 = vunpack.c.h.b16 %v451
        %v605 = vunpack.c.l.b16 %v452
        %v606 = vunpack.c.l.b16 %v453
        %v607 = vunpack.c.h.b16 %v453
        %v608 = vunpack.c.l.b16 %v454
        %v609 = vpack.c.b16 %v606, %v603
        %v610 = vpack.c.b16 %v607, %v604
        %v611 = vpack.c.b16 %v608, %v605
        %v759 = vunpack.c.l.b16 %v455
        %v760 = vunpack.c.h.b16 %v455
        %v761 = vunpack.c.l.b16 %v456
        %v762 = vunpack.c.h.b16 %v456
        %v763 = vunpack.c.l.b16 %v457
        %v764 = vunpack.c.h.b16 %v457
        %v765 = vunpack.c.l.b16 %v458
        %v766 = vunpack.c.h.b16 %v458
        %v767 = vunpack.c.l.b16 %v459
        %v768 = vunpack.c.h.b16 %v459
        %v769 = vunpack.c.l.b16 %v460
        %v770 = vunpack.c.h.b16 %v460
        %v771 = vunpack.c.l.b16 %v461
        %v772 = vunpack.c.h.b16 %v461
        %v773 = vunpack.c.l.b16 %v462
        %v774 = vunpack.c.h.b16 %v462
        %v775 = vunpack.c.l.b16 %v463
        %v776 = vunpack.c.h.b16 %v463
        %v777 = vunpack.c.l.b16 %v464
        %v778 = vunpack.c.h.b16 %v464
        %v779 = vunpack.c.l.b16 %v465
        %v780 = vunpack.c.h.b16 %v465
        %v781 = vunpack.c.l.b16 %v466
        %v782 = vunpack.c.h.b16 %v466
        %v783 = vunpack.c.l.b16 %v467
        %v784 = vunpack.c.h.b16 %v467
        %v785 = vunpack.c.l.b16 %v468
        %v786 = vunpack.c.h.b16 %v468
        %v787 = vunpack.c.l.b16 %v469
        %v788 = vunpack.c.h.b16 %v469
        %v789 = vunpack.c.l.b16 %v470
        %v790 = vunpack.c.h.b16 %v470
        %v791 = vunpack.c.l.b16 %v471
        %v792 = vunpack.c.h.b16 %v471
        %v793 = vunpack.c.l.b16 %v472
        %v794 = vunpack.c.h.b16 %v472
        %v795 = vunpack.c.l.b16 %v473
        %v796 = vunpack.c.h.b16 %v473
        %v797 = vunpack.c.l.b16 %v474
        %v798 = vunpack.c.h.b16 %v474
        %v799 = vunpack.c.l.b16 %v475
        %v800 = vunpack.c.h.b16 %v475
        %v801 = vunpack.c.l.b16 %v476
        %v802 = vunpack.c.h.b16 %v476
        %v803 = vunpack.c.l.b16 %v477
        %v804 = vunpack.c.h.b16 %v477
        %v805 = vunpack.c.l.b16 %v478
        %v806 = vunpack.c.h.b16 %v478
        %v807 = vunpack.c.l.b16 %v479
        %v808 = vunpack.c.h.b16 %v479
        %v809 = vunpack.c.l.b16 %v480
        %v810 = vunpack.c.h.b16 %v480
        %v811 = vunpack.c.l.b16 %v481
        %v812 = vunpack.c.h.b16 %v481
        %v813 = vunpack.c.l.b16 %v482
        %v814 = vunpack.c.h.b16 %v482
        %v815 = vunpack.c.l.b16 %v483
        %v816 = vunpack.c.h.b16 %v483
        %v817 = vunpack.c.l.b16 %v484
        %v818 = vunpack.c.h.b16 %v484
        %v819 = vunpack.c.l.b16 %v485
        %v820 = vunpack.c.h.b16 %v485
        %v821 = vunpack.c.l.b16 %v486
        %v822 = vunpack.c.h.b16 %v486
        %v823 = vunpack.c.l.b16 %v487
        %v824 = vunpack.c.h.b16 %v487
        %v825 = vunpack.c.l.b16 %v488
        %v826 = vunpack.c.h.b16 %v488
        %v827 = vunpack.c.l.b16 %v489
        %v828 = vunpack.c.h.b16 %v489
        %v829 = vunpack.c.l.b16 %v490
        %v830 = vunpack.c.h.b16 %v490
        %v831 = vunpack.c.l.b16 %v491
        %v832 = vunpack.c.h.b16 %v491
        %v833 = vunpack.c.l.b16 %v492
        %v834 = vunpack.c.h.b16 %v492
        %v835 = vunpack.c.l.b16 %v493
        %v836 = vunpack.c.h.b16 %v493
        %v837 = vunpack.c.l.b16 %v494
        %v838 = vunpack.c.h.b16 %v494
        %v839 = vunpack.c.l.b16 %v495
        %v840 = vunpack.c.h.b16 %v495
        %v841 = vunpack.c.l.b16 %v496
        %v842 = vunpack.c.h.b16 %v496
        %v843 = vunpack.c.l.b16 %v497
        %v844 = vunpack.c.h.b16 %v497
        %v845 = vunpack.c.l.b16 %v498
        %v846 = vunpack.c.h.b16 %v498
        %v847 = vunpack.c.l.b16 %v499
        %v848 = vunpack.c.h.b16 %v499
        %v849 = vunpack.c.l.b16 %v500
        %v850 = vunpack.c.h.b16 %v500
        %v851 = vunpack.c.l.b16 %v501
        %v852 = vunpack.c.h.b16 %v501
        %v853 = vunpack.c.l.b16 %v502
        %v854 = vunpack.c.h.b16 %v502
        %v855 = vunpack.c.l.b16 %v503
        %v856 = vunpack.c.h.b16 %v503
        %v857 = vunpack.c.l.b16 %v504
        %v858 = vunpack.c.h.b16 %v504
        %v859 = vunpack.c.l.b16 %v505
        %v860 = vunpack.c.h.b16 %v505
        %v861 = vunpack.c.l.b16 %v506
        %v862 = vunpack.c.h.b16 %v506
        %v863 = vunpack.c.l.b16 %v507
        %v864 = vunpack.c.h.b16 %v507
        %v865 = vunpack.c.l.b16 %v508
        %v866 = vunpack.c.h.b16 %v508
        %v867 = vunpack.c.l.b16 %v509
        %v868 = vunpack.c.h.b16 %v509
        %v869 = vunpack.c.l.b16 %v510
        %v870 = vunpack.c.h.b16 %v510
        %v871 = vunpack.c.l.b16 %v511
        %v872 = vunpack.c.h.b16 %v511
        %v873 = vunpack.c.l.b16 %v512
        %v874 = vunpack.c.h.b16 %v512
        %v875 = vunpack.c.l.b16 %v513
        %v876 = vunpack.c.h.b16 %v513
        %v877 = vunpack.c.l.b16 %v514
        %v878 = vunpack.c.h.b16 %v514
        %v879 = vunpack.c.l.b16 %v515
        %v880 = vunpack.c.h.b16 %v515
        %v881 = vunpack.c.l.b16 %v516
        %v882 = vunpack.c.h.b16 %v516
        %v883 = vunpack.c.l.b16 %v517
        %v884 = vunpack.c.h.b16 %v517
        %v885 = vunpack.c.l.b16 %v518
        %v886 = vunpack.c.h.b16 %v518
        %v887 = vunpack.c.l.b16 %v519
        %v888 = vunpack.c.h.b16 %v519
        %v889 = vunpack.c.l.b16 %v520
        %v890 = vunpack.c.h.b16 %v520
        %v891 = vunpack.c.l.b16 %v521
        %v892 = vunpack.c.h.b16 %v521
        %v893 = vunpack.c.l.b16 %v522
        %v894 = vunpack.c.h.b16 %v522
        %v895 = vunpack.c.l.b16 %v523
        %v896 = vunpack.c.h.b16 %v523
        %v897 = vunpack.c.l.b16 %v524
        %v898 = vunpack.c.h.b16 %v524
        %v899 = vunpack.c.l.b16 %v525
        %v900 = vunpack.c.h.b16 %v525
        %v901 = vunpack.c.l.b16 %v526
        %v902 = vunpack.c.h.b16 %v526
        %v903 = vunpack.c.l.b16 %v527
        %v904 = vunpack.c.h.b16 %v527
        %v905 = vunpack.c.l.b16 %v528
        %v906 = vunpack.c.h.b16 %v528
        %v907 = vunpack.c.l.b16 %v529
        %v908 = vunpack.c.h.b16 %v529
        %v909 = vunpack.c.l.b16 %v530
        %v910 = vunpack.c.h.b16 %v530
        %v911 = vunpack.c.l.b16 %v531
        %v912 = vunpack.c.h.b16 %v531
        %v913 = vunpack.c.l.b16 %v532
        %v914 = vunpack.c.h.b16 %v532
        %v915 = vunpack.c.l.b16 %v533
        %v916 = vunpack.c.h.b16 %v533
        %v917 = vunpack.c.l.b16 %v534
        %v918 = vunpack.c.h.b16 %v534
        %v919 = vunpack.c.l.b16 %v535
        %v920 = vunpack.c.h.b16 %v535
        %v921 = vunpack.c.l.b16 %v536
        %v922 = vunpack.c.h.b16 %v536
        %v923 = vunpack.c.l.b16 %v537
        %v924 = vunpack.c.h.b16 %v537
        %v925 = vunpack.c.l.b16 %v538
        %v926 = vunpack.c.h.b16 %v538
        %v927 = vunpack.c.l.b16 %v539
        %v928 = vunpack.c.h.b16 %v539
        %v929 = vunpack.c.l.b16 %v540
        %v930 = vunpack.c.h.b16 %v540
        %v931 = vunpack.c.l.b16 %v541
        %v932 = vunpack.c.h.b16 %v541
        %v933 = vunpack.c.l.b16 %v542
        %v934 = vunpack.c.h.b16 %v542
        %v935 = vunpack.c.l.b16 %v543
        %v936 = vunpack.c.h.b16 %v543
        %v937 = vunpack.c.l.b16 %v544
        %v938 = vunpack.c.h.b16 %v544
        %v939 = vunpack.c.l.b16 %v545
        %v940 = vunpack.c.h.b16 %v545
        %v941 = vunpack.c.l.b16 %v546
        %v942 = vunpack.c.h.b16 %v546
        %v943 = vunpack.c.l.b16 %v547
        %v944 = vunpack.c.h.b16 %v547
        %v945 = vunpack.c.l.b16 %v548
        %v946 = vunpack.c.h.b16 %v548
        %v947 = vunpack.c.l.b16 %v549
        %v948 = vunpack.c.h.b16 %v549
        %v949 = vunpack.c.l.b16 %v550
        %v950 = vunpack.c.h.b16 %v550
        %v951 = vunpack.c.l.b16 %v551
        %v952 = vunpack.c.h.b16 %v551
        %v953 = vunpack.c.l.b16 %v552
        %v954 = vunpack.c.h.b16 %v552
        %v955 = vunpack.c.l.b16 %v553
        %v956 = vunpack.c.h.b16 %v553
        %v957 = vunpack.c.l.b16 %v554
        %v958 = vunpack.c.h.b16 %v554
        %v959 = vunpack.c.l.b16 %v555
        %v960 = vunpack.c.h.b16 %v555
        %v961 = vunpack.c.l.b16 %v556
        %v962 = vunpack.c.h.b16 %v556
        %v963 = vunpack.c.l.b16 %v557
        %v964 = vunpack.c.h.b16 %v557
        %v965 = vunpack.c.l.b16 %v558
        %v966 = vunpack.c.h.b16 %v558
        %v967 = vunpack.c.l.b16 %v559
        %v968 = vunpack.c.h.b16 %v559
        %v969 = vunpack.c.l.b16 %v560
        %v970 = vunpack.c.h.b16 %v560
        %v971 = vunpack.c.l.b16 %v561
        %v972 = vunpack.c.h.b16 %v561
        %v973 = vunpack.c.l.b16 %v562
        %v974 = vunpack.c.h.b16 %v562
        %v975 = vunpack.c.l.b16 %v563
        %v976 = vunpack.c.h.b16 %v563
        %v977 = vunpack.c.l.b16 %v564
        %v978 = vunpack.c.h.b16 %v564
        %v979 = vunpack.c.l.b16 %v565
        %v980 = vunpack.c.h.b16 %v565
        %v981 = vunpack.c.l.b16 %v566
        %v982 = vunpack.c.h.b16 %v566
        %v983 = vunpack.c.l.b16 %v567
        %v984 = vunpack.c.h.b16 %v567
        %v985 = vunpack.c.l.b16 %v568
        %v986 = vunpack.c.h.b16 %v568
        %v987 = vunpack.c.l.b16 %v569
        %v988 = vunpack.c.h.b16 %v569
        %v989 = vunpack.c.l.b16 %v570
        %v990 = vunpack.c.h.b16 %v570
        %v991 = vunpack.c.l.b16 %v571
        %v992 = vunpack.c.h.b16 %v571
        %v993 = vunpack.c.l.b16 %v572
        %v994 = vunpack.c.h.b16 %v572
        %v995 = vunpack.c.l.b16 %v573
        %v996 = vunpack.c.h.b16 %v573
        %v997 = vunpack.c.l.b16 %v574
        %v998 = vunpack.c.h.b16 %v574
        %v999 = vunpack.c.l.b16 %v575
        %v1000 = vunpack.c.h.b16 %v575
        %v1001 = vunpack.c.l.b16 %v576
        %v1002 = vunpack.c.h.b16 %v576
        %v1003 = vunpack.c.l.b16 %v577
        %v1004 = vunpack.c.h.b16 %v577
        %v1005 = vunpack.c.l.b16 %v578
        %v1006 = vunpack.c.h.b16 %v578
        %v1007 = vunpack.c.l.b16 %v579
        %v1008 = vunpack.c.h.b16 %v579
        %v1009 = vunpack.c.l.b16 %v580
        %v1010 = vunpack.c.h.b16 %v580
        %v1011 = vunpack.c.l.b16 %v581
        %v1012 = vunpack.c.h.b16 %v581
        %v1013 = vunpack.c.l.b16 %v582
        %v1014 = vunpack.c.h.b16 %v582
        %v1015 = vunpack.c.l.b16 %v583
        %v1016 = vunpack.c.h.b16 %v583
        %v1017 = vunpack.c.l.b16 %v584
        %v1018 = vunpack.c.h.b16 %v584
        %v1019 = vunpack.c.l.b16 %v585
        %v1020 = vunpack.c.h.b16 %v585
        %v1021 = vunpack.c.l.b16 %v586
        %v1022 = vunpack.c.h.b16 %v586
        %v1023 = vunpack.c.l.b16 %v587
        %v1024 = vunpack.c.h.b16 %v587
        %v1025 = vunpack.c.l.b16 %v588
        %v1026 = vunpack.c.h.b16 %v588
        %v1027 = vunpack.c.l.b16 %v589
        %v1028 = vunpack.c.h.b16 %v589
        %v1029 = vunpack.c.l.b16 %v590
        %v1030 = vunpack.c.h.b16 %v590
        %v1031 = vunpack.c.l.b16 %v591
        %v1032 = vunpack.c.h.b16 %v591
        %v1033 = vunpack.c.l.b16 %v592
        %v1034 = vunpack.c.h.b16 %v592
        %v1035 = vunpack.c.l.b16 %v593
        %v1036 = vunpack.c.h.b16 %v593
        %v1037 = vunpack.c.l.b16 %v594
        %v1038 = vunpack.c.h.b16 %v594
        %v1039 = vunpack.c.l.b16 %v595
        %v1040 = vunpack.c.h.b16 %v595
        %v1041 = vunpack.c.l.b16 %v596
        %v1042 = vunpack.c.h.b16 %v596
        %v1043 = vunpack.c.l.b16 %v597
        %v1044 = vunpack.c.h.b16 %v597
        %v1045 = vunpack.c.l.b16 %v598
        %v1046 = vunpack.c.h.b16 %v598
        %v1047 = vpack.c.b16 %v765, %v759
        %v1048 = vpack.c.b16 %v766, %v760
        %v1049 = vpack.c.b16 %v767, %v761
        %v1050 = vpack.c.b16 %v768, %v762
        %v1051 = vpack.c.b16 %v769, %v763
        %v1052 = vpack.c.b16 %v770, %v764
        %v1053 = vpack.c.b16 %v777, %v771
        %v1054 = vpack.c.b16 %v778, %v772
        %v1055 = vpack.c.b16 %v779, %v773
        %v1056 = vpack.c.b16 %v780, %v774
        %v1057 = vpack.c.b16 %v781, %v775
        %v1058 = vpack.c.b16 %v782, %v776
        %v1059 = vpack.c.b16 %v789, %v783
        %v1060 = vpack.c.b16 %v790, %v784
        %v1061 = vpack.c.b16 %v791, %v785
        %v1062 = vpack.c.b16 %v792, %v786
        %v1063 = vpack.c.b16 %v793, %v787
        %v1064 = vpack.c.b16 %v794, %v788
        %v1065 = vpack.c.b16 %v801, %v795
        %v1066 = vpack.c.b16 %v802, %v796
        %v1067 = vpack.c.b16 %v803, %v797
        %v1068 = vpack.c.b16 %v804, %v798
        %v1069 = vpack.c.b16 %v805, %v799
        %v1070 = vpack.c.b16 %v806, %v800
        %v1071 = vpack.c.b16 %v813, %v807
        %v1072 = vpack.c.b16 %v814, %v808
        %v1073 = vpack.c.b16 %v815, %v809
        %v1074 = vpack.c.b16 %v816, %v810
        %v1075 = vpack.c.b16 %v817, %v811
        %v1076 = vpack.c.b16 %v818, %v812
        %v1077 = vpack.c.b16 %v825, %v819
        %v1078 = vpack.c.b16 %v826, %v820
        %v1079 = vpack.c.b16 %v827, %v821
        %v1080 = vpack.c.b16 %v828, %v822
        %v1081 = vpack.c.b16 %v829, %v823
        %v1082 = vpack.c.b16 %v830, %v824
        %v1083 = vpack.c.b16 %v837, %v831
        %v1084 = vpack.c.b16 %v838, %v832
        %v1085 = vpack.c.b16 %v839, %v833
        %v1086 = vpack.c.b16 %v840, %v834
        %v1087 = vpack.c.b16 %v841, %v835
        %v1088 = vpack.c.b16 %v842, %v836
        %v1089 = vpack.c.b16 %v849, %v843
        %v1090 = vpack.c.b16 %v850, %v844
        %v1091 = vpack.c.b16 %v851, %v845
        %v1092 = vpack.c.b16 %v852, %v846
        %v1093 = vpack.c.b16 %v853, %v847
        %v1094 = vpack.c.b16 %v854, %v848
        %v1095 = vpack.c.b16 %v861, %v855
        %v1096 = vpack.c.b16 %v862, %v856
        %v1097 = vpack.c.b16 %v863, %v857
        %v1098 = vpack.c.b16 %v864, %v858
        %v1099 = vpack.c.b16 %v865, %v859
        %v1100 = vpack.c.b16 %v866, %v860
        %v1101 = vpack.c.b16 %v873, %v867
        %v1102 = vpack.c.b16 %v874, %v868
        %v1103 = vpack.c.b16 %v875, %v869
        %v1104 = vpack.c.b16 %v876, %v870
        %v1105 = vpack.c.b16 %v877, %v871
        %v1106 = vpack.c.b16 %v878, %v872
        %v1107 = vpack.c.b16 %v885, %v879
        %v1108 = vpack.c.b16 %v886, %v880
        %v1109 = vpack.c.b16 %v887, %v881
        %v1110 = vpack.c.b16 %v888, %v882
        %v1111 = vpack.c.b16 %v889, %v883
        %v1112 = vpack.c.b16 %v890, %v884
        %v1113 = vpack.c.b16 %v897, %v891
        %v1114 = vpack.c.b16 %v898, %v892
        %v1115 = vpack.c.b16 %v899, %v893
        %v1116 = vpack.c.b16 %v900, %v894
        %v1117 = vpack.c.b16 %v901, %v895
        %v1118 = vpack.c.b16 %v902, %v896
        %v1119 = vpack.c.b16 %v909, %v903
        %v1120 = vpack.c.b16 %v910, %v904
        %v1121 = vpack.c.b16 %v911, %v905
        %v1122 = vpack.c.b16 %v912, %v906
        %v1123 = vpack.c.b16 %v913, %v907
        %v1124 = vpack.c.b16 %v914, %v908
        %v1125 = vpack.c.b16 %v921, %v915
        %v1126 = vpack.c.b16 %v922, %v916
        %v1127 = vpack.c.b16 %v923, %v917
        %v1128 = vpack.c.b16 %v924, %v918
        %v1129 = vpack.c.b16 %v925, %v919
        %v1130 = vpack.c.b16 %v926, %v920
        %v1131 = vpack.c.b16 %v933, %v927
        %v1132 = vpack.c.b16 %v934, %v928
        %v1133 = vpack.c.b16 %v935, %v929
        %v1134 = vpack.c.b16 %v936, %v930
        %v1135 = vpack.c.b16 %v937, %v931
        %v1136 = vpack.c.b16 %v938, %v932
        %v1137 = vpack.c.b16 %v945, %v939
        %v1138 = vpack.c.b16 %v946, %v940
        %v1139 = vpack.c.b16 %v947, %v941
        %v1140 = vpack.c.b16 %v948, %v942
        %v1141 = vpack.c.b16 %v949, %v943
        %v1142 = vpack.c.b16 %v950, %v944
        %v1143 = vpack.c.b16 %v957, %v951
        %v1144 = vpack.c.b16 %v958, %v952
        %v1145 = vpack.c.b16 %v959, %v953
        %v1146 = vpack.c.b16 %v960, %v954
        %v1147 = vpack.c.b16 %v961, %v955
        %v1148 = vpack.c.b16 %v962, %v956
        %v1149 = vpack.c.b16 %v969, %v963
        %v1150 = vpack.c.b16 %v970, %v964
        %v1151 = vpack.c.b16 %v971, %v965
        %v1152 = vpack.c.b16 %v972, %v966
        %v1153 = vpack.c.b16 %v973, %v967
        %v1154 = vpack.c.b16 %v974, %v968
        %v1155 = vpack.c.b16 %v981, %v975
        %v1156 = vpack.c.b16 %v982, %v976
        %v1157 = vpack.c.b16 %v983, %v977
        %v1158 = vpack.c.b16 %v984, %v978
        %v1159 = vpack.c.b16 %v985, %v979
        %v1160 = vpack.c.b16 %v986, %v980
        %v1161 = vpack.c.b16 %v993, %v987
        %v1162 = vpack.c.b16 %v994, %v988
        %v1163 = vpack.c.b16 %v995, %v989
        %v1164 = vpack.c.b16 %v996, %v990
        %v1165 = vpack.c.b16 %v997, %v991
        %v1166 = vpack.c.b16 %v998, %v992
        %v1167 = vpack.c.b16 %v1005, %v999
        %v1168 = vpack.c.b16 %v1006, %v1000
        %v1169 = vpack.c.b16 %v1007, %v1001
        %v1170 = vpack.c.b16 %v1008, %v1002
        %v1171 = vpack.c.b16 %v1009, %v1003
        %v1172 = vpack.c.b16 %v1010, %v1004
        %v1173 = vpack.c.b16 %v1017, %v1011
        %v1174 = vpack.c.b16 %v1018, %v1012
        %v1175 = vpack.c.b16 %v1019, %v1013
        %v1176 = vpack.c.b16 %v1020, %v1014
        %v1177 = vpack.c.b16 %v1021, %v1015
        %v1178 = vpack.c.b16 %v1022, %v1016
        %v1179 = vpack.c.b16 %v1029, %v1023
        %v1180 = vpack.c.b16 %v1030, %v1024
        %v1181 = vpack.c.b16 %v1031, %v1025
        %v1182 = vpack.c.b16 %v1032, %v1026
        %v1183 = vpack.c.b16 %v1033, %v1027
        %v1184 = vpack.c.b16 %v1034, %v1028
        %v1185 = vpack.c.b16 %v1041, %v1035
        %v1186 = vpack.c.b16 %v1042, %v1036
        %v1187 = vpack.c.b16 %v1043, %v1037
        %v1188 = vpack.c.b16 %v1044, %v1038
        %v1189 = vpack.c.b16 %v1045, %v1039
        %v1190 = vpack.c.b16 %v1046, %v1040
        %1335 = vmatpush.bf16.msra.mxu0 %v1089
        %1336 = vmatpush.bf16.msra.mxu0 %v1083
        %1337 = vmatpush.bf16.msra.mxu0 %v1077
        %1338 = vmatpush.bf16.msra.mxu0 %v1071
        %1339 = vmatpush.bf16.msra.mxu0 %v1065
        %1340 = vmatpush.bf16.msra.mxu0 %v1059
        %1341 = vmatpush.bf16.msra.mxu0 %v1053
        %1342 = vmatpush.bf16.msra.mxu0 %v1047
        %1343 = vmatmul.bf16.gmra.mxu0 %v609
        %v1344 = vpop.f32.mrf.mxu0
        %v1345 = vadd.f32 0.0, %v1344
        %v1346 = vpop.f32.mrf.mxu0
        %v1347 = vadd.f32 0.0, %v1346
        %1348 = vdwg.mxu0
        %1349 = vmatpush.bf16.msra.mxu0 %v1137
        %1350 = vmatpush.bf16.msra.mxu0 %v1131
        %1351 = vmatpush.bf16.msra.mxu0 %v1125
        %1352 = vmatpush.bf16.msra.mxu0 %v1119
        %1353 = vmatpush.bf16.msra.mxu0 %v1113
        %1354 = vmatpush.bf16.msra.mxu0 %v1107
        %1355 = vmatpush.bf16.msra.mxu0 %v1101
        %1356 = vmatpush.bf16.msra.mxu0 %v1095
        %1357 = vmatmul.bf16.gmra.mxu0 %v610
        %v1358 = vpop.f32.mrf.mxu0
        %v1359 = vadd.f32 %v1345, %v1358
        %v1360 = vpop.f32.mrf.mxu0
        %v1361 = vadd.f32 %v1347, %v1360
        %1362 = vdwg.mxu0
        %1363 = vmatpush.bf16.msra.mxu0 %v1185
        %1364 = vmatpush.bf16.msra.mxu0 %v1179
        %1365 = vmatpush.bf16.msra.mxu0 %v1173
        %1366 = vmatpush.bf16.msra.mxu0 %v1167
        %1367 = vmatpush.bf16.msra.mxu0 %v1161
        %1368 = vmatpush.bf16.msra.mxu0 %v1155
        %1369 = vmatpush.bf16.msra.mxu0 %v1149
        %1370 = vmatpush.bf16.msra.mxu0 %v1143
        %1371 = vmatmul.bf16.gmra.mxu0 %v611
        %v1372 = vpop.f32.mrf.mxu0
        %v1373 = vadd.f32 %v1359, %v1372
        %v1374 = vpop.f32.mrf.mxu0
        %v1375 = vadd.f32 %v1361, %v1374
        %1376 = vdwg.mxu0
        %1377 = vmatpush.bf16.msra.mxu0 %v1090
        %1378 = vmatpush.bf16.msra.mxu0 %v1084
        %1379 = vmatpush.bf16.msra.mxu0 %v1078
        %1380 = vmatpush.bf16.msra.mxu0 %v1072
        %1381 = vmatpush.bf16.msra.mxu0 %v1066
        %1382 = vmatpush.bf16.msra.mxu0 %v1060
        %1383 = vmatpush.bf16.msra.mxu0 %v1054
        %1384 = vmatpush.bf16.msra.mxu0 %v1048
        %1385 = vmatmul.bf16.gmra.mxu0 %v609
        %v1386 = vpop.f32.mrf.mxu0
        %v1387 = vadd.f32 0.0, %v1386
        %v1388 = vpop.f32.mrf.mxu0
        %v1389 = vadd.f32 0.0, %v1388
        %1390 = vdwg.mxu0
        %1391 = vmatpush.bf16.msra.mxu0 %v1138
        %1392 = vmatpush.bf16.msra.mxu0 %v1132
        %1393 = vmatpush.bf16.msra.mxu0 %v1126
        %1394 = vmatpush.bf16.msra.mxu0 %v1120
        %1395 = vmatpush.bf16.msra.mxu0 %v1114
        %1396 = vmatpush.bf16.msra.mxu0 %v1108
        %1397 = vmatpush.bf16.msra.mxu0 %v1102
        %1398 = vmatpush.bf16.msra.mxu0 %v1096
        %1399 = vmatmul.bf16.gmra.mxu0 %v610
        %v1400 = vpop.f32.mrf.mxu0
        %v1401 = vadd.f32 %v1387, %v1400
        %v1402 = vpop.f32.mrf.mxu0
        %v1403 = vadd.f32 %v1389, %v1402
        %1404 = vdwg.mxu0
        %1405 = vmatpush.bf16.msra.mxu0 %v1186
        %1406 = vmatpush.bf16.msra.mxu0 %v1180
        %1407 = vmatpush.bf16.msra.mxu0 %v1174
        %1408 = vmatpush.bf16.msra.mxu0 %v1168
        %1409 = vmatpush.bf16.msra.mxu0 %v1162
        %1410 = vmatpush.bf16.msra.mxu0 %v1156
        %1411 = vmatpush.bf16.msra.mxu0 %v1150
        %1412 = vmatpush.bf16.msra.mxu0 %v1144
        %1413 = vmatmul.bf16.gmra.mxu0 %v611
        %v1414 = vpop.f32.mrf.mxu0
        %v1415 = vadd.f32 %v1401, %v1414
        %v1416 = vpop.f32.mrf.mxu0
        %v1417 = vadd.f32 %v1403, %v1416
        %1418 = vdwg.mxu0
        %1419 = vmatpush.bf16.msra.mxu0 %v1091
        %1420 = vmatpush.bf16.msra.mxu0 %v1085
        %1421 = vmatpush.bf16.msra.mxu0 %v1079
        %1422 = vmatpush.bf16.msra.mxu0 %v1073
        %1423 = vmatpush.bf16.msra.mxu0 %v1067
        %1424 = vmatpush.bf16.msra.mxu0 %v1061
        %1425 = vmatpush.bf16.msra.mxu0 %v1055
        %1426 = vmatpush.bf16.msra.mxu0 %v1049
        %1427 = vmatmul.bf16.gmra.mxu0 %v609
        %v1428 = vpop.f32.mrf.mxu0
        %v1429 = vadd.f32 0.0, %v1428
        %v1430 = vpop.f32.mrf.mxu0
        %v1431 = vadd.f32 0.0, %v1430
        %1432 = vdwg.mxu0
        %1433 = vmatpush.bf16.msra.mxu0 %v1139
        %1434 = vmatpush.bf16.msra.mxu0 %v1133
        %1435 = vmatpush.bf16.msra.mxu0 %v1127
        %1436 = vmatpush.bf16.msra.mxu0 %v1121
        %1437 = vmatpush.bf16.msra.mxu0 %v1115
        %1438 = vmatpush.bf16.msra.mxu0 %v1109
        %1439 = vmatpush.bf16.msra.mxu0 %v1103
        %1440 = vmatpush.bf16.msra.mxu0 %v1097
        %1441 = vmatmul.bf16.gmra.mxu0 %v610
        %v1442 = vpop.f32.mrf.mxu0
        %v1443 = vadd.f32 %v1429, %v1442
        %v1444 = vpop.f32.mrf.mxu0
        %v1445 = vadd.f32 %v1431, %v1444
        %1446 = vdwg.mxu0
        %1447 = vmatpush.bf16.msra.mxu0 %v1187
        %1448 = vmatpush.bf16.msra.mxu0 %v1181
        %1449 = vmatpush.bf16.msra.mxu0 %v1175
        %1450 = vmatpush.bf16.msra.mxu0 %v1169
        %1451 = vmatpush.bf16.msra.mxu0 %v1163
        %1452 = vmatpush.bf16.msra.mxu0 %v1157
        %1453 = vmatpush.bf16.msra.mxu0 %v1151
        %1454 = vmatpush.bf16.msra.mxu0 %v1145
        %1455 = vmatmul.bf16.gmra.mxu0 %v611
        %v1456 = vpop.f32.mrf.mxu0
        %v1457 = vadd.f32 %v1443, %v1456
        %v1458 = vpop.f32.mrf.mxu0
        %v1459 = vadd.f32 %v1445, %v1458
        %1460 = vdwg.mxu0
        %1461 = vmatpush.bf16.msra.mxu0 %v1092
        %1462 = vmatpush.bf16.msra.mxu0 %v1086
        %1463 = vmatpush.bf16.msra.mxu0 %v1080
        %1464 = vmatpush.bf16.msra.mxu0 %v1074
        %1465 = vmatpush.bf16.msra.mxu0 %v1068
        %1466 = vmatpush.bf16.msra.mxu0 %v1062
        %1467 = vmatpush.bf16.msra.mxu0 %v1056
        %1468 = vmatpush.bf16.msra.mxu0 %v1050
        %1469 = vmatmul.bf16.gmra.mxu0 %v609
        %v1470 = vpop.f32.mrf.mxu0
        %v1471 = vadd.f32 0.0, %v1470
        %v1472 = vpop.f32.mrf.mxu0
        %v1473 = vadd.f32 0.0, %v1472
        %1474 = vdwg.mxu0
        %1475 = vmatpush.bf16.msra.mxu0 %v1140
        %1476 = vmatpush.bf16.msra.mxu0 %v1134
        %1477 = vmatpush.bf16.msra.mxu0 %v1128
        %1478 = vmatpush.bf16.msra.mxu0 %v1122
        %1479 = vmatpush.bf16.msra.mxu0 %v1116
        %1480 = vmatpush.bf16.msra.mxu0 %v1110
        %1481 = vmatpush.bf16.msra.mxu0 %v1104
        %1482 = vmatpush.bf16.msra.mxu0 %v1098
        %1483 = vmatmul.bf16.gmra.mxu0 %v610
        %v1484 = vpop.f32.mrf.mxu0
        %v1485 = vadd.f32 %v1471, %v1484
        %v1486 = vpop.f32.mrf.mxu0
        %v1487 = vadd.f32 %v1473, %v1486
        %1488 = vdwg.mxu0
        %1489 = vmatpush.bf16.msra.mxu0 %v1188
        %1490 = vmatpush.bf16.msra.mxu0 %v1182
        %1491 = vmatpush.bf16.msra.mxu0 %v1176
        %1492 = vmatpush.bf16.msra.mxu0 %v1170
        %1493 = vmatpush.bf16.msra.mxu0 %v1164
        %1494 = vmatpush.bf16.msra.mxu0 %v1158
        %1495 = vmatpush.bf16.msra.mxu0 %v1152
        %1496 = vmatpush.bf16.msra.mxu0 %v1146
        %1497 = vmatmul.bf16.gmra.mxu0 %v611
        %v1498 = vpop.f32.mrf.mxu0
        %v1499 = vadd.f32 %v1485, %v1498
        %v1500 = vpop.f32.mrf.mxu0
        %v1501 = vadd.f32 %v1487, %v1500
        %1502 = vdwg.mxu0
        %1503 = vmatpush.bf16.msra.mxu0 %v1093
        %1504 = vmatpush.bf16.msra.mxu0 %v1087
        %1505 = vmatpush.bf16.msra.mxu0 %v1081
        %1506 = vmatpush.bf16.msra.mxu0 %v1075
        %1507 = vmatpush.bf16.msra.mxu0 %v1069
        %1508 = vmatpush.bf16.msra.mxu0 %v1063
        %1509 = vmatpush.bf16.msra.mxu0 %v1057
        %1510 = vmatpush.bf16.msra.mxu0 %v1051
        %1511 = vmatmul.bf16.gmra.mxu0 %v609
        %v1512 = vpop.f32.mrf.mxu0
        %v1513 = vadd.f32 0.0, %v1512
        %v1514 = vpop.f32.mrf.mxu0
        %v1515 = vadd.f32 0.0, %v1514
        %1516 = vdwg.mxu0
        %1517 = vmatpush.bf16.msra.mxu0 %v1141
        %1518 = vmatpush.bf16.msra.mxu0 %v1135
        %1519 = vmatpush.bf16.msra.mxu0 %v1129
        %1520 = vmatpush.bf16.msra.mxu0 %v1123
        %1521 = vmatpush.bf16.msra.mxu0 %v1117
        %1522 = vmatpush.bf16.msra.mxu0 %v1111
        %1523 = vmatpush.bf16.msra.mxu0 %v1105
        %1524 = vmatpush.bf16.msra.mxu0 %v1099
        %1525 = vmatmul.bf16.gmra.mxu0 %v610
        %v1526 = vpop.f32.mrf.mxu0
        %v1527 = vadd.f32 %v1513, %v1526
        %v1528 = vpop.f32.mrf.mxu0
        %v1529 = vadd.f32 %v1515, %v1528
        %1530 = vdwg.mxu0
        %1531 = vmatpush.bf16.msra.mxu0 %v1189
        %1532 = vmatpush.bf16.msra.mxu0 %v1183
        %1533 = vmatpush.bf16.msra.mxu0 %v1177
        %1534 = vmatpush.bf16.msra.mxu0 %v1171
        %1535 = vmatpush.bf16.msra.mxu0 %v1165
        %1536 = vmatpush.bf16.msra.mxu0 %v1159
        %1537 = vmatpush.bf16.msra.mxu0 %v1153
        %1538 = vmatpush.bf16.msra.mxu0 %v1147
        %1539 = vmatmul.bf16.gmra.mxu0 %v611
        %v1540 = vpop.f32.mrf.mxu0
        %v1541 = vadd.f32 %v1527, %v1540
        %v1542 = vpop.f32.mrf.mxu0
        %v1543 = vadd.f32 %v1529, %v1542
        %1544 = vdwg.mxu0
        %1545 = vmatpush.bf16.msra.mxu0 %v1094
        %1546 = vmatpush.bf16.msra.mxu0 %v1088
        %1547 = vmatpush.bf16.msra.mxu0 %v1082
        %1548 = vmatpush.bf16.msra.mxu0 %v1076
        %1549 = vmatpush.bf16.msra.mxu0 %v1070
        %1550 = vmatpush.bf16.msra.mxu0 %v1064
        %1551 = vmatpush.bf16.msra.mxu0 %v1058
        %1552 = vmatpush.bf16.msra.mxu0 %v1052
        %1553 = vmatmul.bf16.gmra.mxu0 %v609
        %v1554 = vpop.f32.mrf.mxu0
        %v1555 = vadd.f32 0.0, %v1554
        %v1556 = vpop.f32.mrf.mxu0
        %v1557 = vadd.f32 0.0, %v1556
        %1558 = vdwg.mxu0
        %1559 = vmatpush.bf16.msra.mxu0 %v1142
        %1560 = vmatpush.bf16.msra.mxu0 %v1136
        %1561 = vmatpush.bf16.msra.mxu0 %v1130
        %1562 = vmatpush.bf16.msra.mxu0 %v1124
        %1563 = vmatpush.bf16.msra.mxu0 %v1118
        %1564 = vmatpush.bf16.msra.mxu0 %v1112
        %1565 = vmatpush.bf16.msra.mxu0 %v1106
        %1566 = vmatpush.bf16.msra.mxu0 %v1100
        %1567 = vmatmul.bf16.gmra.mxu0 %v610
        %v1568 = vpop.f32.mrf.mxu0
        %v1569 = vadd.f32 %v1555, %v1568
        %v1570 = vpop.f32.mrf.mxu0
        %v1571 = vadd.f32 %v1557, %v1570
        %1572 = vdwg.mxu0
        %1573 = vmatpush.bf16.msra.mxu0 %v1190
        %1574 = vmatpush.bf16.msra.mxu0 %v1184
        %1575 = vmatpush.bf16.msra.mxu0 %v1178
        %1576 = vmatpush.bf16.msra.mxu0 %v1172
        %1577 = vmatpush.bf16.msra.mxu0 %v1166
        %1578 = vmatpush.bf16.msra.mxu0 %v1160
        %1579 = vmatpush.bf16.msra.mxu0 %v1154
        %1580 = vmatpush.bf16.msra.mxu0 %v1148
        %1581 = vmatmul.bf16.gmra.mxu0 %v611
        %v1582 = vpop.f32.mrf.mxu0
        %v1583 = vadd.f32 %v1569, %v1582
        %v1584 = vpop.f32.mrf.mxu0
        %v1585 = vadd.f32 %v1571, %v1584
        %1586 = vdwg.mxu0
        %v1587 = vadd.f32 %v439, %v1373
        %v1588 = vadd.f32 %v440, %v1415
        %v1589 = vadd.f32 %v441, %v1457
        %v1590 = vadd.f32 %v442, %v1499
        %v1591 = vadd.f32 %v443, %v1541
        %v1592 = vadd.f32 %v444, %v1583
        %v1593 = vadd.f32 %v445, %v1375
        %v1594 = vadd.f32 %v446, %v1417
        %v1595 = vadd.f32 %v447, %v1459
        %v1596 = vadd.f32 %v448, %v1501
        %v1597 = vadd.f32 %v449, %v1543
        %v1598 = vadd.f32 %v450, %v1585
        %1599 = vst [vmem:[#allocation2] sm:$0xff] %v1587
        %1600 = vst [vmem:[#allocation2 + $0x8] sm:$0xff] %v1588
        %1601 = vst [vmem:[#allocation2 + $0x10] sm:$0xff] %v1589
        %1602 = vst [vmem:[#allocation2 + $0x18] sm:$0xff] %v1590
        %1603 = vst [vmem:[#allocation2 + $0x20] sm:$0xff] %v1591
        %1604 = vst [vmem:[#allocation2 + $0x28] sm:$0xff] %v1592
        %1605 = vst [vmem:[#allocation2 + $0x30] sm:$0xff] %v1593
        %1606 = vst [vmem:[#allocation2 + $0x38] sm:$0xff] %v1594
        %1607 = vst [vmem:[#allocation2 + $0x40] sm:$0xff] %v1595
        %1608 = vst [vmem:[#allocation2 + $0x48] sm:$0xff] %v1596
        %1609 = vst [vmem:[#allocation2 + $0x50] sm:$0xff] %v1597
        %1610 = vst [vmem:[#allocation2 + $0x58] sm:$0xff] %v1598
        %p1611 = scmp.eq.s32.totalorder %s27, 1
        // Predicated region
        $region91: #{bert_arch_forward.15} parent=65 // pred_check
          %p1612 = pneg %p1611
        $region92: #{bert_arch_forward.15} parent=65 // pred_check_branch
          %1614 = sbr.rel (%p1612) target = $region94
        $region93: #{bert_arch_forward.15} parent=65 // pred_region
          %v1615 = vld [vmem:[#allocation2] sm:$0xff]
          %v1616 = vld [vmem:[#allocation2 + $0x8] sm:$0xff]
          %v1617 = vld [vmem:[#allocation2 + $0x10] sm:$0xff]
          %v1618 = vld [vmem:[#allocation2 + $0x18] sm:$0xff]
          %v1619 = vld [vmem:[#allocation2 + $0x20] sm:$0xff]
          %v1620 = vld [vmem:[#allocation2 + $0x28] sm:$0xff]
          %v1621 = vld [vmem:[#allocation2 + $0x30] sm:$0xff]
          %v1622 = vld [vmem:[#allocation2 + $0x38] sm:$0xff]
          %v1623 = vld [vmem:[#allocation2 + $0x40] sm:$0xff]
          %v1624 = vld [vmem:[#allocation2 + $0x48] sm:$0xff]
          %v1625 = vld [vmem:[#allocation2 + $0x50] sm:$0xff]
          %v1626 = vld [vmem:[#allocation2 + $0x58] sm:$0xff]
          %v1627 = vld [vmem:[#allocation6] sm:$0x3f]
          %v1629 = vperm.slane %v1627, 0
          %v1630 = vperm.slane %v1627, 1
          %v1631 = vperm.slane %v1627, 2
          %v1632 = vperm.slane %v1627, 3
          %v1633 = vperm.slane %v1627, 4
          %v1634 = vperm.slane %v1627, 5
          %v1641 = vadd.f32 %v1615, %v1629
          %v1642 = vadd.f32 %v1616, %v1630
          %v1643 = vadd.f32 %v1617, %v1631
          %v1644 = vadd.f32 %v1618, %v1632
          %v1645 = vadd.f32 %v1619, %v1633
          %v1646 = vadd.f32 %v1620, %v1634
          %v1647 = vadd.f32 %v1621, %v1629
          %v1648 = vadd.f32 %v1622, %v1630
          %v1649 = vadd.f32 %v1623, %v1631
          %v1650 = vadd.f32 %v1624, %v1632
          %v1651 = vadd.f32 %v1625, %v1633
          %v1652 = vadd.f32 %v1626, %v1634
          %v1653 = vld [vmem:[%s414] sm:$0xff]
          %v1654 = vld [vmem:[%s414 + $0x8] sm:$0xff]
          %v1655 = vld [vmem:[%s414 + $0x10] sm:$0xff]
          %v1656 = vld [vmem:[%s414 + $0x18] sm:$0xff]
          %v1657 = vld [vmem:[%s414 + $0x20] sm:$0xff]
          %v1658 = vld [vmem:[%s414 + $0x28] sm:$0xff]
          %v1659 = vunpack.c.l.bf16 %v1653
          %v1660 = vunpack.c.h.bf16 %v1653
          %v1661 = vunpack.c.l.bf16 %v1654
          %v1662 = vunpack.c.h.bf16 %v1654
          %v1663 = vunpack.c.l.bf16 %v1655
          %v1664 = vunpack.c.h.bf16 %v1655
          %v1665 = vunpack.c.l.bf16 %v1656
          %v1666 = vunpack.c.h.bf16 %v1656
          %v1667 = vunpack.c.l.bf16 %v1657
          %v1668 = vunpack.c.h.bf16 %v1657
          %v1669 = vunpack.c.l.bf16 %v1658
          %v1670 = vunpack.c.h.bf16 %v1658
          %v1671 = vadd.f32 %v1641, %v1659
          %v1672 = vadd.f32 %v1642, %v1660
          %v1673 = vadd.f32 %v1643, %v1661
          %v1674 = vadd.f32 %v1644, %v1662
          %v1675 = vadd.f32 %v1645, %v1663
          %v1676 = vadd.f32 %v1646, %v1664
          %v1677 = vadd.f32 %v1647, %v1665
          %v1678 = vadd.f32 %v1648, %v1666
          %v1679 = vadd.f32 %v1649, %v1667
          %v1680 = vadd.f32 %v1650, %v1668
          %v1681 = vadd.f32 %v1651, %v1669
          %v1682 = vadd.f32 %v1652, %v1670
          %v1683 = vadd.f32 %v1671, %v1672
          %v1684 = vadd.f32 %v1683, %v1673
          %v1685 = vadd.f32 %v1684, %v1674
          %v1686 = vadd.f32 %v1685, %v1675
          %v1687 = vadd.f32 %v1686, %v1676
          %1688 = vadd.xlane.f32.xlu0 %v1687
          %v1689 = vpop.xlane.xlu0 %1688
          %v1690 = vadd.f32 %v1677, %v1678
          %v1691 = vadd.f32 %v1690, %v1679
          %v1692 = vadd.f32 %v1691, %v1680
          %v1693 = vadd.f32 %v1692, %v1681
          %v1694 = vadd.f32 %v1693, %v1682
          %1695 = vadd.xlane.f32.xlu0 %v1694
          %v1696 = vpop.xlane.xlu0 %1695
          %v1697 = vrcp.pop 768.0
          %v1698 = vmul.f32 768.0, %v1697
          %v1699 = vsub.f32 1.0, %v1698
          %v1700 = vmul.f32 %v1697, %v1699
          %v1701 = vadd.f32 %v1697, %v1700
          %vm1702 = vweird.f32 %v1697
          %v1703 = vsel %vm1702, %v1697, %v1701
          %v1704 = vmul.f32 %v1689, %v1703
          %v1705 = vmul.f32 %v1696, %v1703
          %v1706 = vsub.f32 %v1671, %v1704
          %v1707 = vsub.f32 %v1672, %v1704
          %v1708 = vsub.f32 %v1673, %v1704
          %v1709 = vsub.f32 %v1674, %v1704
          %v1710 = vsub.f32 %v1675, %v1704
          %v1711 = vsub.f32 %v1676, %v1704
          %v1712 = vsub.f32 %v1677, %v1705
          %v1713 = vsub.f32 %v1678, %v1705
          %v1714 = vsub.f32 %v1679, %v1705
          %v1715 = vsub.f32 %v1680, %v1705
          %v1716 = vsub.f32 %v1681, %v1705
          %v1717 = vsub.f32 %v1682, %v1705
          %v1718 = vmul.f32 %v1706, %v1706
          %v1719 = vmul.f32 %v1707, %v1707
          %v1720 = vmul.f32 %v1708, %v1708
          %v1721 = vmul.f32 %v1709, %v1709
          %v1722 = vmul.f32 %v1710, %v1710
          %v1723 = vmul.f32 %v1711, %v1711
          %v1724 = vmul.f32 %v1712, %v1712
          %v1725 = vmul.f32 %v1713, %v1713
          %v1726 = vmul.f32 %v1714, %v1714
          %v1727 = vmul.f32 %v1715, %v1715
          %v1728 = vmul.f32 %v1716, %v1716
          %v1729 = vmul.f32 %v1717, %v1717
          %v1730 = vadd.f32 %v1718, %v1719
          %v1731 = vadd.f32 %v1730, %v1720
          %v1732 = vadd.f32 %v1731, %v1721
          %v1733 = vadd.f32 %v1732, %v1722
          %v1734 = vadd.f32 %v1733, %v1723
          %1735 = vadd.xlane.f32.xlu0 %v1734
          %v1736 = vpop.xlane.xlu0 %1735
          %v1737 = vadd.f32 %v1724, %v1725
          %v1738 = vadd.f32 %v1737, %v1726
          %v1739 = vadd.f32 %v1738, %v1727
          %v1740 = vadd.f32 %v1739, %v1728
          %v1741 = vadd.f32 %v1740, %v1729
          %1742 = vadd.xlane.f32.xlu0 %v1741
          %v1743 = vpop.xlane.xlu0 %1742
          %v1744 = vmul.f32 %v1736, %v1703
          %v1745 = vmul.f32 %v1743, %v1703
          %v1746 = vadd.f32 %v1744, 1e-12
          %v1747 = vadd.f32 %v1745, 1e-12
          %v1748 = vrsqrt.pop %v1746
          %v1749 = vmul.f32 %v1748, %v1746
          %v1750 = vmul.f32 %v1749, %v1748
          %v1751 = vmul.f32 0.5, %v1750
          %v1752 = vsub.f32 1.5, %v1751
          %v1753 = vmul.f32 %v1748, %v1752
          %vm1754 = vweird.f32 %v1746
          %vm1755 = vweird.f32 %v1748
          %vm1756 = vmor %vm1754, %vm1755
          %v1757 = vsel %vm1756, %v1748, %v1753
          %v1758 = vrsqrt.pop %v1747
          %v1759 = vmul.f32 %v1758, %v1747
          %v1760 = vmul.f32 %v1759, %v1758
          %v1761 = vmul.f32 0.5, %v1760
          %v1762 = vsub.f32 1.5, %v1761
          %v1763 = vmul.f32 %v1758, %v1762
          %vm1764 = vweird.f32 %v1747
          %vm1765 = vweird.f32 %v1758
          %vm1766 = vmor %vm1764, %vm1765
          %v1767 = vsel %vm1766, %v1758, %v1763
          %v1768 = vmul.f32 %v1706, %v1757
          %v1769 = vmul.f32 %v1707, %v1757
          %v1770 = vmul.f32 %v1708, %v1757
          %v1771 = vmul.f32 %v1709, %v1757
          %v1772 = vmul.f32 %v1710, %v1757
          %v1773 = vmul.f32 %v1711, %v1757
          %v1774 = vmul.f32 %v1712, %v1767
          %v1775 = vmul.f32 %v1713, %v1767
          %v1776 = vmul.f32 %v1714, %v1767
          %v1777 = vmul.f32 %v1715, %v1767
          %v1778 = vmul.f32 %v1716, %v1767
          %v1779 = vmul.f32 %v1717, %v1767
          %v1780 = vld [vmem:[#allocation8] sm:$0x3f]
          %v1782 = vperm.slane %v1780, 0
          %v1783 = vperm.slane %v1780, 1
          %v1784 = vperm.slane %v1780, 2
          %v1785 = vperm.slane %v1780, 3
          %v1786 = vperm.slane %v1780, 4
          %v1787 = vperm.slane %v1780, 5
          %v1794 = vmul.f32 %v1768, %v1782
          %v1795 = vmul.f32 %v1769, %v1783
          %v1796 = vmul.f32 %v1770, %v1784
          %v1797 = vmul.f32 %v1771, %v1785
          %v1798 = vmul.f32 %v1772, %v1786
          %v1799 = vmul.f32 %v1773, %v1787
          %v1800 = vmul.f32 %v1774, %v1782
          %v1801 = vmul.f32 %v1775, %v1783
          %v1802 = vmul.f32 %v1776, %v1784
          %v1803 = vmul.f32 %v1777, %v1785
          %v1804 = vmul.f32 %v1778, %v1786
          %v1805 = vmul.f32 %v1779, %v1787
          %v1806 = vld [vmem:[#allocation9] sm:$0x3f]
          %v1808 = vperm.slane %v1806, 0
          %v1809 = vperm.slane %v1806, 1
          %v1810 = vperm.slane %v1806, 2
          %v1811 = vperm.slane %v1806, 3
          %v1812 = vperm.slane %v1806, 4
          %v1813 = vperm.slane %v1806, 5
          %v1820 = vadd.f32 %v1794, %v1808
          %v1821 = vadd.f32 %v1795, %v1809
          %v1822 = vadd.f32 %v1796, %v1810
          %v1823 = vadd.f32 %v1797, %v1811
          %v1824 = vadd.f32 %v1798, %v1812
          %v1825 = vadd.f32 %v1799, %v1813
          %v1826 = vadd.f32 %v1800, %v1808
          %v1827 = vadd.f32 %v1801, %v1809
          %v1828 = vadd.f32 %v1802, %v1810
          %v1829 = vadd.f32 %v1803, %v1811
          %v1830 = vadd.f32 %v1804, %v1812
          %v1831 = vadd.f32 %v1805, %v1813
          %v1832 = vpack.c.bf16 %v1821, %v1820
          %v1833 = vpack.c.bf16 %v1823, %v1822
          %v1834 = vpack.c.bf16 %v1825, %v1824
          %v1835 = vpack.c.bf16 %v1827, %v1826
          %v1836 = vpack.c.bf16 %v1829, %v1828
          %v1837 = vpack.c.bf16 %v1831, %v1830
          %1838 = vst [vmem:[%s421] sm:$0xff] %v1832
          %1839 = vst [vmem:[%s421 + $0x8] sm:$0xff] %v1833
          %1840 = vst [vmem:[%s421 + $0x10] sm:$0xff] %v1834
          %1841 = vst [vmem:[%s421 + $0x18] sm:$0xff] %v1835
          %1842 = vst [vmem:[%s421 + $0x20] sm:$0xff] %v1836
          %1843 = vst [vmem:[%s421 + $0x28] sm:$0xff] %v1837
        $region94: #{bert_arch_forward.15} parent=65 // pred_fallthru
          _
        %s1844 = smul.u32 2, %s26
        %p1845 = scmp.lt.s32.totalorder %s1844, 1
        %s1846 = scalar_select %p1845, %s1844, 1
        %s1847 = smul.addr %s1846, 6
        %s1848 = smul.addr %s1847, 4
        %s1849 = scalar_lea.vmem %s6, %s1848
        // Predicated region
        $region95: #{bert_arch_forward.15} parent=65 // pred_check
          %p1850 = pneg %p195
        $region96: #{bert_arch_forward.15} parent=65 // pred_check_branch
          %1852 = sbr.rel (%p1850) target = $region98
        $region97: #{bert_arch_forward.15} parent=65 // pred_region
          %s1853 = smul.u32 2, %s26
        $region98: #{bert_arch_forward.15} parent=65 // pred_fallthru
          _
        // Predicated region
        $region99: #{bert_arch_forward.15} parent=65 // pred_check
          %p1854 = pneg %p195
        $region100: #{bert_arch_forward.15} parent=65 // pred_check_branch
          %1856 = sbr.rel (%p1854) target = $region102
        $region101: #{bert_arch_forward.15} parent=65 // pred_region
          %s1857 = smul.u32 2, %s26
          %p1858 = scmp.lt.s32.totalorder %s1857, 1
          %s1859 = scalar_select %p1858, %s1857, 1
          %s1860 = smul.addr %s1859, 6
          %s1861 = smul.addr %s1860, 4
          %s1862 = scalar_lea.vmem %s6, %s1861
        $region102: #{bert_arch_forward.15} parent=65 // pred_fallthru
          _
      $region66: #{bert_arch_forward.15} parent=5 // pred_fallthru
        _
      %p1863 = scmp.le.s32.totalorder 2, %s17
      // Predicated region
      $region103: #{bert_arch_forward.15} parent=5 // pred_check
        %p1864 = pneg %p1863
      $region104: #{bert_arch_forward.15} parent=5 // pred_check_branch
        %1866 = sbr.rel (%p1864) target = $region106
      $region105: #{bert_arch_forward.15} parent=5 // pred_region
        %s1867 = ssub.s32 %s17, 2
      $region106: #{bert_arch_forward.15} parent=5 // pred_fallthru
        _
    $region6: #{bert_arch_forward.15} parent=1 // loop_footer
      %s21 = sadd.s32 1, %s17
    $region7: #{bert_arch_forward.15} parent=1 // loop_footer_branch
      %16 = sbr.rel target = $region3
    $region8: #{bert_arch_forward.15} parent=1 // loop_exit
      _
    %1868 = vsyncpa [#allocation5], 1
    %s1869 = scalar_lea.sflag [#allocation5], 1
    %1870 = vsyncpa %s1869, 1
    %1871 = vsyncpa [#allocation7], 1
    %1872 = vsyncpa [#allocation10], 1

// kernel: bert_arch_forward.16
$region0: #{bert_arch_forward.16}
  #allocation0 [shape = 'u32[]', space=smem, size = 0x4, offset = 0x4, fixed_abs, tag = 'smem constant byte address 0x4 - core index']
  #allocation1 [shape = 'u32[72,128]{1,0:T(1,128)}', space=vmem, size = 0x9000, scoped, tag = 'internal scratch']
  #allocation2 [shape = 'f32[16,512]{1,0:T(8,128)}', space=vmem, size = 0x8000, scoped, tag = 'scratch operand']
  %s0 = inlined_call_operand.vmem [shape: bf16[16,768], index: 0, kind: input, shape index: {}]
  %s1 = inlined_call_operand.hbm [shape: bf16[768,3072], index: 1, kind: input, shape index: {}]
  %s2 = inlined_call_operand.hbm [shape: f32[1,3072], index: 2, kind: input, shape index: {}]
  %s3 = inlined_call_operand.vmem [shape: bf16[16,3072], index: 3, kind: output, shape index: {}]
  %s4 = sld [smem:[#allocation0]]
  $region106: #{bert_arch_forward.16} parent=0
    _
  %s6 = ssub.s32 1, %s4
  %s7 = scalar_select 0, %s6, %s4
  $region1: #{bert_arch_forward.16} parent=0
    #allocation3 [shape = 'u8[24576]{0}', space=vmem, size = 0x6000, scoped, tag = 'input window, operand 0']
    #allocation4 [shape = 'u8[786432]{0}', space=vmem, size = 0xc0000, scoped, tag = 'input window, operand 1']
    #allocation5 [shape = 's32[2]{0}', space=sflag, size = 0x8, scoped, tag = 'scoped memory for bert_arch_forward.16']
    #allocation6 [shape = 'u8[4096]{0}', space=vmem, size = 0x1000, scoped, tag = 'input window, operand 2']
    #allocation7 [shape = 's32[2]{0}', space=sflag, size = 0x8, scoped, tag = 'scoped memory for bert_arch_forward.16']
    #allocation8 [shape = 'u8[32768]{0}', space=vmem, size = 0x8000, scoped, tag = 'output window, operand 0']
    %8 = vsyncpa [#allocation5], 0
    %s9 = scalar_lea.sflag [#allocation5], 1
    %10 = vsyncpa %s9, 0
    %11 = vsyncpa [#allocation7], 0
    %s12 = scalar_lea.sflag [#allocation7], 1
    %13 = vsyncpa %s12, 0
    loop: start=0, step=1, limit=14
    $region2: #{bert_arch_forward.16} parent=1 // loop_pre_header
      _
    $region3: #{bert_arch_forward.16} parent=1 // loop_header
      %s15 = sphi 0, %s19
      %p16 = scmp.ge.s32.totalorder %s15, 14
      %s22 = sphi 0, %s41
      %s23 = sphi 0, %s37
      %s24 = sphi 0, %s33
      %s25 = sphi 0, %s22
      %s26 = sphi 0, %s23
      %s27 = sphi 0, %s24
      %s28 = sphi 0, %s25
      %s29 = sphi 0, %s26
      %s30 = sphi 0, %s27
      %s46 = sphi 0, %s48
      %s49 = sphi 0, %s46
      %s50 = sphi 0, %s49
      %s66 = sphi 0, %s50
      %s74 = sphi 0, %s76
      %s77 = sphi 0, %s74
      %s78 = sphi 0, %s77
      %s94 = sphi 0, %s78
      %s100 = sphi 0, %s102
      %s103 = sphi 0, %s100
      %s104 = sphi 0, %s103
      %s120 = sphi 0, %s104
      %s128 = sphi 0, %s130
      %s131 = sphi 0, %s128
      %s132 = sphi 0, %s131
      %s148 = sphi 0, %s132
    $region4: #{bert_arch_forward.16} parent=1 // loop_header_branch
      %18 = sbr.rel (%p16) target = $region8
    $region5: #{bert_arch_forward.16} parent=1 // loop_body
      %s20 = ssub.s32 %s15, 1
      %s21 = ssub.s32 %s15, 2
      %s31 = sadd.s32 1, %s24
      %p32 = scmp.ge.s32.totalorder %s31, 2
      %s33 = scalar_select %p32, 0, %s31
      %s34 = sadd.s32 1, %s23
      %s35 = scalar_select %p32, %s34, %s23
      %p36 = scmp.ge.s32.totalorder %s35, 6
      %s37 = scalar_select %p36, 0, %s35
      %s38 = sadd.s32 1, %s22
      %s39 = scalar_select %p36, %s38, %s22
      %p40 = scmp.ge.s32.totalorder %s39, 1
      %s41 = scalar_select %p40, 0, %s39
      %s42 = ssub.s32 %s22, %s41
      %s43 = ssub.s32 %s24, %s33
      %s44 = sor.u32 %s42, %s43
      %p45 = scmp.eq.s32.totalorder %s44, 0
      %s47 = sadd.s32 %s46, 1
      %s48 = scalar_select %p45, %s46, %s47
      %p51 = pneg %p45
      %p52 = scmp.eq.s32.totalorder %s15, 11
      %p53 = por %p51, %p52
      %p54 = scmp.ne.s32.totalorder %s46, %s49
      %p55 = scmp.eq.s32.totalorder %s15, 0
      %p56 = por %p54, %p55
      %p57 = scmp.ne.s32.totalorder %s46, %s49
      %p58 = scmp.eq.s32.totalorder %s20, 11
      %p59 = por %p57, %p58
      %p60 = scmp.ne.s32.totalorder %s49, %s50
      %p61 = scmp.eq.s32.totalorder %s20, 0
      %p62 = por %p60, %p61
      %p63 = scmp.ne.s32.totalorder %s49, %s50
      %p64 = scmp.eq.s32.totalorder %s21, 11
      %p65 = por %p63, %p64
      %p67 = scmp.ne.s32.totalorder %s50, %s66
      %p68 = scmp.eq.s32.totalorder %s21, 0
      %p69 = por %p67, %p68
      %s70 = ssub.s32 %s24, %s33
      %s71 = ssub.s32 %s23, %s37
      %s72 = sor.u32 %s70, %s71
      %p73 = scmp.eq.s32.totalorder %s72, 0
      %s75 = sadd.s32 %s74, 1
      %s76 = scalar_select %p73, %s74, %s75
      %p79 = pneg %p73
      %p80 = scmp.eq.s32.totalorder %s15, 11
      %p81 = por %p79, %p80
      %p82 = scmp.ne.s32.totalorder %s74, %s77
      %p83 = scmp.eq.s32.totalorder %s15, 0
      %p84 = por %p82, %p83
      %p85 = scmp.ne.s32.totalorder %s74, %s77
      %p86 = scmp.eq.s32.totalorder %s20, 11
      %p87 = por %p85, %p86
      %p88 = scmp.ne.s32.totalorder %s77, %s78
      %p89 = scmp.eq.s32.totalorder %s20, 0
      %p90 = por %p88, %p89
      %p91 = scmp.ne.s32.totalorder %s77, %s78
      %p92 = scmp.eq.s32.totalorder %s21, 11
      %p93 = por %p91, %p92
      %p95 = scmp.ne.s32.totalorder %s78, %s94
      %p96 = scmp.eq.s32.totalorder %s21, 0
      %p97 = por %p95, %p96
      %s98 = ssub.s32 %s23, %s37
      %p99 = scmp.eq.s32.totalorder %s98, 0
      %s101 = sadd.s32 %s100, 1
      %s102 = scalar_select %p99, %s100, %s101
      %p105 = pneg %p99
      %p106 = scmp.eq.s32.totalorder %s15, 11
      %p107 = por %p105, %p106
      %p108 = scmp.ne.s32.totalorder %s100, %s103
      %p109 = scmp.eq.s32.totalorder %s15, 0
      %p110 = por %p108, %p109
      %p111 = scmp.ne.s32.totalorder %s100, %s103
      %p112 = scmp.eq.s32.totalorder %s20, 11
      %p113 = por %p111, %p112
      %p114 = scmp.ne.s32.totalorder %s103, %s104
      %p115 = scmp.eq.s32.totalorder %s20, 0
      %p116 = por %p114, %p115
      %p117 = scmp.ne.s32.totalorder %s103, %s104
      %p118 = scmp.eq.s32.totalorder %s21, 11
      %p119 = por %p117, %p118
      %p121 = scmp.ne.s32.totalorder %s104, %s120
      %p122 = scmp.eq.s32.totalorder %s21, 0
      %p123 = por %p121, %p122
      %s124 = ssub.s32 %s22, %s41
      %s125 = ssub.s32 %s23, %s37
      %s126 = sor.u32 %s124, %s125
      %p127 = scmp.eq.s32.totalorder %s126, 0
      %s129 = sadd.s32 %s128, 1
      %s130 = scalar_select %p127, %s128, %s129
      %p133 = pneg %p127
      %p134 = scmp.eq.s32.totalorder %s15, 11
      %p135 = por %p133, %p134
      %p136 = scmp.ne.s32.totalorder %s128, %s131
      %p137 = scmp.eq.s32.totalorder %s15, 0
      %p138 = por %p136, %p137
      %p139 = scmp.ne.s32.totalorder %s128, %s131
      %p140 = scmp.eq.s32.totalorder %s20, 11
      %p141 = por %p139, %p140
      %p142 = scmp.ne.s32.totalorder %s131, %s132
      %p143 = scmp.eq.s32.totalorder %s20, 0
      %p144 = por %p142, %p143
      %p145 = scmp.ne.s32.totalorder %s131, %s132
      %p146 = scmp.eq.s32.totalorder %s21, 11
      %p147 = por %p145, %p146
      %p149 = scmp.ne.s32.totalorder %s132, %s148
      %p150 = scmp.eq.s32.totalorder %s21, 0
      %p151 = por %p149, %p150
      %p152 = scmp.le.s32.totalorder 1, %s15
      %p153 = scmp.lt.s32.totalorder %s15, 13
      %p154 = pnand %p152, %p153
      %p155 = pneg %p154
      // Predicated region
      $region9: #{bert_arch_forward.16} parent=5 // pred_check
        _
      $region10: #{bert_arch_forward.16} parent=5 // pred_check_branch
        %157 = sbr.rel (%p154) target = $region12
      $region11: #{bert_arch_forward.16} parent=5 // pred_region
        %s158 = ssub.s32 %s15, 1
      $region12: #{bert_arch_forward.16} parent=5 // pred_fallthru
        _
      %p159 = scmp.lt.s32.totalorder %s15, 12
      // Predicated region
      $region13: #{bert_arch_forward.16} parent=5 // pred_check
        %p160 = pneg %p159
      $region14: #{bert_arch_forward.16} parent=5 // pred_check_branch
        %162 = sbr.rel (%p160) target = $region16
      $region15: #{bert_arch_forward.16} parent=5 // pred_region
        // Predicated region
        $region17: #{bert_arch_forward.16} parent=15 // pred_check
          %p163 = pneg %p56
        $region18: #{bert_arch_forward.16} parent=15 // pred_check_branch
          %165 = sbr.rel (%p163) target = $region20
        $region19: #{bert_arch_forward.16} parent=15 // pred_region
          %s166 = sand.u32 %s46, 1
          %s167 = sand.u32 %s46, 1
          %s168 = smul.addr %s167, 24
          %s169 = scalar_lea.vmem [#allocation3], %s168
          %s170 = smul.u32 2, %s22
          %s171 = smul.u32 3, %s24
          %s172 = smul.addr %s170, 6
          %s173 = sadd.s32 %s171, %s172
          %s174 = smul.addr %s173, 4
          %s175 = scalar_lea.vmem %s0, %s174
          // Predicated region
          $region21: #{bert_arch_forward.16} parent=19 // pred_check
            _
          $region22: #{bert_arch_forward.16} parent=19 // pred_check_branch
            %177 = sbr.rel (0) target = $region24
          $region23: #{bert_arch_forward.16} parent=19 // pred_region
            // Predicated region
            $region25: #{bert_arch_forward.16} parent=23 // pred_check
              _
            $region26: #{bert_arch_forward.16} parent=23 // pred_check_branch
              %179 = sbr.rel (0) target = $region28
            $region27: #{bert_arch_forward.16} parent=23 // pred_region
              %s180 = scalar_lea.vmem %s175, 8
              %s181 = scalar_lea.vmem %s169, 8 [#allocation3]
              loop: start=0, step=1, limit=1
              $region29: #{bert_arch_forward.16} parent=27 // loop_pre_header
                _
              $region30: #{bert_arch_forward.16} parent=27 // loop_header
                %s183 = sphi 0, %s187
                %p184 = scmp.ge.s32.totalorder %s183, 1
                %s188 = sphi %s175, %s175
                %s189 = sphi %s169, %s169
              $region31: #{bert_arch_forward.16} parent=27 // loop_header_branch
                %186 = sbr.rel (%p184) target = $region35
              $region32: #{bert_arch_forward.16} parent=27 // loop_body
                %v190 = vld [vmem:[%s188] sm:$0xff]
                %191 = vst [vmem:[%s189] sm:$0xff] %v190
                %v192 = vld [vmem:[%s188 + $0x18] sm:$0xff]
                %193 = vst [vmem:[%s189 + $0xc] sm:$0xff] %v192
              $region33: #{bert_arch_forward.16} parent=27 // loop_footer
                %s187 = sadd.s32 1, %s183
              $region34: #{bert_arch_forward.16} parent=27 // loop_footer_branch
                %182 = sbr.rel target = $region30
              $region35: #{bert_arch_forward.16} parent=27 // loop_exit
                _
              %s195 = ssub.s32 16, 1
              loop: start=0, step=1, limit=1
              $region36: #{bert_arch_forward.16} parent=27 // loop_pre_header
                _
              $region37: #{bert_arch_forward.16} parent=27 // loop_header
                %s197 = sphi 0, %s201
                %p198 = scmp.ge.s32.totalorder %s197, 1
                %s202 = sphi %s180, %s180
                %s203 = sphi %s181, %s181
              $region38: #{bert_arch_forward.16} parent=27 // loop_header_branch
                %200 = sbr.rel (%p198) target = $region42
              $region39: #{bert_arch_forward.16} parent=27 // loop_body
                %v204 = vld [vmem:[%s202] sm:%s195]
                %205 = vst [vmem:[%s203] sm:%s195] %v204
                %v206 = vld [vmem:[%s202 + $0x18] sm:%s195]
                %207 = vst [vmem:[%s203 + $0xc] sm:%s195] %v206
              $region40: #{bert_arch_forward.16} parent=27 // loop_footer
                %s201 = sadd.s32 1, %s197
              $region41: #{bert_arch_forward.16} parent=27 // loop_footer_branch
                %196 = sbr.rel target = $region37
              $region42: #{bert_arch_forward.16} parent=27 // loop_exit
                _
            $region28: #{bert_arch_forward.16} parent=23 // pred_fallthru
              _
          $region24: #{bert_arch_forward.16} parent=19 // pred_fallthru
            _
          %208 = vnop
        $region20: #{bert_arch_forward.16} parent=15 // pred_fallthru
          _
        // Predicated region
        $region43: #{bert_arch_forward.16} parent=15 // pred_check
          %p209 = pneg %p84
        $region44: #{bert_arch_forward.16} parent=15 // pred_check_branch
          %211 = sbr.rel (%p209) target = $region46
        $region45: #{bert_arch_forward.16} parent=15 // pred_region
          %s212 = sand.u32 %s74, 1
          %s213 = scalar_lea.sflag [#allocation5], %s212
          %s214 = sand.u32 %s74, 1
          %s215 = smul.addr %s214, 768
          %s216 = scalar_lea.vmem [#allocation4], %s215
          %s217 = smul.u32 48, %s24
          %s218 = smul.u32 4, %s23
          %220 = vsyncadd %s213, 0
          %s221 = smul.addr %s217, 24
          %s222 = sadd.s32 %s218, %s221
          %s223 = smul.addr %s222, 4
          %s224 = scalar_lea.hbm %s1, %s223
          %s225 = sshll.u32 %s224, 4
          %s226 = int_to_ptr.hbm [resolvable:$true] %s225
          %s227 = sshll.u32 %s216, 4
          %s228 = int_to_ptr.vmem [resolvable:$true] %s227
          %233 = dma.hbm_to_vmem [thread:$0]  %s226, 12288, %s228, %s213, 1536, 256, 16
        $region46: #{bert_arch_forward.16} parent=15 // pred_fallthru
          _
        // Predicated region
        $region47: #{bert_arch_forward.16} parent=15 // pred_check
          %p234 = pneg %p110
        $region48: #{bert_arch_forward.16} parent=15 // pred_check_branch
          %236 = sbr.rel (%p234) target = $region50
        $region49: #{bert_arch_forward.16} parent=15 // pred_region
          %s237 = sand.u32 %s100, 1
          %s238 = scalar_lea.sflag [#allocation7], %s237
          %s239 = sand.u32 %s100, 1
          %s240 = smul.addr %s239, 4
          %s241 = scalar_lea.vmem [#allocation6], %s240
          %s242 = smul.u32 4, %s23
          %244 = vsyncadd %s238, 0
          %s245 = scalar_lea.hbm %s2, %s242
          %s247 = sshll.u32 %s245, 4
          %s248 = int_to_ptr.hbm [resolvable:$true] %s247
          %s249 = sshll.u32 %s241, 4
          %s250 = int_to_ptr.vmem [resolvable:$true] %s249
          %252 = dma.hbm_to_vmem [thread:$0]  %s248, 64, %s250, %s238
        $region50: #{bert_arch_forward.16} parent=15 // pred_fallthru
          _
      $region16: #{bert_arch_forward.16} parent=5 // pred_fallthru
        _
      %p253 = scmp.le.s32.totalorder 1, %s15
      %p254 = scmp.lt.s32.totalorder %s15, 13
      %p255 = pnand %p253, %p254
      %p256 = pneg %p255
      // Predicated region
      $region51: #{bert_arch_forward.16} parent=5 // pred_check
        _
      $region52: #{bert_arch_forward.16} parent=5 // pred_check_branch
        %258 = sbr.rel (%p255) target = $region54
      $region53: #{bert_arch_forward.16} parent=5 // pred_region
        %s259 = ssub.s32 %s15, 1
        %s260 = sand.u32 %s49, 1
        %s261 = sand.u32 %s49, 1
        %s262 = smul.addr %s261, 24
        %s263 = scalar_lea.vmem [#allocation3], %s262
        // Predicated region
        $region55: #{bert_arch_forward.16} parent=53 // pred_check
          %p264 = pneg %p62
        $region56: #{bert_arch_forward.16} parent=53 // pred_check_branch
          %266 = sbr.rel (%p264) target = $region58
        $region57: #{bert_arch_forward.16} parent=53 // pred_region
          _
        $region58: #{bert_arch_forward.16} parent=53 // pred_fallthru
          _
        %s267 = sand.u32 %s77, 1
        %s268 = scalar_lea.sflag [#allocation5], %s267
        %s269 = sand.u32 %s77, 1
        %s270 = smul.addr %s269, 768
        %s271 = scalar_lea.vmem [#allocation4], %s270
        // Predicated region
        $region59: #{bert_arch_forward.16} parent=53 // pred_check
          %p272 = pneg %p90
        $region60: #{bert_arch_forward.16} parent=53 // pred_check_branch
          %274 = sbr.rel (%p272) target = $region62
        $region61: #{bert_arch_forward.16} parent=53 // pred_region
          %276 = dma.done %s268, 12288
        $region62: #{bert_arch_forward.16} parent=53 // pred_fallthru
          _
        %s277 = sand.u32 %s103, 1
        %s278 = scalar_lea.sflag [#allocation7], %s277
        %s279 = sand.u32 %s103, 1
        %s280 = smul.addr %s279, 4
        %s281 = scalar_lea.vmem [#allocation6], %s280
        // Predicated region
        $region63: #{bert_arch_forward.16} parent=53 // pred_check
          %p282 = pneg %p116
        $region64: #{bert_arch_forward.16} parent=53 // pred_check_branch
          %284 = sbr.rel (%p282) target = $region66
        $region65: #{bert_arch_forward.16} parent=53 // pred_region
          %286 = dma.done %s278, 64
        $region66: #{bert_arch_forward.16} parent=53 // pred_fallthru
          _
        %s287 = sand.u32 %s49, 1
        %s288 = sand.u32 %s49, 1
        %s289 = smul.addr %s288, 24
        %s290 = scalar_lea.vmem [#allocation3], %s289
        %p291 = pneg %p62
        %p292 = pneg %p59
        %s293 = sand.u32 %s77, 1
        %s294 = scalar_lea.sflag [#allocation5], %s293
        %s295 = sand.u32 %s77, 1
        %s296 = smul.addr %s295, 768
        %s297 = scalar_lea.vmem [#allocation4], %s296
        %p298 = pneg %p90
        %p299 = pneg %p87
        %s300 = sand.u32 %s103, 1
        %s301 = scalar_lea.sflag [#allocation7], %s300
        %s302 = sand.u32 %s103, 1
        %s303 = smul.addr %s302, 4
        %s304 = scalar_lea.vmem [#allocation6], %s303
        %p305 = pneg %p116
        %p306 = pneg %p113
        %p307 = pneg %p144
        %p308 = pneg %p141
        %s309 = sand.u32 %s131, 1
        %s310 = sand.u32 %s131, 1
        %s311 = smul.addr %s310, 32
        %s312 = scalar_lea.vmem [#allocation8], %s311
        %s313 = smul.u32 2, %s25
        %s314 = smul.u32 3, %s27
        %s315 = smul.u32 48, %s27
        %s316 = smul.u32 4, %s26
        %s317 = smul.u32 4, %s26
        %s318 = smul.u32 2, %s25
        %s319 = smul.u32 4, %s26
        %p320 = scmp.eq.s32.totalorder %s27, 0
        // Predicated region
        $region67: #{bert_arch_forward.16} parent=53 // pred_check
          %p321 = pneg %p320
        $region68: #{bert_arch_forward.16} parent=53 // pred_check_branch
          %323 = sbr.rel (%p321) target = $region70
        $region69: #{bert_arch_forward.16} parent=53 // pred_region
          %324 = vst [vmem:[#allocation2] sm:$0xff] 0.0
          %325 = vst [vmem:[#allocation2 + $0x8] sm:$0xff] 0.0
          %326 = vst [vmem:[#allocation2 + $0x10] sm:$0xff] 0.0
          %327 = vst [vmem:[#allocation2 + $0x18] sm:$0xff] 0.0
          %328 = vst [vmem:[#allocation2 + $0x20] sm:$0xff] 0.0
          %329 = vst [vmem:[#allocation2 + $0x28] sm:$0xff] 0.0
          %330 = vst [vmem:[#allocation2 + $0x30] sm:$0xff] 0.0
          %331 = vst [vmem:[#allocation2 + $0x38] sm:$0xff] 0.0
        $region70: #{bert_arch_forward.16} parent=53 // pred_fallthru
          _
        %v332 = vld [vmem:[#allocation2] sm:$0xff]
        %v333 = vld [vmem:[#allocation2 + $0x8] sm:$0xff]
        %v334 = vld [vmem:[#allocation2 + $0x10] sm:$0xff]
        %v335 = vld [vmem:[#allocation2 + $0x18] sm:$0xff]
        %v336 = vld [vmem:[#allocation2 + $0x20] sm:$0xff]
        %v337 = vld [vmem:[#allocation2 + $0x28] sm:$0xff]
        %v338 = vld [vmem:[#allocation2 + $0x30] sm:$0xff]
        %v339 = vld [vmem:[#allocation2 + $0x38] sm:$0xff]
        %v340 = vld [vmem:[%s263] sm:$0xff]
        %v341 = vld [vmem:[%s263 + $0x8] sm:$0xf]
        %v342 = vld [vmem:[%s263 + $0xc] sm:$0xff]
        %v343 = vld [vmem:[%s263 + $0x14] sm:$0xf]
        %v344 = vld [vmem:[%s271] sm:$0xff]
        %v345 = vld [vmem:[%s271 + $0x8] sm:$0xff]
        %v346 = vld [vmem:[%s271 + $0x10] sm:$0xff]
        %v347 = vld [vmem:[%s271 + $0x18] sm:$0xff]
        %v348 = vld [vmem:[%s271 + $0x20] sm:$0xff]
        %v349 = vld [vmem:[%s271 + $0x28] sm:$0xff]
        %v350 = vld [vmem:[%s271 + $0x30] sm:$0xff]
        %v351 = vld [vmem:[%s271 + $0x38] sm:$0xff]
        %v352 = vld [vmem:[%s271 + $0x40] sm:$0xff]
        %v353 = vld [vmem:[%s271 + $0x48] sm:$0xff]
        %v354 = vld [vmem:[%s271 + $0x50] sm:$0xff]
        %v355 = vld [vmem:[%s271 + $0x58] sm:$0xff]
        %v356 = vld [vmem:[%s271 + $0x60] sm:$0xff]
        %v357 = vld [vmem:[%s271 + $0x68] sm:$0xff]
        %v358 = vld [vmem:[%s271 + $0x70] sm:$0xff]
        %v359 = vld [vmem:[%s271 + $0x78] sm:$0xff]
        %v360 = vld [vmem:[%s271 + $0x80] sm:$0xff]
        %v361 = vld [vmem:[%s271 + $0x88] sm:$0xff]
        %v362 = vld [vmem:[%s271 + $0x90] sm:$0xff]
        %v363 = vld [vmem:[%s271 + $0x98] sm:$0xff]
        %v364 = vld [vmem:[%s271 + $0xa0] sm:$0xff]
        %v365 = vld [vmem:[%s271 + $0xa8] sm:$0xff]
        %v366 = vld [vmem:[%s271 + $0xb0] sm:$0xff]
        %v367 = vld [vmem:[%s271 + $0xb8] sm:$0xff]
        %v368 = vld [vmem:[%s271 + $0xc0] sm:$0xff]
        %v369 = vld [vmem:[%s271 + $0xc8] sm:$0xff]
        %v370 = vld [vmem:[%s271 + $0xd0] sm:$0xff]
        %v371 = vld [vmem:[%s271 + $0xd8] sm:$0xff]
        %v372 = vld [vmem:[%s271 + $0xe0] sm:$0xff]
        %v373 = vld [vmem:[%s271 + $0xe8] sm:$0xff]
        %v374 = vld [vmem:[%s271 + $0xf0] sm:$0xff]
        %v375 = vld [vmem:[%s271 + $0xf8] sm:$0xff]
        %v376 = vld [vmem:[%s271 + $0x100] sm:$0xff]
        %v377 = vld [vmem:[%s271 + $0x108] sm:$0xff]
        %v378 = vld [vmem:[%s271 + $0x110] sm:$0xff]
        %v379 = vld [vmem:[%s271 + $0x118] sm:$0xff]
        %v380 = vld [vmem:[%s271 + $0x120] sm:$0xff]
        %v381 = vld [vmem:[%s271 + $0x128] sm:$0xff]
        %v382 = vld [vmem:[%s271 + $0x130] sm:$0xff]
        %v383 = vld [vmem:[%s271 + $0x138] sm:$0xff]
        %v384 = vld [vmem:[%s271 + $0x140] sm:$0xff]
        %v385 = vld [vmem:[%s271 + $0x148] sm:$0xff]
        %v386 = vld [vmem:[%s271 + $0x150] sm:$0xff]
        %v387 = vld [vmem:[%s271 + $0x158] sm:$0xff]
        %v388 = vld [vmem:[%s271 + $0x160] sm:$0xff]
        %v389 = vld [vmem:[%s271 + $0x168] sm:$0xff]
        %v390 = vld [vmem:[%s271 + $0x170] sm:$0xff]
        %v391 = vld [vmem:[%s271 + $0x178] sm:$0xff]
        %v392 = vld [vmem:[%s271 + $0x180] sm:$0xff]
        %v393 = vld [vmem:[%s271 + $0x188] sm:$0xff]
        %v394 = vld [vmem:[%s271 + $0x190] sm:$0xff]
        %v395 = vld [vmem:[%s271 + $0x198] sm:$0xff]
        %v396 = vld [vmem:[%s271 + $0x1a0] sm:$0xff]
        %v397 = vld [vmem:[%s271 + $0x1a8] sm:$0xff]
        %v398 = vld [vmem:[%s271 + $0x1b0] sm:$0xff]
        %v399 = vld [vmem:[%s271 + $0x1b8] sm:$0xff]
        %v400 = vld [vmem:[%s271 + $0x1c0] sm:$0xff]
        %v401 = vld [vmem:[%s271 + $0x1c8] sm:$0xff]
        %v402 = vld [vmem:[%s271 + $0x1d0] sm:$0xff]
        %v403 = vld [vmem:[%s271 + $0x1d8] sm:$0xff]
        %v404 = vld [vmem:[%s271 + $0x1e0] sm:$0xff]
        %v405 = vld [vmem:[%s271 + $0x1e8] sm:$0xff]
        %v406 = vld [vmem:[%s271 + $0x1f0] sm:$0xff]
        %v407 = vld [vmem:[%s271 + $0x1f8] sm:$0xff]
        %v408 = vld [vmem:[%s271 + $0x200] sm:$0xff]
        %v409 = vld [vmem:[%s271 + $0x208] sm:$0xff]
        %v410 = vld [vmem:[%s271 + $0x210] sm:$0xff]
        %v411 = vld [vmem:[%s271 + $0x218] sm:$0xff]
        %v412 = vld [vmem:[%s271 + $0x220] sm:$0xff]
        %v413 = vld [vmem:[%s271 + $0x228] sm:$0xff]
        %v414 = vld [vmem:[%s271 + $0x230] sm:$0xff]
        %v415 = vld [vmem:[%s271 + $0x238] sm:$0xff]
        %v416 = vld [vmem:[%s271 + $0x240] sm:$0xff]
        %v417 = vld [vmem:[%s271 + $0x248] sm:$0xff]
        %v418 = vld [vmem:[%s271 + $0x250] sm:$0xff]
        %v419 = vld [vmem:[%s271 + $0x258] sm:$0xff]
        %v420 = vld [vmem:[%s271 + $0x260] sm:$0xff]
        %v421 = vld [vmem:[%s271 + $0x268] sm:$0xff]
        %v422 = vld [vmem:[%s271 + $0x270] sm:$0xff]
        %v423 = vld [vmem:[%s271 + $0x278] sm:$0xff]
        %v424 = vld [vmem:[%s271 + $0x280] sm:$0xff]
        %v425 = vld [vmem:[%s271 + $0x288] sm:$0xff]
        %v426 = vld [vmem:[%s271 + $0x290] sm:$0xff]
        %v427 = vld [vmem:[%s271 + $0x298] sm:$0xff]
        %v428 = vld [vmem:[%s271 + $0x2a0] sm:$0xff]
        %v429 = vld [vmem:[%s271 + $0x2a8] sm:$0xff]
        %v430 = vld [vmem:[%s271 + $0x2b0] sm:$0xff]
        %v431 = vld [vmem:[%s271 + $0x2b8] sm:$0xff]
        %v432 = vld [vmem:[%s271 + $0x2c0] sm:$0xff]
        %v433 = vld [vmem:[%s271 + $0x2c8] sm:$0xff]
        %v434 = vld [vmem:[%s271 + $0x2d0] sm:$0xff]
        %v435 = vld [vmem:[%s271 + $0x2d8] sm:$0xff]
        %v436 = vld [vmem:[%s271 + $0x2e0] sm:$0xff]
        %v437 = vld [vmem:[%s271 + $0x2e8] sm:$0xff]
        %v438 = vld [vmem:[%s271 + $0x2f0] sm:$0xff]
        %v439 = vld [vmem:[%s271 + $0x2f8] sm:$0xff]
        %v444 = vunpack.c.l.b16 %v340
        %v445 = vunpack.c.h.b16 %v340
        %v446 = vunpack.c.l.b16 %v341
        %v447 = vunpack.c.l.b16 %v342
        %v448 = vunpack.c.h.b16 %v342
        %v449 = vunpack.c.l.b16 %v343
        %v450 = vpack.c.b16 %v447, %v444
        %v451 = vpack.c.b16 %v448, %v445
        %v452 = vpack.c.b16 %v449, %v446
        %v552 = vunpack.c.l.b16 %v344
        %v553 = vunpack.c.h.b16 %v344
        %v554 = vunpack.c.l.b16 %v345
        %v555 = vunpack.c.h.b16 %v345
        %v556 = vunpack.c.l.b16 %v346
        %v557 = vunpack.c.h.b16 %v346
        %v558 = vunpack.c.l.b16 %v347
        %v559 = vunpack.c.h.b16 %v347
        %v560 = vunpack.c.l.b16 %v348
        %v561 = vunpack.c.h.b16 %v348
        %v562 = vunpack.c.l.b16 %v349
        %v563 = vunpack.c.h.b16 %v349
        %v564 = vunpack.c.l.b16 %v350
        %v565 = vunpack.c.h.b16 %v350
        %v566 = vunpack.c.l.b16 %v351
        %v567 = vunpack.c.h.b16 %v351
        %v568 = vunpack.c.l.b16 %v352
        %v569 = vunpack.c.h.b16 %v352
        %v570 = vunpack.c.l.b16 %v353
        %v571 = vunpack.c.h.b16 %v353
        %v572 = vunpack.c.l.b16 %v354
        %v573 = vunpack.c.h.b16 %v354
        %v574 = vunpack.c.l.b16 %v355
        %v575 = vunpack.c.h.b16 %v355
        %v576 = vunpack.c.l.b16 %v356
        %v577 = vunpack.c.h.b16 %v356
        %v578 = vunpack.c.l.b16 %v357
        %v579 = vunpack.c.h.b16 %v357
        %v580 = vunpack.c.l.b16 %v358
        %v581 = vunpack.c.h.b16 %v358
        %v582 = vunpack.c.l.b16 %v359
        %v583 = vunpack.c.h.b16 %v359
        %v584 = vunpack.c.l.b16 %v360
        %v585 = vunpack.c.h.b16 %v360
        %v586 = vunpack.c.l.b16 %v361
        %v587 = vunpack.c.h.b16 %v361
        %v588 = vunpack.c.l.b16 %v362
        %v589 = vunpack.c.h.b16 %v362
        %v590 = vunpack.c.l.b16 %v363
        %v591 = vunpack.c.h.b16 %v363
        %v592 = vunpack.c.l.b16 %v364
        %v593 = vunpack.c.h.b16 %v364
        %v594 = vunpack.c.l.b16 %v365
        %v595 = vunpack.c.h.b16 %v365
        %v596 = vunpack.c.l.b16 %v366
        %v597 = vunpack.c.h.b16 %v366
        %v598 = vunpack.c.l.b16 %v367
        %v599 = vunpack.c.h.b16 %v367
        %v600 = vunpack.c.l.b16 %v368
        %v601 = vunpack.c.h.b16 %v368
        %v602 = vunpack.c.l.b16 %v369
        %v603 = vunpack.c.h.b16 %v369
        %v604 = vunpack.c.l.b16 %v370
        %v605 = vunpack.c.h.b16 %v370
        %v606 = vunpack.c.l.b16 %v371
        %v607 = vunpack.c.h.b16 %v371
        %v608 = vunpack.c.l.b16 %v372
        %v609 = vunpack.c.h.b16 %v372
        %v610 = vunpack.c.l.b16 %v373
        %v611 = vunpack.c.h.b16 %v373
        %v612 = vunpack.c.l.b16 %v374
        %v613 = vunpack.c.h.b16 %v374
        %v614 = vunpack.c.l.b16 %v375
        %v615 = vunpack.c.h.b16 %v375
        %v616 = vunpack.c.l.b16 %v376
        %v617 = vunpack.c.h.b16 %v376
        %v618 = vunpack.c.l.b16 %v377
        %v619 = vunpack.c.h.b16 %v377
        %v620 = vunpack.c.l.b16 %v378
        %v621 = vunpack.c.h.b16 %v378
        %v622 = vunpack.c.l.b16 %v379
        %v623 = vunpack.c.h.b16 %v379
        %v624 = vunpack.c.l.b16 %v380
        %v625 = vunpack.c.h.b16 %v380
        %v626 = vunpack.c.l.b16 %v381
        %v627 = vunpack.c.h.b16 %v381
        %v628 = vunpack.c.l.b16 %v382
        %v629 = vunpack.c.h.b16 %v382
        %v630 = vunpack.c.l.b16 %v383
        %v631 = vunpack.c.h.b16 %v383
        %v632 = vunpack.c.l.b16 %v384
        %v633 = vunpack.c.h.b16 %v384
        %v634 = vunpack.c.l.b16 %v385
        %v635 = vunpack.c.h.b16 %v385
        %v636 = vunpack.c.l.b16 %v386
        %v637 = vunpack.c.h.b16 %v386
        %v638 = vunpack.c.l.b16 %v387
        %v639 = vunpack.c.h.b16 %v387
        %v640 = vunpack.c.l.b16 %v388
        %v641 = vunpack.c.h.b16 %v388
        %v642 = vunpack.c.l.b16 %v389
        %v643 = vunpack.c.h.b16 %v389
        %v644 = vunpack.c.l.b16 %v390
        %v645 = vunpack.c.h.b16 %v390
        %v646 = vunpack.c.l.b16 %v391
        %v647 = vunpack.c.h.b16 %v391
        %v648 = vunpack.c.l.b16 %v392
        %v649 = vunpack.c.h.b16 %v392
        %v650 = vunpack.c.l.b16 %v393
        %v651 = vunpack.c.h.b16 %v393
        %v652 = vunpack.c.l.b16 %v394
        %v653 = vunpack.c.h.b16 %v394
        %v654 = vunpack.c.l.b16 %v395
        %v655 = vunpack.c.h.b16 %v395
        %v656 = vunpack.c.l.b16 %v396
        %v657 = vunpack.c.h.b16 %v396
        %v658 = vunpack.c.l.b16 %v397
        %v659 = vunpack.c.h.b16 %v397
        %v660 = vunpack.c.l.b16 %v398
        %v661 = vunpack.c.h.b16 %v398
        %v662 = vunpack.c.l.b16 %v399
        %v663 = vunpack.c.h.b16 %v399
        %v664 = vunpack.c.l.b16 %v400
        %v665 = vunpack.c.h.b16 %v400
        %v666 = vunpack.c.l.b16 %v401
        %v667 = vunpack.c.h.b16 %v401
        %v668 = vunpack.c.l.b16 %v402
        %v669 = vunpack.c.h.b16 %v402
        %v670 = vunpack.c.l.b16 %v403
        %v671 = vunpack.c.h.b16 %v403
        %v672 = vunpack.c.l.b16 %v404
        %v673 = vunpack.c.h.b16 %v404
        %v674 = vunpack.c.l.b16 %v405
        %v675 = vunpack.c.h.b16 %v405
        %v676 = vunpack.c.l.b16 %v406
        %v677 = vunpack.c.h.b16 %v406
        %v678 = vunpack.c.l.b16 %v407
        %v679 = vunpack.c.h.b16 %v407
        %v680 = vunpack.c.l.b16 %v408
        %v681 = vunpack.c.h.b16 %v408
        %v682 = vunpack.c.l.b16 %v409
        %v683 = vunpack.c.h.b16 %v409
        %v684 = vunpack.c.l.b16 %v410
        %v685 = vunpack.c.h.b16 %v410
        %v686 = vunpack.c.l.b16 %v411
        %v687 = vunpack.c.h.b16 %v411
        %v688 = vunpack.c.l.b16 %v412
        %v689 = vunpack.c.h.b16 %v412
        %v690 = vunpack.c.l.b16 %v413
        %v691 = vunpack.c.h.b16 %v413
        %v692 = vunpack.c.l.b16 %v414
        %v693 = vunpack.c.h.b16 %v414
        %v694 = vunpack.c.l.b16 %v415
        %v695 = vunpack.c.h.b16 %v415
        %v696 = vunpack.c.l.b16 %v416
        %v697 = vunpack.c.h.b16 %v416
        %v698 = vunpack.c.l.b16 %v417
        %v699 = vunpack.c.h.b16 %v417
        %v700 = vunpack.c.l.b16 %v418
        %v701 = vunpack.c.h.b16 %v418
        %v702 = vunpack.c.l.b16 %v419
        %v703 = vunpack.c.h.b16 %v419
        %v704 = vunpack.c.l.b16 %v420
        %v705 = vunpack.c.h.b16 %v420
        %v706 = vunpack.c.l.b16 %v421
        %v707 = vunpack.c.h.b16 %v421
        %v708 = vunpack.c.l.b16 %v422
        %v709 = vunpack.c.h.b16 %v422
        %v710 = vunpack.c.l.b16 %v423
        %v711 = vunpack.c.h.b16 %v423
        %v712 = vunpack.c.l.b16 %v424
        %v713 = vunpack.c.h.b16 %v424
        %v714 = vunpack.c.l.b16 %v425
        %v715 = vunpack.c.h.b16 %v425
        %v716 = vunpack.c.l.b16 %v426
        %v717 = vunpack.c.h.b16 %v426
        %v718 = vunpack.c.l.b16 %v427
        %v719 = vunpack.c.h.b16 %v427
        %v720 = vunpack.c.l.b16 %v428
        %v721 = vunpack.c.h.b16 %v428
        %v722 = vunpack.c.l.b16 %v429
        %v723 = vunpack.c.h.b16 %v429
        %v724 = vunpack.c.l.b16 %v430
        %v725 = vunpack.c.h.b16 %v430
        %v726 = vunpack.c.l.b16 %v431
        %v727 = vunpack.c.h.b16 %v431
        %v728 = vunpack.c.l.b16 %v432
        %v729 = vunpack.c.h.b16 %v432
        %v730 = vunpack.c.l.b16 %v433
        %v731 = vunpack.c.h.b16 %v433
        %v732 = vunpack.c.l.b16 %v434
        %v733 = vunpack.c.h.b16 %v434
        %v734 = vunpack.c.l.b16 %v435
        %v735 = vunpack.c.h.b16 %v435
        %v736 = vunpack.c.l.b16 %v436
        %v737 = vunpack.c.h.b16 %v436
        %v738 = vunpack.c.l.b16 %v437
        %v739 = vunpack.c.h.b16 %v437
        %v740 = vunpack.c.l.b16 %v438
        %v741 = vunpack.c.h.b16 %v438
        %v742 = vunpack.c.l.b16 %v439
        %v743 = vunpack.c.h.b16 %v439
        %v744 = vpack.c.b16 %v556, %v552
        %v745 = vpack.c.b16 %v557, %v553
        %v746 = vpack.c.b16 %v558, %v554
        %v747 = vpack.c.b16 %v559, %v555
        %v748 = vpack.c.b16 %v564, %v560
        %v749 = vpack.c.b16 %v565, %v561
        %v750 = vpack.c.b16 %v566, %v562
        %v751 = vpack.c.b16 %v567, %v563
        %v752 = vpack.c.b16 %v572, %v568
        %v753 = vpack.c.b16 %v573, %v569
        %v754 = vpack.c.b16 %v574, %v570
        %v755 = vpack.c.b16 %v575, %v571
        %v756 = vpack.c.b16 %v580, %v576
        %v757 = vpack.c.b16 %v581, %v577
        %v758 = vpack.c.b16 %v582, %v578
        %v759 = vpack.c.b16 %v583, %v579
        %v760 = vpack.c.b16 %v588, %v584
        %v761 = vpack.c.b16 %v589, %v585
        %v762 = vpack.c.b16 %v590, %v586
        %v763 = vpack.c.b16 %v591, %v587
        %v764 = vpack.c.b16 %v596, %v592
        %v765 = vpack.c.b16 %v597, %v593
        %v766 = vpack.c.b16 %v598, %v594
        %v767 = vpack.c.b16 %v599, %v595
        %v768 = vpack.c.b16 %v604, %v600
        %v769 = vpack.c.b16 %v605, %v601
        %v770 = vpack.c.b16 %v606, %v602
        %v771 = vpack.c.b16 %v607, %v603
        %v772 = vpack.c.b16 %v612, %v608
        %v773 = vpack.c.b16 %v613, %v609
        %v774 = vpack.c.b16 %v614, %v610
        %v775 = vpack.c.b16 %v615, %v611
        %v776 = vpack.c.b16 %v620, %v616
        %v777 = vpack.c.b16 %v621, %v617
        %v778 = vpack.c.b16 %v622, %v618
        %v779 = vpack.c.b16 %v623, %v619
        %v780 = vpack.c.b16 %v628, %v624
        %v781 = vpack.c.b16 %v629, %v625
        %v782 = vpack.c.b16 %v630, %v626
        %v783 = vpack.c.b16 %v631, %v627
        %v784 = vpack.c.b16 %v636, %v632
        %v785 = vpack.c.b16 %v637, %v633
        %v786 = vpack.c.b16 %v638, %v634
        %v787 = vpack.c.b16 %v639, %v635
        %v788 = vpack.c.b16 %v644, %v640
        %v789 = vpack.c.b16 %v645, %v641
        %v790 = vpack.c.b16 %v646, %v642
        %v791 = vpack.c.b16 %v647, %v643
        %v792 = vpack.c.b16 %v652, %v648
        %v793 = vpack.c.b16 %v653, %v649
        %v794 = vpack.c.b16 %v654, %v650
        %v795 = vpack.c.b16 %v655, %v651
        %v796 = vpack.c.b16 %v660, %v656
        %v797 = vpack.c.b16 %v661, %v657
        %v798 = vpack.c.b16 %v662, %v658
        %v799 = vpack.c.b16 %v663, %v659
        %v800 = vpack.c.b16 %v668, %v664
        %v801 = vpack.c.b16 %v669, %v665
        %v802 = vpack.c.b16 %v670, %v666
        %v803 = vpack.c.b16 %v671, %v667
        %v804 = vpack.c.b16 %v676, %v672
        %v805 = vpack.c.b16 %v677, %v673
        %v806 = vpack.c.b16 %v678, %v674
        %v807 = vpack.c.b16 %v679, %v675
        %v808 = vpack.c.b16 %v684, %v680
        %v809 = vpack.c.b16 %v685, %v681
        %v810 = vpack.c.b16 %v686, %v682
        %v811 = vpack.c.b16 %v687, %v683
        %v812 = vpack.c.b16 %v692, %v688
        %v813 = vpack.c.b16 %v693, %v689
        %v814 = vpack.c.b16 %v694, %v690
        %v815 = vpack.c.b16 %v695, %v691
        %v816 = vpack.c.b16 %v700, %v696
        %v817 = vpack.c.b16 %v701, %v697
        %v818 = vpack.c.b16 %v702, %v698
        %v819 = vpack.c.b16 %v703, %v699
        %v820 = vpack.c.b16 %v708, %v704
        %v821 = vpack.c.b16 %v709, %v705
        %v822 = vpack.c.b16 %v710, %v706
        %v823 = vpack.c.b16 %v711, %v707
        %v824 = vpack.c.b16 %v716, %v712
        %v825 = vpack.c.b16 %v717, %v713
        %v826 = vpack.c.b16 %v718, %v714
        %v827 = vpack.c.b16 %v719, %v715
        %v828 = vpack.c.b16 %v724, %v720
        %v829 = vpack.c.b16 %v725, %v721
        %v830 = vpack.c.b16 %v726, %v722
        %v831 = vpack.c.b16 %v727, %v723
        %v832 = vpack.c.b16 %v732, %v728
        %v833 = vpack.c.b16 %v733, %v729
        %v834 = vpack.c.b16 %v734, %v730
        %v835 = vpack.c.b16 %v735, %v731
        %v836 = vpack.c.b16 %v740, %v736
        %v837 = vpack.c.b16 %v741, %v737
        %v838 = vpack.c.b16 %v742, %v738
        %v839 = vpack.c.b16 %v743, %v739
        %936 = vmatpush.bf16.msra.mxu0 %v772
        %937 = vmatpush.bf16.msra.mxu0 %v768
        %938 = vmatpush.bf16.msra.mxu0 %v764
        %939 = vmatpush.bf16.msra.mxu0 %v760
        %940 = vmatpush.bf16.msra.mxu0 %v756
        %941 = vmatpush.bf16.msra.mxu0 %v752
        %942 = vmatpush.bf16.msra.mxu0 %v748
        %943 = vmatpush.bf16.msra.mxu0 %v744
        %944 = vmatmul.bf16.gmra.mxu0 %v450
        %v945 = vpop.f32.mrf.mxu0
        %v946 = vadd.f32 0.0, %v945
        %v947 = vpop.f32.mrf.mxu0
        %v948 = vadd.f32 0.0, %v947
        %949 = vdwg.mxu0
        %950 = vmatpush.bf16.msra.mxu0 %v804
        %951 = vmatpush.bf16.msra.mxu0 %v800
        %952 = vmatpush.bf16.msra.mxu0 %v796
        %953 = vmatpush.bf16.msra.mxu0 %v792
        %954 = vmatpush.bf16.msra.mxu0 %v788
        %955 = vmatpush.bf16.msra.mxu0 %v784
        %956 = vmatpush.bf16.msra.mxu0 %v780
        %957 = vmatpush.bf16.msra.mxu0 %v776
        %958 = vmatmul.bf16.gmra.mxu0 %v451
        %v959 = vpop.f32.mrf.mxu0
        %v960 = vadd.f32 %v946, %v959
        %v961 = vpop.f32.mrf.mxu0
        %v962 = vadd.f32 %v948, %v961
        %963 = vdwg.mxu0
        %964 = vmatpush.bf16.msra.mxu0 %v836
        %965 = vmatpush.bf16.msra.mxu0 %v832
        %966 = vmatpush.bf16.msra.mxu0 %v828
        %967 = vmatpush.bf16.msra.mxu0 %v824
        %968 = vmatpush.bf16.msra.mxu0 %v820
        %969 = vmatpush.bf16.msra.mxu0 %v816
        %970 = vmatpush.bf16.msra.mxu0 %v812
        %971 = vmatpush.bf16.msra.mxu0 %v808
        %972 = vmatmul.bf16.gmra.mxu0 %v452
        %v973 = vpop.f32.mrf.mxu0
        %v974 = vadd.f32 %v960, %v973
        %v975 = vpop.f32.mrf.mxu0
        %v976 = vadd.f32 %v962, %v975
        %977 = vdwg.mxu0
        %978 = vmatpush.bf16.msra.mxu0 %v773
        %979 = vmatpush.bf16.msra.mxu0 %v769
        %980 = vmatpush.bf16.msra.mxu0 %v765
        %981 = vmatpush.bf16.msra.mxu0 %v761
        %982 = vmatpush.bf16.msra.mxu0 %v757
        %983 = vmatpush.bf16.msra.mxu0 %v753
        %984 = vmatpush.bf16.msra.mxu0 %v749
        %985 = vmatpush.bf16.msra.mxu0 %v745
        %986 = vmatmul.bf16.gmra.mxu0 %v450
        %v987 = vpop.f32.mrf.mxu0
        %v988 = vadd.f32 0.0, %v987
        %v989 = vpop.f32.mrf.mxu0
        %v990 = vadd.f32 0.0, %v989
        %991 = vdwg.mxu0
        %992 = vmatpush.bf16.msra.mxu0 %v805
        %993 = vmatpush.bf16.msra.mxu0 %v801
        %994 = vmatpush.bf16.msra.mxu0 %v797
        %995 = vmatpush.bf16.msra.mxu0 %v793
        %996 = vmatpush.bf16.msra.mxu0 %v789
        %997 = vmatpush.bf16.msra.mxu0 %v785
        %998 = vmatpush.bf16.msra.mxu0 %v781
        %999 = vmatpush.bf16.msra.mxu0 %v777
        %1000 = vmatmul.bf16.gmra.mxu0 %v451
        %v1001 = vpop.f32.mrf.mxu0
        %v1002 = vadd.f32 %v988, %v1001
        %v1003 = vpop.f32.mrf.mxu0
        %v1004 = vadd.f32 %v990, %v1003
        %1005 = vdwg.mxu0
        %1006 = vmatpush.bf16.msra.mxu0 %v837
        %1007 = vmatpush.bf16.msra.mxu0 %v833
        %1008 = vmatpush.bf16.msra.mxu0 %v829
        %1009 = vmatpush.bf16.msra.mxu0 %v825
        %1010 = vmatpush.bf16.msra.mxu0 %v821
        %1011 = vmatpush.bf16.msra.mxu0 %v817
        %1012 = vmatpush.bf16.msra.mxu0 %v813
        %1013 = vmatpush.bf16.msra.mxu0 %v809
        %1014 = vmatmul.bf16.gmra.mxu0 %v452
        %v1015 = vpop.f32.mrf.mxu0
        %v1016 = vadd.f32 %v1002, %v1015
        %v1017 = vpop.f32.mrf.mxu0
        %v1018 = vadd.f32 %v1004, %v1017
        %1019 = vdwg.mxu0
        %1020 = vmatpush.bf16.msra.mxu0 %v774
        %1021 = vmatpush.bf16.msra.mxu0 %v770
        %1022 = vmatpush.bf16.msra.mxu0 %v766
        %1023 = vmatpush.bf16.msra.mxu0 %v762
        %1024 = vmatpush.bf16.msra.mxu0 %v758
        %1025 = vmatpush.bf16.msra.mxu0 %v754
        %1026 = vmatpush.bf16.msra.mxu0 %v750
        %1027 = vmatpush.bf16.msra.mxu0 %v746
        %1028 = vmatmul.bf16.gmra.mxu0 %v450
        %v1029 = vpop.f32.mrf.mxu0
        %v1030 = vadd.f32 0.0, %v1029
        %v1031 = vpop.f32.mrf.mxu0
        %v1032 = vadd.f32 0.0, %v1031
        %1033 = vdwg.mxu0
        %1034 = vmatpush.bf16.msra.mxu0 %v806
        %1035 = vmatpush.bf16.msra.mxu0 %v802
        %1036 = vmatpush.bf16.msra.mxu0 %v798
        %1037 = vmatpush.bf16.msra.mxu0 %v794
        %1038 = vmatpush.bf16.msra.mxu0 %v790
        %1039 = vmatpush.bf16.msra.mxu0 %v786
        %1040 = vmatpush.bf16.msra.mxu0 %v782
        %1041 = vmatpush.bf16.msra.mxu0 %v778
        %1042 = vmatmul.bf16.gmra.mxu0 %v451
        %v1043 = vpop.f32.mrf.mxu0
        %v1044 = vadd.f32 %v1030, %v1043
        %v1045 = vpop.f32.mrf.mxu0
        %v1046 = vadd.f32 %v1032, %v1045
        %1047 = vdwg.mxu0
        %1048 = vmatpush.bf16.msra.mxu0 %v838
        %1049 = vmatpush.bf16.msra.mxu0 %v834
        %1050 = vmatpush.bf16.msra.mxu0 %v830
        %1051 = vmatpush.bf16.msra.mxu0 %v826
        %1052 = vmatpush.bf16.msra.mxu0 %v822
        %1053 = vmatpush.bf16.msra.mxu0 %v818
        %1054 = vmatpush.bf16.msra.mxu0 %v814
        %1055 = vmatpush.bf16.msra.mxu0 %v810
        %1056 = vmatmul.bf16.gmra.mxu0 %v452
        %v1057 = vpop.f32.mrf.mxu0
        %v1058 = vadd.f32 %v1044, %v1057
        %v1059 = vpop.f32.mrf.mxu0
        %v1060 = vadd.f32 %v1046, %v1059
        %1061 = vdwg.mxu0
        %1062 = vmatpush.bf16.msra.mxu0 %v775
        %1063 = vmatpush.bf16.msra.mxu0 %v771
        %1064 = vmatpush.bf16.msra.mxu0 %v767
        %1065 = vmatpush.bf16.msra.mxu0 %v763
        %1066 = vmatpush.bf16.msra.mxu0 %v759
        %1067 = vmatpush.bf16.msra.mxu0 %v755
        %1068 = vmatpush.bf16.msra.mxu0 %v751
        %1069 = vmatpush.bf16.msra.mxu0 %v747
        %1070 = vmatmul.bf16.gmra.mxu0 %v450
        %v1071 = vpop.f32.mrf.mxu0
        %v1072 = vadd.f32 0.0, %v1071
        %v1073 = vpop.f32.mrf.mxu0
        %v1074 = vadd.f32 0.0, %v1073
        %1075 = vdwg.mxu0
        %1076 = vmatpush.bf16.msra.mxu0 %v807
        %1077 = vmatpush.bf16.msra.mxu0 %v803
        %1078 = vmatpush.bf16.msra.mxu0 %v799
        %1079 = vmatpush.bf16.msra.mxu0 %v795
        %1080 = vmatpush.bf16.msra.mxu0 %v791
        %1081 = vmatpush.bf16.msra.mxu0 %v787
        %1082 = vmatpush.bf16.msra.mxu0 %v783
        %1083 = vmatpush.bf16.msra.mxu0 %v779
        %1084 = vmatmul.bf16.gmra.mxu0 %v451
        %v1085 = vpop.f32.mrf.mxu0
        %v1086 = vadd.f32 %v1072, %v1085
        %v1087 = vpop.f32.mrf.mxu0
        %v1088 = vadd.f32 %v1074, %v1087
        %1089 = vdwg.mxu0
        %1090 = vmatpush.bf16.msra.mxu0 %v839
        %1091 = vmatpush.bf16.msra.mxu0 %v835
        %1092 = vmatpush.bf16.msra.mxu0 %v831
        %1093 = vmatpush.bf16.msra.mxu0 %v827
        %1094 = vmatpush.bf16.msra.mxu0 %v823
        %1095 = vmatpush.bf16.msra.mxu0 %v819
        %1096 = vmatpush.bf16.msra.mxu0 %v815
        %1097 = vmatpush.bf16.msra.mxu0 %v811
        %1098 = vmatmul.bf16.gmra.mxu0 %v452
        %v1099 = vpop.f32.mrf.mxu0
        %v1100 = vadd.f32 %v1086, %v1099
        %v1101 = vpop.f32.mrf.mxu0
        %v1102 = vadd.f32 %v1088, %v1101
        %1103 = vdwg.mxu0
        %v1104 = vadd.f32 %v332, %v974
        %v1105 = vadd.f32 %v333, %v1016
        %v1106 = vadd.f32 %v334, %v1058
        %v1107 = vadd.f32 %v335, %v1100
        %v1108 = vadd.f32 %v336, %v976
        %v1109 = vadd.f32 %v337, %v1018
        %v1110 = vadd.f32 %v338, %v1060
        %v1111 = vadd.f32 %v339, %v1102
        %1112 = vst [vmem:[#allocation2] sm:$0xff] %v1104
        %1113 = vst [vmem:[#allocation2 + $0x8] sm:$0xff] %v1105
        %1114 = vst [vmem:[#allocation2 + $0x10] sm:$0xff] %v1106
        %1115 = vst [vmem:[#allocation2 + $0x18] sm:$0xff] %v1107
        %1116 = vst [vmem:[#allocation2 + $0x20] sm:$0xff] %v1108
        %1117 = vst [vmem:[#allocation2 + $0x28] sm:$0xff] %v1109
        %1118 = vst [vmem:[#allocation2 + $0x30] sm:$0xff] %v1110
        %1119 = vst [vmem:[#allocation2 + $0x38] sm:$0xff] %v1111
        %p1120 = scmp.eq.s32.totalorder %s27, 1
        // Predicated region
        $region71: #{bert_arch_forward.16} parent=53 // pred_check
          %p1121 = pneg %p1120
        $region72: #{bert_arch_forward.16} parent=53 // pred_check_branch
          %1123 = sbr.rel (%p1121) target = $region74
        $region73: #{bert_arch_forward.16} parent=53 // pred_region
          %v1124 = vld [vmem:[#allocation2] sm:$0xff]
          %v1125 = vld [vmem:[#allocation2 + $0x8] sm:$0xff]
          %v1126 = vld [vmem:[#allocation2 + $0x10] sm:$0xff]
          %v1127 = vld [vmem:[#allocation2 + $0x18] sm:$0xff]
          %v1128 = vld [vmem:[#allocation2 + $0x20] sm:$0xff]
          %v1129 = vld [vmem:[#allocation2 + $0x28] sm:$0xff]
          %v1130 = vld [vmem:[#allocation2 + $0x30] sm:$0xff]
          %v1131 = vld [vmem:[#allocation2 + $0x38] sm:$0xff]
          %v1132 = vld [vmem:[%s281] sm:$0xf]
          %v1134 = vperm.slane %v1132, 0
          %v1135 = vperm.slane %v1132, 1
          %v1136 = vperm.slane %v1132, 2
          %v1137 = vperm.slane %v1132, 3
          %v1142 = vadd.f32 %v1124, %v1134
          %v1143 = vadd.f32 %v1125, %v1135
          %v1144 = vadd.f32 %v1126, %v1136
          %v1145 = vadd.f32 %v1127, %v1137
          %v1146 = vadd.f32 %v1128, %v1134
          %v1147 = vadd.f32 %v1129, %v1135
          %v1148 = vadd.f32 %v1130, %v1136
          %v1149 = vadd.f32 %v1131, %v1137
          %v1150 = vmul.f32 %v1142, 0.5
          %v1151 = vmul.f32 %v1143, 0.5
          %v1152 = vmul.f32 %v1144, 0.5
          %v1153 = vmul.f32 %v1145, 0.5
          %v1154 = vmul.f32 %v1146, 0.5
          %v1155 = vmul.f32 %v1147, 0.5
          %v1156 = vmul.f32 %v1148, 0.5
          %v1157 = vmul.f32 %v1149, 0.5
          %v1158 = vmul.f32 %v1142, 0.044715
          %v1159 = vmul.f32 %v1143, 0.044715
          %v1160 = vmul.f32 %v1144, 0.044715
          %v1161 = vmul.f32 %v1145, 0.044715
          %v1162 = vmul.f32 %v1146, 0.044715
          %v1163 = vmul.f32 %v1147, 0.044715
          %v1164 = vmul.f32 %v1148, 0.044715
          %v1165 = vmul.f32 %v1149, 0.044715
          %v1166 = vmul.f32 %v1158, %v1142
          %v1167 = vmul.f32 %v1159, %v1143
          %v1168 = vmul.f32 %v1160, %v1144
          %v1169 = vmul.f32 %v1161, %v1145
          %v1170 = vmul.f32 %v1162, %v1146
          %v1171 = vmul.f32 %v1163, %v1147
          %v1172 = vmul.f32 %v1164, %v1148
          %v1173 = vmul.f32 %v1165, %v1149
          %v1174 = vmul.f32 %v1166, %v1142
          %v1175 = vmul.f32 %v1167, %v1143
          %v1176 = vmul.f32 %v1168, %v1144
          %v1177 = vmul.f32 %v1169, %v1145
          %v1178 = vmul.f32 %v1170, %v1146
          %v1179 = vmul.f32 %v1171, %v1147
          %v1180 = vmul.f32 %v1172, %v1148
          %v1181 = vmul.f32 %v1173, %v1149
          %v1182 = vadd.f32 %v1142, %v1174
          %v1183 = vadd.f32 %v1143, %v1175
          %v1184 = vadd.f32 %v1144, %v1176
          %v1185 = vadd.f32 %v1145, %v1177
          %v1186 = vadd.f32 %v1146, %v1178
          %v1187 = vadd.f32 %v1147, %v1179
          %v1188 = vadd.f32 %v1148, %v1180
          %v1189 = vadd.f32 %v1149, %v1181
          %v1190 = vmul.f32 %v1182, 0.7978846
          %v1191 = vmul.f32 %v1183, 0.7978846
          %v1192 = vmul.f32 %v1184, 0.7978846
          %v1193 = vmul.f32 %v1185, 0.7978846
          %v1194 = vmul.f32 %v1186, 0.7978846
          %v1195 = vmul.f32 %v1187, 0.7978846
          %v1196 = vmul.f32 %v1188, 0.7978846
          %v1197 = vmul.f32 %v1189, 0.7978846
          %v1198 = vtanh.pop %v1190
          %v1199 = vtanh.pop %v1191
          %v1200 = vtanh.pop %v1192
          %v1201 = vtanh.pop %v1193
          %v1202 = vtanh.pop %v1194
          %v1203 = vtanh.pop %v1195
          %v1204 = vtanh.pop %v1196
          %v1205 = vtanh.pop %v1197
          %v1206 = vadd.f32 %v1198, 1.0
          %v1207 = vadd.f32 %v1199, 1.0
          %v1208 = vadd.f32 %v1200, 1.0
          %v1209 = vadd.f32 %v1201, 1.0
          %v1210 = vadd.f32 %v1202, 1.0
          %v1211 = vadd.f32 %v1203, 1.0
          %v1212 = vadd.f32 %v1204, 1.0
          %v1213 = vadd.f32 %v1205, 1.0
          %v1214 = vmul.f32 %v1150, %v1206
          %v1215 = vmul.f32 %v1151, %v1207
          %v1216 = vmul.f32 %v1152, %v1208
          %v1217 = vmul.f32 %v1153, %v1209
          %v1218 = vmul.f32 %v1154, %v1210
          %v1219 = vmul.f32 %v1155, %v1211
          %v1220 = vmul.f32 %v1156, %v1212
          %v1221 = vmul.f32 %v1157, %v1213
          %v1222 = vpack.c.bf16 %v1215, %v1214
          %v1223 = vpack.c.bf16 %v1217, %v1216
          %v1224 = vpack.c.bf16 %v1219, %v1218
          %v1225 = vpack.c.bf16 %v1221, %v1220
          %1226 = vst [vmem:[%s312] sm:$0xff] %v1222
          %1227 = vst [vmem:[%s312 + $0x8] sm:$0xff] %v1223
          %1228 = vst [vmem:[%s312 + $0x10] sm:$0xff] %v1224
          %1229 = vst [vmem:[%s312 + $0x18] sm:$0xff] %v1225
        $region74: #{bert_arch_forward.16} parent=53 // pred_fallthru
          _
        %s1230 = sand.u32 %s131, 1
        %s1231 = sand.u32 %s131, 1
        %s1232 = smul.addr %s1231, 32
        %s1233 = scalar_lea.vmem [#allocation8], %s1232
        // Predicated region
        $region75: #{bert_arch_forward.16} parent=53 // pred_check
          %p1234 = pneg %p141
        $region76: #{bert_arch_forward.16} parent=53 // pred_check_branch
          %1236 = sbr.rel (%p1234) target = $region78
        $region77: #{bert_arch_forward.16} parent=53 // pred_region
          %s1237 = smul.u32 2, %s25
          %s1238 = smul.u32 4, %s26
          %s1239 = smul.addr %s1237, 24
          %s1240 = sadd.s32 %s1238, %s1239
          %s1241 = smul.addr %s1240, 4
          %s1242 = scalar_lea.vmem %s3, %s1241
          // Predicated region
          $region79: #{bert_arch_forward.16} parent=77 // pred_check
            _
          $region80: #{bert_arch_forward.16} parent=77 // pred_check_branch
            %1244 = sbr.rel (0) target = $region82
          $region81: #{bert_arch_forward.16} parent=77 // pred_region
            // Predicated region
            $region83: #{bert_arch_forward.16} parent=81 // pred_check
              _
            $region84: #{bert_arch_forward.16} parent=81 // pred_check_branch
              %1246 = sbr.rel (0) target = $region86
            $region85: #{bert_arch_forward.16} parent=81 // pred_region
              loop: start=0, step=1, limit=1
              $region87: #{bert_arch_forward.16} parent=85 // loop_pre_header
                _
              $region88: #{bert_arch_forward.16} parent=85 // loop_header
                %s1248 = sphi 0, %s1252
                %p1249 = scmp.ge.s32.totalorder %s1248, 1
                %s1253 = sphi %s1233, %s1233
                %s1254 = sphi %s1242, %s1242
              $region89: #{bert_arch_forward.16} parent=85 // loop_header_branch
                %1251 = sbr.rel (%p1249) target = $region93
              $region90: #{bert_arch_forward.16} parent=85 // loop_body
                %v1255 = vld [vmem:[%s1253] sm:$0xff]
                %1256 = vst [vmem:[%s1254] sm:$0xff] %v1255
                %v1257 = vld [vmem:[%s1253 + $0x8] sm:$0xff]
                %1258 = vst [vmem:[%s1254 + $0x8] sm:$0xff] %v1257
                %v1259 = vld [vmem:[%s1253 + $0x10] sm:$0xff]
                %1260 = vst [vmem:[%s1254 + $0x60] sm:$0xff] %v1259
                %v1261 = vld [vmem:[%s1253 + $0x18] sm:$0xff]
                %1262 = vst [vmem:[%s1254 + $0x68] sm:$0xff] %v1261
              $region91: #{bert_arch_forward.16} parent=85 // loop_footer
                %s1252 = sadd.s32 1, %s1248
              $region92: #{bert_arch_forward.16} parent=85 // loop_footer_branch
                %1247 = sbr.rel target = $region88
              $region93: #{bert_arch_forward.16} parent=85 // loop_exit
                _
            $region86: #{bert_arch_forward.16} parent=81 // pred_fallthru
              _
            // Predicated region
            $region94: #{bert_arch_forward.16} parent=81 // pred_check
              _
            $region95: #{bert_arch_forward.16} parent=81 // pred_check_branch
              %1264 = sbr.rel target = $region97
            $region96: #{bert_arch_forward.16} parent=81 // pred_region
              _
            $region97: #{bert_arch_forward.16} parent=81 // pred_fallthru
              _
          $region82: #{bert_arch_forward.16} parent=77 // pred_fallthru
            _
          %1265 = vnop
        $region78: #{bert_arch_forward.16} parent=53 // pred_fallthru
          _
      $region54: #{bert_arch_forward.16} parent=5 // pred_fallthru
        _
      %p1266 = scmp.le.s32.totalorder 2, %s15
      // Predicated region
      $region98: #{bert_arch_forward.16} parent=5 // pred_check
        %p1267 = pneg %p1266
      $region99: #{bert_arch_forward.16} parent=5 // pred_check_branch
        %1269 = sbr.rel (%p1267) target = $region101
      $region100: #{bert_arch_forward.16} parent=5 // pred_region
        %s1270 = ssub.s32 %s15, 2
        // Predicated region
        $region102: #{bert_arch_forward.16} parent=100 // pred_check
          %p1271 = pneg %p147
        $region103: #{bert_arch_forward.16} parent=100 // pred_check_branch
          %1273 = sbr.rel (%p1271) target = $region105
        $region104: #{bert_arch_forward.16} parent=100 // pred_region
          %s1274 = sand.u32 %s132, 1
          %s1275 = sand.u32 %s132, 1
          %s1276 = smul.addr %s1275, 32
          %s1277 = scalar_lea.vmem [#allocation8], %s1276
        $region105: #{bert_arch_forward.16} parent=100 // pred_fallthru
          _
      $region101: #{bert_arch_forward.16} parent=5 // pred_fallthru
        _
    $region6: #{bert_arch_forward.16} parent=1 // loop_footer
      %s19 = sadd.s32 1, %s15
    $region7: #{bert_arch_forward.16} parent=1 // loop_footer_branch
      %14 = sbr.rel target = $region3
    $region8: #{bert_arch_forward.16} parent=1 // loop_exit
      _
    %1278 = vsyncpa [#allocation5], 1
    %s1279 = scalar_lea.sflag [#allocation5], 1
    %1280 = vsyncpa %s1279, 1
    %1281 = vsyncpa [#allocation7], 1
    %s1282 = scalar_lea.sflag [#allocation7], 1
    %1283 = vsyncpa %s1282, 1

// kernel: bert_arch_forward.17
$region0: #{bert_arch_forward.17}
  #allocation0 [shape = 'u32[]', space=smem, size = 0x4, offset = 0x4, fixed_abs, tag = 'smem constant byte address 0x4 - core index']
  #allocation1 [shape = 'u32[72,128]{1,0:T(1,128)}', space=vmem, size = 0x9000, scoped, tag = 'internal scratch']
  #allocation2 [shape = 'f32[16,768]{1,0:T(8,128)}', space=vmem, size = 0xc000, scoped, tag = 'scratch operand']
  %s0 = inlined_call_operand.vmem [shape: bf16[16,3072], index: 0, kind: input, shape index: {}]
  %s1 = inlined_call_operand.hbm [shape: bf16[3072,768], index: 1, kind: input, shape index: {}]
  %s2 = inlined_call_operand.hbm [shape: f32[1,768], index: 2, kind: input, shape index: {}]
  %s3 = inlined_call_operand.vmem [shape: bf16[16,768], index: 3, kind: input, shape index: {}]
  %s4 = inlined_call_operand.hbm [shape: f32[1,768], index: 4, kind: input, shape index: {}]
  %s5 = inlined_call_operand.hbm [shape: f32[1,768], index: 5, kind: input, shape index: {}]
  %s6 = inlined_call_operand.vmem [shape: bf16[16,768], index: 6, kind: output, shape index: {}]
  %s7 = sld [smem:[#allocation0]]
  $region104: #{bert_arch_forward.17} parent=0
    _
  %s9 = ssub.s32 1, %s7
  %s10 = scalar_select 0, %s9, %s7
  $region1: #{bert_arch_forward.17} parent=0
    #allocation3 [shape = 'u8[32768]{0}', space=vmem, size = 0x8000, scoped, tag = 'input window, operand 0']
    #allocation4 [shape = 'u8[1572864]{0}', space=vmem, size = 0x180000, scoped, tag = 'input window, operand 1']
    #allocation5 [shape = 's32[2]{0}', space=sflag, size = 0x8, scoped, tag = 'scoped memory for bert_arch_forward.17']
    #allocation6 [shape = 'u8[3072]{0}', space=vmem, size = 0xc00, scoped, tag = 'input window, operand 2, single buffered']
    #allocation7 [shape = 's32[1]{0}', space=sflag, size = 0x4, scoped, tag = 'scoped memory for bert_arch_forward.17']
    #allocation8 [shape = 'u8[3072]{0}', space=vmem, size = 0xc00, scoped, tag = 'input window, operand 4, single buffered']
    #allocation9 [shape = 'u8[3072]{0}', space=vmem, size = 0xc00, scoped, tag = 'input window, operand 5, single buffered']
    #allocation10 [shape = 's32[1]{0}', space=sflag, size = 0x4, scoped, tag = 'scoped memory for bert_arch_forward.17']
    %11 = vsyncpa [#allocation5], 0
    %s12 = scalar_lea.sflag [#allocation5], 1
    %13 = vsyncpa %s12, 0
    %14 = vsyncpa [#allocation7], 0
    %15 = vsyncpa [#allocation10], 0
    loop: start=0, step=1, limit=8
    $region2: #{bert_arch_forward.17} parent=1 // loop_pre_header
      _
    $region3: #{bert_arch_forward.17} parent=1 // loop_header
      %s17 = sphi 0, %s21
      %p18 = scmp.ge.s32.totalorder %s17, 8
      %s24 = sphi 0, %s36
      %s25 = sphi 0, %s32
      %s26 = sphi 0, %s24
      %s27 = sphi 0, %s25
      %s28 = sphi 0, %s26
      %s29 = sphi 0, %s27
      %s41 = sphi 0, %s43
      %s44 = sphi 0, %s41
      %s45 = sphi 0, %s44
      %s61 = sphi 0, %s45
      %s67 = sphi 0, %s69
      %s70 = sphi 0, %s67
      %s71 = sphi 0, %s70
      %s87 = sphi 0, %s71
      %s91 = sphi 0, %s91
      %s93 = sphi 0, %s91
      %s94 = sphi 0, %s93
      %s108 = sphi 0, %s94
      %s114 = sphi 0, %s116
      %s117 = sphi 0, %s114
      %s118 = sphi 0, %s117
      %s134 = sphi 0, %s118
      %s138 = sphi 0, %s138
      %s140 = sphi 0, %s138
      %s141 = sphi 0, %s140
      %s155 = sphi 0, %s141
      %s159 = sphi 0, %s159
      %s161 = sphi 0, %s159
      %s162 = sphi 0, %s161
      %s176 = sphi 0, %s162
      %s182 = sphi 0, %s184
      %s185 = sphi 0, %s182
      %s186 = sphi 0, %s185
      %s202 = sphi 0, %s186
    $region4: #{bert_arch_forward.17} parent=1 // loop_header_branch
      %20 = sbr.rel (%p18) target = $region8
    $region5: #{bert_arch_forward.17} parent=1 // loop_body
      %s22 = ssub.s32 %s17, 1
      %s23 = ssub.s32 %s17, 2
      %s30 = sadd.s32 1, %s25
      %p31 = scmp.ge.s32.totalorder %s30, 6
      %s32 = scalar_select %p31, 0, %s30
      %s33 = sadd.s32 1, %s24
      %s34 = scalar_select %p31, %s33, %s24
      %p35 = scmp.ge.s32.totalorder %s34, 1
      %s36 = scalar_select %p35, 0, %s34
      %s37 = ssub.s32 %s24, %s36
      %s38 = ssub.s32 %s25, %s32
      %s39 = sor.u32 %s37, %s38
      %p40 = scmp.eq.s32.totalorder %s39, 0
      %s42 = sadd.s32 %s41, 1
      %s43 = scalar_select %p40, %s41, %s42
      %p46 = pneg %p40
      %p47 = scmp.eq.s32.totalorder %s17, 5
      %p48 = por %p46, %p47
      %p49 = scmp.ne.s32.totalorder %s41, %s44
      %p50 = scmp.eq.s32.totalorder %s17, 0
      %p51 = por %p49, %p50
      %p52 = scmp.ne.s32.totalorder %s41, %s44
      %p53 = scmp.eq.s32.totalorder %s22, 5
      %p54 = por %p52, %p53
      %p55 = scmp.ne.s32.totalorder %s44, %s45
      %p56 = scmp.eq.s32.totalorder %s22, 0
      %p57 = por %p55, %p56
      %p58 = scmp.ne.s32.totalorder %s44, %s45
      %p59 = scmp.eq.s32.totalorder %s23, 5
      %p60 = por %p58, %p59
      %p62 = scmp.ne.s32.totalorder %s45, %s61
      %p63 = scmp.eq.s32.totalorder %s23, 0
      %p64 = por %p62, %p63
      %s65 = ssub.s32 %s25, %s32
      %p66 = scmp.eq.s32.totalorder %s65, 0
      %s68 = sadd.s32 %s67, 1
      %s69 = scalar_select %p66, %s67, %s68
      %p72 = pneg %p66
      %p73 = scmp.eq.s32.totalorder %s17, 5
      %p74 = por %p72, %p73
      %p75 = scmp.ne.s32.totalorder %s67, %s70
      %p76 = scmp.eq.s32.totalorder %s17, 0
      %p77 = por %p75, %p76
      %p78 = scmp.ne.s32.totalorder %s67, %s70
      %p79 = scmp.eq.s32.totalorder %s22, 5
      %p80 = por %p78, %p79
      %p81 = scmp.ne.s32.totalorder %s70, %s71
      %p82 = scmp.eq.s32.totalorder %s22, 0
      %p83 = por %p81, %p82
      %p84 = scmp.ne.s32.totalorder %s70, %s71
      %p85 = scmp.eq.s32.totalorder %s23, 5
      %p86 = por %p84, %p85
      %p88 = scmp.ne.s32.totalorder %s71, %s87
      %p89 = scmp.eq.s32.totalorder %s23, 0
      %p90 = por %p88, %p89
      %s92 = sadd.s32 %s91, 1
      %p95 = scmp.eq.s32.totalorder %s17, 5
      %p96 = scmp.ne.s32.totalorder %s91, %s93
      %p97 = scmp.eq.s32.totalorder %s17, 0
      %p98 = por %p96, %p97
      %p99 = scmp.ne.s32.totalorder %s91, %s93
      %p100 = scmp.eq.s32.totalorder %s22, 5
      %p101 = por %p99, %p100
      %p102 = scmp.ne.s32.totalorder %s93, %s94
      %p103 = scmp.eq.s32.totalorder %s22, 0
      %p104 = por %p102, %p103
      %p105 = scmp.ne.s32.totalorder %s93, %s94
      %p106 = scmp.eq.s32.totalorder %s23, 5
      %p107 = por %p105, %p106
      %p109 = scmp.ne.s32.totalorder %s94, %s108
      %p110 = scmp.eq.s32.totalorder %s23, 0
      %p111 = por %p109, %p110
      %s112 = ssub.s32 %s24, %s36
      %p113 = scmp.eq.s32.totalorder %s112, 0
      %s115 = sadd.s32 %s114, 1
      %s116 = scalar_select %p113, %s114, %s115
      %p119 = pneg %p113
      %p120 = scmp.eq.s32.totalorder %s17, 5
      %p121 = por %p119, %p120
      %p122 = scmp.ne.s32.totalorder %s114, %s117
      %p123 = scmp.eq.s32.totalorder %s17, 0
      %p124 = por %p122, %p123
      %p125 = scmp.ne.s32.totalorder %s114, %s117
      %p126 = scmp.eq.s32.totalorder %s22, 5
      %p127 = por %p125, %p126
      %p128 = scmp.ne.s32.totalorder %s117, %s118
      %p129 = scmp.eq.s32.totalorder %s22, 0
      %p130 = por %p128, %p129
      %p131 = scmp.ne.s32.totalorder %s117, %s118
      %p132 = scmp.eq.s32.totalorder %s23, 5
      %p133 = por %p131, %p132
      %p135 = scmp.ne.s32.totalorder %s118, %s134
      %p136 = scmp.eq.s32.totalorder %s23, 0
      %p137 = por %p135, %p136
      %s139 = sadd.s32 %s138, 1
      %p142 = scmp.eq.s32.totalorder %s17, 5
      %p143 = scmp.ne.s32.totalorder %s138, %s140
      %p144 = scmp.eq.s32.totalorder %s17, 0
      %p145 = por %p143, %p144
      %p146 = scmp.ne.s32.totalorder %s138, %s140
      %p147 = scmp.eq.s32.totalorder %s22, 5
      %p148 = por %p146, %p147
      %p149 = scmp.ne.s32.totalorder %s140, %s141
      %p150 = scmp.eq.s32.totalorder %s22, 0
      %p151 = por %p149, %p150
      %p152 = scmp.ne.s32.totalorder %s140, %s141
      %p153 = scmp.eq.s32.totalorder %s23, 5
      %p154 = por %p152, %p153
      %p156 = scmp.ne.s32.totalorder %s141, %s155
      %p157 = scmp.eq.s32.totalorder %s23, 0
      %p158 = por %p156, %p157
      %s160 = sadd.s32 %s159, 1
      %p163 = scmp.eq.s32.totalorder %s17, 5
      %p164 = scmp.ne.s32.totalorder %s159, %s161
      %p165 = scmp.eq.s32.totalorder %s17, 0
      %p166 = por %p164, %p165
      %p167 = scmp.ne.s32.totalorder %s159, %s161
      %p168 = scmp.eq.s32.totalorder %s22, 5
      %p169 = por %p167, %p168
      %p170 = scmp.ne.s32.totalorder %s161, %s162
      %p171 = scmp.eq.s32.totalorder %s22, 0
      %p172 = por %p170, %p171
      %p173 = scmp.ne.s32.totalorder %s161, %s162
      %p174 = scmp.eq.s32.totalorder %s23, 5
      %p175 = por %p173, %p174
      %p177 = scmp.ne.s32.totalorder %s162, %s176
      %p178 = scmp.eq.s32.totalorder %s23, 0
      %p179 = por %p177, %p178
      %s180 = ssub.s32 %s24, %s36
      %p181 = scmp.eq.s32.totalorder %s180, 0
      %s183 = sadd.s32 %s182, 1
      %s184 = scalar_select %p181, %s182, %s183
      %p187 = pneg %p181
      %p188 = scmp.eq.s32.totalorder %s17, 5
      %p189 = por %p187, %p188
      %p190 = scmp.ne.s32.totalorder %s182, %s185
      %p191 = scmp.eq.s32.totalorder %s17, 0
      %p192 = por %p190, %p191
      %p193 = scmp.ne.s32.totalorder %s182, %s185
      %p194 = scmp.eq.s32.totalorder %s22, 5
      %p195 = por %p193, %p194
      %p196 = scmp.ne.s32.totalorder %s185, %s186
      %p197 = scmp.eq.s32.totalorder %s22, 0
      %p198 = por %p196, %p197
      %p199 = scmp.ne.s32.totalorder %s185, %s186
      %p200 = scmp.eq.s32.totalorder %s23, 5
      %p201 = por %p199, %p200
      %p203 = scmp.ne.s32.totalorder %s186, %s202
      %p204 = scmp.eq.s32.totalorder %s23, 0
      %p205 = por %p203, %p204
      %p206 = scmp.le.s32.totalorder 1, %s17
      %p207 = scmp.lt.s32.totalorder %s17, 7
      %p208 = pnand %p206, %p207
      %p209 = pneg %p208
      // Predicated region
      $region9: #{bert_arch_forward.17} parent=5 // pred_check
        _
      $region10: #{bert_arch_forward.17} parent=5 // pred_check_branch
        %211 = sbr.rel (%p208) target = $region12
      $region11: #{bert_arch_forward.17} parent=5 // pred_region
        %s212 = ssub.s32 %s17, 1
        // Predicated region
        $region13: #{bert_arch_forward.17} parent=11 // pred_check
          %p213 = pneg %p104
        $region14: #{bert_arch_forward.17} parent=11 // pred_check_branch
          %215 = sbr.rel (%p213) target = $region16
        $region15: #{bert_arch_forward.17} parent=11 // pred_region
          %217 = vsyncadd [#allocation7], 0
          %s219 = sshll.u32 %s2, 4
          %s220 = int_to_ptr.hbm [resolvable:$true] %s219
          %s221 = sshll.u32 [#allocation6], 4
          %s222 = int_to_ptr.vmem [resolvable:$true] %s221
          %224 = dma.hbm_to_vmem [thread:$0]  %s220, 96, %s222, [#allocation7]
        $region16: #{bert_arch_forward.17} parent=11 // pred_fallthru
          _
        // Predicated region
        $region17: #{bert_arch_forward.17} parent=11 // pred_check
          %p225 = pneg %p130
        $region18: #{bert_arch_forward.17} parent=11 // pred_check_branch
          %227 = sbr.rel (%p225) target = $region20
        $region19: #{bert_arch_forward.17} parent=11 // pred_region
          %s228 = smul.u32 2, %s26
          %p229 = scmp.lt.s32.totalorder %s228, 1
          %s230 = scalar_select %p229, %s228, 1
          %s231 = smul.addr %s230, 6
          %s232 = smul.addr %s231, 4
          %s233 = scalar_lea.vmem %s3, %s232
          %s234 = smul.u32 2, %s26
        $region20: #{bert_arch_forward.17} parent=11 // pred_fallthru
          _
        // Predicated region
        $region21: #{bert_arch_forward.17} parent=11 // pred_check
          %p235 = pneg %p151
        $region22: #{bert_arch_forward.17} parent=11 // pred_check_branch
          %237 = sbr.rel (%p235) target = $region24
        $region23: #{bert_arch_forward.17} parent=11 // pred_region
          %239 = vsyncadd [#allocation7], 0
          %s241 = sshll.u32 %s4, 4
          %s242 = int_to_ptr.hbm [resolvable:$true] %s241
          %s243 = sshll.u32 [#allocation8], 4
          %s244 = int_to_ptr.vmem [resolvable:$true] %s243
          %246 = dma.hbm_to_vmem [thread:$0]  %s242, 96, %s244, [#allocation7]
        $region24: #{bert_arch_forward.17} parent=11 // pred_fallthru
          _
        // Predicated region
        $region25: #{bert_arch_forward.17} parent=11 // pred_check
          %p247 = pneg %p172
        $region26: #{bert_arch_forward.17} parent=11 // pred_check_branch
          %249 = sbr.rel (%p247) target = $region28
        $region27: #{bert_arch_forward.17} parent=11 // pred_region
          %251 = vsyncadd [#allocation10], 0
          %s253 = sshll.u32 %s5, 4
          %s254 = int_to_ptr.hbm [resolvable:$true] %s253
          %s255 = sshll.u32 [#allocation9], 4
          %s256 = int_to_ptr.vmem [resolvable:$true] %s255
          %258 = dma.hbm_to_vmem [thread:$0]  %s254, 96, %s256, [#allocation10]
        $region28: #{bert_arch_forward.17} parent=11 // pred_fallthru
          _
      $region12: #{bert_arch_forward.17} parent=5 // pred_fallthru
        _
      %p259 = scmp.lt.s32.totalorder %s17, 6
      // Predicated region
      $region29: #{bert_arch_forward.17} parent=5 // pred_check
        %p260 = pneg %p259
      $region30: #{bert_arch_forward.17} parent=5 // pred_check_branch
        %262 = sbr.rel (%p260) target = $region32
      $region31: #{bert_arch_forward.17} parent=5 // pred_region
        // Predicated region
        $region33: #{bert_arch_forward.17} parent=31 // pred_check
          %p263 = pneg %p51
        $region34: #{bert_arch_forward.17} parent=31 // pred_check_branch
          %265 = sbr.rel (%p263) target = $region36
        $region35: #{bert_arch_forward.17} parent=31 // pred_region
          %s266 = sand.u32 %s41, 1
          %s267 = sand.u32 %s41, 1
          %s268 = smul.addr %s267, 32
          %s269 = scalar_lea.vmem [#allocation3], %s268
          %s270 = smul.u32 2, %s24
          %s271 = smul.u32 4, %s25
          %s272 = smul.addr %s270, 24
          %s273 = sadd.s32 %s271, %s272
          %s274 = smul.addr %s273, 4
          %s275 = scalar_lea.vmem %s0, %s274
          // Predicated region
          $region37: #{bert_arch_forward.17} parent=35 // pred_check
            _
          $region38: #{bert_arch_forward.17} parent=35 // pred_check_branch
            %277 = sbr.rel (0) target = $region40
          $region39: #{bert_arch_forward.17} parent=35 // pred_region
            // Predicated region
            $region41: #{bert_arch_forward.17} parent=39 // pred_check
              _
            $region42: #{bert_arch_forward.17} parent=39 // pred_check_branch
              %279 = sbr.rel (0) target = $region44
            $region43: #{bert_arch_forward.17} parent=39 // pred_region
              loop: start=0, step=1, limit=1
              $region45: #{bert_arch_forward.17} parent=43 // loop_pre_header
                _
              $region46: #{bert_arch_forward.17} parent=43 // loop_header
                %s281 = sphi 0, %s285
                %p282 = scmp.ge.s32.totalorder %s281, 1
                %s286 = sphi %s275, %s275
                %s287 = sphi %s269, %s269
              $region47: #{bert_arch_forward.17} parent=43 // loop_header_branch
                %284 = sbr.rel (%p282) target = $region51
              $region48: #{bert_arch_forward.17} parent=43 // loop_body
                %v288 = vld [vmem:[%s286] sm:$0xff]
                %289 = vst [vmem:[%s287] sm:$0xff] %v288
                %v290 = vld [vmem:[%s286 + $0x8] sm:$0xff]
                %291 = vst [vmem:[%s287 + $0x8] sm:$0xff] %v290
                %v292 = vld [vmem:[%s286 + $0x60] sm:$0xff]
                %293 = vst [vmem:[%s287 + $0x10] sm:$0xff] %v292
                %v294 = vld [vmem:[%s286 + $0x68] sm:$0xff]
                %295 = vst [vmem:[%s287 + $0x18] sm:$0xff] %v294
              $region49: #{bert_arch_forward.17} parent=43 // loop_footer
                %s285 = sadd.s32 1, %s281
              $region50: #{bert_arch_forward.17} parent=43 // loop_footer_branch
                %280 = sbr.rel target = $region46
              $region51: #{bert_arch_forward.17} parent=43 // loop_exit
                _
            $region44: #{bert_arch_forward.17} parent=39 // pred_fallthru
              _
            // Predicated region
            $region52: #{bert_arch_forward.17} parent=39 // pred_check
              _
            $region53: #{bert_arch_forward.17} parent=39 // pred_check_branch
              %297 = sbr.rel target = $region55
            $region54: #{bert_arch_forward.17} parent=39 // pred_region
              _
            $region55: #{bert_arch_forward.17} parent=39 // pred_fallthru
              _
          $region40: #{bert_arch_forward.17} parent=35 // pred_fallthru
            _
          %298 = vnop
        $region36: #{bert_arch_forward.17} parent=31 // pred_fallthru
          _
        // Predicated region
        $region56: #{bert_arch_forward.17} parent=31 // pred_check
          %p299 = pneg %p77
        $region57: #{bert_arch_forward.17} parent=31 // pred_check_branch
          %301 = sbr.rel (%p299) target = $region59
        $region58: #{bert_arch_forward.17} parent=31 // pred_region
          %s302 = sand.u32 %s67, 1
          %s303 = scalar_lea.sflag [#allocation5], %s302
          %s304 = sand.u32 %s67, 1
          %s305 = smul.addr %s304, 1536
          %s306 = scalar_lea.vmem [#allocation4], %s305
          %s307 = smul.u32 64, %s25
          %309 = vsyncadd %s303, 0
          %s310 = smul.addr %s307, 6
          %s311 = smul.addr %s310, 4
          %s312 = scalar_lea.hbm %s1, %s311
          %s313 = sshll.u32 %s312, 4
          %s314 = int_to_ptr.hbm [resolvable:$true] %s313
          %s315 = sshll.u32 %s306, 4
          %s316 = int_to_ptr.vmem [resolvable:$true] %s315
          %321 = dma.hbm_to_vmem [thread:$0]  %s314, 24576, %s316, %s303, 384, 384, 24
        $region59: #{bert_arch_forward.17} parent=31 // pred_fallthru
          _
      $region32: #{bert_arch_forward.17} parent=5 // pred_fallthru
        _
      %p322 = scmp.le.s32.totalorder 1, %s17
      %p323 = scmp.lt.s32.totalorder %s17, 7
      %p324 = pnand %p322, %p323
      %p325 = pneg %p324
      // Predicated region
      $region60: #{bert_arch_forward.17} parent=5 // pred_check
        _
      $region61: #{bert_arch_forward.17} parent=5 // pred_check_branch
        %327 = sbr.rel (%p324) target = $region63
      $region62: #{bert_arch_forward.17} parent=5 // pred_region
        %s328 = ssub.s32 %s17, 1
        %s329 = sand.u32 %s44, 1
        %s330 = sand.u32 %s44, 1
        %s331 = smul.addr %s330, 32
        %s332 = scalar_lea.vmem [#allocation3], %s331
        // Predicated region
        $region64: #{bert_arch_forward.17} parent=62 // pred_check
          %p333 = pneg %p57
        $region65: #{bert_arch_forward.17} parent=62 // pred_check_branch
          %335 = sbr.rel (%p333) target = $region67
        $region66: #{bert_arch_forward.17} parent=62 // pred_region
          _
        $region67: #{bert_arch_forward.17} parent=62 // pred_fallthru
          _
        %s336 = sand.u32 %s70, 1
        %s337 = scalar_lea.sflag [#allocation5], %s336
        %s338 = sand.u32 %s70, 1
        %s339 = smul.addr %s338, 1536
        %s340 = scalar_lea.vmem [#allocation4], %s339
        // Predicated region
        $region68: #{bert_arch_forward.17} parent=62 // pred_check
          %p341 = pneg %p83
        $region69: #{bert_arch_forward.17} parent=62 // pred_check_branch
          %343 = sbr.rel (%p341) target = $region71
        $region70: #{bert_arch_forward.17} parent=62 // pred_region
          %345 = dma.done %s337, 24576
        $region71: #{bert_arch_forward.17} parent=62 // pred_fallthru
          _
        // Predicated region
        $region72: #{bert_arch_forward.17} parent=62 // pred_check
          %p346 = pneg %p104
        $region73: #{bert_arch_forward.17} parent=62 // pred_check_branch
          %348 = sbr.rel (%p346) target = $region75
        $region74: #{bert_arch_forward.17} parent=62 // pred_region
          %350 = dma.done [#allocation7], 96
        $region75: #{bert_arch_forward.17} parent=62 // pred_fallthru
          _
        // Predicated region
        $region76: #{bert_arch_forward.17} parent=62 // pred_check
          %p351 = pneg %p151
        $region77: #{bert_arch_forward.17} parent=62 // pred_check_branch
          %353 = sbr.rel (%p351) target = $region79
        $region78: #{bert_arch_forward.17} parent=62 // pred_region
          %355 = dma.done [#allocation7], 96
        $region79: #{bert_arch_forward.17} parent=62 // pred_fallthru
          _
        // Predicated region
        $region80: #{bert_arch_forward.17} parent=62 // pred_check
          %p356 = pneg %p172
        $region81: #{bert_arch_forward.17} parent=62 // pred_check_branch
          %358 = sbr.rel (%p356) target = $region83
        $region82: #{bert_arch_forward.17} parent=62 // pred_region
          %360 = dma.done [#allocation10], 96
        $region83: #{bert_arch_forward.17} parent=62 // pred_fallthru
          _
        %s361 = sand.u32 %s44, 1
        %s362 = sand.u32 %s44, 1
        %s363 = smul.addr %s362, 32
        %s364 = scalar_lea.vmem [#allocation3], %s363
        %p365 = pneg %p57
        %p366 = pneg %p54
        %s367 = sand.u32 %s70, 1
        %s368 = scalar_lea.sflag [#allocation5], %s367
        %s369 = sand.u32 %s70, 1
        %s370 = smul.addr %s369, 1536
        %s371 = scalar_lea.vmem [#allocation4], %s370
        %p372 = pneg %p83
        %p373 = pneg %p80
        %p374 = pneg %p104
        %p375 = pneg %p101
        %s376 = smul.u32 2, %s26
        %p377 = scmp.lt.s32.totalorder %s376, 1
        %s378 = scalar_select %p377, %s376, 1
        %s379 = smul.addr %s378, 6
        %s380 = smul.addr %s379, 4
        %s381 = scalar_lea.vmem %s3, %s380
        %p382 = pneg %p130
        %p383 = pneg %p127
        %p384 = pneg %p151
        %p385 = pneg %p148
        %p386 = pneg %p172
        %p387 = pneg %p169
        %p388 = pneg %p198
        %p389 = pneg %p195
        %s390 = smul.u32 2, %s26
        %p391 = scmp.lt.s32.totalorder %s390, 1
        %s392 = scalar_select %p391, %s390, 1
        %s393 = smul.addr %s392, 6
        %s394 = smul.addr %s393, 4
        %s395 = scalar_lea.vmem %s6, %s394
        %s396 = smul.u32 2, %s26
        %s397 = smul.u32 4, %s27
        %s398 = smul.u32 64, %s27
        %s399 = smul.u32 2, %s26
        %p400 = scmp.lt.s32.totalorder %s399, 1
        %s401 = scalar_select %p400, %s399, 1
        %s402 = smul.addr %s401, 6
        %s403 = smul.addr %s402, 4
        %s404 = scalar_lea.vmem %s3, %s403
        %s405 = smul.u32 2, %s26
        %s406 = smul.u32 2, %s26
        %p407 = scmp.lt.s32.totalorder %s406, 1
        %s408 = scalar_select %p407, %s406, 1
        %s409 = smul.addr %s408, 6
        %s410 = smul.addr %s409, 4
        %s411 = scalar_lea.vmem %s6, %s410
        %s412 = smul.u32 2, %s26
        %p413 = scmp.eq.s32.totalorder %s27, 0
        // Predicated region
        $region84: #{bert_arch_forward.17} parent=62 // pred_check
          %p414 = pneg %p413
        $region85: #{bert_arch_forward.17} parent=62 // pred_check_branch
          %416 = sbr.rel (%p414) target = $region87
        $region86: #{bert_arch_forward.17} parent=62 // pred_region
          %417 = vst [vmem:[#allocation2] sm:$0xff] 0.0
          %418 = vst [vmem:[#allocation2 + $0x8] sm:$0xff] 0.0
          %419 = vst [vmem:[#allocation2 + $0x10] sm:$0xff] 0.0
          %420 = vst [vmem:[#allocation2 + $0x18] sm:$0xff] 0.0
          %421 = vst [vmem:[#allocation2 + $0x20] sm:$0xff] 0.0
          %422 = vst [vmem:[#allocation2 + $0x28] sm:$0xff] 0.0
          %423 = vst [vmem:[#allocation2 + $0x30] sm:$0xff] 0.0
          %424 = vst [vmem:[#allocation2 + $0x38] sm:$0xff] 0.0
          %425 = vst [vmem:[#allocation2 + $0x40] sm:$0xff] 0.0
          %426 = vst [vmem:[#allocation2 + $0x48] sm:$0xff] 0.0
          %427 = vst [vmem:[#allocation2 + $0x50] sm:$0xff] 0.0
          %428 = vst [vmem:[#allocation2 + $0x58] sm:$0xff] 0.0
        $region87: #{bert_arch_forward.17} parent=62 // pred_fallthru
          _
        %v429 = vld [vmem:[#allocation2] sm:$0xff]
        %v430 = vld [vmem:[#allocation2 + $0x8] sm:$0xff]
        %v431 = vld [vmem:[#allocation2 + $0x10] sm:$0xff]
        %v432 = vld [vmem:[#allocation2 + $0x18] sm:$0xff]
        %v433 = vld [vmem:[#allocation2 + $0x20] sm:$0xff]
        %v434 = vld [vmem:[#allocation2 + $0x28] sm:$0xff]
        %v435 = vld [vmem:[#allocation2 + $0x30] sm:$0xff]
        %v436 = vld [vmem:[#allocation2 + $0x38] sm:$0xff]
        %v437 = vld [vmem:[#allocation2 + $0x40] sm:$0xff]
        %v438 = vld [vmem:[#allocation2 + $0x48] sm:$0xff]
        %v439 = vld [vmem:[#allocation2 + $0x50] sm:$0xff]
        %v440 = vld [vmem:[#allocation2 + $0x58] sm:$0xff]
        %v441 = vld [vmem:[%s332] sm:$0xff]
        %v442 = vld [vmem:[%s332 + $0x8] sm:$0xff]
        %v443 = vld [vmem:[%s332 + $0x10] sm:$0xff]
        %v444 = vld [vmem:[%s332 + $0x18] sm:$0xff]
        %v445 = vld [vmem:[%s340] sm:$0xff]
        %v446 = vld [vmem:[%s340 + $0x8] sm:$0xff]
        %v447 = vld [vmem:[%s340 + $0x10] sm:$0xff]
        %v448 = vld [vmem:[%s340 + $0x18] sm:$0xff]
        %v449 = vld [vmem:[%s340 + $0x20] sm:$0xff]
        %v450 = vld [vmem:[%s340 + $0x28] sm:$0xff]
        %v451 = vld [vmem:[%s340 + $0x30] sm:$0xff]
        %v452 = vld [vmem:[%s340 + $0x38] sm:$0xff]
        %v453 = vld [vmem:[%s340 + $0x40] sm:$0xff]
        %v454 = vld [vmem:[%s340 + $0x48] sm:$0xff]
        %v455 = vld [vmem:[%s340 + $0x50] sm:$0xff]
        %v456 = vld [vmem:[%s340 + $0x58] sm:$0xff]
        %v457 = vld [vmem:[%s340 + $0x60] sm:$0xff]
        %v458 = vld [vmem:[%s340 + $0x68] sm:$0xff]
        %v459 = vld [vmem:[%s340 + $0x70] sm:$0xff]
        %v460 = vld [vmem:[%s340 + $0x78] sm:$0xff]
        %v461 = vld [vmem:[%s340 + $0x80] sm:$0xff]
        %v462 = vld [vmem:[%s340 + $0x88] sm:$0xff]
        %v463 = vld [vmem:[%s340 + $0x90] sm:$0xff]
        %v464 = vld [vmem:[%s340 + $0x98] sm:$0xff]
        %v465 = vld [vmem:[%s340 + $0xa0] sm:$0xff]
        %v466 = vld [vmem:[%s340 + $0xa8] sm:$0xff]
        %v467 = vld [vmem:[%s340 + $0xb0] sm:$0xff]
        %v468 = vld [vmem:[%s340 + $0xb8] sm:$0xff]
        %v469 = vld [vmem:[%s340 + $0xc0] sm:$0xff]
        %v470 = vld [vmem:[%s340 + $0xc8] sm:$0xff]
        %v471 = vld [vmem:[%s340 + $0xd0] sm:$0xff]
        %v472 = vld [vmem:[%s340 + $0xd8] sm:$0xff]
        %v473 = vld [vmem:[%s340 + $0xe0] sm:$0xff]
        %v474 = vld [vmem:[%s340 + $0xe8] sm:$0xff]
        %v475 = vld [vmem:[%s340 + $0xf0] sm:$0xff]
        %v476 = vld [vmem:[%s340 + $0xf8] sm:$0xff]
        %v477 = vld [vmem:[%s340 + $0x100] sm:$0xff]
        %v478 = vld [vmem:[%s340 + $0x108] sm:$0xff]
        %v479 = vld [vmem:[%s340 + $0x110] sm:$0xff]
        %v480 = vld [vmem:[%s340 + $0x118] sm:$0xff]
        %v481 = vld [vmem:[%s340 + $0x120] sm:$0xff]
        %v482 = vld [vmem:[%s340 + $0x128] sm:$0xff]
        %v483 = vld [vmem:[%s340 + $0x130] sm:$0xff]
        %v484 = vld [vmem:[%s340 + $0x138] sm:$0xff]
        %v485 = vld [vmem:[%s340 + $0x140] sm:$0xff]
        %v486 = vld [vmem:[%s340 + $0x148] sm:$0xff]
        %v487 = vld [vmem:[%s340 + $0x150] sm:$0xff]
        %v488 = vld [vmem:[%s340 + $0x158] sm:$0xff]
        %v489 = vld [vmem:[%s340 + $0x160] sm:$0xff]
        %v490 = vld [vmem:[%s340 + $0x168] sm:$0xff]
        %v491 = vld [vmem:[%s340 + $0x170] sm:$0xff]
        %v492 = vld [vmem:[%s340 + $0x178] sm:$0xff]
        %v493 = vld [vmem:[%s340 + $0x180] sm:$0xff]
        %v494 = vld [vmem:[%s340 + $0x188] sm:$0xff]
        %v495 = vld [vmem:[%s340 + $0x190] sm:$0xff]
        %v496 = vld [vmem:[%s340 + $0x198] sm:$0xff]
        %v497 = vld [vmem:[%s340 + $0x1a0] sm:$0xff]
        %v498 = vld [vmem:[%s340 + $0x1a8] sm:$0xff]
        %v499 = vld [vmem:[%s340 + $0x1b0] sm:$0xff]
        %v500 = vld [vmem:[%s340 + $0x1b8] sm:$0xff]
        %v501 = vld [vmem:[%s340 + $0x1c0] sm:$0xff]
        %v502 = vld [vmem:[%s340 + $0x1c8] sm:$0xff]
        %v503 = vld [vmem:[%s340 + $0x1d0] sm:$0xff]
        %v504 = vld [vmem:[%s340 + $0x1d8] sm:$0xff]
        %v505 = vld [vmem:[%s340 + $0x1e0] sm:$0xff]
        %v506 = vld [vmem:[%s340 + $0x1e8] sm:$0xff]
        %v507 = vld [vmem:[%s340 + $0x1f0] sm:$0xff]
        %v508 = vld [vmem:[%s340 + $0x1f8] sm:$0xff]
        %v509 = vld [vmem:[%s340 + $0x200] sm:$0xff]
        %v510 = vld [vmem:[%s340 + $0x208] sm:$0xff]
        %v511 = vld [vmem:[%s340 + $0x210] sm:$0xff]
        %v512 = vld [vmem:[%s340 + $0x218] sm:$0xff]
        %v513 = vld [vmem:[%s340 + $0x220] sm:$0xff]
        %v514 = vld [vmem:[%s340 + $0x228] sm:$0xff]
        %v515 = vld [vmem:[%s340 + $0x230] sm:$0xff]
        %v516 = vld [vmem:[%s340 + $0x238] sm:$0xff]
        %v517 = vld [vmem:[%s340 + $0x240] sm:$0xff]
        %v518 = vld [vmem:[%s340 + $0x248] sm:$0xff]
        %v519 = vld [vmem:[%s340 + $0x250] sm:$0xff]
        %v520 = vld [vmem:[%s340 + $0x258] sm:$0xff]
        %v521 = vld [vmem:[%s340 + $0x260] sm:$0xff]
        %v522 = vld [vmem:[%s340 + $0x268] sm:$0xff]
        %v523 = vld [vmem:[%s340 + $0x270] sm:$0xff]
        %v524 = vld [vmem:[%s340 + $0x278] sm:$0xff]
        %v525 = vld [vmem:[%s340 + $0x280] sm:$0xff]
        %v526 = vld [vmem:[%s340 + $0x288] sm:$0xff]
        %v527 = vld [vmem:[%s340 + $0x290] sm:$0xff]
        %v528 = vld [vmem:[%s340 + $0x298] sm:$0xff]
        %v529 = vld [vmem:[%s340 + $0x2a0] sm:$0xff]
        %v530 = vld [vmem:[%s340 + $0x2a8] sm:$0xff]
        %v531 = vld [vmem:[%s340 + $0x2b0] sm:$0xff]
        %v532 = vld [vmem:[%s340 + $0x2b8] sm:$0xff]
        %v533 = vld [vmem:[%s340 + $0x2c0] sm:$0xff]
        %v534 = vld [vmem:[%s340 + $0x2c8] sm:$0xff]
        %v535 = vld [vmem:[%s340 + $0x2d0] sm:$0xff]
        %v536 = vld [vmem:[%s340 + $0x2d8] sm:$0xff]
        %v537 = vld [vmem:[%s340 + $0x2e0] sm:$0xff]
        %v538 = vld [vmem:[%s340 + $0x2e8] sm:$0xff]
        %v539 = vld [vmem:[%s340 + $0x2f0] sm:$0xff]
        %v540 = vld [vmem:[%s340 + $0x2f8] sm:$0xff]
        %v541 = vld [vmem:[%s340 + $0x300] sm:$0xff]
        %v542 = vld [vmem:[%s340 + $0x308] sm:$0xff]
        %v543 = vld [vmem:[%s340 + $0x310] sm:$0xff]
        %v544 = vld [vmem:[%s340 + $0x318] sm:$0xff]
        %v545 = vld [vmem:[%s340 + $0x320] sm:$0xff]
        %v546 = vld [vmem:[%s340 + $0x328] sm:$0xff]
        %v547 = vld [vmem:[%s340 + $0x330] sm:$0xff]
        %v548 = vld [vmem:[%s340 + $0x338] sm:$0xff]
        %v549 = vld [vmem:[%s340 + $0x340] sm:$0xff]
        %v550 = vld [vmem:[%s340 + $0x348] sm:$0xff]
        %v551 = vld [vmem:[%s340 + $0x350] sm:$0xff]
        %v552 = vld [vmem:[%s340 + $0x358] sm:$0xff]
        %v553 = vld [vmem:[%s340 + $0x360] sm:$0xff]
        %v554 = vld [vmem:[%s340 + $0x368] sm:$0xff]
        %v555 = vld [vmem:[%s340 + $0x370] sm:$0xff]
        %v556 = vld [vmem:[%s340 + $0x378] sm:$0xff]
        %v557 = vld [vmem:[%s340 + $0x380] sm:$0xff]
        %v558 = vld [vmem:[%s340 + $0x388] sm:$0xff]
        %v559 = vld [vmem:[%s340 + $0x390] sm:$0xff]
        %v560 = vld [vmem:[%s340 + $0x398] sm:$0xff]
        %v561 = vld [vmem:[%s340 + $0x3a0] sm:$0xff]
        %v562 = vld [vmem:[%s340 + $0x3a8] sm:$0xff]
        %v563 = vld [vmem:[%s340 + $0x3b0] sm:$0xff]
        %v564 = vld [vmem:[%s340 + $0x3b8] sm:$0xff]
        %v565 = vld [vmem:[%s340 + $0x3c0] sm:$0xff]
        %v566 = vld [vmem:[%s340 + $0x3c8] sm:$0xff]
        %v567 = vld [vmem:[%s340 + $0x3d0] sm:$0xff]
        %v568 = vld [vmem:[%s340 + $0x3d8] sm:$0xff]
        %v569 = vld [vmem:[%s340 + $0x3e0] sm:$0xff]
        %v570 = vld [vmem:[%s340 + $0x3e8] sm:$0xff]
        %v571 = vld [vmem:[%s340 + $0x3f0] sm:$0xff]
        %v572 = vld [vmem:[%s340 + $0x3f8] sm:$0xff]
        %v573 = vld [vmem:[%s340 + $0x400] sm:$0xff]
        %v574 = vld [vmem:[%s340 + $0x408] sm:$0xff]
        %v575 = vld [vmem:[%s340 + $0x410] sm:$0xff]
        %v576 = vld [vmem:[%s340 + $0x418] sm:$0xff]
        %v577 = vld [vmem:[%s340 + $0x420] sm:$0xff]
        %v578 = vld [vmem:[%s340 + $0x428] sm:$0xff]
        %v579 = vld [vmem:[%s340 + $0x430] sm:$0xff]
        %v580 = vld [vmem:[%s340 + $0x438] sm:$0xff]
        %v581 = vld [vmem:[%s340 + $0x440] sm:$0xff]
        %v582 = vld [vmem:[%s340 + $0x448] sm:$0xff]
        %v583 = vld [vmem:[%s340 + $0x450] sm:$0xff]
        %v584 = vld [vmem:[%s340 + $0x458] sm:$0xff]
        %v585 = vld [vmem:[%s340 + $0x460] sm:$0xff]
        %v586 = vld [vmem:[%s340 + $0x468] sm:$0xff]
        %v587 = vld [vmem:[%s340 + $0x470] sm:$0xff]
        %v588 = vld [vmem:[%s340 + $0x478] sm:$0xff]
        %v589 = vld [vmem:[%s340 + $0x480] sm:$0xff]
        %v590 = vld [vmem:[%s340 + $0x488] sm:$0xff]
        %v591 = vld [vmem:[%s340 + $0x490] sm:$0xff]
        %v592 = vld [vmem:[%s340 + $0x498] sm:$0xff]
        %v593 = vld [vmem:[%s340 + $0x4a0] sm:$0xff]
        %v594 = vld [vmem:[%s340 + $0x4a8] sm:$0xff]
        %v595 = vld [vmem:[%s340 + $0x4b0] sm:$0xff]
        %v596 = vld [vmem:[%s340 + $0x4b8] sm:$0xff]
        %v597 = vld [vmem:[%s340 + $0x4c0] sm:$0xff]
        %v598 = vld [vmem:[%s340 + $0x4c8] sm:$0xff]
        %v599 = vld [vmem:[%s340 + $0x4d0] sm:$0xff]
        %v600 = vld [vmem:[%s340 + $0x4d8] sm:$0xff]
        %v601 = vld [vmem:[%s340 + $0x4e0] sm:$0xff]
        %v602 = vld [vmem:[%s340 + $0x4e8] sm:$0xff]
        %v603 = vld [vmem:[%s340 + $0x4f0] sm:$0xff]
        %v604 = vld [vmem:[%s340 + $0x4f8] sm:$0xff]
        %v605 = vld [vmem:[%s340 + $0x500] sm:$0xff]
        %v606 = vld [vmem:[%s340 + $0x508] sm:$0xff]
        %v607 = vld [vmem:[%s340 + $0x510] sm:$0xff]
        %v608 = vld [vmem:[%s340 + $0x518] sm:$0xff]
        %v609 = vld [vmem:[%s340 + $0x520] sm:$0xff]
        %v610 = vld [vmem:[%s340 + $0x528] sm:$0xff]
        %v611 = vld [vmem:[%s340 + $0x530] sm:$0xff]
        %v612 = vld [vmem:[%s340 + $0x538] sm:$0xff]
        %v613 = vld [vmem:[%s340 + $0x540] sm:$0xff]
        %v614 = vld [vmem:[%s340 + $0x548] sm:$0xff]
        %v615 = vld [vmem:[%s340 + $0x550] sm:$0xff]
        %v616 = vld [vmem:[%s340 + $0x558] sm:$0xff]
        %v617 = vld [vmem:[%s340 + $0x560] sm:$0xff]
        %v618 = vld [vmem:[%s340 + $0x568] sm:$0xff]
        %v619 = vld [vmem:[%s340 + $0x570] sm:$0xff]
        %v620 = vld [vmem:[%s340 + $0x578] sm:$0xff]
        %v621 = vld [vmem:[%s340 + $0x580] sm:$0xff]
        %v622 = vld [vmem:[%s340 + $0x588] sm:$0xff]
        %v623 = vld [vmem:[%s340 + $0x590] sm:$0xff]
        %v624 = vld [vmem:[%s340 + $0x598] sm:$0xff]
        %v625 = vld [vmem:[%s340 + $0x5a0] sm:$0xff]
        %v626 = vld [vmem:[%s340 + $0x5a8] sm:$0xff]
        %v627 = vld [vmem:[%s340 + $0x5b0] sm:$0xff]
        %v628 = vld [vmem:[%s340 + $0x5b8] sm:$0xff]
        %v629 = vld [vmem:[%s340 + $0x5c0] sm:$0xff]
        %v630 = vld [vmem:[%s340 + $0x5c8] sm:$0xff]
        %v631 = vld [vmem:[%s340 + $0x5d0] sm:$0xff]
        %v632 = vld [vmem:[%s340 + $0x5d8] sm:$0xff]
        %v633 = vld [vmem:[%s340 + $0x5e0] sm:$0xff]
        %v634 = vld [vmem:[%s340 + $0x5e8] sm:$0xff]
        %v635 = vld [vmem:[%s340 + $0x5f0] sm:$0xff]
        %v636 = vld [vmem:[%s340 + $0x5f8] sm:$0xff]
        %v641 = vunpack.c.l.b16 %v441
        %v642 = vunpack.c.h.b16 %v441
        %v643 = vunpack.c.l.b16 %v442
        %v644 = vunpack.c.h.b16 %v442
        %v645 = vunpack.c.l.b16 %v443
        %v646 = vunpack.c.h.b16 %v443
        %v647 = vunpack.c.l.b16 %v444
        %v648 = vunpack.c.h.b16 %v444
        %v649 = vpack.c.b16 %v645, %v641
        %v650 = vpack.c.b16 %v646, %v642
        %v651 = vpack.c.b16 %v647, %v643
        %v652 = vpack.c.b16 %v648, %v644
        %v849 = vunpack.c.l.b16 %v445
        %v850 = vunpack.c.h.b16 %v445
        %v851 = vunpack.c.l.b16 %v446
        %v852 = vunpack.c.h.b16 %v446
        %v853 = vunpack.c.l.b16 %v447
        %v854 = vunpack.c.h.b16 %v447
        %v855 = vunpack.c.l.b16 %v448
        %v856 = vunpack.c.h.b16 %v448
        %v857 = vunpack.c.l.b16 %v449
        %v858 = vunpack.c.h.b16 %v449
        %v859 = vunpack.c.l.b16 %v450
        %v860 = vunpack.c.h.b16 %v450
        %v861 = vunpack.c.l.b16 %v451
        %v862 = vunpack.c.h.b16 %v451
        %v863 = vunpack.c.l.b16 %v452
        %v864 = vunpack.c.h.b16 %v452
        %v865 = vunpack.c.l.b16 %v453
        %v866 = vunpack.c.h.b16 %v453
        %v867 = vunpack.c.l.b16 %v454
        %v868 = vunpack.c.h.b16 %v454
        %v869 = vunpack.c.l.b16 %v455
        %v870 = vunpack.c.h.b16 %v455
        %v871 = vunpack.c.l.b16 %v456
        %v872 = vunpack.c.h.b16 %v456
        %v873 = vunpack.c.l.b16 %v457
        %v874 = vunpack.c.h.b16 %v457
        %v875 = vunpack.c.l.b16 %v458
        %v876 = vunpack.c.h.b16 %v458
        %v877 = vunpack.c.l.b16 %v459
        %v878 = vunpack.c.h.b16 %v459
        %v879 = vunpack.c.l.b16 %v460
        %v880 = vunpack.c.h.b16 %v460
        %v881 = vunpack.c.l.b16 %v461
        %v882 = vunpack.c.h.b16 %v461
        %v883 = vunpack.c.l.b16 %v462
        %v884 = vunpack.c.h.b16 %v462
        %v885 = vunpack.c.l.b16 %v463
        %v886 = vunpack.c.h.b16 %v463
        %v887 = vunpack.c.l.b16 %v464
        %v888 = vunpack.c.h.b16 %v464
        %v889 = vunpack.c.l.b16 %v465
        %v890 = vunpack.c.h.b16 %v465
        %v891 = vunpack.c.l.b16 %v466
        %v892 = vunpack.c.h.b16 %v466
        %v893 = vunpack.c.l.b16 %v467
        %v894 = vunpack.c.h.b16 %v467
        %v895 = vunpack.c.l.b16 %v468
        %v896 = vunpack.c.h.b16 %v468
        %v897 = vunpack.c.l.b16 %v469
        %v898 = vunpack.c.h.b16 %v469
        %v899 = vunpack.c.l.b16 %v470
        %v900 = vunpack.c.h.b16 %v470
        %v901 = vunpack.c.l.b16 %v471
        %v902 = vunpack.c.h.b16 %v471
        %v903 = vunpack.c.l.b16 %v472
        %v904 = vunpack.c.h.b16 %v472
        %v905 = vunpack.c.l.b16 %v473
        %v906 = vunpack.c.h.b16 %v473
        %v907 = vunpack.c.l.b16 %v474
        %v908 = vunpack.c.h.b16 %v474
        %v909 = vunpack.c.l.b16 %v475
        %v910 = vunpack.c.h.b16 %v475
        %v911 = vunpack.c.l.b16 %v476
        %v912 = vunpack.c.h.b16 %v476
        %v913 = vunpack.c.l.b16 %v477
        %v914 = vunpack.c.h.b16 %v477
        %v915 = vunpack.c.l.b16 %v478
        %v916 = vunpack.c.h.b16 %v478
        %v917 = vunpack.c.l.b16 %v479
        %v918 = vunpack.c.h.b16 %v479
        %v919 = vunpack.c.l.b16 %v480
        %v920 = vunpack.c.h.b16 %v480
        %v921 = vunpack.c.l.b16 %v481
        %v922 = vunpack.c.h.b16 %v481
        %v923 = vunpack.c.l.b16 %v482
        %v924 = vunpack.c.h.b16 %v482
        %v925 = vunpack.c.l.b16 %v483
        %v926 = vunpack.c.h.b16 %v483
        %v927 = vunpack.c.l.b16 %v484
        %v928 = vunpack.c.h.b16 %v484
        %v929 = vunpack.c.l.b16 %v485
        %v930 = vunpack.c.h.b16 %v485
        %v931 = vunpack.c.l.b16 %v486
        %v932 = vunpack.c.h.b16 %v486
        %v933 = vunpack.c.l.b16 %v487
        %v934 = vunpack.c.h.b16 %v487
        %v935 = vunpack.c.l.b16 %v488
        %v936 = vunpack.c.h.b16 %v488
        %v937 = vunpack.c.l.b16 %v489
        %v938 = vunpack.c.h.b16 %v489
        %v939 = vunpack.c.l.b16 %v490
        %v940 = vunpack.c.h.b16 %v490
        %v941 = vunpack.c.l.b16 %v491
        %v942 = vunpack.c.h.b16 %v491
        %v943 = vunpack.c.l.b16 %v492
        %v944 = vunpack.c.h.b16 %v492
        %v945 = vunpack.c.l.b16 %v493
        %v946 = vunpack.c.h.b16 %v493
        %v947 = vunpack.c.l.b16 %v494
        %v948 = vunpack.c.h.b16 %v494
        %v949 = vunpack.c.l.b16 %v495
        %v950 = vunpack.c.h.b16 %v495
        %v951 = vunpack.c.l.b16 %v496
        %v952 = vunpack.c.h.b16 %v496
        %v953 = vunpack.c.l.b16 %v497
        %v954 = vunpack.c.h.b16 %v497
        %v955 = vunpack.c.l.b16 %v498
        %v956 = vunpack.c.h.b16 %v498
        %v957 = vunpack.c.l.b16 %v499
        %v958 = vunpack.c.h.b16 %v499
        %v959 = vunpack.c.l.b16 %v500
        %v960 = vunpack.c.h.b16 %v500
        %v961 = vunpack.c.l.b16 %v501
        %v962 = vunpack.c.h.b16 %v501
        %v963 = vunpack.c.l.b16 %v502
        %v964 = vunpack.c.h.b16 %v502
        %v965 = vunpack.c.l.b16 %v503
        %v966 = vunpack.c.h.b16 %v503
        %v967 = vunpack.c.l.b16 %v504
        %v968 = vunpack.c.h.b16 %v504
        %v969 = vunpack.c.l.b16 %v505
        %v970 = vunpack.c.h.b16 %v505
        %v971 = vunpack.c.l.b16 %v506
        %v972 = vunpack.c.h.b16 %v506
        %v973 = vunpack.c.l.b16 %v507
        %v974 = vunpack.c.h.b16 %v507
        %v975 = vunpack.c.l.b16 %v508
        %v976 = vunpack.c.h.b16 %v508
        %v977 = vunpack.c.l.b16 %v509
        %v978 = vunpack.c.h.b16 %v509
        %v979 = vunpack.c.l.b16 %v510
        %v980 = vunpack.c.h.b16 %v510
        %v981 = vunpack.c.l.b16 %v511
        %v982 = vunpack.c.h.b16 %v511
        %v983 = vunpack.c.l.b16 %v512
        %v984 = vunpack.c.h.b16 %v512
        %v985 = vunpack.c.l.b16 %v513
        %v986 = vunpack.c.h.b16 %v513
        %v987 = vunpack.c.l.b16 %v514
        %v988 = vunpack.c.h.b16 %v514
        %v989 = vunpack.c.l.b16 %v515
        %v990 = vunpack.c.h.b16 %v515
        %v991 = vunpack.c.l.b16 %v516
        %v992 = vunpack.c.h.b16 %v516
        %v993 = vunpack.c.l.b16 %v517
        %v994 = vunpack.c.h.b16 %v517
        %v995 = vunpack.c.l.b16 %v518
        %v996 = vunpack.c.h.b16 %v518
        %v997 = vunpack.c.l.b16 %v519
        %v998 = vunpack.c.h.b16 %v519
        %v999 = vunpack.c.l.b16 %v520
        %v1000 = vunpack.c.h.b16 %v520
        %v1001 = vunpack.c.l.b16 %v521
        %v1002 = vunpack.c.h.b16 %v521
        %v1003 = vunpack.c.l.b16 %v522
        %v1004 = vunpack.c.h.b16 %v522
        %v1005 = vunpack.c.l.b16 %v523
        %v1006 = vunpack.c.h.b16 %v523
        %v1007 = vunpack.c.l.b16 %v524
        %v1008 = vunpack.c.h.b16 %v524
        %v1009 = vunpack.c.l.b16 %v525
        %v1010 = vunpack.c.h.b16 %v525
        %v1011 = vunpack.c.l.b16 %v526
        %v1012 = vunpack.c.h.b16 %v526
        %v1013 = vunpack.c.l.b16 %v527
        %v1014 = vunpack.c.h.b16 %v527
        %v1015 = vunpack.c.l.b16 %v528
        %v1016 = vunpack.c.h.b16 %v528
        %v1017 = vunpack.c.l.b16 %v529
        %v1018 = vunpack.c.h.b16 %v529
        %v1019 = vunpack.c.l.b16 %v530
        %v1020 = vunpack.c.h.b16 %v530
        %v1021 = vunpack.c.l.b16 %v531
        %v1022 = vunpack.c.h.b16 %v531
        %v1023 = vunpack.c.l.b16 %v532
        %v1024 = vunpack.c.h.b16 %v532
        %v1025 = vunpack.c.l.b16 %v533
        %v1026 = vunpack.c.h.b16 %v533
        %v1027 = vunpack.c.l.b16 %v534
        %v1028 = vunpack.c.h.b16 %v534
        %v1029 = vunpack.c.l.b16 %v535
        %v1030 = vunpack.c.h.b16 %v535
        %v1031 = vunpack.c.l.b16 %v536
        %v1032 = vunpack.c.h.b16 %v536
        %v1033 = vunpack.c.l.b16 %v537
        %v1034 = vunpack.c.h.b16 %v537
        %v1035 = vunpack.c.l.b16 %v538
        %v1036 = vunpack.c.h.b16 %v538
        %v1037 = vunpack.c.l.b16 %v539
        %v1038 = vunpack.c.h.b16 %v539
        %v1039 = vunpack.c.l.b16 %v540
        %v1040 = vunpack.c.h.b16 %v540
        %v1041 = vunpack.c.l.b16 %v541
        %v1042 = vunpack.c.h.b16 %v541
        %v1043 = vunpack.c.l.b16 %v542
        %v1044 = vunpack.c.h.b16 %v542
        %v1045 = vunpack.c.l.b16 %v543
        %v1046 = vunpack.c.h.b16 %v543
        %v1047 = vunpack.c.l.b16 %v544
        %v1048 = vunpack.c.h.b16 %v544
        %v1049 = vunpack.c.l.b16 %v545
        %v1050 = vunpack.c.h.b16 %v545
        %v1051 = vunpack.c.l.b16 %v546
        %v1052 = vunpack.c.h.b16 %v546
        %v1053 = vunpack.c.l.b16 %v547
        %v1054 = vunpack.c.h.b16 %v547
        %v1055 = vunpack.c.l.b16 %v548
        %v1056 = vunpack.c.h.b16 %v548
        %v1057 = vunpack.c.l.b16 %v549
        %v1058 = vunpack.c.h.b16 %v549
        %v1059 = vunpack.c.l.b16 %v550
        %v1060 = vunpack.c.h.b16 %v550
        %v1061 = vunpack.c.l.b16 %v551
        %v1062 = vunpack.c.h.b16 %v551
        %v1063 = vunpack.c.l.b16 %v552
        %v1064 = vunpack.c.h.b16 %v552
        %v1065 = vunpack.c.l.b16 %v553
        %v1066 = vunpack.c.h.b16 %v553
        %v1067 = vunpack.c.l.b16 %v554
        %v1068 = vunpack.c.h.b16 %v554
        %v1069 = vunpack.c.l.b16 %v555
        %v1070 = vunpack.c.h.b16 %v555
        %v1071 = vunpack.c.l.b16 %v556
        %v1072 = vunpack.c.h.b16 %v556
        %v1073 = vunpack.c.l.b16 %v557
        %v1074 = vunpack.c.h.b16 %v557
        %v1075 = vunpack.c.l.b16 %v558
        %v1076 = vunpack.c.h.b16 %v558
        %v1077 = vunpack.c.l.b16 %v559
        %v1078 = vunpack.c.h.b16 %v559
        %v1079 = vunpack.c.l.b16 %v560
        %v1080 = vunpack.c.h.b16 %v560
        %v1081 = vunpack.c.l.b16 %v561
        %v1082 = vunpack.c.h.b16 %v561
        %v1083 = vunpack.c.l.b16 %v562
        %v1084 = vunpack.c.h.b16 %v562
        %v1085 = vunpack.c.l.b16 %v563
        %v1086 = vunpack.c.h.b16 %v563
        %v1087 = vunpack.c.l.b16 %v564
        %v1088 = vunpack.c.h.b16 %v564
        %v1089 = vunpack.c.l.b16 %v565
        %v1090 = vunpack.c.h.b16 %v565
        %v1091 = vunpack.c.l.b16 %v566
        %v1092 = vunpack.c.h.b16 %v566
        %v1093 = vunpack.c.l.b16 %v567
        %v1094 = vunpack.c.h.b16 %v567
        %v1095 = vunpack.c.l.b16 %v568
        %v1096 = vunpack.c.h.b16 %v568
        %v1097 = vunpack.c.l.b16 %v569
        %v1098 = vunpack.c.h.b16 %v569
        %v1099 = vunpack.c.l.b16 %v570
        %v1100 = vunpack.c.h.b16 %v570
        %v1101 = vunpack.c.l.b16 %v571
        %v1102 = vunpack.c.h.b16 %v571
        %v1103 = vunpack.c.l.b16 %v572
        %v1104 = vunpack.c.h.b16 %v572
        %v1105 = vunpack.c.l.b16 %v573
        %v1106 = vunpack.c.h.b16 %v573
        %v1107 = vunpack.c.l.b16 %v574
        %v1108 = vunpack.c.h.b16 %v574
        %v1109 = vunpack.c.l.b16 %v575
        %v1110 = vunpack.c.h.b16 %v575
        %v1111 = vunpack.c.l.b16 %v576
        %v1112 = vunpack.c.h.b16 %v576
        %v1113 = vunpack.c.l.b16 %v577
        %v1114 = vunpack.c.h.b16 %v577
        %v1115 = vunpack.c.l.b16 %v578
        %v1116 = vunpack.c.h.b16 %v578
        %v1117 = vunpack.c.l.b16 %v579
        %v1118 = vunpack.c.h.b16 %v579
        %v1119 = vunpack.c.l.b16 %v580
        %v1120 = vunpack.c.h.b16 %v580
        %v1121 = vunpack.c.l.b16 %v581
        %v1122 = vunpack.c.h.b16 %v581
        %v1123 = vunpack.c.l.b16 %v582
        %v1124 = vunpack.c.h.b16 %v582
        %v1125 = vunpack.c.l.b16 %v583
        %v1126 = vunpack.c.h.b16 %v583
        %v1127 = vunpack.c.l.b16 %v584
        %v1128 = vunpack.c.h.b16 %v584
        %v1129 = vunpack.c.l.b16 %v585
        %v1130 = vunpack.c.h.b16 %v585
        %v1131 = vunpack.c.l.b16 %v586
        %v1132 = vunpack.c.h.b16 %v586
        %v1133 = vunpack.c.l.b16 %v587
        %v1134 = vunpack.c.h.b16 %v587
        %v1135 = vunpack.c.l.b16 %v588
        %v1136 = vunpack.c.h.b16 %v588
        %v1137 = vunpack.c.l.b16 %v589
        %v1138 = vunpack.c.h.b16 %v589
        %v1139 = vunpack.c.l.b16 %v590
        %v1140 = vunpack.c.h.b16 %v590
        %v1141 = vunpack.c.l.b16 %v591
        %v1142 = vunpack.c.h.b16 %v591
        %v1143 = vunpack.c.l.b16 %v592
        %v1144 = vunpack.c.h.b16 %v592
        %v1145 = vunpack.c.l.b16 %v593
        %v1146 = vunpack.c.h.b16 %v593
        %v1147 = vunpack.c.l.b16 %v594
        %v1148 = vunpack.c.h.b16 %v594
        %v1149 = vunpack.c.l.b16 %v595
        %v1150 = vunpack.c.h.b16 %v595
        %v1151 = vunpack.c.l.b16 %v596
        %v1152 = vunpack.c.h.b16 %v596
        %v1153 = vunpack.c.l.b16 %v597
        %v1154 = vunpack.c.h.b16 %v597
        %v1155 = vunpack.c.l.b16 %v598
        %v1156 = vunpack.c.h.b16 %v598
        %v1157 = vunpack.c.l.b16 %v599
        %v1158 = vunpack.c.h.b16 %v599
        %v1159 = vunpack.c.l.b16 %v600
        %v1160 = vunpack.c.h.b16 %v600
        %v1161 = vunpack.c.l.b16 %v601
        %v1162 = vunpack.c.h.b16 %v601
        %v1163 = vunpack.c.l.b16 %v602
        %v1164 = vunpack.c.h.b16 %v602
        %v1165 = vunpack.c.l.b16 %v603
        %v1166 = vunpack.c.h.b16 %v603
        %v1167 = vunpack.c.l.b16 %v604
        %v1168 = vunpack.c.h.b16 %v604
        %v1169 = vunpack.c.l.b16 %v605
        %v1170 = vunpack.c.h.b16 %v605
        %v1171 = vunpack.c.l.b16 %v606
        %v1172 = vunpack.c.h.b16 %v606
        %v1173 = vunpack.c.l.b16 %v607
        %v1174 = vunpack.c.h.b16 %v607
        %v1175 = vunpack.c.l.b16 %v608
        %v1176 = vunpack.c.h.b16 %v608
        %v1177 = vunpack.c.l.b16 %v609
        %v1178 = vunpack.c.h.b16 %v609
        %v1179 = vunpack.c.l.b16 %v610
        %v1180 = vunpack.c.h.b16 %v610
        %v1181 = vunpack.c.l.b16 %v611
        %v1182 = vunpack.c.h.b16 %v611
        %v1183 = vunpack.c.l.b16 %v612
        %v1184 = vunpack.c.h.b16 %v612
        %v1185 = vunpack.c.l.b16 %v613
        %v1186 = vunpack.c.h.b16 %v613
        %v1187 = vunpack.c.l.b16 %v614
        %v1188 = vunpack.c.h.b16 %v614
        %v1189 = vunpack.c.l.b16 %v615
        %v1190 = vunpack.c.h.b16 %v615
        %v1191 = vunpack.c.l.b16 %v616
        %v1192 = vunpack.c.h.b16 %v616
        %v1193 = vunpack.c.l.b16 %v617
        %v1194 = vunpack.c.h.b16 %v617
        %v1195 = vunpack.c.l.b16 %v618
        %v1196 = vunpack.c.h.b16 %v618
        %v1197 = vunpack.c.l.b16 %v619
        %v1198 = vunpack.c.h.b16 %v619
        %v1199 = vunpack.c.l.b16 %v620
        %v1200 = vunpack.c.h.b16 %v620
        %v1201 = vunpack.c.l.b16 %v621
        %v1202 = vunpack.c.h.b16 %v621
        %v1203 = vunpack.c.l.b16 %v622
        %v1204 = vunpack.c.h.b16 %v622
        %v1205 = vunpack.c.l.b16 %v623
        %v1206 = vunpack.c.h.b16 %v623
        %v1207 = vunpack.c.l.b16 %v624
        %v1208 = vunpack.c.h.b16 %v624
        %v1209 = vunpack.c.l.b16 %v625
        %v1210 = vunpack.c.h.b16 %v625
        %v1211 = vunpack.c.l.b16 %v626
        %v1212 = vunpack.c.h.b16 %v626
        %v1213 = vunpack.c.l.b16 %v627
        %v1214 = vunpack.c.h.b16 %v627
        %v1215 = vunpack.c.l.b16 %v628
        %v1216 = vunpack.c.h.b16 %v628
        %v1217 = vunpack.c.l.b16 %v629
        %v1218 = vunpack.c.h.b16 %v629
        %v1219 = vunpack.c.l.b16 %v630
        %v1220 = vunpack.c.h.b16 %v630
        %v1221 = vunpack.c.l.b16 %v631
        %v1222 = vunpack.c.h.b16 %v631
        %v1223 = vunpack.c.l.b16 %v632
        %v1224 = vunpack.c.h.b16 %v632
        %v1225 = vunpack.c.l.b16 %v633
        %v1226 = vunpack.c.h.b16 %v633
        %v1227 = vunpack.c.l.b16 %v634
        %v1228 = vunpack.c.h.b16 %v634
        %v1229 = vunpack.c.l.b16 %v635
        %v1230 = vunpack.c.h.b16 %v635
        %v1231 = vunpack.c.l.b16 %v636
        %v1232 = vunpack.c.h.b16 %v636
        %v1233 = vpack.c.b16 %v855, %v849
        %v1234 = vpack.c.b16 %v856, %v850
        %v1235 = vpack.c.b16 %v857, %v851
        %v1236 = vpack.c.b16 %v858, %v852
        %v1237 = vpack.c.b16 %v859, %v853
        %v1238 = vpack.c.b16 %v860, %v854
        %v1239 = vpack.c.b16 %v867, %v861
        %v1240 = vpack.c.b16 %v868, %v862
        %v1241 = vpack.c.b16 %v869, %v863
        %v1242 = vpack.c.b16 %v870, %v864
        %v1243 = vpack.c.b16 %v871, %v865
        %v1244 = vpack.c.b16 %v872, %v866
        %v1245 = vpack.c.b16 %v879, %v873
        %v1246 = vpack.c.b16 %v880, %v874
        %v1247 = vpack.c.b16 %v881, %v875
        %v1248 = vpack.c.b16 %v882, %v876
        %v1249 = vpack.c.b16 %v883, %v877
        %v1250 = vpack.c.b16 %v884, %v878
        %v1251 = vpack.c.b16 %v891, %v885
        %v1252 = vpack.c.b16 %v892, %v886
        %v1253 = vpack.c.b16 %v893, %v887
        %v1254 = vpack.c.b16 %v894, %v888
        %v1255 = vpack.c.b16 %v895, %v889
        %v1256 = vpack.c.b16 %v896, %v890
        %v1257 = vpack.c.b16 %v903, %v897
        %v1258 = vpack.c.b16 %v904, %v898
        %v1259 = vpack.c.b16 %v905, %v899
        %v1260 = vpack.c.b16 %v906, %v900
        %v1261 = vpack.c.b16 %v907, %v901
        %v1262 = vpack.c.b16 %v908, %v902
        %v1263 = vpack.c.b16 %v915, %v909
        %v1264 = vpack.c.b16 %v916, %v910
        %v1265 = vpack.c.b16 %v917, %v911
        %v1266 = vpack.c.b16 %v918, %v912
        %v1267 = vpack.c.b16 %v919, %v913
        %v1268 = vpack.c.b16 %v920, %v914
        %v1269 = vpack.c.b16 %v927, %v921
        %v1270 = vpack.c.b16 %v928, %v922
        %v1271 = vpack.c.b16 %v929, %v923
        %v1272 = vpack.c.b16 %v930, %v924
        %v1273 = vpack.c.b16 %v931, %v925
        %v1274 = vpack.c.b16 %v932, %v926
        %v1275 = vpack.c.b16 %v939, %v933
        %v1276 = vpack.c.b16 %v940, %v934
        %v1277 = vpack.c.b16 %v941, %v935
        %v1278 = vpack.c.b16 %v942, %v936
        %v1279 = vpack.c.b16 %v943, %v937
        %v1280 = vpack.c.b16 %v944, %v938
        %v1281 = vpack.c.b16 %v951, %v945
        %v1282 = vpack.c.b16 %v952, %v946
        %v1283 = vpack.c.b16 %v953, %v947
        %v1284 = vpack.c.b16 %v954, %v948
        %v1285 = vpack.c.b16 %v955, %v949
        %v1286 = vpack.c.b16 %v956, %v950
        %v1287 = vpack.c.b16 %v963, %v957
        %v1288 = vpack.c.b16 %v964, %v958
        %v1289 = vpack.c.b16 %v965, %v959
        %v1290 = vpack.c.b16 %v966, %v960
        %v1291 = vpack.c.b16 %v967, %v961
        %v1292 = vpack.c.b16 %v968, %v962
        %v1293 = vpack.c.b16 %v975, %v969
        %v1294 = vpack.c.b16 %v976, %v970
        %v1295 = vpack.c.b16 %v977, %v971
        %v1296 = vpack.c.b16 %v978, %v972
        %v1297 = vpack.c.b16 %v979, %v973
        %v1298 = vpack.c.b16 %v980, %v974
        %v1299 = vpack.c.b16 %v987, %v981
        %v1300 = vpack.c.b16 %v988, %v982
        %v1301 = vpack.c.b16 %v989, %v983
        %v1302 = vpack.c.b16 %v990, %v984
        %v1303 = vpack.c.b16 %v991, %v985
        %v1304 = vpack.c.b16 %v992, %v986
        %v1305 = vpack.c.b16 %v999, %v993
        %v1306 = vpack.c.b16 %v1000, %v994
        %v1307 = vpack.c.b16 %v1001, %v995
        %v1308 = vpack.c.b16 %v1002, %v996
        %v1309 = vpack.c.b16 %v1003, %v997
        %v1310 = vpack.c.b16 %v1004, %v998
        %v1311 = vpack.c.b16 %v1011, %v1005
        %v1312 = vpack.c.b16 %v1012, %v1006
        %v1313 = vpack.c.b16 %v1013, %v1007
        %v1314 = vpack.c.b16 %v1014, %v1008
        %v1315 = vpack.c.b16 %v1015, %v1009
        %v1316 = vpack.c.b16 %v1016, %v1010
        %v1317 = vpack.c.b16 %v1023, %v1017
        %v1318 = vpack.c.b16 %v1024, %v1018
        %v1319 = vpack.c.b16 %v1025, %v1019
        %v1320 = vpack.c.b16 %v1026, %v1020
        %v1321 = vpack.c.b16 %v1027, %v1021
        %v1322 = vpack.c.b16 %v1028, %v1022
        %v1323 = vpack.c.b16 %v1035, %v1029
        %v1324 = vpack.c.b16 %v1036, %v1030
        %v1325 = vpack.c.b16 %v1037, %v1031
        %v1326 = vpack.c.b16 %v1038, %v1032
        %v1327 = vpack.c.b16 %v1039, %v1033
        %v1328 = vpack.c.b16 %v1040, %v1034
        %v1329 = vpack.c.b16 %v1047, %v1041
        %v1330 = vpack.c.b16 %v1048, %v1042
        %v1331 = vpack.c.b16 %v1049, %v1043
        %v1332 = vpack.c.b16 %v1050, %v1044
        %v1333 = vpack.c.b16 %v1051, %v1045
        %v1334 = vpack.c.b16 %v1052, %v1046
        %v1335 = vpack.c.b16 %v1059, %v1053
        %v1336 = vpack.c.b16 %v1060, %v1054
        %v1337 = vpack.c.b16 %v1061, %v1055
        %v1338 = vpack.c.b16 %v1062, %v1056
        %v1339 = vpack.c.b16 %v1063, %v1057
        %v1340 = vpack.c.b16 %v1064, %v1058
        %v1341 = vpack.c.b16 %v1071, %v1065
        %v1342 = vpack.c.b16 %v1072, %v1066
        %v1343 = vpack.c.b16 %v1073, %v1067
        %v1344 = vpack.c.b16 %v1074, %v1068
        %v1345 = vpack.c.b16 %v1075, %v1069
        %v1346 = vpack.c.b16 %v1076, %v1070
        %v1347 = vpack.c.b16 %v1083, %v1077
        %v1348 = vpack.c.b16 %v1084, %v1078
        %v1349 = vpack.c.b16 %v1085, %v1079
        %v1350 = vpack.c.b16 %v1086, %v1080
        %v1351 = vpack.c.b16 %v1087, %v1081
        %v1352 = vpack.c.b16 %v1088, %v1082
        %v1353 = vpack.c.b16 %v1095, %v1089
        %v1354 = vpack.c.b16 %v1096, %v1090
        %v1355 = vpack.c.b16 %v1097, %v1091
        %v1356 = vpack.c.b16 %v1098, %v1092
        %v1357 = vpack.c.b16 %v1099, %v1093
        %v1358 = vpack.c.b16 %v1100, %v1094
        %v1359 = vpack.c.b16 %v1107, %v1101
        %v1360 = vpack.c.b16 %v1108, %v1102
        %v1361 = vpack.c.b16 %v1109, %v1103
        %v1362 = vpack.c.b16 %v1110, %v1104
        %v1363 = vpack.c.b16 %v1111, %v1105
        %v1364 = vpack.c.b16 %v1112, %v1106
        %v1365 = vpack.c.b16 %v1119, %v1113
        %v1366 = vpack.c.b16 %v1120, %v1114
        %v1367 = vpack.c.b16 %v1121, %v1115
        %v1368 = vpack.c.b16 %v1122, %v1116
        %v1369 = vpack.c.b16 %v1123, %v1117
        %v1370 = vpack.c.b16 %v1124, %v1118
        %v1371 = vpack.c.b16 %v1131, %v1125
        %v1372 = vpack.c.b16 %v1132, %v1126
        %v1373 = vpack.c.b16 %v1133, %v1127
        %v1374 = vpack.c.b16 %v1134, %v1128
        %v1375 = vpack.c.b16 %v1135, %v1129
        %v1376 = vpack.c.b16 %v1136, %v1130
        %v1377 = vpack.c.b16 %v1143, %v1137
        %v1378 = vpack.c.b16 %v1144, %v1138
        %v1379 = vpack.c.b16 %v1145, %v1139
        %v1380 = vpack.c.b16 %v1146, %v1140
        %v1381 = vpack.c.b16 %v1147, %v1141
        %v1382 = vpack.c.b16 %v1148, %v1142
        %v1383 = vpack.c.b16 %v1155, %v1149
        %v1384 = vpack.c.b16 %v1156, %v1150
        %v1385 = vpack.c.b16 %v1157, %v1151
        %v1386 = vpack.c.b16 %v1158, %v1152
        %v1387 = vpack.c.b16 %v1159, %v1153
        %v1388 = vpack.c.b16 %v1160, %v1154
        %v1389 = vpack.c.b16 %v1167, %v1161
        %v1390 = vpack.c.b16 %v1168, %v1162
        %v1391 = vpack.c.b16 %v1169, %v1163
        %v1392 = vpack.c.b16 %v1170, %v1164
        %v1393 = vpack.c.b16 %v1171, %v1165
        %v1394 = vpack.c.b16 %v1172, %v1166
        %v1395 = vpack.c.b16 %v1179, %v1173
        %v1396 = vpack.c.b16 %v1180, %v1174
        %v1397 = vpack.c.b16 %v1181, %v1175
        %v1398 = vpack.c.b16 %v1182, %v1176
        %v1399 = vpack.c.b16 %v1183, %v1177
        %v1400 = vpack.c.b16 %v1184, %v1178
        %v1401 = vpack.c.b16 %v1191, %v1185
        %v1402 = vpack.c.b16 %v1192, %v1186
        %v1403 = vpack.c.b16 %v1193, %v1187
        %v1404 = vpack.c.b16 %v1194, %v1188
        %v1405 = vpack.c.b16 %v1195, %v1189
        %v1406 = vpack.c.b16 %v1196, %v1190
        %v1407 = vpack.c.b16 %v1203, %v1197
        %v1408 = vpack.c.b16 %v1204, %v1198
        %v1409 = vpack.c.b16 %v1205, %v1199
        %v1410 = vpack.c.b16 %v1206, %v1200
        %v1411 = vpack.c.b16 %v1207, %v1201
        %v1412 = vpack.c.b16 %v1208, %v1202
        %v1413 = vpack.c.b16 %v1215, %v1209
        %v1414 = vpack.c.b16 %v1216, %v1210
        %v1415 = vpack.c.b16 %v1217, %v1211
        %v1416 = vpack.c.b16 %v1218, %v1212
        %v1417 = vpack.c.b16 %v1219, %v1213
        %v1418 = vpack.c.b16 %v1220, %v1214
        %v1419 = vpack.c.b16 %v1227, %v1221
        %v1420 = vpack.c.b16 %v1228, %v1222
        %v1421 = vpack.c.b16 %v1229, %v1223
        %v1422 = vpack.c.b16 %v1230, %v1224
        %v1423 = vpack.c.b16 %v1231, %v1225
        %v1424 = vpack.c.b16 %v1232, %v1226
        %1617 = vmatpush.bf16.msra.mxu0 %v1275
        %1618 = vmatpush.bf16.msra.mxu0 %v1269
        %1619 = vmatpush.bf16.msra.mxu0 %v1263
        %1620 = vmatpush.bf16.msra.mxu0 %v1257
        %1621 = vmatpush.bf16.msra.mxu0 %v1251
        %1622 = vmatpush.bf16.msra.mxu0 %v1245
        %1623 = vmatpush.bf16.msra.mxu0 %v1239
        %1624 = vmatpush.bf16.msra.mxu0 %v1233
        %1625 = vmatmul.bf16.gmra.mxu0 %v649
        %v1626 = vpop.f32.mrf.mxu0
        %v1627 = vadd.f32 0.0, %v1626
        %v1628 = vpop.f32.mrf.mxu0
        %v1629 = vadd.f32 0.0, %v1628
        %1630 = vdwg.mxu0
        %1631 = vmatpush.bf16.msra.mxu0 %v1323
        %1632 = vmatpush.bf16.msra.mxu0 %v1317
        %1633 = vmatpush.bf16.msra.mxu0 %v1311
        %1634 = vmatpush.bf16.msra.mxu0 %v1305
        %1635 = vmatpush.bf16.msra.mxu0 %v1299
        %1636 = vmatpush.bf16.msra.mxu0 %v1293
        %1637 = vmatpush.bf16.msra.mxu0 %v1287
        %1638 = vmatpush.bf16.msra.mxu0 %v1281
        %1639 = vmatmul.bf16.gmra.mxu0 %v650
        %v1640 = vpop.f32.mrf.mxu0
        %v1641 = vadd.f32 %v1627, %v1640
        %v1642 = vpop.f32.mrf.mxu0
        %v1643 = vadd.f32 %v1629, %v1642
        %1644 = vdwg.mxu0
        %1645 = vmatpush.bf16.msra.mxu0 %v1371
        %1646 = vmatpush.bf16.msra.mxu0 %v1365
        %1647 = vmatpush.bf16.msra.mxu0 %v1359
        %1648 = vmatpush.bf16.msra.mxu0 %v1353
        %1649 = vmatpush.bf16.msra.mxu0 %v1347
        %1650 = vmatpush.bf16.msra.mxu0 %v1341
        %1651 = vmatpush.bf16.msra.mxu0 %v1335
        %1652 = vmatpush.bf16.msra.mxu0 %v1329
        %1653 = vmatmul.bf16.gmra.mxu0 %v651
        %v1654 = vpop.f32.mrf.mxu0
        %v1655 = vadd.f32 %v1641, %v1654
        %v1656 = vpop.f32.mrf.mxu0
        %v1657 = vadd.f32 %v1643, %v1656
        %1658 = vdwg.mxu0
        %1659 = vmatpush.bf16.msra.mxu0 %v1419
        %1660 = vmatpush.bf16.msra.mxu0 %v1413
        %1661 = vmatpush.bf16.msra.mxu0 %v1407
        %1662 = vmatpush.bf16.msra.mxu0 %v1401
        %1663 = vmatpush.bf16.msra.mxu0 %v1395
        %1664 = vmatpush.bf16.msra.mxu0 %v1389
        %1665 = vmatpush.bf16.msra.mxu0 %v1383
        %1666 = vmatpush.bf16.msra.mxu0 %v1377
        %1667 = vmatmul.bf16.gmra.mxu0 %v652
        %v1668 = vpop.f32.mrf.mxu0
        %v1669 = vadd.f32 %v1655, %v1668
        %v1670 = vpop.f32.mrf.mxu0
        %v1671 = vadd.f32 %v1657, %v1670
        %1672 = vdwg.mxu0
        %1673 = vmatpush.bf16.msra.mxu0 %v1276
        %1674 = vmatpush.bf16.msra.mxu0 %v1270
        %1675 = vmatpush.bf16.msra.mxu0 %v1264
        %1676 = vmatpush.bf16.msra.mxu0 %v1258
        %1677 = vmatpush.bf16.msra.mxu0 %v1252
        %1678 = vmatpush.bf16.msra.mxu0 %v1246
        %1679 = vmatpush.bf16.msra.mxu0 %v1240
        %1680 = vmatpush.bf16.msra.mxu0 %v1234
        %1681 = vmatmul.bf16.gmra.mxu0 %v649
        %v1682 = vpop.f32.mrf.mxu0
        %v1683 = vadd.f32 0.0, %v1682
        %v1684 = vpop.f32.mrf.mxu0
        %v1685 = vadd.f32 0.0, %v1684
        %1686 = vdwg.mxu0
        %1687 = vmatpush.bf16.msra.mxu0 %v1324
        %1688 = vmatpush.bf16.msra.mxu0 %v1318
        %1689 = vmatpush.bf16.msra.mxu0 %v1312
        %1690 = vmatpush.bf16.msra.mxu0 %v1306
        %1691 = vmatpush.bf16.msra.mxu0 %v1300
        %1692 = vmatpush.bf16.msra.mxu0 %v1294
        %1693 = vmatpush.bf16.msra.mxu0 %v1288
        %1694 = vmatpush.bf16.msra.mxu0 %v1282
        %1695 = vmatmul.bf16.gmra.mxu0 %v650
        %v1696 = vpop.f32.mrf.mxu0
        %v1697 = vadd.f32 %v1683, %v1696
        %v1698 = vpop.f32.mrf.mxu0
        %v1699 = vadd.f32 %v1685, %v1698
        %1700 = vdwg.mxu0
        %1701 = vmatpush.bf16.msra.mxu0 %v1372
        %1702 = vmatpush.bf16.msra.mxu0 %v1366
        %1703 = vmatpush.bf16.msra.mxu0 %v1360
        %1704 = vmatpush.bf16.msra.mxu0 %v1354
        %1705 = vmatpush.bf16.msra.mxu0 %v1348
        %1706 = vmatpush.bf16.msra.mxu0 %v1342
        %1707 = vmatpush.bf16.msra.mxu0 %v1336
        %1708 = vmatpush.bf16.msra.mxu0 %v1330
        %1709 = vmatmul.bf16.gmra.mxu0 %v651
        %v1710 = vpop.f32.mrf.mxu0
        %v1711 = vadd.f32 %v1697, %v1710
        %v1712 = vpop.f32.mrf.mxu0
        %v1713 = vadd.f32 %v1699, %v1712
        %1714 = vdwg.mxu0
        %1715 = vmatpush.bf16.msra.mxu0 %v1420
        %1716 = vmatpush.bf16.msra.mxu0 %v1414
        %1717 = vmatpush.bf16.msra.mxu0 %v1408
        %1718 = vmatpush.bf16.msra.mxu0 %v1402
        %1719 = vmatpush.bf16.msra.mxu0 %v1396
        %1720 = vmatpush.bf16.msra.mxu0 %v1390
        %1721 = vmatpush.bf16.msra.mxu0 %v1384
        %1722 = vmatpush.bf16.msra.mxu0 %v1378
        %1723 = vmatmul.bf16.gmra.mxu0 %v652
        %v1724 = vpop.f32.mrf.mxu0
        %v1725 = vadd.f32 %v1711, %v1724
        %v1726 = vpop.f32.mrf.mxu0
        %v1727 = vadd.f32 %v1713, %v1726
        %1728 = vdwg.mxu0
        %1729 = vmatpush.bf16.msra.mxu0 %v1277
        %1730 = vmatpush.bf16.msra.mxu0 %v1271
        %1731 = vmatpush.bf16.msra.mxu0 %v1265
        %1732 = vmatpush.bf16.msra.mxu0 %v1259
        %1733 = vmatpush.bf16.msra.mxu0 %v1253
        %1734 = vmatpush.bf16.msra.mxu0 %v1247
        %1735 = vmatpush.bf16.msra.mxu0 %v1241
        %1736 = vmatpush.bf16.msra.mxu0 %v1235
        %1737 = vmatmul.bf16.gmra.mxu0 %v649
        %v1738 = vpop.f32.mrf.mxu0
        %v1739 = vadd.f32 0.0, %v1738
        %v1740 = vpop.f32.mrf.mxu0
        %v1741 = vadd.f32 0.0, %v1740
        %1742 = vdwg.mxu0
        %1743 = vmatpush.bf16.msra.mxu0 %v1325
        %1744 = vmatpush.bf16.msra.mxu0 %v1319
        %1745 = vmatpush.bf16.msra.mxu0 %v1313
        %1746 = vmatpush.bf16.msra.mxu0 %v1307
        %1747 = vmatpush.bf16.msra.mxu0 %v1301
        %1748 = vmatpush.bf16.msra.mxu0 %v1295
        %1749 = vmatpush.bf16.msra.mxu0 %v1289
        %1750 = vmatpush.bf16.msra.mxu0 %v1283
        %1751 = vmatmul.bf16.gmra.mxu0 %v650
        %v1752 = vpop.f32.mrf.mxu0
        %v1753 = vadd.f32 %v1739, %v1752
        %v1754 = vpop.f32.mrf.mxu0
        %v1755 = vadd.f32 %v1741, %v1754
        %1756 = vdwg.mxu0
        %1757 = vmatpush.bf16.msra.mxu0 %v1373
        %1758 = vmatpush.bf16.msra.mxu0 %v1367
        %1759 = vmatpush.bf16.msra.mxu0 %v1361
        %1760 = vmatpush.bf16.msra.mxu0 %v1355
        %1761 = vmatpush.bf16.msra.mxu0 %v1349
        %1762 = vmatpush.bf16.msra.mxu0 %v1343
        %1763 = vmatpush.bf16.msra.mxu0 %v1337
        %1764 = vmatpush.bf16.msra.mxu0 %v1331
        %1765 = vmatmul.bf16.gmra.mxu0 %v651
        %v1766 = vpop.f32.mrf.mxu0
        %v1767 = vadd.f32 %v1753, %v1766
        %v1768 = vpop.f32.mrf.mxu0
        %v1769 = vadd.f32 %v1755, %v1768
        %1770 = vdwg.mxu0
        %1771 = vmatpush.bf16.msra.mxu0 %v1421
        %1772 = vmatpush.bf16.msra.mxu0 %v1415
        %1773 = vmatpush.bf16.msra.mxu0 %v1409
        %1774 = vmatpush.bf16.msra.mxu0 %v1403
        %1775 = vmatpush.bf16.msra.mxu0 %v1397
        %1776 = vmatpush.bf16.msra.mxu0 %v1391
        %1777 = vmatpush.bf16.msra.mxu0 %v1385
        %1778 = vmatpush.bf16.msra.mxu0 %v1379
        %1779 = vmatmul.bf16.gmra.mxu0 %v652
        %v1780 = vpop.f32.mrf.mxu0
        %v1781 = vadd.f32 %v1767, %v1780
        %v1782 = vpop.f32.mrf.mxu0
        %v1783 = vadd.f32 %v1769, %v1782
        %1784 = vdwg.mxu0
        %1785 = vmatpush.bf16.msra.mxu0 %v1278
        %1786 = vmatpush.bf16.msra.mxu0 %v1272
        %1787 = vmatpush.bf16.msra.mxu0 %v1266
        %1788 = vmatpush.bf16.msra.mxu0 %v1260
        %1789 = vmatpush.bf16.msra.mxu0 %v1254
        %1790 = vmatpush.bf16.msra.mxu0 %v1248
        %1791 = vmatpush.bf16.msra.mxu0 %v1242
        %1792 = vmatpush.bf16.msra.mxu0 %v1236
        %1793 = vmatmul.bf16.gmra.mxu0 %v649
        %v1794 = vpop.f32.mrf.mxu0
        %v1795 = vadd.f32 0.0, %v1794
        %v1796 = vpop.f32.mrf.mxu0
        %v1797 = vadd.f32 0.0, %v1796
        %1798 = vdwg.mxu0
        %1799 = vmatpush.bf16.msra.mxu0 %v1326
        %1800 = vmatpush.bf16.msra.mxu0 %v1320
        %1801 = vmatpush.bf16.msra.mxu0 %v1314
        %1802 = vmatpush.bf16.msra.mxu0 %v1308
        %1803 = vmatpush.bf16.msra.mxu0 %v1302
        %1804 = vmatpush.bf16.msra.mxu0 %v1296
        %1805 = vmatpush.bf16.msra.mxu0 %v1290
        %1806 = vmatpush.bf16.msra.mxu0 %v1284
        %1807 = vmatmul.bf16.gmra.mxu0 %v650
        %v1808 = vpop.f32.mrf.mxu0
        %v1809 = vadd.f32 %v1795, %v1808
        %v1810 = vpop.f32.mrf.mxu0
        %v1811 = vadd.f32 %v1797, %v1810
        %1812 = vdwg.mxu0
        %1813 = vmatpush.bf16.msra.mxu0 %v1374
        %1814 = vmatpush.bf16.msra.mxu0 %v1368
        %1815 = vmatpush.bf16.msra.mxu0 %v1362
        %1816 = vmatpush.bf16.msra.mxu0 %v1356
        %1817 = vmatpush.bf16.msra.mxu0 %v1350
        %1818 = vmatpush.bf16.msra.mxu0 %v1344
        %1819 = vmatpush.bf16.msra.mxu0 %v1338
        %1820 = vmatpush.bf16.msra.mxu0 %v1332
        %1821 = vmatmul.bf16.gmra.mxu0 %v651
        %v1822 = vpop.f32.mrf.mxu0
        %v1823 = vadd.f32 %v1809, %v1822
        %v1824 = vpop.f32.mrf.mxu0
        %v1825 = vadd.f32 %v1811, %v1824
        %1826 = vdwg.mxu0
        %1827 = vmatpush.bf16.msra.mxu0 %v1422
        %1828 = vmatpush.bf16.msra.mxu0 %v1416
        %1829 = vmatpush.bf16.msra.mxu0 %v1410
        %1830 = vmatpush.bf16.msra.mxu0 %v1404
        %1831 = vmatpush.bf16.msra.mxu0 %v1398
        %1832 = vmatpush.bf16.msra.mxu0 %v1392
        %1833 = vmatpush.bf16.msra.mxu0 %v1386
        %1834 = vmatpush.bf16.msra.mxu0 %v1380
        %1835 = vmatmul.bf16.gmra.mxu0 %v652
        %v1836 = vpop.f32.mrf.mxu0
        %v1837 = vadd.f32 %v1823, %v1836
        %v1838 = vpop.f32.mrf.mxu0
        %v1839 = vadd.f32 %v1825, %v1838
        %1840 = vdwg.mxu0
        %1841 = vmatpush.bf16.msra.mxu0 %v1279
        %1842 = vmatpush.bf16.msra.mxu0 %v1273
        %1843 = vmatpush.bf16.msra.mxu0 %v1267
        %1844 = vmatpush.bf16.msra.mxu0 %v1261
        %1845 = vmatpush.bf16.msra.mxu0 %v1255
        %1846 = vmatpush.bf16.msra.mxu0 %v1249
        %1847 = vmatpush.bf16.msra.mxu0 %v1243
        %1848 = vmatpush.bf16.msra.mxu0 %v1237
        %1849 = vmatmul.bf16.gmra.mxu0 %v649
        %v1850 = vpop.f32.mrf.mxu0
        %v1851 = vadd.f32 0.0, %v1850
        %v1852 = vpop.f32.mrf.mxu0
        %v1853 = vadd.f32 0.0, %v1852
        %1854 = vdwg.mxu0
        %1855 = vmatpush.bf16.msra.mxu0 %v1327
        %1856 = vmatpush.bf16.msra.mxu0 %v1321
        %1857 = vmatpush.bf16.msra.mxu0 %v1315
        %1858 = vmatpush.bf16.msra.mxu0 %v1309
        %1859 = vmatpush.bf16.msra.mxu0 %v1303
        %1860 = vmatpush.bf16.msra.mxu0 %v1297
        %1861 = vmatpush.bf16.msra.mxu0 %v1291
        %1862 = vmatpush.bf16.msra.mxu0 %v1285
        %1863 = vmatmul.bf16.gmra.mxu0 %v650
        %v1864 = vpop.f32.mrf.mxu0
        %v1865 = vadd.f32 %v1851, %v1864
        %v1866 = vpop.f32.mrf.mxu0
        %v1867 = vadd.f32 %v1853, %v1866
        %1868 = vdwg.mxu0
        %1869 = vmatpush.bf16.msra.mxu0 %v1375
        %1870 = vmatpush.bf16.msra.mxu0 %v1369
        %1871 = vmatpush.bf16.msra.mxu0 %v1363
        %1872 = vmatpush.bf16.msra.mxu0 %v1357
        %1873 = vmatpush.bf16.msra.mxu0 %v1351
        %1874 = vmatpush.bf16.msra.mxu0 %v1345
        %1875 = vmatpush.bf16.msra.mxu0 %v1339
        %1876 = vmatpush.bf16.msra.mxu0 %v1333
        %1877 = vmatmul.bf16.gmra.mxu0 %v651
        %v1878 = vpop.f32.mrf.mxu0
        %v1879 = vadd.f32 %v1865, %v1878
        %v1880 = vpop.f32.mrf.mxu0
        %v1881 = vadd.f32 %v1867, %v1880
        %1882 = vdwg.mxu0
        %1883 = vmatpush.bf16.msra.mxu0 %v1423
        %1884 = vmatpush.bf16.msra.mxu0 %v1417
        %1885 = vmatpush.bf16.msra.mxu0 %v1411
        %1886 = vmatpush.bf16.msra.mxu0 %v1405
        %1887 = vmatpush.bf16.msra.mxu0 %v1399
        %1888 = vmatpush.bf16.msra.mxu0 %v1393
        %1889 = vmatpush.bf16.msra.mxu0 %v1387
        %1890 = vmatpush.bf16.msra.mxu0 %v1381
        %1891 = vmatmul.bf16.gmra.mxu0 %v652
        %v1892 = vpop.f32.mrf.mxu0
        %v1893 = vadd.f32 %v1879, %v1892
        %v1894 = vpop.f32.mrf.mxu0
        %v1895 = vadd.f32 %v1881, %v1894
        %1896 = vdwg.mxu0
        %1897 = vmatpush.bf16.msra.mxu0 %v1280
        %1898 = vmatpush.bf16.msra.mxu0 %v1274
        %1899 = vmatpush.bf16.msra.mxu0 %v1268
        %1900 = vmatpush.bf16.msra.mxu0 %v1262
        %1901 = vmatpush.bf16.msra.mxu0 %v1256
        %1902 = vmatpush.bf16.msra.mxu0 %v1250
        %1903 = vmatpush.bf16.msra.mxu0 %v1244
        %1904 = vmatpush.bf16.msra.mxu0 %v1238
        %1905 = vmatmul.bf16.gmra.mxu0 %v649
        %v1906 = vpop.f32.mrf.mxu0
        %v1907 = vadd.f32 0.0, %v1906
        %v1908 = vpop.f32.mrf.mxu0
        %v1909 = vadd.f32 0.0, %v1908
        %1910 = vdwg.mxu0
        %1911 = vmatpush.bf16.msra.mxu0 %v1328
        %1912 = vmatpush.bf16.msra.mxu0 %v1322
        %1913 = vmatpush.bf16.msra.mxu0 %v1316
        %1914 = vmatpush.bf16.msra.mxu0 %v1310
        %1915 = vmatpush.bf16.msra.mxu0 %v1304
        %1916 = vmatpush.bf16.msra.mxu0 %v1298
        %1917 = vmatpush.bf16.msra.mxu0 %v1292
        %1918 = vmatpush.bf16.msra.mxu0 %v1286
        %1919 = vmatmul.bf16.gmra.mxu0 %v650
        %v1920 = vpop.f32.mrf.mxu0
        %v1921 = vadd.f32 %v1907, %v1920
        %v1922 = vpop.f32.mrf.mxu0
        %v1923 = vadd.f32 %v1909, %v1922
        %1924 = vdwg.mxu0
        %1925 = vmatpush.bf16.msra.mxu0 %v1376
        %1926 = vmatpush.bf16.msra.mxu0 %v1370
        %1927 = vmatpush.bf16.msra.mxu0 %v1364
        %1928 = vmatpush.bf16.msra.mxu0 %v1358
        %1929 = vmatpush.bf16.msra.mxu0 %v1352
        %1930 = vmatpush.bf16.msra.mxu0 %v1346
        %1931 = vmatpush.bf16.msra.mxu0 %v1340
        %1932 = vmatpush.bf16.msra.mxu0 %v1334
        %1933 = vmatmul.bf16.gmra.mxu0 %v651
        %v1934 = vpop.f32.mrf.mxu0
        %v1935 = vadd.f32 %v1921, %v1934
        %v1936 = vpop.f32.mrf.mxu0
        %v1937 = vadd.f32 %v1923, %v1936
        %1938 = vdwg.mxu0
        %1939 = vmatpush.bf16.msra.mxu0 %v1424
        %1940 = vmatpush.bf16.msra.mxu0 %v1418
        %1941 = vmatpush.bf16.msra.mxu0 %v1412
        %1942 = vmatpush.bf16.msra.mxu0 %v1406
        %1943 = vmatpush.bf16.msra.mxu0 %v1400
        %1944 = vmatpush.bf16.msra.mxu0 %v1394
        %1945 = vmatpush.bf16.msra.mxu0 %v1388
        %1946 = vmatpush.bf16.msra.mxu0 %v1382
        %1947 = vmatmul.bf16.gmra.mxu0 %v652
        %v1948 = vpop.f32.mrf.mxu0
        %v1949 = vadd.f32 %v1935, %v1948
        %v1950 = vpop.f32.mrf.mxu0
        %v1951 = vadd.f32 %v1937, %v1950
        %1952 = vdwg.mxu0
        %v1953 = vadd.f32 %v429, %v1669
        %v1954 = vadd.f32 %v430, %v1725
        %v1955 = vadd.f32 %v431, %v1781
        %v1956 = vadd.f32 %v432, %v1837
        %v1957 = vadd.f32 %v433, %v1893
        %v1958 = vadd.f32 %v434, %v1949
        %v1959 = vadd.f32 %v435, %v1671
        %v1960 = vadd.f32 %v436, %v1727
        %v1961 = vadd.f32 %v437, %v1783
        %v1962 = vadd.f32 %v438, %v1839
        %v1963 = vadd.f32 %v439, %v1895
        %v1964 = vadd.f32 %v440, %v1951
        %1965 = vst [vmem:[#allocation2] sm:$0xff] %v1953
        %1966 = vst [vmem:[#allocation2 + $0x8] sm:$0xff] %v1954
        %1967 = vst [vmem:[#allocation2 + $0x10] sm:$0xff] %v1955
        %1968 = vst [vmem:[#allocation2 + $0x18] sm:$0xff] %v1956
        %1969 = vst [vmem:[#allocation2 + $0x20] sm:$0xff] %v1957
        %1970 = vst [vmem:[#allocation2 + $0x28] sm:$0xff] %v1958
        %1971 = vst [vmem:[#allocation2 + $0x30] sm:$0xff] %v1959
        %1972 = vst [vmem:[#allocation2 + $0x38] sm:$0xff] %v1960
        %1973 = vst [vmem:[#allocation2 + $0x40] sm:$0xff] %v1961
        %1974 = vst [vmem:[#allocation2 + $0x48] sm:$0xff] %v1962
        %1975 = vst [vmem:[#allocation2 + $0x50] sm:$0xff] %v1963
        %1976 = vst [vmem:[#allocation2 + $0x58] sm:$0xff] %v1964
        %p1977 = scmp.eq.s32.totalorder %s27, 5
        // Predicated region
        $region88: #{bert_arch_forward.17} parent=62 // pred_check
          %p1978 = pneg %p1977
        $region89: #{bert_arch_forward.17} parent=62 // pred_check_branch
          %1980 = sbr.rel (%p1978) target = $region91
        $region90: #{bert_arch_forward.17} parent=62 // pred_region
          %v1981 = vld [vmem:[#allocation2] sm:$0xff]
          %v1982 = vld [vmem:[#allocation2 + $0x8] sm:$0xff]
          %v1983 = vld [vmem:[#allocation2 + $0x10] sm:$0xff]
          %v1984 = vld [vmem:[#allocation2 + $0x18] sm:$0xff]
          %v1985 = vld [vmem:[#allocation2 + $0x20] sm:$0xff]
          %v1986 = vld [vmem:[#allocation2 + $0x28] sm:$0xff]
          %v1987 = vld [vmem:[#allocation2 + $0x30] sm:$0xff]
          %v1988 = vld [vmem:[#allocation2 + $0x38] sm:$0xff]
          %v1989 = vld [vmem:[#allocation2 + $0x40] sm:$0xff]
          %v1990 = vld [vmem:[#allocation2 + $0x48] sm:$0xff]
          %v1991 = vld [vmem:[#allocation2 + $0x50] sm:$0xff]
          %v1992 = vld [vmem:[#allocation2 + $0x58] sm:$0xff]
          %v1993 = vld [vmem:[#allocation6] sm:$0x3f]
          %v1995 = vperm.slane %v1993, 0
          %v1996 = vperm.slane %v1993, 1
          %v1997 = vperm.slane %v1993, 2
          %v1998 = vperm.slane %v1993, 3
          %v1999 = vperm.slane %v1993, 4
          %v2000 = vperm.slane %v1993, 5
          %v2007 = vadd.f32 %v1981, %v1995
          %v2008 = vadd.f32 %v1982, %v1996
          %v2009 = vadd.f32 %v1983, %v1997
          %v2010 = vadd.f32 %v1984, %v1998
          %v2011 = vadd.f32 %v1985, %v1999
          %v2012 = vadd.f32 %v1986, %v2000
          %v2013 = vadd.f32 %v1987, %v1995
          %v2014 = vadd.f32 %v1988, %v1996
          %v2015 = vadd.f32 %v1989, %v1997
          %v2016 = vadd.f32 %v1990, %v1998
          %v2017 = vadd.f32 %v1991, %v1999
          %v2018 = vadd.f32 %v1992, %v2000
          %v2019 = vld [vmem:[%s404] sm:$0xff]
          %v2020 = vld [vmem:[%s404 + $0x8] sm:$0xff]
          %v2021 = vld [vmem:[%s404 + $0x10] sm:$0xff]
          %v2022 = vld [vmem:[%s404 + $0x18] sm:$0xff]
          %v2023 = vld [vmem:[%s404 + $0x20] sm:$0xff]
          %v2024 = vld [vmem:[%s404 + $0x28] sm:$0xff]
          %v2025 = vunpack.c.l.bf16 %v2019
          %v2026 = vunpack.c.h.bf16 %v2019
          %v2027 = vunpack.c.l.bf16 %v2020
          %v2028 = vunpack.c.h.bf16 %v2020
          %v2029 = vunpack.c.l.bf16 %v2021
          %v2030 = vunpack.c.h.bf16 %v2021
          %v2031 = vunpack.c.l.bf16 %v2022
          %v2032 = vunpack.c.h.bf16 %v2022
          %v2033 = vunpack.c.l.bf16 %v2023
          %v2034 = vunpack.c.h.bf16 %v2023
          %v2035 = vunpack.c.l.bf16 %v2024
          %v2036 = vunpack.c.h.bf16 %v2024
          %v2037 = vadd.f32 %v2007, %v2025
          %v2038 = vadd.f32 %v2008, %v2026
          %v2039 = vadd.f32 %v2009, %v2027
          %v2040 = vadd.f32 %v2010, %v2028
          %v2041 = vadd.f32 %v2011, %v2029
          %v2042 = vadd.f32 %v2012, %v2030
          %v2043 = vadd.f32 %v2013, %v2031
          %v2044 = vadd.f32 %v2014, %v2032
          %v2045 = vadd.f32 %v2015, %v2033
          %v2046 = vadd.f32 %v2016, %v2034
          %v2047 = vadd.f32 %v2017, %v2035
          %v2048 = vadd.f32 %v2018, %v2036
          %v2049 = vadd.f32 %v2037, %v2038
          %v2050 = vadd.f32 %v2049, %v2039
          %v2051 = vadd.f32 %v2050, %v2040
          %v2052 = vadd.f32 %v2051, %v2041
          %v2053 = vadd.f32 %v2052, %v2042
          %2054 = vadd.xlane.f32.xlu0 %v2053
          %v2055 = vpop.xlane.xlu0 %2054
          %v2056 = vadd.f32 %v2043, %v2044
          %v2057 = vadd.f32 %v2056, %v2045
          %v2058 = vadd.f32 %v2057, %v2046
          %v2059 = vadd.f32 %v2058, %v2047
          %v2060 = vadd.f32 %v2059, %v2048
          %2061 = vadd.xlane.f32.xlu0 %v2060
          %v2062 = vpop.xlane.xlu0 %2061
          %v2063 = vrcp.pop 768.0
          %v2064 = vmul.f32 768.0, %v2063
          %v2065 = vsub.f32 1.0, %v2064
          %v2066 = vmul.f32 %v2063, %v2065
          %v2067 = vadd.f32 %v2063, %v2066
          %vm2068 = vweird.f32 %v2063
          %v2069 = vsel %vm2068, %v2063, %v2067
          %v2070 = vmul.f32 %v2055, %v2069
          %v2071 = vmul.f32 %v2062, %v2069
          %v2072 = vsub.f32 %v2037, %v2070
          %v2073 = vsub.f32 %v2038, %v2070
          %v2074 = vsub.f32 %v2039, %v2070
          %v2075 = vsub.f32 %v2040, %v2070
          %v2076 = vsub.f32 %v2041, %v2070
          %v2077 = vsub.f32 %v2042, %v2070
          %v2078 = vsub.f32 %v2043, %v2071
          %v2079 = vsub.f32 %v2044, %v2071
          %v2080 = vsub.f32 %v2045, %v2071
          %v2081 = vsub.f32 %v2046, %v2071
          %v2082 = vsub.f32 %v2047, %v2071
          %v2083 = vsub.f32 %v2048, %v2071
          %v2084 = vmul.f32 %v2072, %v2072
          %v2085 = vmul.f32 %v2073, %v2073
          %v2086 = vmul.f32 %v2074, %v2074
          %v2087 = vmul.f32 %v2075, %v2075
          %v2088 = vmul.f32 %v2076, %v2076
          %v2089 = vmul.f32 %v2077, %v2077
          %v2090 = vmul.f32 %v2078, %v2078
          %v2091 = vmul.f32 %v2079, %v2079
          %v2092 = vmul.f32 %v2080, %v2080
          %v2093 = vmul.f32 %v2081, %v2081
          %v2094 = vmul.f32 %v2082, %v2082
          %v2095 = vmul.f32 %v2083, %v2083
          %v2096 = vadd.f32 %v2084, %v2085
          %v2097 = vadd.f32 %v2096, %v2086
          %v2098 = vadd.f32 %v2097, %v2087
          %v2099 = vadd.f32 %v2098, %v2088
          %v2100 = vadd.f32 %v2099, %v2089
          %2101 = vadd.xlane.f32.xlu0 %v2100
          %v2102 = vpop.xlane.xlu0 %2101
          %v2103 = vadd.f32 %v2090, %v2091
          %v2104 = vadd.f32 %v2103, %v2092
          %v2105 = vadd.f32 %v2104, %v2093
          %v2106 = vadd.f32 %v2105, %v2094
          %v2107 = vadd.f32 %v2106, %v2095
          %2108 = vadd.xlane.f32.xlu0 %v2107
          %v2109 = vpop.xlane.xlu0 %2108
          %v2110 = vmul.f32 %v2102, %v2069
          %v2111 = vmul.f32 %v2109, %v2069
          %v2112 = vadd.f32 %v2110, 1e-12
          %v2113 = vadd.f32 %v2111, 1e-12
          %v2114 = vrsqrt.pop %v2112
          %v2115 = vmul.f32 %v2114, %v2112
          %v2116 = vmul.f32 %v2115, %v2114
          %v2117 = vmul.f32 0.5, %v2116
          %v2118 = vsub.f32 1.5, %v2117
          %v2119 = vmul.f32 %v2114, %v2118
          %vm2120 = vweird.f32 %v2112
          %vm2121 = vweird.f32 %v2114
          %vm2122 = vmor %vm2120, %vm2121
          %v2123 = vsel %vm2122, %v2114, %v2119
          %v2124 = vrsqrt.pop %v2113
          %v2125 = vmul.f32 %v2124, %v2113
          %v2126 = vmul.f32 %v2125, %v2124
          %v2127 = vmul.f32 0.5, %v2126
          %v2128 = vsub.f32 1.5, %v2127
          %v2129 = vmul.f32 %v2124, %v2128
          %vm2130 = vweird.f32 %v2113
          %vm2131 = vweird.f32 %v2124
          %vm2132 = vmor %vm2130, %vm2131
          %v2133 = vsel %vm2132, %v2124, %v2129
          %v2134 = vmul.f32 %v2072, %v2123
          %v2135 = vmul.f32 %v2073, %v2123
          %v2136 = vmul.f32 %v2074, %v2123
          %v2137 = vmul.f32 %v2075, %v2123
          %v2138 = vmul.f32 %v2076, %v2123
          %v2139 = vmul.f32 %v2077, %v2123
          %v2140 = vmul.f32 %v2078, %v2133
          %v2141 = vmul.f32 %v2079, %v2133
          %v2142 = vmul.f32 %v2080, %v2133
          %v2143 = vmul.f32 %v2081, %v2133
          %v2144 = vmul.f32 %v2082, %v2133
          %v2145 = vmul.f32 %v2083, %v2133
          %v2146 = vld [vmem:[#allocation8] sm:$0x3f]
          %v2148 = vperm.slane %v2146, 0
          %v2149 = vperm.slane %v2146, 1
          %v2150 = vperm.slane %v2146, 2
          %v2151 = vperm.slane %v2146, 3
          %v2152 = vperm.slane %v2146, 4
          %v2153 = vperm.slane %v2146, 5
          %v2160 = vmul.f32 %v2134, %v2148
          %v2161 = vmul.f32 %v2135, %v2149
          %v2162 = vmul.f32 %v2136, %v2150
          %v2163 = vmul.f32 %v2137, %v2151
          %v2164 = vmul.f32 %v2138, %v2152
          %v2165 = vmul.f32 %v2139, %v2153
          %v2166 = vmul.f32 %v2140, %v2148
          %v2167 = vmul.f32 %v2141, %v2149
          %v2168 = vmul.f32 %v2142, %v2150
          %v2169 = vmul.f32 %v2143, %v2151
          %v2170 = vmul.f32 %v2144, %v2152
          %v2171 = vmul.f32 %v2145, %v2153
          %v2172 = vld [vmem:[#allocation9] sm:$0x3f]
          %v2174 = vperm.slane %v2172, 0
          %v2175 = vperm.slane %v2172, 1
          %v2176 = vperm.slane %v2172, 2
          %v2177 = vperm.slane %v2172, 3
          %v2178 = vperm.slane %v2172, 4
          %v2179 = vperm.slane %v2172, 5
          %v2186 = vadd.f32 %v2160, %v2174
          %v2187 = vadd.f32 %v2161, %v2175
          %v2188 = vadd.f32 %v2162, %v2176
          %v2189 = vadd.f32 %v2163, %v2177
          %v2190 = vadd.f32 %v2164, %v2178
          %v2191 = vadd.f32 %v2165, %v2179
          %v2192 = vadd.f32 %v2166, %v2174
          %v2193 = vadd.f32 %v2167, %v2175
          %v2194 = vadd.f32 %v2168, %v2176
          %v2195 = vadd.f32 %v2169, %v2177
          %v2196 = vadd.f32 %v2170, %v2178
          %v2197 = vadd.f32 %v2171, %v2179
          %v2198 = vpack.c.bf16 %v2187, %v2186
          %v2199 = vpack.c.bf16 %v2189, %v2188
          %v2200 = vpack.c.bf16 %v2191, %v2190
          %v2201 = vpack.c.bf16 %v2193, %v2192
          %v2202 = vpack.c.bf16 %v2195, %v2194
          %v2203 = vpack.c.bf16 %v2197, %v2196
          %2204 = vst [vmem:[%s411] sm:$0xff] %v2198
          %2205 = vst [vmem:[%s411 + $0x8] sm:$0xff] %v2199
          %2206 = vst [vmem:[%s411 + $0x10] sm:$0xff] %v2200
          %2207 = vst [vmem:[%s411 + $0x18] sm:$0xff] %v2201
          %2208 = vst [vmem:[%s411 + $0x20] sm:$0xff] %v2202
          %2209 = vst [vmem:[%s411 + $0x28] sm:$0xff] %v2203
        $region91: #{bert_arch_forward.17} parent=62 // pred_fallthru
          _
        %s2210 = smul.u32 2, %s26
        %p2211 = scmp.lt.s32.totalorder %s2210, 1
        %s2212 = scalar_select %p2211, %s2210, 1
        %s2213 = smul.addr %s2212, 6
        %s2214 = smul.addr %s2213, 4
        %s2215 = scalar_lea.vmem %s6, %s2214
        // Predicated region
        $region92: #{bert_arch_forward.17} parent=62 // pred_check
          %p2216 = pneg %p195
        $region93: #{bert_arch_forward.17} parent=62 // pred_check_branch
          %2218 = sbr.rel (%p2216) target = $region95
        $region94: #{bert_arch_forward.17} parent=62 // pred_region
          %s2219 = smul.u32 2, %s26
        $region95: #{bert_arch_forward.17} parent=62 // pred_fallthru
          _
        // Predicated region
        $region96: #{bert_arch_forward.17} parent=62 // pred_check
          %p2220 = pneg %p195
        $region97: #{bert_arch_forward.17} parent=62 // pred_check_branch
          %2222 = sbr.rel (%p2220) target = $region99
        $region98: #{bert_arch_forward.17} parent=62 // pred_region
          %s2223 = smul.u32 2, %s26
          %p2224 = scmp.lt.s32.totalorder %s2223, 1
          %s2225 = scalar_select %p2224, %s2223, 1
          %s2226 = smul.addr %s2225, 6
          %s2227 = smul.addr %s2226, 4
          %s2228 = scalar_lea.vmem %s6, %s2227
        $region99: #{bert_arch_forward.17} parent=62 // pred_fallthru
          _
      $region63: #{bert_arch_forward.17} parent=5 // pred_fallthru
        _
      %p2229 = scmp.le.s32.totalorder 2, %s17
      // Predicated region
      $region100: #{bert_arch_forward.17} parent=5 // pred_check
        %p2230 = pneg %p2229
      $region101: #{bert_arch_forward.17} parent=5 // pred_check_branch
        %2232 = sbr.rel (%p2230) target = $region103
      $region102: #{bert_arch_forward.17} parent=5 // pred_region
        %s2233 = ssub.s32 %s17, 2
      $region103: #{bert_arch_forward.17} parent=5 // pred_fallthru
        _
    $region6: #{bert_arch_forward.17} parent=1 // loop_footer
      %s21 = sadd.s32 1, %s17
    $region7: #{bert_arch_forward.17} parent=1 // loop_footer_branch
      %16 = sbr.rel target = $region3
    $region8: #{bert_arch_forward.17} parent=1 // loop_exit
      _
    %2234 = vsyncpa [#allocation5], 1
    %s2235 = scalar_lea.sflag [#allocation5], 1
    %2236 = vsyncpa %s2235, 1
    %2237 = vsyncpa [#allocation7], 1
    %2238 = vsyncpa [#allocation10], 1

// kernel: bert_arch_forward.23
$region0: #{bert_arch_forward.23}
  #allocation0 [shape = 'u32[]', space=smem, size = 0x4, offset = 0x4, fixed_abs, tag = 'smem constant byte address 0x4 - core index']
  #allocation1 [shape = 'u32[72,128]{1,0:T(1,128)}', space=vmem, size = 0x9000, scoped, tag = 'internal scratch']
  %s0 = inlined_call_operand.vmem [shape: bf16[2,768], index: 0, kind: input, shape index: {}]
  %s1 = inlined_call_operand.hbm [shape: bf16[768,768], index: 1, kind: input, shape index: {}]
  %s2 = inlined_call_operand.hbm [shape: f32[1,768], index: 2, kind: input, shape index: {}]
  %s3 = inlined_call_operand.hbm [shape: bf16[768,512], index: 3, kind: input, shape index: {}]
  %s4 = inlined_call_operand.hbm [shape: f32[1,512], index: 4, kind: input, shape index: {}]
  %s5 = inlined_call_operand.hbm [shape: bf16[512,128], index: 5, kind: input, shape index: {}]
  %s6 = inlined_call_operand.hbm [shape: f32[1,128], index: 6, kind: input, shape index: {}]
  %s7 = inlined_call_operand.hbm [shape: f32[2,128], index: 7, kind: output, shape index: {}]
  %s8 = sld [smem:[#allocation0]]
  $region62: #{bert_arch_forward.23} parent=0
    _
  %s10 = ssub.s32 1, %s8
  %s11 = scalar_select 0, %s10, %s8
  $region1: #{bert_arch_forward.23} parent=0
    #allocation2 [shape = 'u8[1179648]{0}', space=vmem, size = 0x120000, scoped, tag = 'input window, operand 1, single buffered']
    #allocation3 [shape = 's32[1]{0}', space=sflag, size = 0x4, scoped, tag = 'scoped memory for bert_arch_forward.23']
    #allocation4 [shape = 's32[1]{0}', space=sflag, size = 0x4, scoped, tag = 'scoped memory for bert_arch_forward.23']
    #allocation5 [shape = 'u8[3072]{0}', space=vmem, size = 0xc00, scoped, tag = 'input window, operand 2, single buffered']
    #allocation6 [shape = 's32[1]{0}', space=sflag, size = 0x4, scoped, tag = 'scoped memory for bert_arch_forward.23']
    #allocation7 [shape = 'u8[786432]{0}', space=vmem, size = 0xc0000, scoped, tag = 'input window, operand 3, single buffered']
    #allocation8 [shape = 'u8[2048]{0}', space=vmem, size = 0x800, scoped, tag = 'input window, operand 4, single buffered']
    #allocation9 [shape = 's32[1]{0}', space=sflag, size = 0x4, scoped, tag = 'scoped memory for bert_arch_forward.23']
    #allocation10 [shape = 'u8[131072]{0}', space=vmem, size = 0x20000, scoped, tag = 'input window, operand 5, single buffered']
    #allocation11 [shape = 'u8[512]{0}', space=vmem, size = 0x400, scoped, tag = 'input window, operand 6, single buffered']
    #allocation12 [shape = 's32[1]{0}', space=sflag, size = 0x4, scoped, tag = 'scoped memory for bert_arch_forward.23']
    #allocation13 [shape = 'u8[1024]{0}', space=vmem, size = 0x400, scoped, tag = 'output window, operand 0, single buffered']
    %12 = vsyncpa [#allocation3], 0
    %13 = vsyncpa [#allocation6], 0
    %14 = vsyncpa [#allocation9], 0
    %15 = vsyncpa [#allocation12], 0
    %16 = vsyncpa [#allocation4], 0
    // Predicated region
    $region2: #{bert_arch_forward.23} parent=1 // pred_check
      _
    $region3: #{bert_arch_forward.23} parent=1 // pred_check_branch
      %18 = sbr.rel (0) target = $region5
    $region4: #{bert_arch_forward.23} parent=1 // pred_region
      _
    $region5: #{bert_arch_forward.23} parent=1 // pred_fallthru
      _
    // Predicated region
    $region6: #{bert_arch_forward.23} parent=1 // pred_check
      _
    $region7: #{bert_arch_forward.23} parent=1 // pred_check_branch
      %20 = sbr.rel (0) target = $region9
    $region8: #{bert_arch_forward.23} parent=1 // pred_region
      %22 = vsyncadd [#allocation3], 0
      %s23 = sshll.u32 %s1, 4
      %s24 = int_to_ptr.hbm [resolvable:$true] %s23
      %s25 = sshll.u32 [#allocation2], 4
      %s26 = int_to_ptr.vmem [resolvable:$true] %s25
      %31 = dma.hbm_to_vmem [thread:$0]  %s24, 36864, %s26, [#allocation3], 384, 384, 24
    $region9: #{bert_arch_forward.23} parent=1 // pred_fallthru
      _
    // Predicated region
    $region10: #{bert_arch_forward.23} parent=1 // pred_check
      _
    $region11: #{bert_arch_forward.23} parent=1 // pred_check_branch
      %33 = sbr.rel (0) target = $region13
    $region12: #{bert_arch_forward.23} parent=1 // pred_region
      %35 = vsyncadd [#allocation6], 0
      %s37 = sshll.u32 %s2, 4
      %s38 = int_to_ptr.hbm [resolvable:$true] %s37
      %s39 = sshll.u32 [#allocation5], 4
      %s40 = int_to_ptr.vmem [resolvable:$true] %s39
      %42 = dma.hbm_to_vmem [thread:$0]  %s38, 96, %s40, [#allocation6]
    $region13: #{bert_arch_forward.23} parent=1 // pred_fallthru
      _
    // Predicated region
    $region14: #{bert_arch_forward.23} parent=1 // pred_check
      _
    $region15: #{bert_arch_forward.23} parent=1 // pred_check_branch
      %44 = sbr.rel (0) target = $region17
    $region16: #{bert_arch_forward.23} parent=1 // pred_region
      %46 = vsyncadd [#allocation6], 0
      %s47 = sshll.u32 %s3, 4
      %s48 = int_to_ptr.hbm [resolvable:$true] %s47
      %s49 = sshll.u32 [#allocation7], 4
      %s50 = int_to_ptr.vmem [resolvable:$true] %s49
      %55 = dma.hbm_to_vmem [thread:$0]  %s48, 24576, %s50, [#allocation6], 256, 256, 16
    $region17: #{bert_arch_forward.23} parent=1 // pred_fallthru
      _
    // Predicated region
    $region18: #{bert_arch_forward.23} parent=1 // pred_check
      _
    $region19: #{bert_arch_forward.23} parent=1 // pred_check_branch
      %57 = sbr.rel (0) target = $region21
    $region20: #{bert_arch_forward.23} parent=1 // pred_region
      %59 = vsyncadd [#allocation9], 0
      %s61 = sshll.u32 %s4, 4
      %s62 = int_to_ptr.hbm [resolvable:$true] %s61
      %s63 = sshll.u32 [#allocation8], 4
      %s64 = int_to_ptr.vmem [resolvable:$true] %s63
      %66 = dma.hbm_to_vmem [thread:$0]  %s62, 64, %s64, [#allocation9]
    $region21: #{bert_arch_forward.23} parent=1 // pred_fallthru
      _
    // Predicated region
    $region22: #{bert_arch_forward.23} parent=1 // pred_check
      _
    $region23: #{bert_arch_forward.23} parent=1 // pred_check_branch
      %68 = sbr.rel (0) target = $region25
    $region24: #{bert_arch_forward.23} parent=1 // pred_region
      %70 = vsyncadd [#allocation9], 0
      %s71 = sshll.u32 %s5, 4
      %s72 = int_to_ptr.hbm [resolvable:$true] %s71
      %s73 = sshll.u32 [#allocation10], 4
      %s74 = int_to_ptr.vmem [resolvable:$true] %s73
      %79 = dma.hbm_to_vmem [thread:$0]  %s72, 4096, %s74, [#allocation9], 64, 64, 4
    $region25: #{bert_arch_forward.23} parent=1 // pred_fallthru
      _
    // Predicated region
    $region26: #{bert_arch_forward.23} parent=1 // pred_check
      _
    $region27: #{bert_arch_forward.23} parent=1 // pred_check_branch
      %81 = sbr.rel (0) target = $region29
    $region28: #{bert_arch_forward.23} parent=1 // pred_region
      %83 = vsyncadd [#allocation12], 0
      %s85 = sshll.u32 %s6, 4
      %s86 = int_to_ptr.hbm [resolvable:$true] %s85
      %s87 = sshll.u32 [#allocation11], 4
      %s88 = int_to_ptr.vmem [resolvable:$true] %s87
      %90 = dma.hbm_to_vmem [thread:$0]  %s86, 16, %s88, [#allocation12]
    $region29: #{bert_arch_forward.23} parent=1 // pred_fallthru
      _
    // Predicated region
    $region30: #{bert_arch_forward.23} parent=1 // pred_check
      _
    $region31: #{bert_arch_forward.23} parent=1 // pred_check_branch
      %92 = sbr.rel (0) target = $region33
    $region32: #{bert_arch_forward.23} parent=1 // pred_region
      %94 = dma.done [#allocation3], 36864
    $region33: #{bert_arch_forward.23} parent=1 // pred_fallthru
      _
    // Predicated region
    $region34: #{bert_arch_forward.23} parent=1 // pred_check
      _
    $region35: #{bert_arch_forward.23} parent=1 // pred_check_branch
      %96 = sbr.rel (0) target = $region37
    $region36: #{bert_arch_forward.23} parent=1 // pred_region
      %98 = dma.done [#allocation6], 96
    $region37: #{bert_arch_forward.23} parent=1 // pred_fallthru
      _
    // Predicated region
    $region38: #{bert_arch_forward.23} parent=1 // pred_check
      _
    $region39: #{bert_arch_forward.23} parent=1 // pred_check_branch
      %100 = sbr.rel (0) target = $region41
    $region40: #{bert_arch_forward.23} parent=1 // pred_region
      %102 = dma.done [#allocation6], 24576
    $region41: #{bert_arch_forward.23} parent=1 // pred_fallthru
      _
    // Predicated region
    $region42: #{bert_arch_forward.23} parent=1 // pred_check
      _
    $region43: #{bert_arch_forward.23} parent=1 // pred_check_branch
      %104 = sbr.rel (0) target = $region45
    $region44: #{bert_arch_forward.23} parent=1 // pred_region
      %106 = dma.done [#allocation9], 64
    $region45: #{bert_arch_forward.23} parent=1 // pred_fallthru
      _
    // Predicated region
    $region46: #{bert_arch_forward.23} parent=1 // pred_check
      _
    $region47: #{bert_arch_forward.23} parent=1 // pred_check_branch
      %108 = sbr.rel (0) target = $region49
    $region48: #{bert_arch_forward.23} parent=1 // pred_region
      %110 = dma.done [#allocation9], 4096
    $region49: #{bert_arch_forward.23} parent=1 // pred_fallthru
      _
    // Predicated region
    $region50: #{bert_arch_forward.23} parent=1 // pred_check
      _
    $region51: #{bert_arch_forward.23} parent=1 // pred_check_branch
      %112 = sbr.rel (0) target = $region53
    $region52: #{bert_arch_forward.23} parent=1 // pred_region
      %114 = dma.done [#allocation12], 16
    $region53: #{bert_arch_forward.23} parent=1 // pred_fallthru
      _
    %v115 = vld [vmem:[%s0] sm:$0x3f]
    %v116 = vld [vmem:[#allocation2] sm:$0xff]
    %v117 = vld [vmem:[#allocation2 + $0x8] sm:$0xff]
    %v118 = vld [vmem:[#allocation2 + $0x10] sm:$0xff]
    %v119 = vld [vmem:[#allocation2 + $0x18] sm:$0xff]
    %v120 = vld [vmem:[#allocation2 + $0x20] sm:$0xff]
    %v121 = vld [vmem:[#allocation2 + $0x28] sm:$0xff]
    %v122 = vld [vmem:[#allocation2 + $0x30] sm:$0xff]
    %v123 = vld [vmem:[#allocation2 + $0x38] sm:$0xff]
    %v124 = vld [vmem:[#allocation2 + $0x40] sm:$0xff]
    %v125 = vld [vmem:[#allocation2 + $0x48] sm:$0xff]
    %v126 = vld [vmem:[#allocation2 + $0x50] sm:$0xff]
    %v127 = vld [vmem:[#allocation2 + $0x58] sm:$0xff]
    %v128 = vld [vmem:[#allocation2 + $0x60] sm:$0xff]
    %v129 = vld [vmem:[#allocation2 + $0x68] sm:$0xff]
    %v130 = vld [vmem:[#allocation2 + $0x70] sm:$0xff]
    %v131 = vld [vmem:[#allocation2 + $0x78] sm:$0xff]
    %v132 = vld [vmem:[#allocation2 + $0x80] sm:$0xff]
    %v133 = vld [vmem:[#allocation2 + $0x88] sm:$0xff]
    %v134 = vld [vmem:[#allocation2 + $0x90] sm:$0xff]
    %v135 = vld [vmem:[#allocation2 + $0x98] sm:$0xff]
    %v136 = vld [vmem:[#allocation2 + $0xa0] sm:$0xff]
    %v137 = vld [vmem:[#allocation2 + $0xa8] sm:$0xff]
    %v138 = vld [vmem:[#allocation2 + $0xb0] sm:$0xff]
    %v139 = vld [vmem:[#allocation2 + $0xb8] sm:$0xff]
    %v140 = vld [vmem:[#allocation2 + $0xc0] sm:$0xff]
    %v141 = vld [vmem:[#allocation2 + $0xc8] sm:$0xff]
    %v142 = vld [vmem:[#allocation2 + $0xd0] sm:$0xff]
    %v143 = vld [vmem:[#allocation2 + $0xd8] sm:$0xff]
    %v144 = vld [vmem:[#allocation2 + $0xe0] sm:$0xff]
    %v145 = vld [vmem:[#allocation2 + $0xe8] sm:$0xff]
    %v146 = vld [vmem:[#allocation2 + $0xf0] sm:$0xff]
    %v147 = vld [vmem:[#allocation2 + $0xf8] sm:$0xff]
    %v148 = vld [vmem:[#allocation2 + $0x100] sm:$0xff]
    %v149 = vld [vmem:[#allocation2 + $0x108] sm:$0xff]
    %v150 = vld [vmem:[#allocation2 + $0x110] sm:$0xff]
    %v151 = vld [vmem:[#allocation2 + $0x118] sm:$0xff]
    %v152 = vld [vmem:[#allocation2 + $0x120] sm:$0xff]
    %v153 = vld [vmem:[#allocation2 + $0x128] sm:$0xff]
    %v154 = vld [vmem:[#allocation2 + $0x130] sm:$0xff]
    %v155 = vld [vmem:[#allocation2 + $0x138] sm:$0xff]
    %v156 = vld [vmem:[#allocation2 + $0x140] sm:$0xff]
    %v157 = vld [vmem:[#allocation2 + $0x148] sm:$0xff]
    %v158 = vld [vmem:[#allocation2 + $0x150] sm:$0xff]
    %v159 = vld [vmem:[#allocation2 + $0x158] sm:$0xff]
    %v160 = vld [vmem:[#allocation2 + $0x160] sm:$0xff]
    %v161 = vld [vmem:[#allocation2 + $0x168] sm:$0xff]
    %v162 = vld [vmem:[#allocation2 + $0x170] sm:$0xff]
    %v163 = vld [vmem:[#allocation2 + $0x178] sm:$0xff]
    %v164 = vld [vmem:[#allocation2 + $0x180] sm:$0xff]
    %v165 = vld [vmem:[#allocation2 + $0x188] sm:$0xff]
    %v166 = vld [vmem:[#allocation2 + $0x190] sm:$0xff]
    %v167 = vld [vmem:[#allocation2 + $0x198] sm:$0xff]
    %v168 = vld [vmem:[#allocation2 + $0x1a0] sm:$0xff]
    %v169 = vld [vmem:[#allocation2 + $0x1a8] sm:$0xff]
    %v170 = vld [vmem:[#allocation2 + $0x1b0] sm:$0xff]
    %v171 = vld [vmem:[#allocation2 + $0x1b8] sm:$0xff]
    %v172 = vld [vmem:[#allocation2 + $0x1c0] sm:$0xff]
    %v173 = vld [vmem:[#allocation2 + $0x1c8] sm:$0xff]
    %v174 = vld [vmem:[#allocation2 + $0x1d0] sm:$0xff]
    %v175 = vld [vmem:[#allocation2 + $0x1d8] sm:$0xff]
    %v176 = vld [vmem:[#allocation2 + $0x1e0] sm:$0xff]
    %v177 = vld [vmem:[#allocation2 + $0x1e8] sm:$0xff]
    %v178 = vld [vmem:[#allocation2 + $0x1f0] sm:$0xff]
    %v179 = vld [vmem:[#allocation2 + $0x1f8] sm:$0xff]
    %v180 = vld [vmem:[#allocation2 + $0x200] sm:$0xff]
    %v181 = vld [vmem:[#allocation2 + $0x208] sm:$0xff]
    %v182 = vld [vmem:[#allocation2 + $0x210] sm:$0xff]
    %v183 = vld [vmem:[#allocation2 + $0x218] sm:$0xff]
    %v184 = vld [vmem:[#allocation2 + $0x220] sm:$0xff]
    %v185 = vld [vmem:[#allocation2 + $0x228] sm:$0xff]
    %v186 = vld [vmem:[#allocation2 + $0x230] sm:$0xff]
    %v187 = vld [vmem:[#allocation2 + $0x238] sm:$0xff]
    %v188 = vld [vmem:[#allocation2 + $0x240] sm:$0xff]
    %v189 = vld [vmem:[#allocation2 + $0x248] sm:$0xff]
    %v190 = vld [vmem:[#allocation2 + $0x250] sm:$0xff]
    %v191 = vld [vmem:[#allocation2 + $0x258] sm:$0xff]
    %v192 = vld [vmem:[#allocation2 + $0x260] sm:$0xff]
    %v193 = vld [vmem:[#allocation2 + $0x268] sm:$0xff]
    %v194 = vld [vmem:[#allocation2 + $0x270] sm:$0xff]
    %v195 = vld [vmem:[#allocation2 + $0x278] sm:$0xff]
    %v196 = vld [vmem:[#allocation2 + $0x280] sm:$0xff]
    %v197 = vld [vmem:[#allocation2 + $0x288] sm:$0xff]
    %v198 = vld [vmem:[#allocation2 + $0x290] sm:$0xff]
    %v199 = vld [vmem:[#allocation2 + $0x298] sm:$0xff]
    %v200 = vld [vmem:[#allocation2 + $0x2a0] sm:$0xff]
    %v201 = vld [vmem:[#allocation2 + $0x2a8] sm:$0xff]
    %v202 = vld [vmem:[#allocation2 + $0x2b0] sm:$0xff]
    %v203 = vld [vmem:[#allocation2 + $0x2b8] sm:$0xff]
    %v204 = vld [vmem:[#allocation2 + $0x2c0] sm:$0xff]
    %v205 = vld [vmem:[#allocation2 + $0x2c8] sm:$0xff]
    %v206 = vld [vmem:[#allocation2 + $0x2d0] sm:$0xff]
    %v207 = vld [vmem:[#allocation2 + $0x2d8] sm:$0xff]
    %v208 = vld [vmem:[#allocation2 + $0x2e0] sm:$0xff]
    %v209 = vld [vmem:[#allocation2 + $0x2e8] sm:$0xff]
    %v210 = vld [vmem:[#allocation2 + $0x2f0] sm:$0xff]
    %v211 = vld [vmem:[#allocation2 + $0x2f8] sm:$0xff]
    %v212 = vld [vmem:[#allocation2 + $0x300] sm:$0xff]
    %v213 = vld [vmem:[#allocation2 + $0x308] sm:$0xff]
    %v214 = vld [vmem:[#allocation2 + $0x310] sm:$0xff]
    %v215 = vld [vmem:[#allocation2 + $0x318] sm:$0xff]
    %v216 = vld [vmem:[#allocation2 + $0x320] sm:$0xff]
    %v217 = vld [vmem:[#allocation2 + $0x328] sm:$0xff]
    %v218 = vld [vmem:[#allocation2 + $0x330] sm:$0xff]
    %v219 = vld [vmem:[#allocation2 + $0x338] sm:$0xff]
    %v220 = vld [vmem:[#allocation2 + $0x340] sm:$0xff]
    %v221 = vld [vmem:[#allocation2 + $0x348] sm:$0xff]
    %v222 = vld [vmem:[#allocation2 + $0x350] sm:$0xff]
    %v223 = vld [vmem:[#allocation2 + $0x358] sm:$0xff]
    %v224 = vld [vmem:[#allocation2 + $0x360] sm:$0xff]
    %v225 = vld [vmem:[#allocation2 + $0x368] sm:$0xff]
    %v226 = vld [vmem:[#allocation2 + $0x370] sm:$0xff]
    %v227 = vld [vmem:[#allocation2 + $0x378] sm:$0xff]
    %v228 = vld [vmem:[#allocation2 + $0x380] sm:$0xff]
    %v229 = vld [vmem:[#allocation2 + $0x388] sm:$0xff]
    %v230 = vld [vmem:[#allocation2 + $0x390] sm:$0xff]
    %v231 = vld [vmem:[#allocation2 + $0x398] sm:$0xff]
    %v232 = vld [vmem:[#allocation2 + $0x3a0] sm:$0xff]
    %v233 = vld [vmem:[#allocation2 + $0x3a8] sm:$0xff]
    %v234 = vld [vmem:[#allocation2 + $0x3b0] sm:$0xff]
    %v235 = vld [vmem:[#allocation2 + $0x3b8] sm:$0xff]
    %v236 = vld [vmem:[#allocation2 + $0x3c0] sm:$0xff]
    %v237 = vld [vmem:[#allocation2 + $0x3c8] sm:$0xff]
    %v238 = vld [vmem:[#allocation2 + $0x3d0] sm:$0xff]
    %v239 = vld [vmem:[#allocation2 + $0x3d8] sm:$0xff]
    %v240 = vld [vmem:[#allocation2 + $0x3e0] sm:$0xff]
    %v241 = vld [vmem:[#allocation2 + $0x3e8] sm:$0xff]
    %v242 = vld [vmem:[#allocation2 + $0x3f0] sm:$0xff]
    %v243 = vld [vmem:[#allocation2 + $0x3f8] sm:$0xff]
    %v244 = vld [vmem:[#allocation2 + $0x400] sm:$0xff]
    %v245 = vld [vmem:[#allocation2 + $0x408] sm:$0xff]
    %v246 = vld [vmem:[#allocation2 + $0x410] sm:$0xff]
    %v247 = vld [vmem:[#allocation2 + $0x418] sm:$0xff]
    %v248 = vld [vmem:[#allocation2 + $0x420] sm:$0xff]
    %v249 = vld [vmem:[#allocation2 + $0x428] sm:$0xff]
    %v250 = vld [vmem:[#allocation2 + $0x430] sm:$0xff]
    %v251 = vld [vmem:[#allocation2 + $0x438] sm:$0xff]
    %v252 = vld [vmem:[#allocation2 + $0x440] sm:$0xff]
    %v253 = vld [vmem:[#allocation2 + $0x448] sm:$0xff]
    %v254 = vld [vmem:[#allocation2 + $0x450] sm:$0xff]
    %v255 = vld [vmem:[#allocation2 + $0x458] sm:$0xff]
    %v256 = vld [vmem:[#allocation2 + $0x460] sm:$0xff]
    %v257 = vld [vmem:[#allocation2 + $0x468] sm:$0xff]
    %v258 = vld [vmem:[#allocation2 + $0x470] sm:$0xff]
    %v259 = vld [vmem:[#allocation2 + $0x478] sm:$0xff]
    %v260 = vld [vmem:[#allocation2 + $0x480] sm:$0xff]
    %v261 = vld [vmem:[#allocation2 + $0x488] sm:$0xff]
    %v262 = vld [vmem:[#allocation2 + $0x490] sm:$0xff]
    %v263 = vld [vmem:[#allocation2 + $0x498] sm:$0xff]
    %v264 = vld [vmem:[#allocation2 + $0x4a0] sm:$0xff]
    %v265 = vld [vmem:[#allocation2 + $0x4a8] sm:$0xff]
    %v266 = vld [vmem:[#allocation2 + $0x4b0] sm:$0xff]
    %v267 = vld [vmem:[#allocation2 + $0x4b8] sm:$0xff]
    %v268 = vld [vmem:[#allocation2 + $0x4c0] sm:$0xff]
    %v269 = vld [vmem:[#allocation2 + $0x4c8] sm:$0xff]
    %v270 = vld [vmem:[#allocation2 + $0x4d0] sm:$0xff]
    %v271 = vld [vmem:[#allocation2 + $0x4d8] sm:$0xff]
    %v272 = vld [vmem:[#allocation2 + $0x4e0] sm:$0xff]
    %v273 = vld [vmem:[#allocation2 + $0x4e8] sm:$0xff]
    %v274 = vld [vmem:[#allocation2 + $0x4f0] sm:$0xff]
    %v275 = vld [vmem:[#allocation2 + $0x4f8] sm:$0xff]
    %v276 = vld [vmem:[#allocation2 + $0x500] sm:$0xff]
    %v277 = vld [vmem:[#allocation2 + $0x508] sm:$0xff]
    %v278 = vld [vmem:[#allocation2 + $0x510] sm:$0xff]
    %v279 = vld [vmem:[#allocation2 + $0x518] sm:$0xff]
    %v280 = vld [vmem:[#allocation2 + $0x520] sm:$0xff]
    %v281 = vld [vmem:[#allocation2 + $0x528] sm:$0xff]
    %v282 = vld [vmem:[#allocation2 + $0x530] sm:$0xff]
    %v283 = vld [vmem:[#allocation2 + $0x538] sm:$0xff]
    %v284 = vld [vmem:[#allocation2 + $0x540] sm:$0xff]
    %v285 = vld [vmem:[#allocation2 + $0x548] sm:$0xff]
    %v286 = vld [vmem:[#allocation2 + $0x550] sm:$0xff]
    %v287 = vld [vmem:[#allocation2 + $0x558] sm:$0xff]
    %v288 = vld [vmem:[#allocation2 + $0x560] sm:$0xff]
    %v289 = vld [vmem:[#allocation2 + $0x568] sm:$0xff]
    %v290 = vld [vmem:[#allocation2 + $0x570] sm:$0xff]
    %v291 = vld [vmem:[#allocation2 + $0x578] sm:$0xff]
    %v292 = vld [vmem:[#allocation2 + $0x580] sm:$0xff]
    %v293 = vld [vmem:[#allocation2 + $0x588] sm:$0xff]
    %v294 = vld [vmem:[#allocation2 + $0x590] sm:$0xff]
    %v295 = vld [vmem:[#allocation2 + $0x598] sm:$0xff]
    %v296 = vld [vmem:[#allocation2 + $0x5a0] sm:$0xff]
    %v297 = vld [vmem:[#allocation2 + $0x5a8] sm:$0xff]
    %v298 = vld [vmem:[#allocation2 + $0x5b0] sm:$0xff]
    %v299 = vld [vmem:[#allocation2 + $0x5b8] sm:$0xff]
    %v300 = vld [vmem:[#allocation2 + $0x5c0] sm:$0xff]
    %v301 = vld [vmem:[#allocation2 + $0x5c8] sm:$0xff]
    %v302 = vld [vmem:[#allocation2 + $0x5d0] sm:$0xff]
    %v303 = vld [vmem:[#allocation2 + $0x5d8] sm:$0xff]
    %v304 = vld [vmem:[#allocation2 + $0x5e0] sm:$0xff]
    %v305 = vld [vmem:[#allocation2 + $0x5e8] sm:$0xff]
    %v306 = vld [vmem:[#allocation2 + $0x5f0] sm:$0xff]
    %v307 = vld [vmem:[#allocation2 + $0x5f8] sm:$0xff]
    %v308 = vld [vmem:[#allocation2 + $0x600] sm:$0xff]
    %v309 = vld [vmem:[#allocation2 + $0x608] sm:$0xff]
    %v310 = vld [vmem:[#allocation2 + $0x610] sm:$0xff]
    %v311 = vld [vmem:[#allocation2 + $0x618] sm:$0xff]
    %v312 = vld [vmem:[#allocation2 + $0x620] sm:$0xff]
    %v313 = vld [vmem:[#allocation2 + $0x628] sm:$0xff]
    %v314 = vld [vmem:[#allocation2 + $0x630] sm:$0xff]
    %v315 = vld [vmem:[#allocation2 + $0x638] sm:$0xff]
    %v316 = vld [vmem:[#allocation2 + $0x640] sm:$0xff]
    %v317 = vld [vmem:[#allocation2 + $0x648] sm:$0xff]
    %v318 = vld [vmem:[#allocation2 + $0x650] sm:$0xff]
    %v319 = vld [vmem:[#allocation2 + $0x658] sm:$0xff]
    %v320 = vld [vmem:[#allocation2 + $0x660] sm:$0xff]
    %v321 = vld [vmem:[#allocation2 + $0x668] sm:$0xff]
    %v322 = vld [vmem:[#allocation2 + $0x670] sm:$0xff]
    %v323 = vld [vmem:[#allocation2 + $0x678] sm:$0xff]
    %v324 = vld [vmem:[#allocation2 + $0x680] sm:$0xff]
    %v325 = vld [vmem:[#allocation2 + $0x688] sm:$0xff]
    %v326 = vld [vmem:[#allocation2 + $0x690] sm:$0xff]
    %v327 = vld [vmem:[#allocation2 + $0x698] sm:$0xff]
    %v328 = vld [vmem:[#allocation2 + $0x6a0] sm:$0xff]
    %v329 = vld [vmem:[#allocation2 + $0x6a8] sm:$0xff]
    %v330 = vld [vmem:[#allocation2 + $0x6b0] sm:$0xff]
    %v331 = vld [vmem:[#allocation2 + $0x6b8] sm:$0xff]
    %v332 = vld [vmem:[#allocation2 + $0x6c0] sm:$0xff]
    %v333 = vld [vmem:[#allocation2 + $0x6c8] sm:$0xff]
    %v334 = vld [vmem:[#allocation2 + $0x6d0] sm:$0xff]
    %v335 = vld [vmem:[#allocation2 + $0x6d8] sm:$0xff]
    %v336 = vld [vmem:[#allocation2 + $0x6e0] sm:$0xff]
    %v337 = vld [vmem:[#allocation2 + $0x6e8] sm:$0xff]
    %v338 = vld [vmem:[#allocation2 + $0x6f0] sm:$0xff]
    %v339 = vld [vmem:[#allocation2 + $0x6f8] sm:$0xff]
    %v340 = vld [vmem:[#allocation2 + $0x700] sm:$0xff]
    %v341 = vld [vmem:[#allocation2 + $0x708] sm:$0xff]
    %v342 = vld [vmem:[#allocation2 + $0x710] sm:$0xff]
    %v343 = vld [vmem:[#allocation2 + $0x718] sm:$0xff]
    %v344 = vld [vmem:[#allocation2 + $0x720] sm:$0xff]
    %v345 = vld [vmem:[#allocation2 + $0x728] sm:$0xff]
    %v346 = vld [vmem:[#allocation2 + $0x730] sm:$0xff]
    %v347 = vld [vmem:[#allocation2 + $0x738] sm:$0xff]
    %v348 = vld [vmem:[#allocation2 + $0x740] sm:$0xff]
    %v349 = vld [vmem:[#allocation2 + $0x748] sm:$0xff]
    %v350 = vld [vmem:[#allocation2 + $0x750] sm:$0xff]
    %v351 = vld [vmem:[#allocation2 + $0x758] sm:$0xff]
    %v352 = vld [vmem:[#allocation2 + $0x760] sm:$0xff]
    %v353 = vld [vmem:[#allocation2 + $0x768] sm:$0xff]
    %v354 = vld [vmem:[#allocation2 + $0x770] sm:$0xff]
    %v355 = vld [vmem:[#allocation2 + $0x778] sm:$0xff]
    %v356 = vld [vmem:[#allocation2 + $0x780] sm:$0xff]
    %v357 = vld [vmem:[#allocation2 + $0x788] sm:$0xff]
    %v358 = vld [vmem:[#allocation2 + $0x790] sm:$0xff]
    %v359 = vld [vmem:[#allocation2 + $0x798] sm:$0xff]
    %v360 = vld [vmem:[#allocation2 + $0x7a0] sm:$0xff]
    %v361 = vld [vmem:[#allocation2 + $0x7a8] sm:$0xff]
    %v362 = vld [vmem:[#allocation2 + $0x7b0] sm:$0xff]
    %v363 = vld [vmem:[#allocation2 + $0x7b8] sm:$0xff]
    %v364 = vld [vmem:[#allocation2 + $0x7c0] sm:$0xff]
    %v365 = vld [vmem:[#allocation2 + $0x7c8] sm:$0xff]
    %v366 = vld [vmem:[#allocation2 + $0x7d0] sm:$0xff]
    %v367 = vld [vmem:[#allocation2 + $0x7d8] sm:$0xff]
    %v368 = vld [vmem:[#allocation2 + $0x7e0] sm:$0xff]
    %v369 = vld [vmem:[#allocation2 + $0x7e8] sm:$0xff]
    %v370 = vld [vmem:[#allocation2 + $0x7f0] sm:$0xff]
    %v371 = vld [vmem:[#allocation2 + $0x7f8] sm:$0xff]
    %v372 = vld [vmem:[#allocation2 + $0x800] sm:$0xff]
    %v373 = vld [vmem:[#allocation2 + $0x808] sm:$0xff]
    %v374 = vld [vmem:[#allocation2 + $0x810] sm:$0xff]
    %v375 = vld [vmem:[#allocation2 + $0x818] sm:$0xff]
    %v376 = vld [vmem:[#allocation2 + $0x820] sm:$0xff]
    %v377 = vld [vmem:[#allocation2 + $0x828] sm:$0xff]
    %v378 = vld [vmem:[#allocation2 + $0x830] sm:$0xff]
    %v379 = vld [vmem:[#allocation2 + $0x838] sm:$0xff]
    %v380 = vld [vmem:[#allocation2 + $0x840] sm:$0xff]
    %v381 = vld [vmem:[#allocation2 + $0x848] sm:$0xff]
    %v382 = vld [vmem:[#allocation2 + $0x850] sm:$0xff]
    %v383 = vld [vmem:[#allocation2 + $0x858] sm:$0xff]
    %v384 = vld [vmem:[#allocation2 + $0x860] sm:$0xff]
    %v385 = vld [vmem:[#allocation2 + $0x868] sm:$0xff]
    %v386 = vld [vmem:[#allocation2 + $0x870] sm:$0xff]
    %v387 = vld [vmem:[#allocation2 + $0x878] sm:$0xff]
    %v388 = vld [vmem:[#allocation2 + $0x880] sm:$0xff]
    %v389 = vld [vmem:[#allocation2 + $0x888] sm:$0xff]
    %v390 = vld [vmem:[#allocation2 + $0x890] sm:$0xff]
    %v391 = vld [vmem:[#allocation2 + $0x898] sm:$0xff]
    %v392 = vld [vmem:[#allocation2 + $0x8a0] sm:$0xff]
    %v393 = vld [vmem:[#allocation2 + $0x8a8] sm:$0xff]
    %v394 = vld [vmem:[#allocation2 + $0x8b0] sm:$0xff]
    %v395 = vld [vmem:[#allocation2 + $0x8b8] sm:$0xff]
    %v396 = vld [vmem:[#allocation2 + $0x8c0] sm:$0xff]
    %v397 = vld [vmem:[#allocation2 + $0x8c8] sm:$0xff]
    %v398 = vld [vmem:[#allocation2 + $0x8d0] sm:$0xff]
    %v399 = vld [vmem:[#allocation2 + $0x8d8] sm:$0xff]
    %v400 = vld [vmem:[#allocation2 + $0x8e0] sm:$0xff]
    %v401 = vld [vmem:[#allocation2 + $0x8e8] sm:$0xff]
    %v402 = vld [vmem:[#allocation2 + $0x8f0] sm:$0xff]
    %v403 = vld [vmem:[#allocation2 + $0x8f8] sm:$0xff]
    %v404 = vld [vmem:[#allocation5] sm:$0x3f]
    %v406 = vperm.slane %v404, 0
    %v407 = vperm.slane %v404, 1
    %v408 = vperm.slane %v404, 2
    %v409 = vperm.slane %v404, 3
    %v410 = vperm.slane %v404, 4
    %v411 = vperm.slane %v404, 5
    %419 = vst [vmem:[#allocation1] ss:$9 sm:$0xff] %v115
    %v420 = vld [vmem:[#allocation1] sm:$0xff]
    %v421 = vld [vmem:[#allocation1 + $0x9] sm:$0xff]
    %v422 = vld [vmem:[#allocation1 + $0x12] sm:$0xff]
    %v423 = vld [vmem:[#allocation1 + $0x1b] sm:$0xff]
    %v424 = vld [vmem:[#allocation1 + $0x24] sm:$0xff]
    %v425 = vld [vmem:[#allocation1 + $0x2d] sm:$0xff]
    %v720 = vunpack.c.l.b16 %v116
    %v721 = vunpack.c.h.b16 %v116
    %v722 = vunpack.c.l.b16 %v117
    %v723 = vunpack.c.h.b16 %v117
    %v724 = vunpack.c.l.b16 %v118
    %v725 = vunpack.c.h.b16 %v118
    %v726 = vunpack.c.l.b16 %v119
    %v727 = vunpack.c.h.b16 %v119
    %v728 = vunpack.c.l.b16 %v120
    %v729 = vunpack.c.h.b16 %v120
    %v730 = vunpack.c.l.b16 %v121
    %v731 = vunpack.c.h.b16 %v121
    %v732 = vunpack.c.l.b16 %v122
    %v733 = vunpack.c.h.b16 %v122
    %v734 = vunpack.c.l.b16 %v123
    %v735 = vunpack.c.h.b16 %v123
    %v736 = vunpack.c.l.b16 %v124
    %v737 = vunpack.c.h.b16 %v124
    %v738 = vunpack.c.l.b16 %v125
    %v739 = vunpack.c.h.b16 %v125
    %v740 = vunpack.c.l.b16 %v126
    %v741 = vunpack.c.h.b16 %v126
    %v742 = vunpack.c.l.b16 %v127
    %v743 = vunpack.c.h.b16 %v127
    %v744 = vunpack.c.l.b16 %v128
    %v745 = vunpack.c.h.b16 %v128
    %v746 = vunpack.c.l.b16 %v129
    %v747 = vunpack.c.h.b16 %v129
    %v748 = vunpack.c.l.b16 %v130
    %v749 = vunpack.c.h.b16 %v130
    %v750 = vunpack.c.l.b16 %v131
    %v751 = vunpack.c.h.b16 %v131
    %v752 = vunpack.c.l.b16 %v132
    %v753 = vunpack.c.h.b16 %v132
    %v754 = vunpack.c.l.b16 %v133
    %v755 = vunpack.c.h.b16 %v133
    %v756 = vunpack.c.l.b16 %v134
    %v757 = vunpack.c.h.b16 %v134
    %v758 = vunpack.c.l.b16 %v135
    %v759 = vunpack.c.h.b16 %v135
    %v760 = vunpack.c.l.b16 %v136
    %v761 = vunpack.c.h.b16 %v136
    %v762 = vunpack.c.l.b16 %v137
    %v763 = vunpack.c.h.b16 %v137
    %v764 = vunpack.c.l.b16 %v138
    %v765 = vunpack.c.h.b16 %v138
    %v766 = vunpack.c.l.b16 %v139
    %v767 = vunpack.c.h.b16 %v139
    %v768 = vunpack.c.l.b16 %v140
    %v769 = vunpack.c.h.b16 %v140
    %v770 = vunpack.c.l.b16 %v141
    %v771 = vunpack.c.h.b16 %v141
    %v772 = vunpack.c.l.b16 %v142
    %v773 = vunpack.c.h.b16 %v142
    %v774 = vunpack.c.l.b16 %v143
    %v775 = vunpack.c.h.b16 %v143
    %v776 = vunpack.c.l.b16 %v144
    %v777 = vunpack.c.h.b16 %v144
    %v778 = vunpack.c.l.b16 %v145
    %v779 = vunpack.c.h.b16 %v145
    %v780 = vunpack.c.l.b16 %v146
    %v781 = vunpack.c.h.b16 %v146
    %v782 = vunpack.c.l.b16 %v147
    %v783 = vunpack.c.h.b16 %v147
    %v784 = vunpack.c.l.b16 %v148
    %v785 = vunpack.c.h.b16 %v148
    %v786 = vunpack.c.l.b16 %v149
    %v787 = vunpack.c.h.b16 %v149
    %v788 = vunpack.c.l.b16 %v150
    %v789 = vunpack.c.h.b16 %v150
    %v790 = vunpack.c.l.b16 %v151
    %v791 = vunpack.c.h.b16 %v151
    %v792 = vunpack.c.l.b16 %v152
    %v793 = vunpack.c.h.b16 %v152
    %v794 = vunpack.c.l.b16 %v153
    %v795 = vunpack.c.h.b16 %v153
    %v796 = vunpack.c.l.b16 %v154
    %v797 = vunpack.c.h.b16 %v154
    %v798 = vunpack.c.l.b16 %v155
    %v799 = vunpack.c.h.b16 %v155
    %v800 = vunpack.c.l.b16 %v156
    %v801 = vunpack.c.h.b16 %v156
    %v802 = vunpack.c.l.b16 %v157
    %v803 = vunpack.c.h.b16 %v157
    %v804 = vunpack.c.l.b16 %v158
    %v805 = vunpack.c.h.b16 %v158
    %v806 = vunpack.c.l.b16 %v159
    %v807 = vunpack.c.h.b16 %v159
    %v808 = vunpack.c.l.b16 %v160
    %v809 = vunpack.c.h.b16 %v160
    %v810 = vunpack.c.l.b16 %v161
    %v811 = vunpack.c.h.b16 %v161
    %v812 = vunpack.c.l.b16 %v162
    %v813 = vunpack.c.h.b16 %v162
    %v814 = vunpack.c.l.b16 %v163
    %v815 = vunpack.c.h.b16 %v163
    %v816 = vunpack.c.l.b16 %v164
    %v817 = vunpack.c.h.b16 %v164
    %v818 = vunpack.c.l.b16 %v165
    %v819 = vunpack.c.h.b16 %v165
    %v820 = vunpack.c.l.b16 %v166
    %v821 = vunpack.c.h.b16 %v166
    %v822 = vunpack.c.l.b16 %v167
    %v823 = vunpack.c.h.b16 %v167
    %v824 = vunpack.c.l.b16 %v168
    %v825 = vunpack.c.h.b16 %v168
    %v826 = vunpack.c.l.b16 %v169
    %v827 = vunpack.c.h.b16 %v169
    %v828 = vunpack.c.l.b16 %v170
    %v829 = vunpack.c.h.b16 %v170
    %v830 = vunpack.c.l.b16 %v171
    %v831 = vunpack.c.h.b16 %v171
    %v832 = vunpack.c.l.b16 %v172
    %v833 = vunpack.c.h.b16 %v172
    %v834 = vunpack.c.l.b16 %v173
    %v835 = vunpack.c.h.b16 %v173
    %v836 = vunpack.c.l.b16 %v174
    %v837 = vunpack.c.h.b16 %v174
    %v838 = vunpack.c.l.b16 %v175
    %v839 = vunpack.c.h.b16 %v175
    %v840 = vunpack.c.l.b16 %v176
    %v841 = vunpack.c.h.b16 %v176
    %v842 = vunpack.c.l.b16 %v177
    %v843 = vunpack.c.h.b16 %v177
    %v844 = vunpack.c.l.b16 %v178
    %v845 = vunpack.c.h.b16 %v178
    %v846 = vunpack.c.l.b16 %v179
    %v847 = vunpack.c.h.b16 %v179
    %v848 = vunpack.c.l.b16 %v180
    %v849 = vunpack.c.h.b16 %v180
    %v850 = vunpack.c.l.b16 %v181
    %v851 = vunpack.c.h.b16 %v181
    %v852 = vunpack.c.l.b16 %v182
    %v853 = vunpack.c.h.b16 %v182
    %v854 = vunpack.c.l.b16 %v183
    %v855 = vunpack.c.h.b16 %v183
    %v856 = vunpack.c.l.b16 %v184
    %v857 = vunpack.c.h.b16 %v184
    %v858 = vunpack.c.l.b16 %v185
    %v859 = vunpack.c.h.b16 %v185
    %v860 = vunpack.c.l.b16 %v186
    %v861 = vunpack.c.h.b16 %v186
    %v862 = vunpack.c.l.b16 %v187
    %v863 = vunpack.c.h.b16 %v187
    %v864 = vunpack.c.l.b16 %v188
    %v865 = vunpack.c.h.b16 %v188
    %v866 = vunpack.c.l.b16 %v189
    %v867 = vunpack.c.h.b16 %v189
    %v868 = vunpack.c.l.b16 %v190
    %v869 = vunpack.c.h.b16 %v190
    %v870 = vunpack.c.l.b16 %v191
    %v871 = vunpack.c.h.b16 %v191
    %v872 = vunpack.c.l.b16 %v192
    %v873 = vunpack.c.h.b16 %v192
    %v874 = vunpack.c.l.b16 %v193
    %v875 = vunpack.c.h.b16 %v193
    %v876 = vunpack.c.l.b16 %v194
    %v877 = vunpack.c.h.b16 %v194
    %v878 = vunpack.c.l.b16 %v195
    %v879 = vunpack.c.h.b16 %v195
    %v880 = vunpack.c.l.b16 %v196
    %v881 = vunpack.c.h.b16 %v196
    %v882 = vunpack.c.l.b16 %v197
    %v883 = vunpack.c.h.b16 %v197
    %v884 = vunpack.c.l.b16 %v198
    %v885 = vunpack.c.h.b16 %v198
    %v886 = vunpack.c.l.b16 %v199
    %v887 = vunpack.c.h.b16 %v199
    %v888 = vunpack.c.l.b16 %v200
    %v889 = vunpack.c.h.b16 %v200
    %v890 = vunpack.c.l.b16 %v201
    %v891 = vunpack.c.h.b16 %v201
    %v892 = vunpack.c.l.b16 %v202
    %v893 = vunpack.c.h.b16 %v202
    %v894 = vunpack.c.l.b16 %v203
    %v895 = vunpack.c.h.b16 %v203
    %v896 = vunpack.c.l.b16 %v204
    %v897 = vunpack.c.h.b16 %v204
    %v898 = vunpack.c.l.b16 %v205
    %v899 = vunpack.c.h.b16 %v205
    %v900 = vunpack.c.l.b16 %v206
    %v901 = vunpack.c.h.b16 %v206
    %v902 = vunpack.c.l.b16 %v207
    %v903 = vunpack.c.h.b16 %v207
    %v904 = vunpack.c.l.b16 %v208
    %v905 = vunpack.c.h.b16 %v208
    %v906 = vunpack.c.l.b16 %v209
    %v907 = vunpack.c.h.b16 %v209
    %v908 = vunpack.c.l.b16 %v210
    %v909 = vunpack.c.h.b16 %v210
    %v910 = vunpack.c.l.b16 %v211
    %v911 = vunpack.c.h.b16 %v211
    %v912 = vunpack.c.l.b16 %v212
    %v913 = vunpack.c.h.b16 %v212
    %v914 = vunpack.c.l.b16 %v213
    %v915 = vunpack.c.h.b16 %v213
    %v916 = vunpack.c.l.b16 %v214
    %v917 = vunpack.c.h.b16 %v214
    %v918 = vunpack.c.l.b16 %v215
    %v919 = vunpack.c.h.b16 %v215
    %v920 = vunpack.c.l.b16 %v216
    %v921 = vunpack.c.h.b16 %v216
    %v922 = vunpack.c.l.b16 %v217
    %v923 = vunpack.c.h.b16 %v217
    %v924 = vunpack.c.l.b16 %v218
    %v925 = vunpack.c.h.b16 %v218
    %v926 = vunpack.c.l.b16 %v219
    %v927 = vunpack.c.h.b16 %v219
    %v928 = vunpack.c.l.b16 %v220
    %v929 = vunpack.c.h.b16 %v220
    %v930 = vunpack.c.l.b16 %v221
    %v931 = vunpack.c.h.b16 %v221
    %v932 = vunpack.c.l.b16 %v222
    %v933 = vunpack.c.h.b16 %v222
    %v934 = vunpack.c.l.b16 %v223
    %v935 = vunpack.c.h.b16 %v223
    %v936 = vunpack.c.l.b16 %v224
    %v937 = vunpack.c.h.b16 %v224
    %v938 = vunpack.c.l.b16 %v225
    %v939 = vunpack.c.h.b16 %v225
    %v940 = vunpack.c.l.b16 %v226
    %v941 = vunpack.c.h.b16 %v226
    %v942 = vunpack.c.l.b16 %v227
    %v943 = vunpack.c.h.b16 %v227
    %v944 = vunpack.c.l.b16 %v228
    %v945 = vunpack.c.h.b16 %v228
    %v946 = vunpack.c.l.b16 %v229
    %v947 = vunpack.c.h.b16 %v229
    %v948 = vunpack.c.l.b16 %v230
    %v949 = vunpack.c.h.b16 %v230
    %v950 = vunpack.c.l.b16 %v231
    %v951 = vunpack.c.h.b16 %v231
    %v952 = vunpack.c.l.b16 %v232
    %v953 = vunpack.c.h.b16 %v232
    %v954 = vunpack.c.l.b16 %v233
    %v955 = vunpack.c.h.b16 %v233
    %v956 = vunpack.c.l.b16 %v234
    %v957 = vunpack.c.h.b16 %v234
    %v958 = vunpack.c.l.b16 %v235
    %v959 = vunpack.c.h.b16 %v235
    %v960 = vunpack.c.l.b16 %v236
    %v961 = vunpack.c.h.b16 %v236
    %v962 = vunpack.c.l.b16 %v237
    %v963 = vunpack.c.h.b16 %v237
    %v964 = vunpack.c.l.b16 %v238
    %v965 = vunpack.c.h.b16 %v238
    %v966 = vunpack.c.l.b16 %v239
    %v967 = vunpack.c.h.b16 %v239
    %v968 = vunpack.c.l.b16 %v240
    %v969 = vunpack.c.h.b16 %v240
    %v970 = vunpack.c.l.b16 %v241
    %v971 = vunpack.c.h.b16 %v241
    %v972 = vunpack.c.l.b16 %v242
    %v973 = vunpack.c.h.b16 %v242
    %v974 = vunpack.c.l.b16 %v243
    %v975 = vunpack.c.h.b16 %v243
    %v976 = vunpack.c.l.b16 %v244
    %v977 = vunpack.c.h.b16 %v244
    %v978 = vunpack.c.l.b16 %v245
    %v979 = vunpack.c.h.b16 %v245
    %v980 = vunpack.c.l.b16 %v246
    %v981 = vunpack.c.h.b16 %v246
    %v982 = vunpack.c.l.b16 %v247
    %v983 = vunpack.c.h.b16 %v247
    %v984 = vunpack.c.l.b16 %v248
    %v985 = vunpack.c.h.b16 %v248
    %v986 = vunpack.c.l.b16 %v249
    %v987 = vunpack.c.h.b16 %v249
    %v988 = vunpack.c.l.b16 %v250
    %v989 = vunpack.c.h.b16 %v250
    %v990 = vunpack.c.l.b16 %v251
    %v991 = vunpack.c.h.b16 %v251
    %v992 = vunpack.c.l.b16 %v252
    %v993 = vunpack.c.h.b16 %v252
    %v994 = vunpack.c.l.b16 %v253
    %v995 = vunpack.c.h.b16 %v253
    %v996 = vunpack.c.l.b16 %v254
    %v997 = vunpack.c.h.b16 %v254
    %v998 = vunpack.c.l.b16 %v255
    %v999 = vunpack.c.h.b16 %v255
    %v1000 = vunpack.c.l.b16 %v256
    %v1001 = vunpack.c.h.b16 %v256
    %v1002 = vunpack.c.l.b16 %v257
    %v1003 = vunpack.c.h.b16 %v257
    %v1004 = vunpack.c.l.b16 %v258
    %v1005 = vunpack.c.h.b16 %v258
    %v1006 = vunpack.c.l.b16 %v259
    %v1007 = vunpack.c.h.b16 %v259
    %v1008 = vunpack.c.l.b16 %v260
    %v1009 = vunpack.c.h.b16 %v260
    %v1010 = vunpack.c.l.b16 %v261
    %v1011 = vunpack.c.h.b16 %v261
    %v1012 = vunpack.c.l.b16 %v262
    %v1013 = vunpack.c.h.b16 %v262
    %v1014 = vunpack.c.l.b16 %v263
    %v1015 = vunpack.c.h.b16 %v263
    %v1016 = vunpack.c.l.b16 %v264
    %v1017 = vunpack.c.h.b16 %v264
    %v1018 = vunpack.c.l.b16 %v265
    %v1019 = vunpack.c.h.b16 %v265
    %v1020 = vunpack.c.l.b16 %v266
    %v1021 = vunpack.c.h.b16 %v266
    %v1022 = vunpack.c.l.b16 %v267
    %v1023 = vunpack.c.h.b16 %v267
    %v1024 = vunpack.c.l.b16 %v268
    %v1025 = vunpack.c.h.b16 %v268
    %v1026 = vunpack.c.l.b16 %v269
    %v1027 = vunpack.c.h.b16 %v269
    %v1028 = vunpack.c.l.b16 %v270
    %v1029 = vunpack.c.h.b16 %v270
    %v1030 = vunpack.c.l.b16 %v271
    %v1031 = vunpack.c.h.b16 %v271
    %v1032 = vunpack.c.l.b16 %v272
    %v1033 = vunpack.c.h.b16 %v272
    %v1034 = vunpack.c.l.b16 %v273
    %v1035 = vunpack.c.h.b16 %v273
    %v1036 = vunpack.c.l.b16 %v274
    %v1037 = vunpack.c.h.b16 %v274
    %v1038 = vunpack.c.l.b16 %v275
    %v1039 = vunpack.c.h.b16 %v275
    %v1040 = vunpack.c.l.b16 %v276
    %v1041 = vunpack.c.h.b16 %v276
    %v1042 = vunpack.c.l.b16 %v277
    %v1043 = vunpack.c.h.b16 %v277
    %v1044 = vunpack.c.l.b16 %v278
    %v1045 = vunpack.c.h.b16 %v278
    %v1046 = vunpack.c.l.b16 %v279
    %v1047 = vunpack.c.h.b16 %v279
    %v1048 = vunpack.c.l.b16 %v280
    %v1049 = vunpack.c.h.b16 %v280
    %v1050 = vunpack.c.l.b16 %v281
    %v1051 = vunpack.c.h.b16 %v281
    %v1052 = vunpack.c.l.b16 %v282
    %v1053 = vunpack.c.h.b16 %v282
    %v1054 = vunpack.c.l.b16 %v283
    %v1055 = vunpack.c.h.b16 %v283
    %v1056 = vunpack.c.l.b16 %v284
    %v1057 = vunpack.c.h.b16 %v284
    %v1058 = vunpack.c.l.b16 %v285
    %v1059 = vunpack.c.h.b16 %v285
    %v1060 = vunpack.c.l.b16 %v286
    %v1061 = vunpack.c.h.b16 %v286
    %v1062 = vunpack.c.l.b16 %v287
    %v1063 = vunpack.c.h.b16 %v287
    %v1064 = vunpack.c.l.b16 %v288
    %v1065 = vunpack.c.h.b16 %v288
    %v1066 = vunpack.c.l.b16 %v289
    %v1067 = vunpack.c.h.b16 %v289
    %v1068 = vunpack.c.l.b16 %v290
    %v1069 = vunpack.c.h.b16 %v290
    %v1070 = vunpack.c.l.b16 %v291
    %v1071 = vunpack.c.h.b16 %v291
    %v1072 = vunpack.c.l.b16 %v292
    %v1073 = vunpack.c.h.b16 %v292
    %v1074 = vunpack.c.l.b16 %v293
    %v1075 = vunpack.c.h.b16 %v293
    %v1076 = vunpack.c.l.b16 %v294
    %v1077 = vunpack.c.h.b16 %v294
    %v1078 = vunpack.c.l.b16 %v295
    %v1079 = vunpack.c.h.b16 %v295
    %v1080 = vunpack.c.l.b16 %v296
    %v1081 = vunpack.c.h.b16 %v296
    %v1082 = vunpack.c.l.b16 %v297
    %v1083 = vunpack.c.h.b16 %v297
    %v1084 = vunpack.c.l.b16 %v298
    %v1085 = vunpack.c.h.b16 %v298
    %v1086 = vunpack.c.l.b16 %v299
    %v1087 = vunpack.c.h.b16 %v299
    %v1088 = vunpack.c.l.b16 %v300
    %v1089 = vunpack.c.h.b16 %v300
    %v1090 = vunpack.c.l.b16 %v301
    %v1091 = vunpack.c.h.b16 %v301
    %v1092 = vunpack.c.l.b16 %v302
    %v1093 = vunpack.c.h.b16 %v302
    %v1094 = vunpack.c.l.b16 %v303
    %v1095 = vunpack.c.h.b16 %v303
    %v1096 = vunpack.c.l.b16 %v304
    %v1097 = vunpack.c.h.b16 %v304
    %v1098 = vunpack.c.l.b16 %v305
    %v1099 = vunpack.c.h.b16 %v305
    %v1100 = vunpack.c.l.b16 %v306
    %v1101 = vunpack.c.h.b16 %v306
    %v1102 = vunpack.c.l.b16 %v307
    %v1103 = vunpack.c.h.b16 %v307
    %v1104 = vunpack.c.l.b16 %v308
    %v1105 = vunpack.c.h.b16 %v308
    %v1106 = vunpack.c.l.b16 %v309
    %v1107 = vunpack.c.h.b16 %v309
    %v1108 = vunpack.c.l.b16 %v310
    %v1109 = vunpack.c.h.b16 %v310
    %v1110 = vunpack.c.l.b16 %v311
    %v1111 = vunpack.c.h.b16 %v311
    %v1112 = vunpack.c.l.b16 %v312
    %v1113 = vunpack.c.h.b16 %v312
    %v1114 = vunpack.c.l.b16 %v313
    %v1115 = vunpack.c.h.b16 %v313
    %v1116 = vunpack.c.l.b16 %v314
    %v1117 = vunpack.c.h.b16 %v314
    %v1118 = vunpack.c.l.b16 %v315
    %v1119 = vunpack.c.h.b16 %v315
    %v1120 = vunpack.c.l.b16 %v316
    %v1121 = vunpack.c.h.b16 %v316
    %v1122 = vunpack.c.l.b16 %v317
    %v1123 = vunpack.c.h.b16 %v317
    %v1124 = vunpack.c.l.b16 %v318
    %v1125 = vunpack.c.h.b16 %v318
    %v1126 = vunpack.c.l.b16 %v319
    %v1127 = vunpack.c.h.b16 %v319
    %v1128 = vunpack.c.l.b16 %v320
    %v1129 = vunpack.c.h.b16 %v320
    %v1130 = vunpack.c.l.b16 %v321
    %v1131 = vunpack.c.h.b16 %v321
    %v1132 = vunpack.c.l.b16 %v322
    %v1133 = vunpack.c.h.b16 %v322
    %v1134 = vunpack.c.l.b16 %v323
    %v1135 = vunpack.c.h.b16 %v323
    %v1136 = vunpack.c.l.b16 %v324
    %v1137 = vunpack.c.h.b16 %v324
    %v1138 = vunpack.c.l.b16 %v325
    %v1139 = vunpack.c.h.b16 %v325
    %v1140 = vunpack.c.l.b16 %v326
    %v1141 = vunpack.c.h.b16 %v326
    %v1142 = vunpack.c.l.b16 %v327
    %v1143 = vunpack.c.h.b16 %v327
    %v1144 = vunpack.c.l.b16 %v328
    %v1145 = vunpack.c.h.b16 %v328
    %v1146 = vunpack.c.l.b16 %v329
    %v1147 = vunpack.c.h.b16 %v329
    %v1148 = vunpack.c.l.b16 %v330
    %v1149 = vunpack.c.h.b16 %v330
    %v1150 = vunpack.c.l.b16 %v331
    %v1151 = vunpack.c.h.b16 %v331
    %v1152 = vunpack.c.l.b16 %v332
    %v1153 = vunpack.c.h.b16 %v332
    %v1154 = vunpack.c.l.b16 %v333
    %v1155 = vunpack.c.h.b16 %v333
    %v1156 = vunpack.c.l.b16 %v334
    %v1157 = vunpack.c.h.b16 %v334
    %v1158 = vunpack.c.l.b16 %v335
    %v1159 = vunpack.c.h.b16 %v335
    %v1160 = vunpack.c.l.b16 %v336
    %v1161 = vunpack.c.h.b16 %v336
    %v1162 = vunpack.c.l.b16 %v337
    %v1163 = vunpack.c.h.b16 %v337
    %v1164 = vunpack.c.l.b16 %v338
    %v1165 = vunpack.c.h.b16 %v338
    %v1166 = vunpack.c.l.b16 %v339
    %v1167 = vunpack.c.h.b16 %v339
    %v1168 = vunpack.c.l.b16 %v340
    %v1169 = vunpack.c.h.b16 %v340
    %v1170 = vunpack.c.l.b16 %v341
    %v1171 = vunpack.c.h.b16 %v341
    %v1172 = vunpack.c.l.b16 %v342
    %v1173 = vunpack.c.h.b16 %v342
    %v1174 = vunpack.c.l.b16 %v343
    %v1175 = vunpack.c.h.b16 %v343
    %v1176 = vunpack.c.l.b16 %v344
    %v1177 = vunpack.c.h.b16 %v344
    %v1178 = vunpack.c.l.b16 %v345
    %v1179 = vunpack.c.h.b16 %v345
    %v1180 = vunpack.c.l.b16 %v346
    %v1181 = vunpack.c.h.b16 %v346
    %v1182 = vunpack.c.l.b16 %v347
    %v1183 = vunpack.c.h.b16 %v347
    %v1184 = vunpack.c.l.b16 %v348
    %v1185 = vunpack.c.h.b16 %v348
    %v1186 = vunpack.c.l.b16 %v349
    %v1187 = vunpack.c.h.b16 %v349
    %v1188 = vunpack.c.l.b16 %v350
    %v1189 = vunpack.c.h.b16 %v350
    %v1190 = vunpack.c.l.b16 %v351
    %v1191 = vunpack.c.h.b16 %v351
    %v1192 = vunpack.c.l.b16 %v352
    %v1193 = vunpack.c.h.b16 %v352
    %v1194 = vunpack.c.l.b16 %v353
    %v1195 = vunpack.c.h.b16 %v353
    %v1196 = vunpack.c.l.b16 %v354
    %v1197 = vunpack.c.h.b16 %v354
    %v1198 = vunpack.c.l.b16 %v355
    %v1199 = vunpack.c.h.b16 %v355
    %v1200 = vunpack.c.l.b16 %v356
    %v1201 = vunpack.c.h.b16 %v356
    %v1202 = vunpack.c.l.b16 %v357
    %v1203 = vunpack.c.h.b16 %v357
    %v1204 = vunpack.c.l.b16 %v358
    %v1205 = vunpack.c.h.b16 %v358
    %v1206 = vunpack.c.l.b16 %v359
    %v1207 = vunpack.c.h.b16 %v359
    %v1208 = vunpack.c.l.b16 %v360
    %v1209 = vunpack.c.h.b16 %v360
    %v1210 = vunpack.c.l.b16 %v361
    %v1211 = vunpack.c.h.b16 %v361
    %v1212 = vunpack.c.l.b16 %v362
    %v1213 = vunpack.c.h.b16 %v362
    %v1214 = vunpack.c.l.b16 %v363
    %v1215 = vunpack.c.h.b16 %v363
    %v1216 = vunpack.c.l.b16 %v364
    %v1217 = vunpack.c.h.b16 %v364
    %v1218 = vunpack.c.l.b16 %v365
    %v1219 = vunpack.c.h.b16 %v365
    %v1220 = vunpack.c.l.b16 %v366
    %v1221 = vunpack.c.h.b16 %v366
    %v1222 = vunpack.c.l.b16 %v367
    %v1223 = vunpack.c.h.b16 %v367
    %v1224 = vunpack.c.l.b16 %v368
    %v1225 = vunpack.c.h.b16 %v368
    %v1226 = vunpack.c.l.b16 %v369
    %v1227 = vunpack.c.h.b16 %v369
    %v1228 = vunpack.c.l.b16 %v370
    %v1229 = vunpack.c.h.b16 %v370
    %v1230 = vunpack.c.l.b16 %v371
    %v1231 = vunpack.c.h.b16 %v371
    %v1232 = vunpack.c.l.b16 %v372
    %v1233 = vunpack.c.h.b16 %v372
    %v1234 = vunpack.c.l.b16 %v373
    %v1235 = vunpack.c.h.b16 %v373
    %v1236 = vunpack.c.l.b16 %v374
    %v1237 = vunpack.c.h.b16 %v374
    %v1238 = vunpack.c.l.b16 %v375
    %v1239 = vunpack.c.h.b16 %v375
    %v1240 = vunpack.c.l.b16 %v376
    %v1241 = vunpack.c.h.b16 %v376
    %v1242 = vunpack.c.l.b16 %v377
    %v1243 = vunpack.c.h.b16 %v377
    %v1244 = vunpack.c.l.b16 %v378
    %v1245 = vunpack.c.h.b16 %v378
    %v1246 = vunpack.c.l.b16 %v379
    %v1247 = vunpack.c.h.b16 %v379
    %v1248 = vunpack.c.l.b16 %v380
    %v1249 = vunpack.c.h.b16 %v380
    %v1250 = vunpack.c.l.b16 %v381
    %v1251 = vunpack.c.h.b16 %v381
    %v1252 = vunpack.c.l.b16 %v382
    %v1253 = vunpack.c.h.b16 %v382
    %v1254 = vunpack.c.l.b16 %v383
    %v1255 = vunpack.c.h.b16 %v383
    %v1256 = vunpack.c.l.b16 %v384
    %v1257 = vunpack.c.h.b16 %v384
    %v1258 = vunpack.c.l.b16 %v385
    %v1259 = vunpack.c.h.b16 %v385
    %v1260 = vunpack.c.l.b16 %v386
    %v1261 = vunpack.c.h.b16 %v386
    %v1262 = vunpack.c.l.b16 %v387
    %v1263 = vunpack.c.h.b16 %v387
    %v1264 = vunpack.c.l.b16 %v388
    %v1265 = vunpack.c.h.b16 %v388
    %v1266 = vunpack.c.l.b16 %v389
    %v1267 = vunpack.c.h.b16 %v389
    %v1268 = vunpack.c.l.b16 %v390
    %v1269 = vunpack.c.h.b16 %v390
    %v1270 = vunpack.c.l.b16 %v391
    %v1271 = vunpack.c.h.b16 %v391
    %v1272 = vunpack.c.l.b16 %v392
    %v1273 = vunpack.c.h.b16 %v392
    %v1274 = vunpack.c.l.b16 %v393
    %v1275 = vunpack.c.h.b16 %v393
    %v1276 = vunpack.c.l.b16 %v394
    %v1277 = vunpack.c.h.b16 %v394
    %v1278 = vunpack.c.l.b16 %v395
    %v1279 = vunpack.c.h.b16 %v395
    %v1280 = vunpack.c.l.b16 %v396
    %v1281 = vunpack.c.h.b16 %v396
    %v1282 = vunpack.c.l.b16 %v397
    %v1283 = vunpack.c.h.b16 %v397
    %v1284 = vunpack.c.l.b16 %v398
    %v1285 = vunpack.c.h.b16 %v398
    %v1286 = vunpack.c.l.b16 %v399
    %v1287 = vunpack.c.h.b16 %v399
    %v1288 = vunpack.c.l.b16 %v400
    %v1289 = vunpack.c.h.b16 %v400
    %v1290 = vunpack.c.l.b16 %v401
    %v1291 = vunpack.c.h.b16 %v401
    %v1292 = vunpack.c.l.b16 %v402
    %v1293 = vunpack.c.h.b16 %v402
    %v1294 = vunpack.c.l.b16 %v403
    %v1295 = vunpack.c.h.b16 %v403
    %v1296 = vpack.c.b16 %v726, %v720
    %v1297 = vpack.c.b16 %v727, %v721
    %v1298 = vpack.c.b16 %v728, %v722
    %v1299 = vpack.c.b16 %v729, %v723
    %v1300 = vpack.c.b16 %v730, %v724
    %v1301 = vpack.c.b16 %v731, %v725
    %v1302 = vpack.c.b16 %v738, %v732
    %v1303 = vpack.c.b16 %v739, %v733
    %v1304 = vpack.c.b16 %v740, %v734
    %v1305 = vpack.c.b16 %v741, %v735
    %v1306 = vpack.c.b16 %v742, %v736
    %v1307 = vpack.c.b16 %v743, %v737
    %v1308 = vpack.c.b16 %v750, %v744
    %v1309 = vpack.c.b16 %v751, %v745
    %v1310 = vpack.c.b16 %v752, %v746
    %v1311 = vpack.c.b16 %v753, %v747
    %v1312 = vpack.c.b16 %v754, %v748
    %v1313 = vpack.c.b16 %v755, %v749
    %v1314 = vpack.c.b16 %v762, %v756
    %v1315 = vpack.c.b16 %v763, %v757
    %v1316 = vpack.c.b16 %v764, %v758
    %v1317 = vpack.c.b16 %v765, %v759
    %v1318 = vpack.c.b16 %v766, %v760
    %v1319 = vpack.c.b16 %v767, %v761
    %v1320 = vpack.c.b16 %v774, %v768
    %v1321 = vpack.c.b16 %v775, %v769
    %v1322 = vpack.c.b16 %v776, %v770
    %v1323 = vpack.c.b16 %v777, %v771
    %v1324 = vpack.c.b16 %v778, %v772
    %v1325 = vpack.c.b16 %v779, %v773
    %v1326 = vpack.c.b16 %v786, %v780
    %v1327 = vpack.c.b16 %v787, %v781
    %v1328 = vpack.c.b16 %v788, %v782
    %v1329 = vpack.c.b16 %v789, %v783
    %v1330 = vpack.c.b16 %v790, %v784
    %v1331 = vpack.c.b16 %v791, %v785
    %v1332 = vpack.c.b16 %v798, %v792
    %v1333 = vpack.c.b16 %v799, %v793
    %v1334 = vpack.c.b16 %v800, %v794
    %v1335 = vpack.c.b16 %v801, %v795
    %v1336 = vpack.c.b16 %v802, %v796
    %v1337 = vpack.c.b16 %v803, %v797
    %v1338 = vpack.c.b16 %v810, %v804
    %v1339 = vpack.c.b16 %v811, %v805
    %v1340 = vpack.c.b16 %v812, %v806
    %v1341 = vpack.c.b16 %v813, %v807
    %v1342 = vpack.c.b16 %v814, %v808
    %v1343 = vpack.c.b16 %v815, %v809
    %v1344 = vpack.c.b16 %v822, %v816
    %v1345 = vpack.c.b16 %v823, %v817
    %v1346 = vpack.c.b16 %v824, %v818
    %v1347 = vpack.c.b16 %v825, %v819
    %v1348 = vpack.c.b16 %v826, %v820
    %v1349 = vpack.c.b16 %v827, %v821
    %v1350 = vpack.c.b16 %v834, %v828
    %v1351 = vpack.c.b16 %v835, %v829
    %v1352 = vpack.c.b16 %v836, %v830
    %v1353 = vpack.c.b16 %v837, %v831
    %v1354 = vpack.c.b16 %v838, %v832
    %v1355 = vpack.c.b16 %v839, %v833
    %v1356 = vpack.c.b16 %v846, %v840
    %v1357 = vpack.c.b16 %v847, %v841
    %v1358 = vpack.c.b16 %v848, %v842
    %v1359 = vpack.c.b16 %v849, %v843
    %v1360 = vpack.c.b16 %v850, %v844
    %v1361 = vpack.c.b16 %v851, %v845
    %v1362 = vpack.c.b16 %v858, %v852
    %v1363 = vpack.c.b16 %v859, %v853
    %v1364 = vpack.c.b16 %v860, %v854
    %v1365 = vpack.c.b16 %v861, %v855
    %v1366 = vpack.c.b16 %v862, %v856
    %v1367 = vpack.c.b16 %v863, %v857
    %v1368 = vpack.c.b16 %v870, %v864
    %v1369 = vpack.c.b16 %v871, %v865
    %v1370 = vpack.c.b16 %v872, %v866
    %v1371 = vpack.c.b16 %v873, %v867
    %v1372 = vpack.c.b16 %v874, %v868
    %v1373 = vpack.c.b16 %v875, %v869
    %v1374 = vpack.c.b16 %v882, %v876
    %v1375 = vpack.c.b16 %v883, %v877
    %v1376 = vpack.c.b16 %v884, %v878
    %v1377 = vpack.c.b16 %v885, %v879
    %v1378 = vpack.c.b16 %v886, %v880
    %v1379 = vpack.c.b16 %v887, %v881
    %v1380 = vpack.c.b16 %v894, %v888
    %v1381 = vpack.c.b16 %v895, %v889
    %v1382 = vpack.c.b16 %v896, %v890
    %v1383 = vpack.c.b16 %v897, %v891
    %v1384 = vpack.c.b16 %v898, %v892
    %v1385 = vpack.c.b16 %v899, %v893
    %v1386 = vpack.c.b16 %v906, %v900
    %v1387 = vpack.c.b16 %v907, %v901
    %v1388 = vpack.c.b16 %v908, %v902
    %v1389 = vpack.c.b16 %v909, %v903
    %v1390 = vpack.c.b16 %v910, %v904
    %v1391 = vpack.c.b16 %v911, %v905
    %v1392 = vpack.c.b16 %v918, %v912
    %v1393 = vpack.c.b16 %v919, %v913
    %v1394 = vpack.c.b16 %v920, %v914
    %v1395 = vpack.c.b16 %v921, %v915
    %v1396 = vpack.c.b16 %v922, %v916
    %v1397 = vpack.c.b16 %v923, %v917
    %v1398 = vpack.c.b16 %v930, %v924
    %v1399 = vpack.c.b16 %v931, %v925
    %v1400 = vpack.c.b16 %v932, %v926
    %v1401 = vpack.c.b16 %v933, %v927
    %v1402 = vpack.c.b16 %v934, %v928
    %v1403 = vpack.c.b16 %v935, %v929
    %v1404 = vpack.c.b16 %v942, %v936
    %v1405 = vpack.c.b16 %v943, %v937
    %v1406 = vpack.c.b16 %v944, %v938
    %v1407 = vpack.c.b16 %v945, %v939
    %v1408 = vpack.c.b16 %v946, %v940
    %v1409 = vpack.c.b16 %v947, %v941
    %v1410 = vpack.c.b16 %v954, %v948
    %v1411 = vpack.c.b16 %v955, %v949
    %v1412 = vpack.c.b16 %v956, %v950
    %v1413 = vpack.c.b16 %v957, %v951
    %v1414 = vpack.c.b16 %v958, %v952
    %v1415 = vpack.c.b16 %v959, %v953
    %v1416 = vpack.c.b16 %v966, %v960
    %v1417 = vpack.c.b16 %v967, %v961
    %v1418 = vpack.c.b16 %v968, %v962
    %v1419 = vpack.c.b16 %v969, %v963
    %v1420 = vpack.c.b16 %v970, %v964
    %v1421 = vpack.c.b16 %v971, %v965
    %v1422 = vpack.c.b16 %v978, %v972
    %v1423 = vpack.c.b16 %v979, %v973
    %v1424 = vpack.c.b16 %v980, %v974
    %v1425 = vpack.c.b16 %v981, %v975
    %v1426 = vpack.c.b16 %v982, %v976
    %v1427 = vpack.c.b16 %v983, %v977
    %v1428 = vpack.c.b16 %v990, %v984
    %v1429 = vpack.c.b16 %v991, %v985
    %v1430 = vpack.c.b16 %v992, %v986
    %v1431 = vpack.c.b16 %v993, %v987
    %v1432 = vpack.c.b16 %v994, %v988
    %v1433 = vpack.c.b16 %v995, %v989
    %v1434 = vpack.c.b16 %v1002, %v996
    %v1435 = vpack.c.b16 %v1003, %v997
    %v1436 = vpack.c.b16 %v1004, %v998
    %v1437 = vpack.c.b16 %v1005, %v999
    %v1438 = vpack.c.b16 %v1006, %v1000
    %v1439 = vpack.c.b16 %v1007, %v1001
    %v1440 = vpack.c.b16 %v1014, %v1008
    %v1441 = vpack.c.b16 %v1015, %v1009
    %v1442 = vpack.c.b16 %v1016, %v1010
    %v1443 = vpack.c.b16 %v1017, %v1011
    %v1444 = vpack.c.b16 %v1018, %v1012
    %v1445 = vpack.c.b16 %v1019, %v1013
    %v1446 = vpack.c.b16 %v1026, %v1020
    %v1447 = vpack.c.b16 %v1027, %v1021
    %v1448 = vpack.c.b16 %v1028, %v1022
    %v1449 = vpack.c.b16 %v1029, %v1023
    %v1450 = vpack.c.b16 %v1030, %v1024
    %v1451 = vpack.c.b16 %v1031, %v1025
    %v1452 = vpack.c.b16 %v1038, %v1032
    %v1453 = vpack.c.b16 %v1039, %v1033
    %v1454 = vpack.c.b16 %v1040, %v1034
    %v1455 = vpack.c.b16 %v1041, %v1035
    %v1456 = vpack.c.b16 %v1042, %v1036
    %v1457 = vpack.c.b16 %v1043, %v1037
    %v1458 = vpack.c.b16 %v1050, %v1044
    %v1459 = vpack.c.b16 %v1051, %v1045
    %v1460 = vpack.c.b16 %v1052, %v1046
    %v1461 = vpack.c.b16 %v1053, %v1047
    %v1462 = vpack.c.b16 %v1054, %v1048
    %v1463 = vpack.c.b16 %v1055, %v1049
    %v1464 = vpack.c.b16 %v1062, %v1056
    %v1465 = vpack.c.b16 %v1063, %v1057
    %v1466 = vpack.c.b16 %v1064, %v1058
    %v1467 = vpack.c.b16 %v1065, %v1059
    %v1468 = vpack.c.b16 %v1066, %v1060
    %v1469 = vpack.c.b16 %v1067, %v1061
    %v1470 = vpack.c.b16 %v1074, %v1068
    %v1471 = vpack.c.b16 %v1075, %v1069
    %v1472 = vpack.c.b16 %v1076, %v1070
    %v1473 = vpack.c.b16 %v1077, %v1071
    %v1474 = vpack.c.b16 %v1078, %v1072
    %v1475 = vpack.c.b16 %v1079, %v1073
    %v1476 = vpack.c.b16 %v1086, %v1080
    %v1477 = vpack.c.b16 %v1087, %v1081
    %v1478 = vpack.c.b16 %v1088, %v1082
    %v1479 = vpack.c.b16 %v1089, %v1083
    %v1480 = vpack.c.b16 %v1090, %v1084
    %v1481 = vpack.c.b16 %v1091, %v1085
    %v1482 = vpack.c.b16 %v1098, %v1092
    %v1483 = vpack.c.b16 %v1099, %v1093
    %v1484 = vpack.c.b16 %v1100, %v1094
    %v1485 = vpack.c.b16 %v1101, %v1095
    %v1486 = vpack.c.b16 %v1102, %v1096
    %v1487 = vpack.c.b16 %v1103, %v1097
    %v1488 = vpack.c.b16 %v1110, %v1104
    %v1489 = vpack.c.b16 %v1111, %v1105
    %v1490 = vpack.c.b16 %v1112, %v1106
    %v1491 = vpack.c.b16 %v1113, %v1107
    %v1492 = vpack.c.b16 %v1114, %v1108
    %v1493 = vpack.c.b16 %v1115, %v1109
    %v1494 = vpack.c.b16 %v1122, %v1116
    %v1495 = vpack.c.b16 %v1123, %v1117
    %v1496 = vpack.c.b16 %v1124, %v1118
    %v1497 = vpack.c.b16 %v1125, %v1119
    %v1498 = vpack.c.b16 %v1126, %v1120
    %v1499 = vpack.c.b16 %v1127, %v1121
    %v1500 = vpack.c.b16 %v1134, %v1128
    %v1501 = vpack.c.b16 %v1135, %v1129
    %v1502 = vpack.c.b16 %v1136, %v1130
    %v1503 = vpack.c.b16 %v1137, %v1131
    %v1504 = vpack.c.b16 %v1138, %v1132
    %v1505 = vpack.c.b16 %v1139, %v1133
    %v1506 = vpack.c.b16 %v1146, %v1140
    %v1507 = vpack.c.b16 %v1147, %v1141
    %v1508 = vpack.c.b16 %v1148, %v1142
    %v1509 = vpack.c.b16 %v1149, %v1143
    %v1510 = vpack.c.b16 %v1150, %v1144
    %v1511 = vpack.c.b16 %v1151, %v1145
    %v1512 = vpack.c.b16 %v1158, %v1152
    %v1513 = vpack.c.b16 %v1159, %v1153
    %v1514 = vpack.c.b16 %v1160, %v1154
    %v1515 = vpack.c.b16 %v1161, %v1155
    %v1516 = vpack.c.b16 %v1162, %v1156
    %v1517 = vpack.c.b16 %v1163, %v1157
    %v1518 = vpack.c.b16 %v1170, %v1164
    %v1519 = vpack.c.b16 %v1171, %v1165
    %v1520 = vpack.c.b16 %v1172, %v1166
    %v1521 = vpack.c.b16 %v1173, %v1167
    %v1522 = vpack.c.b16 %v1174, %v1168
    %v1523 = vpack.c.b16 %v1175, %v1169
    %v1524 = vpack.c.b16 %v1182, %v1176
    %v1525 = vpack.c.b16 %v1183, %v1177
    %v1526 = vpack.c.b16 %v1184, %v1178
    %v1527 = vpack.c.b16 %v1185, %v1179
    %v1528 = vpack.c.b16 %v1186, %v1180
    %v1529 = vpack.c.b16 %v1187, %v1181
    %v1530 = vpack.c.b16 %v1194, %v1188
    %v1531 = vpack.c.b16 %v1195, %v1189
    %v1532 = vpack.c.b16 %v1196, %v1190
    %v1533 = vpack.c.b16 %v1197, %v1191
    %v1534 = vpack.c.b16 %v1198, %v1192
    %v1535 = vpack.c.b16 %v1199, %v1193
    %v1536 = vpack.c.b16 %v1206, %v1200
    %v1537 = vpack.c.b16 %v1207, %v1201
    %v1538 = vpack.c.b16 %v1208, %v1202
    %v1539 = vpack.c.b16 %v1209, %v1203
    %v1540 = vpack.c.b16 %v1210, %v1204
    %v1541 = vpack.c.b16 %v1211, %v1205
    %v1542 = vpack.c.b16 %v1218, %v1212
    %v1543 = vpack.c.b16 %v1219, %v1213
    %v1544 = vpack.c.b16 %v1220, %v1214
    %v1545 = vpack.c.b16 %v1221, %v1215
    %v1546 = vpack.c.b16 %v1222, %v1216
    %v1547 = vpack.c.b16 %v1223, %v1217
    %v1548 = vpack.c.b16 %v1230, %v1224
    %v1549 = vpack.c.b16 %v1231, %v1225
    %v1550 = vpack.c.b16 %v1232, %v1226
    %v1551 = vpack.c.b16 %v1233, %v1227
    %v1552 = vpack.c.b16 %v1234, %v1228
    %v1553 = vpack.c.b16 %v1235, %v1229
    %v1554 = vpack.c.b16 %v1242, %v1236
    %v1555 = vpack.c.b16 %v1243, %v1237
    %v1556 = vpack.c.b16 %v1244, %v1238
    %v1557 = vpack.c.b16 %v1245, %v1239
    %v1558 = vpack.c.b16 %v1246, %v1240
    %v1559 = vpack.c.b16 %v1247, %v1241
    %v1560 = vpack.c.b16 %v1254, %v1248
    %v1561 = vpack.c.b16 %v1255, %v1249
    %v1562 = vpack.c.b16 %v1256, %v1250
    %v1563 = vpack.c.b16 %v1257, %v1251
    %v1564 = vpack.c.b16 %v1258, %v1252
    %v1565 = vpack.c.b16 %v1259, %v1253
    %v1566 = vpack.c.b16 %v1266, %v1260
    %v1567 = vpack.c.b16 %v1267, %v1261
    %v1568 = vpack.c.b16 %v1268, %v1262
    %v1569 = vpack.c.b16 %v1269, %v1263
    %v1570 = vpack.c.b16 %v1270, %v1264
    %v1571 = vpack.c.b16 %v1271, %v1265
    %v1572 = vpack.c.b16 %v1278, %v1272
    %v1573 = vpack.c.b16 %v1279, %v1273
    %v1574 = vpack.c.b16 %v1280, %v1274
    %v1575 = vpack.c.b16 %v1281, %v1275
    %v1576 = vpack.c.b16 %v1282, %v1276
    %v1577 = vpack.c.b16 %v1283, %v1277
    %v1578 = vpack.c.b16 %v1290, %v1284
    %v1579 = vpack.c.b16 %v1291, %v1285
    %v1580 = vpack.c.b16 %v1292, %v1286
    %v1581 = vpack.c.b16 %v1293, %v1287
    %v1582 = vpack.c.b16 %v1294, %v1288
    %v1583 = vpack.c.b16 %v1295, %v1289
    %1872 = vmatpush.bf16.msra.mxu0 %v1338
    %1873 = vmatpush.bf16.msra.mxu0 %v1332
    %1874 = vmatpush.bf16.msra.mxu0 %v1326
    %1875 = vmatpush.bf16.msra.mxu0 %v1320
    %1876 = vmatpush.bf16.msra.mxu0 %v1314
    %1877 = vmatpush.bf16.msra.mxu0 %v1308
    %1878 = vmatpush.bf16.msra.mxu0 %v1302
    %1879 = vmatpush.bf16.msra.mxu0 %v1296
    %1880 = vmatmul.bf16.gmra.mxu0 %v420
    %v1881 = vpop.f32.mrf.mxu0
    %v1882 = vadd.f32 %v406, %v1881
    %v1883 = vpop.f32.mrf.mxu0
    %1884 = vdwg.mxu0
    %1885 = vmatpush.bf16.msra.mxu0 %v1386
    %1886 = vmatpush.bf16.msra.mxu0 %v1380
    %1887 = vmatpush.bf16.msra.mxu0 %v1374
    %1888 = vmatpush.bf16.msra.mxu0 %v1368
    %1889 = vmatpush.bf16.msra.mxu0 %v1362
    %1890 = vmatpush.bf16.msra.mxu0 %v1356
    %1891 = vmatpush.bf16.msra.mxu0 %v1350
    %1892 = vmatpush.bf16.msra.mxu0 %v1344
    %1893 = vmatmul.bf16.gmra.mxu0 %v421
    %v1894 = vpop.f32.mrf.mxu0
    %v1895 = vadd.f32 %v1882, %v1894
    %v1896 = vpop.f32.mrf.mxu0
    %1897 = vdwg.mxu0
    %1898 = vmatpush.bf16.msra.mxu0 %v1434
    %1899 = vmatpush.bf16.msra.mxu0 %v1428
    %1900 = vmatpush.bf16.msra.mxu0 %v1422
    %1901 = vmatpush.bf16.msra.mxu0 %v1416
    %1902 = vmatpush.bf16.msra.mxu0 %v1410
    %1903 = vmatpush.bf16.msra.mxu0 %v1404
    %1904 = vmatpush.bf16.msra.mxu0 %v1398
    %1905 = vmatpush.bf16.msra.mxu0 %v1392
    %1906 = vmatmul.bf16.gmra.mxu0 %v422
    %v1907 = vpop.f32.mrf.mxu0
    %v1908 = vadd.f32 %v1895, %v1907
    %v1909 = vpop.f32.mrf.mxu0
    %1910 = vdwg.mxu0
    %1911 = vmatpush.bf16.msra.mxu0 %v1482
    %1912 = vmatpush.bf16.msra.mxu0 %v1476
    %1913 = vmatpush.bf16.msra.mxu0 %v1470
    %1914 = vmatpush.bf16.msra.mxu0 %v1464
    %1915 = vmatpush.bf16.msra.mxu0 %v1458
    %1916 = vmatpush.bf16.msra.mxu0 %v1452
    %1917 = vmatpush.bf16.msra.mxu0 %v1446
    %1918 = vmatpush.bf16.msra.mxu0 %v1440
    %1919 = vmatmul.bf16.gmra.mxu0 %v423
    %v1920 = vpop.f32.mrf.mxu0
    %v1921 = vadd.f32 %v1908, %v1920
    %v1922 = vpop.f32.mrf.mxu0
    %1923 = vdwg.mxu0
    %1924 = vmatpush.bf16.msra.mxu0 %v1530
    %1925 = vmatpush.bf16.msra.mxu0 %v1524
    %1926 = vmatpush.bf16.msra.mxu0 %v1518
    %1927 = vmatpush.bf16.msra.mxu0 %v1512
    %1928 = vmatpush.bf16.msra.mxu0 %v1506
    %1929 = vmatpush.bf16.msra.mxu0 %v1500
    %1930 = vmatpush.bf16.msra.mxu0 %v1494
    %1931 = vmatpush.bf16.msra.mxu0 %v1488
    %1932 = vmatmul.bf16.gmra.mxu0 %v424
    %v1933 = vpop.f32.mrf.mxu0
    %v1934 = vadd.f32 %v1921, %v1933
    %v1935 = vpop.f32.mrf.mxu0
    %1936 = vdwg.mxu0
    %1937 = vmatpush.bf16.msra.mxu0 %v1578
    %1938 = vmatpush.bf16.msra.mxu0 %v1572
    %1939 = vmatpush.bf16.msra.mxu0 %v1566
    %1940 = vmatpush.bf16.msra.mxu0 %v1560
    %1941 = vmatpush.bf16.msra.mxu0 %v1554
    %1942 = vmatpush.bf16.msra.mxu0 %v1548
    %1943 = vmatpush.bf16.msra.mxu0 %v1542
    %1944 = vmatpush.bf16.msra.mxu0 %v1536
    %1945 = vmatmul.bf16.gmra.mxu0 %v425
    %v1946 = vpop.f32.mrf.mxu0
    %v1947 = vadd.f32 %v1934, %v1946
    %v1948 = vpop.f32.mrf.mxu0
    %1949 = vdwg.mxu0
    %1950 = vmatpush.bf16.msra.mxu0 %v1339
    %1951 = vmatpush.bf16.msra.mxu0 %v1333
    %1952 = vmatpush.bf16.msra.mxu0 %v1327
    %1953 = vmatpush.bf16.msra.mxu0 %v1321
    %1954 = vmatpush.bf16.msra.mxu0 %v1315
    %1955 = vmatpush.bf16.msra.mxu0 %v1309
    %1956 = vmatpush.bf16.msra.mxu0 %v1303
    %1957 = vmatpush.bf16.msra.mxu0 %v1297
    %1958 = vmatmul.bf16.gmra.mxu0 %v420
    %v1959 = vpop.f32.mrf.mxu0
    %v1960 = vadd.f32 %v407, %v1959
    %v1961 = vpop.f32.mrf.mxu0
    %1962 = vdwg.mxu0
    %1963 = vmatpush.bf16.msra.mxu0 %v1387
    %1964 = vmatpush.bf16.msra.mxu0 %v1381
    %1965 = vmatpush.bf16.msra.mxu0 %v1375
    %1966 = vmatpush.bf16.msra.mxu0 %v1369
    %1967 = vmatpush.bf16.msra.mxu0 %v1363
    %1968 = vmatpush.bf16.msra.mxu0 %v1357
    %1969 = vmatpush.bf16.msra.mxu0 %v1351
    %1970 = vmatpush.bf16.msra.mxu0 %v1345
    %1971 = vmatmul.bf16.gmra.mxu0 %v421
    %v1972 = vpop.f32.mrf.mxu0
    %v1973 = vadd.f32 %v1960, %v1972
    %v1974 = vpop.f32.mrf.mxu0
    %1975 = vdwg.mxu0
    %1976 = vmatpush.bf16.msra.mxu0 %v1435
    %1977 = vmatpush.bf16.msra.mxu0 %v1429
    %1978 = vmatpush.bf16.msra.mxu0 %v1423
    %1979 = vmatpush.bf16.msra.mxu0 %v1417
    %1980 = vmatpush.bf16.msra.mxu0 %v1411
    %1981 = vmatpush.bf16.msra.mxu0 %v1405
    %1982 = vmatpush.bf16.msra.mxu0 %v1399
    %1983 = vmatpush.bf16.msra.mxu0 %v1393
    %1984 = vmatmul.bf16.gmra.mxu0 %v422
    %v1985 = vpop.f32.mrf.mxu0
    %v1986 = vadd.f32 %v1973, %v1985
    %v1987 = vpop.f32.mrf.mxu0
    %1988 = vdwg.mxu0
    %1989 = vmatpush.bf16.msra.mxu0 %v1483
    %1990 = vmatpush.bf16.msra.mxu0 %v1477
    %1991 = vmatpush.bf16.msra.mxu0 %v1471
    %1992 = vmatpush.bf16.msra.mxu0 %v1465
    %1993 = vmatpush.bf16.msra.mxu0 %v1459
    %1994 = vmatpush.bf16.msra.mxu0 %v1453
    %1995 = vmatpush.bf16.msra.mxu0 %v1447
    %1996 = vmatpush.bf16.msra.mxu0 %v1441
    %1997 = vmatmul.bf16.gmra.mxu0 %v423
    %v1998 = vpop.f32.mrf.mxu0
    %v1999 = vadd.f32 %v1986, %v1998
    %v2000 = vpop.f32.mrf.mxu0
    %2001 = vdwg.mxu0
    %2002 = vmatpush.bf16.msra.mxu0 %v1531
    %2003 = vmatpush.bf16.msra.mxu0 %v1525
    %2004 = vmatpush.bf16.msra.mxu0 %v1519
    %2005 = vmatpush.bf16.msra.mxu0 %v1513
    %2006 = vmatpush.bf16.msra.mxu0 %v1507
    %2007 = vmatpush.bf16.msra.mxu0 %v1501
    %2008 = vmatpush.bf16.msra.mxu0 %v1495
    %2009 = vmatpush.bf16.msra.mxu0 %v1489
    %2010 = vmatmul.bf16.gmra.mxu0 %v424
    %v2011 = vpop.f32.mrf.mxu0
    %v2012 = vadd.f32 %v1999, %v2011
    %v2013 = vpop.f32.mrf.mxu0
    %2014 = vdwg.mxu0
    %2015 = vmatpush.bf16.msra.mxu0 %v1579
    %2016 = vmatpush.bf16.msra.mxu0 %v1573
    %2017 = vmatpush.bf16.msra.mxu0 %v1567
    %2018 = vmatpush.bf16.msra.mxu0 %v1561
    %2019 = vmatpush.bf16.msra.mxu0 %v1555
    %2020 = vmatpush.bf16.msra.mxu0 %v1549
    %2021 = vmatpush.bf16.msra.mxu0 %v1543
    %2022 = vmatpush.bf16.msra.mxu0 %v1537
    %2023 = vmatmul.bf16.gmra.mxu0 %v425
    %v2024 = vpop.f32.mrf.mxu0
    %v2025 = vadd.f32 %v2012, %v2024
    %v2026 = vpop.f32.mrf.mxu0
    %2027 = vdwg.mxu0
    %2028 = vmatpush.bf16.msra.mxu0 %v1340
    %2029 = vmatpush.bf16.msra.mxu0 %v1334
    %2030 = vmatpush.bf16.msra.mxu0 %v1328
    %2031 = vmatpush.bf16.msra.mxu0 %v1322
    %2032 = vmatpush.bf16.msra.mxu0 %v1316
    %2033 = vmatpush.bf16.msra.mxu0 %v1310
    %2034 = vmatpush.bf16.msra.mxu0 %v1304
    %2035 = vmatpush.bf16.msra.mxu0 %v1298
    %2036 = vmatmul.bf16.gmra.mxu0 %v420
    %v2037 = vpop.f32.mrf.mxu0
    %v2038 = vadd.f32 %v408, %v2037
    %v2039 = vpop.f32.mrf.mxu0
    %2040 = vdwg.mxu0
    %2041 = vmatpush.bf16.msra.mxu0 %v1388
    %2042 = vmatpush.bf16.msra.mxu0 %v1382
    %2043 = vmatpush.bf16.msra.mxu0 %v1376
    %2044 = vmatpush.bf16.msra.mxu0 %v1370
    %2045 = vmatpush.bf16.msra.mxu0 %v1364
    %2046 = vmatpush.bf16.msra.mxu0 %v1358
    %2047 = vmatpush.bf16.msra.mxu0 %v1352
    %2048 = vmatpush.bf16.msra.mxu0 %v1346
    %2049 = vmatmul.bf16.gmra.mxu0 %v421
    %v2050 = vpop.f32.mrf.mxu0
    %v2051 = vadd.f32 %v2038, %v2050
    %v2052 = vpop.f32.mrf.mxu0
    %2053 = vdwg.mxu0
    %2054 = vmatpush.bf16.msra.mxu0 %v1436
    %2055 = vmatpush.bf16.msra.mxu0 %v1430
    %2056 = vmatpush.bf16.msra.mxu0 %v1424
    %2057 = vmatpush.bf16.msra.mxu0 %v1418
    %2058 = vmatpush.bf16.msra.mxu0 %v1412
    %2059 = vmatpush.bf16.msra.mxu0 %v1406
    %2060 = vmatpush.bf16.msra.mxu0 %v1400
    %2061 = vmatpush.bf16.msra.mxu0 %v1394
    %2062 = vmatmul.bf16.gmra.mxu0 %v422
    %v2063 = vpop.f32.mrf.mxu0
    %v2064 = vadd.f32 %v2051, %v2063
    %v2065 = vpop.f32.mrf.mxu0
    %2066 = vdwg.mxu0
    %2067 = vmatpush.bf16.msra.mxu0 %v1484
    %2068 = vmatpush.bf16.msra.mxu0 %v1478
    %2069 = vmatpush.bf16.msra.mxu0 %v1472
    %2070 = vmatpush.bf16.msra.mxu0 %v1466
    %2071 = vmatpush.bf16.msra.mxu0 %v1460
    %2072 = vmatpush.bf16.msra.mxu0 %v1454
    %2073 = vmatpush.bf16.msra.mxu0 %v1448
    %2074 = vmatpush.bf16.msra.mxu0 %v1442
    %2075 = vmatmul.bf16.gmra.mxu0 %v423
    %v2076 = vpop.f32.mrf.mxu0
    %v2077 = vadd.f32 %v2064, %v2076
    %v2078 = vpop.f32.mrf.mxu0
    %2079 = vdwg.mxu0
    %2080 = vmatpush.bf16.msra.mxu0 %v1532
    %2081 = vmatpush.bf16.msra.mxu0 %v1526
    %2082 = vmatpush.bf16.msra.mxu0 %v1520
    %2083 = vmatpush.bf16.msra.mxu0 %v1514
    %2084 = vmatpush.bf16.msra.mxu0 %v1508
    %2085 = vmatpush.bf16.msra.mxu0 %v1502
    %2086 = vmatpush.bf16.msra.mxu0 %v1496
    %2087 = vmatpush.bf16.msra.mxu0 %v1490
    %2088 = vmatmul.bf16.gmra.mxu0 %v424
    %v2089 = vpop.f32.mrf.mxu0
    %v2090 = vadd.f32 %v2077, %v2089
    %v2091 = vpop.f32.mrf.mxu0
    %2092 = vdwg.mxu0
    %2093 = vmatpush.bf16.msra.mxu0 %v1580
    %2094 = vmatpush.bf16.msra.mxu0 %v1574
    %2095 = vmatpush.bf16.msra.mxu0 %v1568
    %2096 = vmatpush.bf16.msra.mxu0 %v1562
    %2097 = vmatpush.bf16.msra.mxu0 %v1556
    %2098 = vmatpush.bf16.msra.mxu0 %v1550
    %2099 = vmatpush.bf16.msra.mxu0 %v1544
    %2100 = vmatpush.bf16.msra.mxu0 %v1538
    %2101 = vmatmul.bf16.gmra.mxu0 %v425
    %v2102 = vpop.f32.mrf.mxu0
    %v2103 = vadd.f32 %v2090, %v2102
    %v2104 = vpop.f32.mrf.mxu0
    %2105 = vdwg.mxu0
    %2106 = vmatpush.bf16.msra.mxu0 %v1341
    %2107 = vmatpush.bf16.msra.mxu0 %v1335
    %2108 = vmatpush.bf16.msra.mxu0 %v1329
    %2109 = vmatpush.bf16.msra.mxu0 %v1323
    %2110 = vmatpush.bf16.msra.mxu0 %v1317
    %2111 = vmatpush.bf16.msra.mxu0 %v1311
    %2112 = vmatpush.bf16.msra.mxu0 %v1305
    %2113 = vmatpush.bf16.msra.mxu0 %v1299
    %2114 = vmatmul.bf16.gmra.mxu0 %v420
    %v2115 = vpop.f32.mrf.mxu0
    %v2116 = vadd.f32 %v409, %v2115
    %v2117 = vpop.f32.mrf.mxu0
    %2118 = vdwg.mxu0
    %2119 = vmatpush.bf16.msra.mxu0 %v1389
    %2120 = vmatpush.bf16.msra.mxu0 %v1383
    %2121 = vmatpush.bf16.msra.mxu0 %v1377
    %2122 = vmatpush.bf16.msra.mxu0 %v1371
    %2123 = vmatpush.bf16.msra.mxu0 %v1365
    %2124 = vmatpush.bf16.msra.mxu0 %v1359
    %2125 = vmatpush.bf16.msra.mxu0 %v1353
    %2126 = vmatpush.bf16.msra.mxu0 %v1347
    %2127 = vmatmul.bf16.gmra.mxu0 %v421
    %v2128 = vpop.f32.mrf.mxu0
    %v2129 = vadd.f32 %v2116, %v2128
    %v2130 = vpop.f32.mrf.mxu0
    %2131 = vdwg.mxu0
    %2132 = vmatpush.bf16.msra.mxu0 %v1437
    %2133 = vmatpush.bf16.msra.mxu0 %v1431
    %2134 = vmatpush.bf16.msra.mxu0 %v1425
    %2135 = vmatpush.bf16.msra.mxu0 %v1419
    %2136 = vmatpush.bf16.msra.mxu0 %v1413
    %2137 = vmatpush.bf16.msra.mxu0 %v1407
    %2138 = vmatpush.bf16.msra.mxu0 %v1401
    %2139 = vmatpush.bf16.msra.mxu0 %v1395
    %2140 = vmatmul.bf16.gmra.mxu0 %v422
    %v2141 = vpop.f32.mrf.mxu0
    %v2142 = vadd.f32 %v2129, %v2141
    %v2143 = vpop.f32.mrf.mxu0
    %2144 = vdwg.mxu0
    %2145 = vmatpush.bf16.msra.mxu0 %v1485
    %2146 = vmatpush.bf16.msra.mxu0 %v1479
    %2147 = vmatpush.bf16.msra.mxu0 %v1473
    %2148 = vmatpush.bf16.msra.mxu0 %v1467
    %2149 = vmatpush.bf16.msra.mxu0 %v1461
    %2150 = vmatpush.bf16.msra.mxu0 %v1455
    %2151 = vmatpush.bf16.msra.mxu0 %v1449
    %2152 = vmatpush.bf16.msra.mxu0 %v1443
    %2153 = vmatmul.bf16.gmra.mxu0 %v423
    %v2154 = vpop.f32.mrf.mxu0
    %v2155 = vadd.f32 %v2142, %v2154
    %v2156 = vpop.f32.mrf.mxu0
    %2157 = vdwg.mxu0
    %2158 = vmatpush.bf16.msra.mxu0 %v1533
    %2159 = vmatpush.bf16.msra.mxu0 %v1527
    %2160 = vmatpush.bf16.msra.mxu0 %v1521
    %2161 = vmatpush.bf16.msra.mxu0 %v1515
    %2162 = vmatpush.bf16.msra.mxu0 %v1509
    %2163 = vmatpush.bf16.msra.mxu0 %v1503
    %2164 = vmatpush.bf16.msra.mxu0 %v1497
    %2165 = vmatpush.bf16.msra.mxu0 %v1491
    %2166 = vmatmul.bf16.gmra.mxu0 %v424
    %v2167 = vpop.f32.mrf.mxu0
    %v2168 = vadd.f32 %v2155, %v2167
    %v2169 = vpop.f32.mrf.mxu0
    %2170 = vdwg.mxu0
    %2171 = vmatpush.bf16.msra.mxu0 %v1581
    %2172 = vmatpush.bf16.msra.mxu0 %v1575
    %2173 = vmatpush.bf16.msra.mxu0 %v1569
    %2174 = vmatpush.bf16.msra.mxu0 %v1563
    %2175 = vmatpush.bf16.msra.mxu0 %v1557
    %2176 = vmatpush.bf16.msra.mxu0 %v1551
    %2177 = vmatpush.bf16.msra.mxu0 %v1545
    %2178 = vmatpush.bf16.msra.mxu0 %v1539
    %2179 = vmatmul.bf16.gmra.mxu0 %v425
    %v2180 = vpop.f32.mrf.mxu0
    %v2181 = vadd.f32 %v2168, %v2180
    %v2182 = vpop.f32.mrf.mxu0
    %2183 = vdwg.mxu0
    %2184 = vmatpush.bf16.msra.mxu0 %v1342
    %2185 = vmatpush.bf16.msra.mxu0 %v1336
    %2186 = vmatpush.bf16.msra.mxu0 %v1330
    %2187 = vmatpush.bf16.msra.mxu0 %v1324
    %2188 = vmatpush.bf16.msra.mxu0 %v1318
    %2189 = vmatpush.bf16.msra.mxu0 %v1312
    %2190 = vmatpush.bf16.msra.mxu0 %v1306
    %2191 = vmatpush.bf16.msra.mxu0 %v1300
    %2192 = vmatmul.bf16.gmra.mxu0 %v420
    %v2193 = vpop.f32.mrf.mxu0
    %v2194 = vadd.f32 %v410, %v2193
    %v2195 = vpop.f32.mrf.mxu0
    %2196 = vdwg.mxu0
    %2197 = vmatpush.bf16.msra.mxu0 %v1390
    %2198 = vmatpush.bf16.msra.mxu0 %v1384
    %2199 = vmatpush.bf16.msra.mxu0 %v1378
    %2200 = vmatpush.bf16.msra.mxu0 %v1372
    %2201 = vmatpush.bf16.msra.mxu0 %v1366
    %2202 = vmatpush.bf16.msra.mxu0 %v1360
    %2203 = vmatpush.bf16.msra.mxu0 %v1354
    %2204 = vmatpush.bf16.msra.mxu0 %v1348
    %2205 = vmatmul.bf16.gmra.mxu0 %v421
    %v2206 = vpop.f32.mrf.mxu0
    %v2207 = vadd.f32 %v2194, %v2206
    %v2208 = vpop.f32.mrf.mxu0
    %2209 = vdwg.mxu0
    %2210 = vmatpush.bf16.msra.mxu0 %v1438
    %2211 = vmatpush.bf16.msra.mxu0 %v1432
    %2212 = vmatpush.bf16.msra.mxu0 %v1426
    %2213 = vmatpush.bf16.msra.mxu0 %v1420
    %2214 = vmatpush.bf16.msra.mxu0 %v1414
    %2215 = vmatpush.bf16.msra.mxu0 %v1408
    %2216 = vmatpush.bf16.msra.mxu0 %v1402
    %2217 = vmatpush.bf16.msra.mxu0 %v1396
    %2218 = vmatmul.bf16.gmra.mxu0 %v422
    %v2219 = vpop.f32.mrf.mxu0
    %v2220 = vadd.f32 %v2207, %v2219
    %v2221 = vpop.f32.mrf.mxu0
    %2222 = vdwg.mxu0
    %2223 = vmatpush.bf16.msra.mxu0 %v1486
    %2224 = vmatpush.bf16.msra.mxu0 %v1480
    %2225 = vmatpush.bf16.msra.mxu0 %v1474
    %2226 = vmatpush.bf16.msra.mxu0 %v1468
    %2227 = vmatpush.bf16.msra.mxu0 %v1462
    %2228 = vmatpush.bf16.msra.mxu0 %v1456
    %2229 = vmatpush.bf16.msra.mxu0 %v1450
    %2230 = vmatpush.bf16.msra.mxu0 %v1444
    %2231 = vmatmul.bf16.gmra.mxu0 %v423
    %v2232 = vpop.f32.mrf.mxu0
    %v2233 = vadd.f32 %v2220, %v2232
    %v2234 = vpop.f32.mrf.mxu0
    %2235 = vdwg.mxu0
    %2236 = vmatpush.bf16.msra.mxu0 %v1534
    %2237 = vmatpush.bf16.msra.mxu0 %v1528
    %2238 = vmatpush.bf16.msra.mxu0 %v1522
    %2239 = vmatpush.bf16.msra.mxu0 %v1516
    %2240 = vmatpush.bf16.msra.mxu0 %v1510
    %2241 = vmatpush.bf16.msra.mxu0 %v1504
    %2242 = vmatpush.bf16.msra.mxu0 %v1498
    %2243 = vmatpush.bf16.msra.mxu0 %v1492
    %2244 = vmatmul.bf16.gmra.mxu0 %v424
    %v2245 = vpop.f32.mrf.mxu0
    %v2246 = vadd.f32 %v2233, %v2245
    %v2247 = vpop.f32.mrf.mxu0
    %2248 = vdwg.mxu0
    %2249 = vmatpush.bf16.msra.mxu0 %v1582
    %2250 = vmatpush.bf16.msra.mxu0 %v1576
    %2251 = vmatpush.bf16.msra.mxu0 %v1570
    %2252 = vmatpush.bf16.msra.mxu0 %v1564
    %2253 = vmatpush.bf16.msra.mxu0 %v1558
    %2254 = vmatpush.bf16.msra.mxu0 %v1552
    %2255 = vmatpush.bf16.msra.mxu0 %v1546
    %2256 = vmatpush.bf16.msra.mxu0 %v1540
    %2257 = vmatmul.bf16.gmra.mxu0 %v425
    %v2258 = vpop.f32.mrf.mxu0
    %v2259 = vadd.f32 %v2246, %v2258
    %v2260 = vpop.f32.mrf.mxu0
    %2261 = vdwg.mxu0
    %2262 = vmatpush.bf16.msra.mxu0 %v1343
    %2263 = vmatpush.bf16.msra.mxu0 %v1337
    %2264 = vmatpush.bf16.msra.mxu0 %v1331
    %2265 = vmatpush.bf16.msra.mxu0 %v1325
    %2266 = vmatpush.bf16.msra.mxu0 %v1319
    %2267 = vmatpush.bf16.msra.mxu0 %v1313
    %2268 = vmatpush.bf16.msra.mxu0 %v1307
    %2269 = vmatpush.bf16.msra.mxu0 %v1301
    %2270 = vmatmul.bf16.gmra.mxu0 %v420
    %v2271 = vpop.f32.mrf.mxu0
    %v2272 = vadd.f32 %v411, %v2271
    %v2273 = vpop.f32.mrf.mxu0
    %2274 = vdwg.mxu0
    %2275 = vmatpush.bf16.msra.mxu0 %v1391
    %2276 = vmatpush.bf16.msra.mxu0 %v1385
    %2277 = vmatpush.bf16.msra.mxu0 %v1379
    %2278 = vmatpush.bf16.msra.mxu0 %v1373
    %2279 = vmatpush.bf16.msra.mxu0 %v1367
    %2280 = vmatpush.bf16.msra.mxu0 %v1361
    %2281 = vmatpush.bf16.msra.mxu0 %v1355
    %2282 = vmatpush.bf16.msra.mxu0 %v1349
    %2283 = vmatmul.bf16.gmra.mxu0 %v421
    %v2284 = vpop.f32.mrf.mxu0
    %v2285 = vadd.f32 %v2272, %v2284
    %v2286 = vpop.f32.mrf.mxu0
    %2287 = vdwg.mxu0
    %2288 = vmatpush.bf16.msra.mxu0 %v1439
    %2289 = vmatpush.bf16.msra.mxu0 %v1433
    %2290 = vmatpush.bf16.msra.mxu0 %v1427
    %2291 = vmatpush.bf16.msra.mxu0 %v1421
    %2292 = vmatpush.bf16.msra.mxu0 %v1415
    %2293 = vmatpush.bf16.msra.mxu0 %v1409
    %2294 = vmatpush.bf16.msra.mxu0 %v1403
    %2295 = vmatpush.bf16.msra.mxu0 %v1397
    %2296 = vmatmul.bf16.gmra.mxu0 %v422
    %v2297 = vpop.f32.mrf.mxu0
    %v2298 = vadd.f32 %v2285, %v2297
    %v2299 = vpop.f32.mrf.mxu0
    %2300 = vdwg.mxu0
    %2301 = vmatpush.bf16.msra.mxu0 %v1487
    %2302 = vmatpush.bf16.msra.mxu0 %v1481
    %2303 = vmatpush.bf16.msra.mxu0 %v1475
    %2304 = vmatpush.bf16.msra.mxu0 %v1469
    %2305 = vmatpush.bf16.msra.mxu0 %v1463
    %2306 = vmatpush.bf16.msra.mxu0 %v1457
    %2307 = vmatpush.bf16.msra.mxu0 %v1451
    %2308 = vmatpush.bf16.msra.mxu0 %v1445
    %2309 = vmatmul.bf16.gmra.mxu0 %v423
    %v2310 = vpop.f32.mrf.mxu0
    %v2311 = vadd.f32 %v2298, %v2310
    %v2312 = vpop.f32.mrf.mxu0
    %2313 = vdwg.mxu0
    %2314 = vmatpush.bf16.msra.mxu0 %v1535
    %2315 = vmatpush.bf16.msra.mxu0 %v1529
    %2316 = vmatpush.bf16.msra.mxu0 %v1523
    %2317 = vmatpush.bf16.msra.mxu0 %v1517
    %2318 = vmatpush.bf16.msra.mxu0 %v1511
    %2319 = vmatpush.bf16.msra.mxu0 %v1505
    %2320 = vmatpush.bf16.msra.mxu0 %v1499
    %2321 = vmatpush.bf16.msra.mxu0 %v1493
    %2322 = vmatmul.bf16.gmra.mxu0 %v424
    %v2323 = vpop.f32.mrf.mxu0
    %v2324 = vadd.f32 %v2311, %v2323
    %v2325 = vpop.f32.mrf.mxu0
    %2326 = vdwg.mxu0
    %2327 = vmatpush.bf16.msra.mxu0 %v1583
    %2328 = vmatpush.bf16.msra.mxu0 %v1577
    %2329 = vmatpush.bf16.msra.mxu0 %v1571
    %2330 = vmatpush.bf16.msra.mxu0 %v1565
    %2331 = vmatpush.bf16.msra.mxu0 %v1559
    %2332 = vmatpush.bf16.msra.mxu0 %v1553
    %2333 = vmatpush.bf16.msra.mxu0 %v1547
    %2334 = vmatpush.bf16.msra.mxu0 %v1541
    %2335 = vmatmul.bf16.gmra.mxu0 %v425
    %v2336 = vpop.f32.mrf.mxu0
    %v2337 = vadd.f32 %v2324, %v2336
    %v2338 = vpop.f32.mrf.mxu0
    %2339 = vdwg.mxu0
    %v2340 = vtanh.pop %v1947
    %v2341 = vtanh.pop %v2025
    %v2342 = vtanh.pop %v2103
    %v2343 = vtanh.pop %v2181
    %v2344 = vtanh.pop %v2259
    %v2345 = vtanh.pop %v2337
    %v2346 = vpack.c.bf16 %v2340, %v2340
    %v2347 = vpack.c.bf16 %v2341, %v2341
    %v2348 = vpack.c.bf16 %v2342, %v2342
    %v2349 = vpack.c.bf16 %v2343, %v2343
    %v2350 = vpack.c.bf16 %v2344, %v2344
    %v2351 = vpack.c.bf16 %v2345, %v2345
    %v2352 = vld [vmem:[#allocation7] sm:$0xff]
    %v2353 = vld [vmem:[#allocation7 + $0x8] sm:$0xff]
    %v2354 = vld [vmem:[#allocation7 + $0x10] sm:$0xff]
    %v2355 = vld [vmem:[#allocation7 + $0x18] sm:$0xff]
    %v2356 = vld [vmem:[#allocation7 + $0x20] sm:$0xff]
    %v2357 = vld [vmem:[#allocation7 + $0x28] sm:$0xff]
    %v2358 = vld [vmem:[#allocation7 + $0x30] sm:$0xff]
    %v2359 = vld [vmem:[#allocation7 + $0x38] sm:$0xff]
    %v2360 = vld [vmem:[#allocation7 + $0x40] sm:$0xff]
    %v2361 = vld [vmem:[#allocation7 + $0x48] sm:$0xff]
    %v2362 = vld [vmem:[#allocation7 + $0x50] sm:$0xff]
    %v2363 = vld [vmem:[#allocation7 + $0x58] sm:$0xff]
    %v2364 = vld [vmem:[#allocation7 + $0x60] sm:$0xff]
    %v2365 = vld [vmem:[#allocation7 + $0x68] sm:$0xff]
    %v2366 = vld [vmem:[#allocation7 + $0x70] sm:$0xff]
    %v2367 = vld [vmem:[#allocation7 + $0x78] sm:$0xff]
    %v2368 = vld [vmem:[#allocation7 + $0x80] sm:$0xff]
    %v2369 = vld [vmem:[#allocation7 + $0x88] sm:$0xff]
    %v2370 = vld [vmem:[#allocation7 + $0x90] sm:$0xff]
    %v2371 = vld [vmem:[#allocation7 + $0x98] sm:$0xff]
    %v2372 = vld [vmem:[#allocation7 + $0xa0] sm:$0xff]
    %v2373 = vld [vmem:[#allocation7 + $0xa8] sm:$0xff]
    %v2374 = vld [vmem:[#allocation7 + $0xb0] sm:$0xff]
    %v2375 = vld [vmem:[#allocation7 + $0xb8] sm:$0xff]
    %v2376 = vld [vmem:[#allocation7 + $0xc0] sm:$0xff]
    %v2377 = vld [vmem:[#allocation7 + $0xc8] sm:$0xff]
    %v2378 = vld [vmem:[#allocation7 + $0xd0] sm:$0xff]
    %v2379 = vld [vmem:[#allocation7 + $0xd8] sm:$0xff]
    %v2380 = vld [vmem:[#allocation7 + $0xe0] sm:$0xff]
    %v2381 = vld [vmem:[#allocation7 + $0xe8] sm:$0xff]
    %v2382 = vld [vmem:[#allocation7 + $0xf0] sm:$0xff]
    %v2383 = vld [vmem:[#allocation7 + $0xf8] sm:$0xff]
    %v2384 = vld [vmem:[#allocation7 + $0x100] sm:$0xff]
    %v2385 = vld [vmem:[#allocation7 + $0x108] sm:$0xff]
    %v2386 = vld [vmem:[#allocation7 + $0x110] sm:$0xff]
    %v2387 = vld [vmem:[#allocation7 + $0x118] sm:$0xff]
    %v2388 = vld [vmem:[#allocation7 + $0x120] sm:$0xff]
    %v2389 = vld [vmem:[#allocation7 + $0x128] sm:$0xff]
    %v2390 = vld [vmem:[#allocation7 + $0x130] sm:$0xff]
    %v2391 = vld [vmem:[#allocation7 + $0x138] sm:$0xff]
    %v2392 = vld [vmem:[#allocation7 + $0x140] sm:$0xff]
    %v2393 = vld [vmem:[#allocation7 + $0x148] sm:$0xff]
    %v2394 = vld [vmem:[#allocation7 + $0x150] sm:$0xff]
    %v2395 = vld [vmem:[#allocation7 + $0x158] sm:$0xff]
    %v2396 = vld [vmem:[#allocation7 + $0x160] sm:$0xff]
    %v2397 = vld [vmem:[#allocation7 + $0x168] sm:$0xff]
    %v2398 = vld [vmem:[#allocation7 + $0x170] sm:$0xff]
    %v2399 = vld [vmem:[#allocation7 + $0x178] sm:$0xff]
    %v2400 = vld [vmem:[#allocation7 + $0x180] sm:$0xff]
    %v2401 = vld [vmem:[#allocation7 + $0x188] sm:$0xff]
    %v2402 = vld [vmem:[#allocation7 + $0x190] sm:$0xff]
    %v2403 = vld [vmem:[#allocation7 + $0x198] sm:$0xff]
    %v2404 = vld [vmem:[#allocation7 + $0x1a0] sm:$0xff]
    %v2405 = vld [vmem:[#allocation7 + $0x1a8] sm:$0xff]
    %v2406 = vld [vmem:[#allocation7 + $0x1b0] sm:$0xff]
    %v2407 = vld [vmem:[#allocation7 + $0x1b8] sm:$0xff]
    %v2408 = vld [vmem:[#allocation7 + $0x1c0] sm:$0xff]
    %v2409 = vld [vmem:[#allocation7 + $0x1c8] sm:$0xff]
    %v2410 = vld [vmem:[#allocation7 + $0x1d0] sm:$0xff]
    %v2411 = vld [vmem:[#allocation7 + $0x1d8] sm:$0xff]
    %v2412 = vld [vmem:[#allocation7 + $0x1e0] sm:$0xff]
    %v2413 = vld [vmem:[#allocation7 + $0x1e8] sm:$0xff]
    %v2414 = vld [vmem:[#allocation7 + $0x1f0] sm:$0xff]
    %v2415 = vld [vmem:[#allocation7 + $0x1f8] sm:$0xff]
    %v2416 = vld [vmem:[#allocation7 + $0x200] sm:$0xff]
    %v2417 = vld [vmem:[#allocation7 + $0x208] sm:$0xff]
    %v2418 = vld [vmem:[#allocation7 + $0x210] sm:$0xff]
    %v2419 = vld [vmem:[#allocation7 + $0x218] sm:$0xff]
    %v2420 = vld [vmem:[#allocation7 + $0x220] sm:$0xff]
    %v2421 = vld [vmem:[#allocation7 + $0x228] sm:$0xff]
    %v2422 = vld [vmem:[#allocation7 + $0x230] sm:$0xff]
    %v2423 = vld [vmem:[#allocation7 + $0x238] sm:$0xff]
    %v2424 = vld [vmem:[#allocation7 + $0x240] sm:$0xff]
    %v2425 = vld [vmem:[#allocation7 + $0x248] sm:$0xff]
    %v2426 = vld [vmem:[#allocation7 + $0x250] sm:$0xff]
    %v2427 = vld [vmem:[#allocation7 + $0x258] sm:$0xff]
    %v2428 = vld [vmem:[#allocation7 + $0x260] sm:$0xff]
    %v2429 = vld [vmem:[#allocation7 + $0x268] sm:$0xff]
    %v2430 = vld [vmem:[#allocation7 + $0x270] sm:$0xff]
    %v2431 = vld [vmem:[#allocation7 + $0x278] sm:$0xff]
    %v2432 = vld [vmem:[#allocation7 + $0x280] sm:$0xff]
    %v2433 = vld [vmem:[#allocation7 + $0x288] sm:$0xff]
    %v2434 = vld [vmem:[#allocation7 + $0x290] sm:$0xff]
    %v2435 = vld [vmem:[#allocation7 + $0x298] sm:$0xff]
    %v2436 = vld [vmem:[#allocation7 + $0x2a0] sm:$0xff]
    %v2437 = vld [vmem:[#allocation7 + $0x2a8] sm:$0xff]
    %v2438 = vld [vmem:[#allocation7 + $0x2b0] sm:$0xff]
    %v2439 = vld [vmem:[#allocation7 + $0x2b8] sm:$0xff]
    %v2440 = vld [vmem:[#allocation7 + $0x2c0] sm:$0xff]
    %v2441 = vld [vmem:[#allocation7 + $0x2c8] sm:$0xff]
    %v2442 = vld [vmem:[#allocation7 + $0x2d0] sm:$0xff]
    %v2443 = vld [vmem:[#allocation7 + $0x2d8] sm:$0xff]
    %v2444 = vld [vmem:[#allocation7 + $0x2e0] sm:$0xff]
    %v2445 = vld [vmem:[#allocation7 + $0x2e8] sm:$0xff]
    %v2446 = vld [vmem:[#allocation7 + $0x2f0] sm:$0xff]
    %v2447 = vld [vmem:[#allocation7 + $0x2f8] sm:$0xff]
    %v2448 = vld [vmem:[#allocation7 + $0x300] sm:$0xff]
    %v2449 = vld [vmem:[#allocation7 + $0x308] sm:$0xff]
    %v2450 = vld [vmem:[#allocation7 + $0x310] sm:$0xff]
    %v2451 = vld [vmem:[#allocation7 + $0x318] sm:$0xff]
    %v2452 = vld [vmem:[#allocation7 + $0x320] sm:$0xff]
    %v2453 = vld [vmem:[#allocation7 + $0x328] sm:$0xff]
    %v2454 = vld [vmem:[#allocation7 + $0x330] sm:$0xff]
    %v2455 = vld [vmem:[#allocation7 + $0x338] sm:$0xff]
    %v2456 = vld [vmem:[#allocation7 + $0x340] sm:$0xff]
    %v2457 = vld [vmem:[#allocation7 + $0x348] sm:$0xff]
    %v2458 = vld [vmem:[#allocation7 + $0x350] sm:$0xff]
    %v2459 = vld [vmem:[#allocation7 + $0x358] sm:$0xff]
    %v2460 = vld [vmem:[#allocation7 + $0x360] sm:$0xff]
    %v2461 = vld [vmem:[#allocation7 + $0x368] sm:$0xff]
    %v2462 = vld [vmem:[#allocation7 + $0x370] sm:$0xff]
    %v2463 = vld [vmem:[#allocation7 + $0x378] sm:$0xff]
    %v2464 = vld [vmem:[#allocation7 + $0x380] sm:$0xff]
    %v2465 = vld [vmem:[#allocation7 + $0x388] sm:$0xff]
    %v2466 = vld [vmem:[#allocation7 + $0x390] sm:$0xff]
    %v2467 = vld [vmem:[#allocation7 + $0x398] sm:$0xff]
    %v2468 = vld [vmem:[#allocation7 + $0x3a0] sm:$0xff]
    %v2469 = vld [vmem:[#allocation7 + $0x3a8] sm:$0xff]
    %v2470 = vld [vmem:[#allocation7 + $0x3b0] sm:$0xff]
    %v2471 = vld [vmem:[#allocation7 + $0x3b8] sm:$0xff]
    %v2472 = vld [vmem:[#allocation7 + $0x3c0] sm:$0xff]
    %v2473 = vld [vmem:[#allocation7 + $0x3c8] sm:$0xff]
    %v2474 = vld [vmem:[#allocation7 + $0x3d0] sm:$0xff]
    %v2475 = vld [vmem:[#allocation7 + $0x3d8] sm:$0xff]
    %v2476 = vld [vmem:[#allocation7 + $0x3e0] sm:$0xff]
    %v2477 = vld [vmem:[#allocation7 + $0x3e8] sm:$0xff]
    %v2478 = vld [vmem:[#allocation7 + $0x3f0] sm:$0xff]
    %v2479 = vld [vmem:[#allocation7 + $0x3f8] sm:$0xff]
    %v2480 = vld [vmem:[#allocation7 + $0x400] sm:$0xff]
    %v2481 = vld [vmem:[#allocation7 + $0x408] sm:$0xff]
    %v2482 = vld [vmem:[#allocation7 + $0x410] sm:$0xff]
    %v2483 = vld [vmem:[#allocation7 + $0x418] sm:$0xff]
    %v2484 = vld [vmem:[#allocation7 + $0x420] sm:$0xff]
    %v2485 = vld [vmem:[#allocation7 + $0x428] sm:$0xff]
    %v2486 = vld [vmem:[#allocation7 + $0x430] sm:$0xff]
    %v2487 = vld [vmem:[#allocation7 + $0x438] sm:$0xff]
    %v2488 = vld [vmem:[#allocation7 + $0x440] sm:$0xff]
    %v2489 = vld [vmem:[#allocation7 + $0x448] sm:$0xff]
    %v2490 = vld [vmem:[#allocation7 + $0x450] sm:$0xff]
    %v2491 = vld [vmem:[#allocation7 + $0x458] sm:$0xff]
    %v2492 = vld [vmem:[#allocation7 + $0x460] sm:$0xff]
    %v2493 = vld [vmem:[#allocation7 + $0x468] sm:$0xff]
    %v2494 = vld [vmem:[#allocation7 + $0x470] sm:$0xff]
    %v2495 = vld [vmem:[#allocation7 + $0x478] sm:$0xff]
    %v2496 = vld [vmem:[#allocation7 + $0x480] sm:$0xff]
    %v2497 = vld [vmem:[#allocation7 + $0x488] sm:$0xff]
    %v2498 = vld [vmem:[#allocation7 + $0x490] sm:$0xff]
    %v2499 = vld [vmem:[#allocation7 + $0x498] sm:$0xff]
    %v2500 = vld [vmem:[#allocation7 + $0x4a0] sm:$0xff]
    %v2501 = vld [vmem:[#allocation7 + $0x4a8] sm:$0xff]
    %v2502 = vld [vmem:[#allocation7 + $0x4b0] sm:$0xff]
    %v2503 = vld [vmem:[#allocation7 + $0x4b8] sm:$0xff]
    %v2504 = vld [vmem:[#allocation7 + $0x4c0] sm:$0xff]
    %v2505 = vld [vmem:[#allocation7 + $0x4c8] sm:$0xff]
    %v2506 = vld [vmem:[#allocation7 + $0x4d0] sm:$0xff]
    %v2507 = vld [vmem:[#allocation7 + $0x4d8] sm:$0xff]
    %v2508 = vld [vmem:[#allocation7 + $0x4e0] sm:$0xff]
    %v2509 = vld [vmem:[#allocation7 + $0x4e8] sm:$0xff]
    %v2510 = vld [vmem:[#allocation7 + $0x4f0] sm:$0xff]
    %v2511 = vld [vmem:[#allocation7 + $0x4f8] sm:$0xff]
    %v2512 = vld [vmem:[#allocation7 + $0x500] sm:$0xff]
    %v2513 = vld [vmem:[#allocation7 + $0x508] sm:$0xff]
    %v2514 = vld [vmem:[#allocation7 + $0x510] sm:$0xff]
    %v2515 = vld [vmem:[#allocation7 + $0x518] sm:$0xff]
    %v2516 = vld [vmem:[#allocation7 + $0x520] sm:$0xff]
    %v2517 = vld [vmem:[#allocation7 + $0x528] sm:$0xff]
    %v2518 = vld [vmem:[#allocation7 + $0x530] sm:$0xff]
    %v2519 = vld [vmem:[#allocation7 + $0x538] sm:$0xff]
    %v2520 = vld [vmem:[#allocation7 + $0x540] sm:$0xff]
    %v2521 = vld [vmem:[#allocation7 + $0x548] sm:$0xff]
    %v2522 = vld [vmem:[#allocation7 + $0x550] sm:$0xff]
    %v2523 = vld [vmem:[#allocation7 + $0x558] sm:$0xff]
    %v2524 = vld [vmem:[#allocation7 + $0x560] sm:$0xff]
    %v2525 = vld [vmem:[#allocation7 + $0x568] sm:$0xff]
    %v2526 = vld [vmem:[#allocation7 + $0x570] sm:$0xff]
    %v2527 = vld [vmem:[#allocation7 + $0x578] sm:$0xff]
    %v2528 = vld [vmem:[#allocation7 + $0x580] sm:$0xff]
    %v2529 = vld [vmem:[#allocation7 + $0x588] sm:$0xff]
    %v2530 = vld [vmem:[#allocation7 + $0x590] sm:$0xff]
    %v2531 = vld [vmem:[#allocation7 + $0x598] sm:$0xff]
    %v2532 = vld [vmem:[#allocation7 + $0x5a0] sm:$0xff]
    %v2533 = vld [vmem:[#allocation7 + $0x5a8] sm:$0xff]
    %v2534 = vld [vmem:[#allocation7 + $0x5b0] sm:$0xff]
    %v2535 = vld [vmem:[#allocation7 + $0x5b8] sm:$0xff]
    %v2536 = vld [vmem:[#allocation7 + $0x5c0] sm:$0xff]
    %v2537 = vld [vmem:[#allocation7 + $0x5c8] sm:$0xff]
    %v2538 = vld [vmem:[#allocation7 + $0x5d0] sm:$0xff]
    %v2539 = vld [vmem:[#allocation7 + $0x5d8] sm:$0xff]
    %v2540 = vld [vmem:[#allocation7 + $0x5e0] sm:$0xff]
    %v2541 = vld [vmem:[#allocation7 + $0x5e8] sm:$0xff]
    %v2542 = vld [vmem:[#allocation7 + $0x5f0] sm:$0xff]
    %v2543 = vld [vmem:[#allocation7 + $0x5f8] sm:$0xff]
    %v2544 = vld [vmem:[#allocation8] sm:$0xf]
    %v2546 = vperm.slane %v2544, 0
    %v2547 = vperm.slane %v2544, 1
    %v2548 = vperm.slane %v2544, 2
    %v2549 = vperm.slane %v2544, 3
    %v2746 = vunpack.c.l.b16 %v2352
    %v2747 = vunpack.c.h.b16 %v2352
    %v2748 = vunpack.c.l.b16 %v2353
    %v2749 = vunpack.c.h.b16 %v2353
    %v2750 = vunpack.c.l.b16 %v2354
    %v2751 = vunpack.c.h.b16 %v2354
    %v2752 = vunpack.c.l.b16 %v2355
    %v2753 = vunpack.c.h.b16 %v2355
    %v2754 = vunpack.c.l.b16 %v2356
    %v2755 = vunpack.c.h.b16 %v2356
    %v2756 = vunpack.c.l.b16 %v2357
    %v2757 = vunpack.c.h.b16 %v2357
    %v2758 = vunpack.c.l.b16 %v2358
    %v2759 = vunpack.c.h.b16 %v2358
    %v2760 = vunpack.c.l.b16 %v2359
    %v2761 = vunpack.c.h.b16 %v2359
    %v2762 = vunpack.c.l.b16 %v2360
    %v2763 = vunpack.c.h.b16 %v2360
    %v2764 = vunpack.c.l.b16 %v2361
    %v2765 = vunpack.c.h.b16 %v2361
    %v2766 = vunpack.c.l.b16 %v2362
    %v2767 = vunpack.c.h.b16 %v2362
    %v2768 = vunpack.c.l.b16 %v2363
    %v2769 = vunpack.c.h.b16 %v2363
    %v2770 = vunpack.c.l.b16 %v2364
    %v2771 = vunpack.c.h.b16 %v2364
    %v2772 = vunpack.c.l.b16 %v2365
    %v2773 = vunpack.c.h.b16 %v2365
    %v2774 = vunpack.c.l.b16 %v2366
    %v2775 = vunpack.c.h.b16 %v2366
    %v2776 = vunpack.c.l.b16 %v2367
    %v2777 = vunpack.c.h.b16 %v2367
    %v2778 = vunpack.c.l.b16 %v2368
    %v2779 = vunpack.c.h.b16 %v2368
    %v2780 = vunpack.c.l.b16 %v2369
    %v2781 = vunpack.c.h.b16 %v2369
    %v2782 = vunpack.c.l.b16 %v2370
    %v2783 = vunpack.c.h.b16 %v2370
    %v2784 = vunpack.c.l.b16 %v2371
    %v2785 = vunpack.c.h.b16 %v2371
    %v2786 = vunpack.c.l.b16 %v2372
    %v2787 = vunpack.c.h.b16 %v2372
    %v2788 = vunpack.c.l.b16 %v2373
    %v2789 = vunpack.c.h.b16 %v2373
    %v2790 = vunpack.c.l.b16 %v2374
    %v2791 = vunpack.c.h.b16 %v2374
    %v2792 = vunpack.c.l.b16 %v2375
    %v2793 = vunpack.c.h.b16 %v2375
    %v2794 = vunpack.c.l.b16 %v2376
    %v2795 = vunpack.c.h.b16 %v2376
    %v2796 = vunpack.c.l.b16 %v2377
    %v2797 = vunpack.c.h.b16 %v2377
    %v2798 = vunpack.c.l.b16 %v2378
    %v2799 = vunpack.c.h.b16 %v2378
    %v2800 = vunpack.c.l.b16 %v2379
    %v2801 = vunpack.c.h.b16 %v2379
    %v2802 = vunpack.c.l.b16 %v2380
    %v2803 = vunpack.c.h.b16 %v2380
    %v2804 = vunpack.c.l.b16 %v2381
    %v2805 = vunpack.c.h.b16 %v2381
    %v2806 = vunpack.c.l.b16 %v2382
    %v2807 = vunpack.c.h.b16 %v2382
    %v2808 = vunpack.c.l.b16 %v2383
    %v2809 = vunpack.c.h.b16 %v2383
    %v2810 = vunpack.c.l.b16 %v2384
    %v2811 = vunpack.c.h.b16 %v2384
    %v2812 = vunpack.c.l.b16 %v2385
    %v2813 = vunpack.c.h.b16 %v2385
    %v2814 = vunpack.c.l.b16 %v2386
    %v2815 = vunpack.c.h.b16 %v2386
    %v2816 = vunpack.c.l.b16 %v2387
    %v2817 = vunpack.c.h.b16 %v2387
    %v2818 = vunpack.c.l.b16 %v2388
    %v2819 = vunpack.c.h.b16 %v2388
    %v2820 = vunpack.c.l.b16 %v2389
    %v2821 = vunpack.c.h.b16 %v2389
    %v2822 = vunpack.c.l.b16 %v2390
    %v2823 = vunpack.c.h.b16 %v2390
    %v2824 = vunpack.c.l.b16 %v2391
    %v2825 = vunpack.c.h.b16 %v2391
    %v2826 = vunpack.c.l.b16 %v2392
    %v2827 = vunpack.c.h.b16 %v2392
    %v2828 = vunpack.c.l.b16 %v2393
    %v2829 = vunpack.c.h.b16 %v2393
    %v2830 = vunpack.c.l.b16 %v2394
    %v2831 = vunpack.c.h.b16 %v2394
    %v2832 = vunpack.c.l.b16 %v2395
    %v2833 = vunpack.c.h.b16 %v2395
    %v2834 = vunpack.c.l.b16 %v2396
    %v2835 = vunpack.c.h.b16 %v2396
    %v2836 = vunpack.c.l.b16 %v2397
    %v2837 = vunpack.c.h.b16 %v2397
    %v2838 = vunpack.c.l.b16 %v2398
    %v2839 = vunpack.c.h.b16 %v2398
    %v2840 = vunpack.c.l.b16 %v2399
    %v2841 = vunpack.c.h.b16 %v2399
    %v2842 = vunpack.c.l.b16 %v2400
    %v2843 = vunpack.c.h.b16 %v2400
    %v2844 = vunpack.c.l.b16 %v2401
    %v2845 = vunpack.c.h.b16 %v2401
    %v2846 = vunpack.c.l.b16 %v2402
    %v2847 = vunpack.c.h.b16 %v2402
    %v2848 = vunpack.c.l.b16 %v2403
    %v2849 = vunpack.c.h.b16 %v2403
    %v2850 = vunpack.c.l.b16 %v2404
    %v2851 = vunpack.c.h.b16 %v2404
    %v2852 = vunpack.c.l.b16 %v2405
    %v2853 = vunpack.c.h.b16 %v2405
    %v2854 = vunpack.c.l.b16 %v2406
    %v2855 = vunpack.c.h.b16 %v2406
    %v2856 = vunpack.c.l.b16 %v2407
    %v2857 = vunpack.c.h.b16 %v2407
    %v2858 = vunpack.c.l.b16 %v2408
    %v2859 = vunpack.c.h.b16 %v2408
    %v2860 = vunpack.c.l.b16 %v2409
    %v2861 = vunpack.c.h.b16 %v2409
    %v2862 = vunpack.c.l.b16 %v2410
    %v2863 = vunpack.c.h.b16 %v2410
    %v2864 = vunpack.c.l.b16 %v2411
    %v2865 = vunpack.c.h.b16 %v2411
    %v2866 = vunpack.c.l.b16 %v2412
    %v2867 = vunpack.c.h.b16 %v2412
    %v2868 = vunpack.c.l.b16 %v2413
    %v2869 = vunpack.c.h.b16 %v2413
    %v2870 = vunpack.c.l.b16 %v2414
    %v2871 = vunpack.c.h.b16 %v2414
    %v2872 = vunpack.c.l.b16 %v2415
    %v2873 = vunpack.c.h.b16 %v2415
    %v2874 = vunpack.c.l.b16 %v2416
    %v2875 = vunpack.c.h.b16 %v2416
    %v2876 = vunpack.c.l.b16 %v2417
    %v2877 = vunpack.c.h.b16 %v2417
    %v2878 = vunpack.c.l.b16 %v2418
    %v2879 = vunpack.c.h.b16 %v2418
    %v2880 = vunpack.c.l.b16 %v2419
    %v2881 = vunpack.c.h.b16 %v2419
    %v2882 = vunpack.c.l.b16 %v2420
    %v2883 = vunpack.c.h.b16 %v2420
    %v2884 = vunpack.c.l.b16 %v2421
    %v2885 = vunpack.c.h.b16 %v2421
    %v2886 = vunpack.c.l.b16 %v2422
    %v2887 = vunpack.c.h.b16 %v2422
    %v2888 = vunpack.c.l.b16 %v2423
    %v2889 = vunpack.c.h.b16 %v2423
    %v2890 = vunpack.c.l.b16 %v2424
    %v2891 = vunpack.c.h.b16 %v2424
    %v2892 = vunpack.c.l.b16 %v2425
    %v2893 = vunpack.c.h.b16 %v2425
    %v2894 = vunpack.c.l.b16 %v2426
    %v2895 = vunpack.c.h.b16 %v2426
    %v2896 = vunpack.c.l.b16 %v2427
    %v2897 = vunpack.c.h.b16 %v2427
    %v2898 = vunpack.c.l.b16 %v2428
    %v2899 = vunpack.c.h.b16 %v2428
    %v2900 = vunpack.c.l.b16 %v2429
    %v2901 = vunpack.c.h.b16 %v2429
    %v2902 = vunpack.c.l.b16 %v2430
    %v2903 = vunpack.c.h.b16 %v2430
    %v2904 = vunpack.c.l.b16 %v2431
    %v2905 = vunpack.c.h.b16 %v2431
    %v2906 = vunpack.c.l.b16 %v2432
    %v2907 = vunpack.c.h.b16 %v2432
    %v2908 = vunpack.c.l.b16 %v2433
    %v2909 = vunpack.c.h.b16 %v2433
    %v2910 = vunpack.c.l.b16 %v2434
    %v2911 = vunpack.c.h.b16 %v2434
    %v2912 = vunpack.c.l.b16 %v2435
    %v2913 = vunpack.c.h.b16 %v2435
    %v2914 = vunpack.c.l.b16 %v2436
    %v2915 = vunpack.c.h.b16 %v2436
    %v2916 = vunpack.c.l.b16 %v2437
    %v2917 = vunpack.c.h.b16 %v2437
    %v2918 = vunpack.c.l.b16 %v2438
    %v2919 = vunpack.c.h.b16 %v2438
    %v2920 = vunpack.c.l.b16 %v2439
    %v2921 = vunpack.c.h.b16 %v2439
    %v2922 = vunpack.c.l.b16 %v2440
    %v2923 = vunpack.c.h.b16 %v2440
    %v2924 = vunpack.c.l.b16 %v2441
    %v2925 = vunpack.c.h.b16 %v2441
    %v2926 = vunpack.c.l.b16 %v2442
    %v2927 = vunpack.c.h.b16 %v2442
    %v2928 = vunpack.c.l.b16 %v2443
    %v2929 = vunpack.c.h.b16 %v2443
    %v2930 = vunpack.c.l.b16 %v2444
    %v2931 = vunpack.c.h.b16 %v2444
    %v2932 = vunpack.c.l.b16 %v2445
    %v2933 = vunpack.c.h.b16 %v2445
    %v2934 = vunpack.c.l.b16 %v2446
    %v2935 = vunpack.c.h.b16 %v2446
    %v2936 = vunpack.c.l.b16 %v2447
    %v2937 = vunpack.c.h.b16 %v2447
    %v2938 = vunpack.c.l.b16 %v2448
    %v2939 = vunpack.c.h.b16 %v2448
    %v2940 = vunpack.c.l.b16 %v2449
    %v2941 = vunpack.c.h.b16 %v2449
    %v2942 = vunpack.c.l.b16 %v2450
    %v2943 = vunpack.c.h.b16 %v2450
    %v2944 = vunpack.c.l.b16 %v2451
    %v2945 = vunpack.c.h.b16 %v2451
    %v2946 = vunpack.c.l.b16 %v2452
    %v2947 = vunpack.c.h.b16 %v2452
    %v2948 = vunpack.c.l.b16 %v2453
    %v2949 = vunpack.c.h.b16 %v2453
    %v2950 = vunpack.c.l.b16 %v2454
    %v2951 = vunpack.c.h.b16 %v2454
    %v2952 = vunpack.c.l.b16 %v2455
    %v2953 = vunpack.c.h.b16 %v2455
    %v2954 = vunpack.c.l.b16 %v2456
    %v2955 = vunpack.c.h.b16 %v2456
    %v2956 = vunpack.c.l.b16 %v2457
    %v2957 = vunpack.c.h.b16 %v2457
    %v2958 = vunpack.c.l.b16 %v2458
    %v2959 = vunpack.c.h.b16 %v2458
    %v2960 = vunpack.c.l.b16 %v2459
    %v2961 = vunpack.c.h.b16 %v2459
    %v2962 = vunpack.c.l.b16 %v2460
    %v2963 = vunpack.c.h.b16 %v2460
    %v2964 = vunpack.c.l.b16 %v2461
    %v2965 = vunpack.c.h.b16 %v2461
    %v2966 = vunpack.c.l.b16 %v2462
    %v2967 = vunpack.c.h.b16 %v2462
    %v2968 = vunpack.c.l.b16 %v2463
    %v2969 = vunpack.c.h.b16 %v2463
    %v2970 = vunpack.c.l.b16 %v2464
    %v2971 = vunpack.c.h.b16 %v2464
    %v2972 = vunpack.c.l.b16 %v2465
    %v2973 = vunpack.c.h.b16 %v2465
    %v2974 = vunpack.c.l.b16 %v2466
    %v2975 = vunpack.c.h.b16 %v2466
    %v2976 = vunpack.c.l.b16 %v2467
    %v2977 = vunpack.c.h.b16 %v2467
    %v2978 = vunpack.c.l.b16 %v2468
    %v2979 = vunpack.c.h.b16 %v2468
    %v2980 = vunpack.c.l.b16 %v2469
    %v2981 = vunpack.c.h.b16 %v2469
    %v2982 = vunpack.c.l.b16 %v2470
    %v2983 = vunpack.c.h.b16 %v2470
    %v2984 = vunpack.c.l.b16 %v2471
    %v2985 = vunpack.c.h.b16 %v2471
    %v2986 = vunpack.c.l.b16 %v2472
    %v2987 = vunpack.c.h.b16 %v2472
    %v2988 = vunpack.c.l.b16 %v2473
    %v2989 = vunpack.c.h.b16 %v2473
    %v2990 = vunpack.c.l.b16 %v2474
    %v2991 = vunpack.c.h.b16 %v2474
    %v2992 = vunpack.c.l.b16 %v2475
    %v2993 = vunpack.c.h.b16 %v2475
    %v2994 = vunpack.c.l.b16 %v2476
    %v2995 = vunpack.c.h.b16 %v2476
    %v2996 = vunpack.c.l.b16 %v2477
    %v2997 = vunpack.c.h.b16 %v2477
    %v2998 = vunpack.c.l.b16 %v2478
    %v2999 = vunpack.c.h.b16 %v2478
    %v3000 = vunpack.c.l.b16 %v2479
    %v3001 = vunpack.c.h.b16 %v2479
    %v3002 = vunpack.c.l.b16 %v2480
    %v3003 = vunpack.c.h.b16 %v2480
    %v3004 = vunpack.c.l.b16 %v2481
    %v3005 = vunpack.c.h.b16 %v2481
    %v3006 = vunpack.c.l.b16 %v2482
    %v3007 = vunpack.c.h.b16 %v2482
    %v3008 = vunpack.c.l.b16 %v2483
    %v3009 = vunpack.c.h.b16 %v2483
    %v3010 = vunpack.c.l.b16 %v2484
    %v3011 = vunpack.c.h.b16 %v2484
    %v3012 = vunpack.c.l.b16 %v2485
    %v3013 = vunpack.c.h.b16 %v2485
    %v3014 = vunpack.c.l.b16 %v2486
    %v3015 = vunpack.c.h.b16 %v2486
    %v3016 = vunpack.c.l.b16 %v2487
    %v3017 = vunpack.c.h.b16 %v2487
    %v3018 = vunpack.c.l.b16 %v2488
    %v3019 = vunpack.c.h.b16 %v2488
    %v3020 = vunpack.c.l.b16 %v2489
    %v3021 = vunpack.c.h.b16 %v2489
    %v3022 = vunpack.c.l.b16 %v2490
    %v3023 = vunpack.c.h.b16 %v2490
    %v3024 = vunpack.c.l.b16 %v2491
    %v3025 = vunpack.c.h.b16 %v2491
    %v3026 = vunpack.c.l.b16 %v2492
    %v3027 = vunpack.c.h.b16 %v2492
    %v3028 = vunpack.c.l.b16 %v2493
    %v3029 = vunpack.c.h.b16 %v2493
    %v3030 = vunpack.c.l.b16 %v2494
    %v3031 = vunpack.c.h.b16 %v2494
    %v3032 = vunpack.c.l.b16 %v2495
    %v3033 = vunpack.c.h.b16 %v2495
    %v3034 = vunpack.c.l.b16 %v2496
    %v3035 = vunpack.c.h.b16 %v2496
    %v3036 = vunpack.c.l.b16 %v2497
    %v3037 = vunpack.c.h.b16 %v2497
    %v3038 = vunpack.c.l.b16 %v2498
    %v3039 = vunpack.c.h.b16 %v2498
    %v3040 = vunpack.c.l.b16 %v2499
    %v3041 = vunpack.c.h.b16 %v2499
    %v3042 = vunpack.c.l.b16 %v2500
    %v3043 = vunpack.c.h.b16 %v2500
    %v3044 = vunpack.c.l.b16 %v2501
    %v3045 = vunpack.c.h.b16 %v2501
    %v3046 = vunpack.c.l.b16 %v2502
    %v3047 = vunpack.c.h.b16 %v2502
    %v3048 = vunpack.c.l.b16 %v2503
    %v3049 = vunpack.c.h.b16 %v2503
    %v3050 = vunpack.c.l.b16 %v2504
    %v3051 = vunpack.c.h.b16 %v2504
    %v3052 = vunpack.c.l.b16 %v2505
    %v3053 = vunpack.c.h.b16 %v2505
    %v3054 = vunpack.c.l.b16 %v2506
    %v3055 = vunpack.c.h.b16 %v2506
    %v3056 = vunpack.c.l.b16 %v2507
    %v3057 = vunpack.c.h.b16 %v2507
    %v3058 = vunpack.c.l.b16 %v2508
    %v3059 = vunpack.c.h.b16 %v2508
    %v3060 = vunpack.c.l.b16 %v2509
    %v3061 = vunpack.c.h.b16 %v2509
    %v3062 = vunpack.c.l.b16 %v2510
    %v3063 = vunpack.c.h.b16 %v2510
    %v3064 = vunpack.c.l.b16 %v2511
    %v3065 = vunpack.c.h.b16 %v2511
    %v3066 = vunpack.c.l.b16 %v2512
    %v3067 = vunpack.c.h.b16 %v2512
    %v3068 = vunpack.c.l.b16 %v2513
    %v3069 = vunpack.c.h.b16 %v2513
    %v3070 = vunpack.c.l.b16 %v2514
    %v3071 = vunpack.c.h.b16 %v2514
    %v3072 = vunpack.c.l.b16 %v2515
    %v3073 = vunpack.c.h.b16 %v2515
    %v3074 = vunpack.c.l.b16 %v2516
    %v3075 = vunpack.c.h.b16 %v2516
    %v3076 = vunpack.c.l.b16 %v2517
    %v3077 = vunpack.c.h.b16 %v2517
    %v3078 = vunpack.c.l.b16 %v2518
    %v3079 = vunpack.c.h.b16 %v2518
    %v3080 = vunpack.c.l.b16 %v2519
    %v3081 = vunpack.c.h.b16 %v2519
    %v3082 = vunpack.c.l.b16 %v2520
    %v3083 = vunpack.c.h.b16 %v2520
    %v3084 = vunpack.c.l.b16 %v2521
    %v3085 = vunpack.c.h.b16 %v2521
    %v3086 = vunpack.c.l.b16 %v2522
    %v3087 = vunpack.c.h.b16 %v2522
    %v3088 = vunpack.c.l.b16 %v2523
    %v3089 = vunpack.c.h.b16 %v2523
    %v3090 = vunpack.c.l.b16 %v2524
    %v3091 = vunpack.c.h.b16 %v2524
    %v3092 = vunpack.c.l.b16 %v2525
    %v3093 = vunpack.c.h.b16 %v2525
    %v3094 = vunpack.c.l.b16 %v2526
    %v3095 = vunpack.c.h.b16 %v2526
    %v3096 = vunpack.c.l.b16 %v2527
    %v3097 = vunpack.c.h.b16 %v2527
    %v3098 = vunpack.c.l.b16 %v2528
    %v3099 = vunpack.c.h.b16 %v2528
    %v3100 = vunpack.c.l.b16 %v2529
    %v3101 = vunpack.c.h.b16 %v2529
    %v3102 = vunpack.c.l.b16 %v2530
    %v3103 = vunpack.c.h.b16 %v2530
    %v3104 = vunpack.c.l.b16 %v2531
    %v3105 = vunpack.c.h.b16 %v2531
    %v3106 = vunpack.c.l.b16 %v2532
    %v3107 = vunpack.c.h.b16 %v2532
    %v3108 = vunpack.c.l.b16 %v2533
    %v3109 = vunpack.c.h.b16 %v2533
    %v3110 = vunpack.c.l.b16 %v2534
    %v3111 = vunpack.c.h.b16 %v2534
    %v3112 = vunpack.c.l.b16 %v2535
    %v3113 = vunpack.c.h.b16 %v2535
    %v3114 = vunpack.c.l.b16 %v2536
    %v3115 = vunpack.c.h.b16 %v2536
    %v3116 = vunpack.c.l.b16 %v2537
    %v3117 = vunpack.c.h.b16 %v2537
    %v3118 = vunpack.c.l.b16 %v2538
    %v3119 = vunpack.c.h.b16 %v2538
    %v3120 = vunpack.c.l.b16 %v2539
    %v3121 = vunpack.c.h.b16 %v2539
    %v3122 = vunpack.c.l.b16 %v2540
    %v3123 = vunpack.c.h.b16 %v2540
    %v3124 = vunpack.c.l.b16 %v2541
    %v3125 = vunpack.c.h.b16 %v2541
    %v3126 = vunpack.c.l.b16 %v2542
    %v3127 = vunpack.c.h.b16 %v2542
    %v3128 = vunpack.c.l.b16 %v2543
    %v3129 = vunpack.c.h.b16 %v2543
    %v3130 = vpack.c.b16 %v2750, %v2746
    %v3131 = vpack.c.b16 %v2751, %v2747
    %v3132 = vpack.c.b16 %v2752, %v2748
    %v3133 = vpack.c.b16 %v2753, %v2749
    %v3134 = vpack.c.b16 %v2758, %v2754
    %v3135 = vpack.c.b16 %v2759, %v2755
    %v3136 = vpack.c.b16 %v2760, %v2756
    %v3137 = vpack.c.b16 %v2761, %v2757
    %v3138 = vpack.c.b16 %v2766, %v2762
    %v3139 = vpack.c.b16 %v2767, %v2763
    %v3140 = vpack.c.b16 %v2768, %v2764
    %v3141 = vpack.c.b16 %v2769, %v2765
    %v3142 = vpack.c.b16 %v2774, %v2770
    %v3143 = vpack.c.b16 %v2775, %v2771
    %v3144 = vpack.c.b16 %v2776, %v2772
    %v3145 = vpack.c.b16 %v2777, %v2773
    %v3146 = vpack.c.b16 %v2782, %v2778
    %v3147 = vpack.c.b16 %v2783, %v2779
    %v3148 = vpack.c.b16 %v2784, %v2780
    %v3149 = vpack.c.b16 %v2785, %v2781
    %v3150 = vpack.c.b16 %v2790, %v2786
    %v3151 = vpack.c.b16 %v2791, %v2787
    %v3152 = vpack.c.b16 %v2792, %v2788
    %v3153 = vpack.c.b16 %v2793, %v2789
    %v3154 = vpack.c.b16 %v2798, %v2794
    %v3155 = vpack.c.b16 %v2799, %v2795
    %v3156 = vpack.c.b16 %v2800, %v2796
    %v3157 = vpack.c.b16 %v2801, %v2797
    %v3158 = vpack.c.b16 %v2806, %v2802
    %v3159 = vpack.c.b16 %v2807, %v2803
    %v3160 = vpack.c.b16 %v2808, %v2804
    %v3161 = vpack.c.b16 %v2809, %v2805
    %v3162 = vpack.c.b16 %v2814, %v2810
    %v3163 = vpack.c.b16 %v2815, %v2811
    %v3164 = vpack.c.b16 %v2816, %v2812
    %v3165 = vpack.c.b16 %v2817, %v2813
    %v3166 = vpack.c.b16 %v2822, %v2818
    %v3167 = vpack.c.b16 %v2823, %v2819
    %v3168 = vpack.c.b16 %v2824, %v2820
    %v3169 = vpack.c.b16 %v2825, %v2821
    %v3170 = vpack.c.b16 %v2830, %v2826
    %v3171 = vpack.c.b16 %v2831, %v2827
    %v3172 = vpack.c.b16 %v2832, %v2828
    %v3173 = vpack.c.b16 %v2833, %v2829
    %v3174 = vpack.c.b16 %v2838, %v2834
    %v3175 = vpack.c.b16 %v2839, %v2835
    %v3176 = vpack.c.b16 %v2840, %v2836
    %v3177 = vpack.c.b16 %v2841, %v2837
    %v3178 = vpack.c.b16 %v2846, %v2842
    %v3179 = vpack.c.b16 %v2847, %v2843
    %v3180 = vpack.c.b16 %v2848, %v2844
    %v3181 = vpack.c.b16 %v2849, %v2845
    %v3182 = vpack.c.b16 %v2854, %v2850
    %v3183 = vpack.c.b16 %v2855, %v2851
    %v3184 = vpack.c.b16 %v2856, %v2852
    %v3185 = vpack.c.b16 %v2857, %v2853
    %v3186 = vpack.c.b16 %v2862, %v2858
    %v3187 = vpack.c.b16 %v2863, %v2859
    %v3188 = vpack.c.b16 %v2864, %v2860
    %v3189 = vpack.c.b16 %v2865, %v2861
    %v3190 = vpack.c.b16 %v2870, %v2866
    %v3191 = vpack.c.b16 %v2871, %v2867
    %v3192 = vpack.c.b16 %v2872, %v2868
    %v3193 = vpack.c.b16 %v2873, %v2869
    %v3194 = vpack.c.b16 %v2878, %v2874
    %v3195 = vpack.c.b16 %v2879, %v2875
    %v3196 = vpack.c.b16 %v2880, %v2876
    %v3197 = vpack.c.b16 %v2881, %v2877
    %v3198 = vpack.c.b16 %v2886, %v2882
    %v3199 = vpack.c.b16 %v2887, %v2883
    %v3200 = vpack.c.b16 %v2888, %v2884
    %v3201 = vpack.c.b16 %v2889, %v2885
    %v3202 = vpack.c.b16 %v2894, %v2890
    %v3203 = vpack.c.b16 %v2895, %v2891
    %v3204 = vpack.c.b16 %v2896, %v2892
    %v3205 = vpack.c.b16 %v2897, %v2893
    %v3206 = vpack.c.b16 %v2902, %v2898
    %v3207 = vpack.c.b16 %v2903, %v2899
    %v3208 = vpack.c.b16 %v2904, %v2900
    %v3209 = vpack.c.b16 %v2905, %v2901
    %v3210 = vpack.c.b16 %v2910, %v2906
    %v3211 = vpack.c.b16 %v2911, %v2907
    %v3212 = vpack.c.b16 %v2912, %v2908
    %v3213 = vpack.c.b16 %v2913, %v2909
    %v3214 = vpack.c.b16 %v2918, %v2914
    %v3215 = vpack.c.b16 %v2919, %v2915
    %v3216 = vpack.c.b16 %v2920, %v2916
    %v3217 = vpack.c.b16 %v2921, %v2917
    %v3218 = vpack.c.b16 %v2926, %v2922
    %v3219 = vpack.c.b16 %v2927, %v2923
    %v3220 = vpack.c.b16 %v2928, %v2924
    %v3221 = vpack.c.b16 %v2929, %v2925
    %v3222 = vpack.c.b16 %v2934, %v2930
    %v3223 = vpack.c.b16 %v2935, %v2931
    %v3224 = vpack.c.b16 %v2936, %v2932
    %v3225 = vpack.c.b16 %v2937, %v2933
    %v3226 = vpack.c.b16 %v2942, %v2938
    %v3227 = vpack.c.b16 %v2943, %v2939
    %v3228 = vpack.c.b16 %v2944, %v2940
    %v3229 = vpack.c.b16 %v2945, %v2941
    %v3230 = vpack.c.b16 %v2950, %v2946
    %v3231 = vpack.c.b16 %v2951, %v2947
    %v3232 = vpack.c.b16 %v2952, %v2948
    %v3233 = vpack.c.b16 %v2953, %v2949
    %v3234 = vpack.c.b16 %v2958, %v2954
    %v3235 = vpack.c.b16 %v2959, %v2955
    %v3236 = vpack.c.b16 %v2960, %v2956
    %v3237 = vpack.c.b16 %v2961, %v2957
    %v3238 = vpack.c.b16 %v2966, %v2962
    %v3239 = vpack.c.b16 %v2967, %v2963
    %v3240 = vpack.c.b16 %v2968, %v2964
    %v3241 = vpack.c.b16 %v2969, %v2965
    %v3242 = vpack.c.b16 %v2974, %v2970
    %v3243 = vpack.c.b16 %v2975, %v2971
    %v3244 = vpack.c.b16 %v2976, %v2972
    %v3245 = vpack.c.b16 %v2977, %v2973
    %v3246 = vpack.c.b16 %v2982, %v2978
    %v3247 = vpack.c.b16 %v2983, %v2979
    %v3248 = vpack.c.b16 %v2984, %v2980
    %v3249 = vpack.c.b16 %v2985, %v2981
    %v3250 = vpack.c.b16 %v2990, %v2986
    %v3251 = vpack.c.b16 %v2991, %v2987
    %v3252 = vpack.c.b16 %v2992, %v2988
    %v3253 = vpack.c.b16 %v2993, %v2989
    %v3254 = vpack.c.b16 %v2998, %v2994
    %v3255 = vpack.c.b16 %v2999, %v2995
    %v3256 = vpack.c.b16 %v3000, %v2996
    %v3257 = vpack.c.b16 %v3001, %v2997
    %v3258 = vpack.c.b16 %v3006, %v3002
    %v3259 = vpack.c.b16 %v3007, %v3003
    %v3260 = vpack.c.b16 %v3008, %v3004
    %v3261 = vpack.c.b16 %v3009, %v3005
    %v3262 = vpack.c.b16 %v3014, %v3010
    %v3263 = vpack.c.b16 %v3015, %v3011
    %v3264 = vpack.c.b16 %v3016, %v3012
    %v3265 = vpack.c.b16 %v3017, %v3013
    %v3266 = vpack.c.b16 %v3022, %v3018
    %v3267 = vpack.c.b16 %v3023, %v3019
    %v3268 = vpack.c.b16 %v3024, %v3020
    %v3269 = vpack.c.b16 %v3025, %v3021
    %v3270 = vpack.c.b16 %v3030, %v3026
    %v3271 = vpack.c.b16 %v3031, %v3027
    %v3272 = vpack.c.b16 %v3032, %v3028
    %v3273 = vpack.c.b16 %v3033, %v3029
    %v3274 = vpack.c.b16 %v3038, %v3034
    %v3275 = vpack.c.b16 %v3039, %v3035
    %v3276 = vpack.c.b16 %v3040, %v3036
    %v3277 = vpack.c.b16 %v3041, %v3037
    %v3278 = vpack.c.b16 %v3046, %v3042
    %v3279 = vpack.c.b16 %v3047, %v3043
    %v3280 = vpack.c.b16 %v3048, %v3044
    %v3281 = vpack.c.b16 %v3049, %v3045
    %v3282 = vpack.c.b16 %v3054, %v3050
    %v3283 = vpack.c.b16 %v3055, %v3051
    %v3284 = vpack.c.b16 %v3056, %v3052
    %v3285 = vpack.c.b16 %v3057, %v3053
    %v3286 = vpack.c.b16 %v3062, %v3058
    %v3287 = vpack.c.b16 %v3063, %v3059
    %v3288 = vpack.c.b16 %v3064, %v3060
    %v3289 = vpack.c.b16 %v3065, %v3061
    %v3290 = vpack.c.b16 %v3070, %v3066
    %v3291 = vpack.c.b16 %v3071, %v3067
    %v3292 = vpack.c.b16 %v3072, %v3068
    %v3293 = vpack.c.b16 %v3073, %v3069
    %v3294 = vpack.c.b16 %v3078, %v3074
    %v3295 = vpack.c.b16 %v3079, %v3075
    %v3296 = vpack.c.b16 %v3080, %v3076
    %v3297 = vpack.c.b16 %v3081, %v3077
    %v3298 = vpack.c.b16 %v3086, %v3082
    %v3299 = vpack.c.b16 %v3087, %v3083
    %v3300 = vpack.c.b16 %v3088, %v3084
    %v3301 = vpack.c.b16 %v3089, %v3085
    %v3302 = vpack.c.b16 %v3094, %v3090
    %v3303 = vpack.c.b16 %v3095, %v3091
    %v3304 = vpack.c.b16 %v3096, %v3092
    %v3305 = vpack.c.b16 %v3097, %v3093
    %v3306 = vpack.c.b16 %v3102, %v3098
    %v3307 = vpack.c.b16 %v3103, %v3099
    %v3308 = vpack.c.b16 %v3104, %v3100
    %v3309 = vpack.c.b16 %v3105, %v3101
    %v3310 = vpack.c.b16 %v3110, %v3106
    %v3311 = vpack.c.b16 %v3111, %v3107
    %v3312 = vpack.c.b16 %v3112, %v3108
    %v3313 = vpack.c.b16 %v3113, %v3109
    %v3314 = vpack.c.b16 %v3118, %v3114
    %v3315 = vpack.c.b16 %v3119, %v3115
    %v3316 = vpack.c.b16 %v3120, %v3116
    %v3317 = vpack.c.b16 %v3121, %v3117
    %v3318 = vpack.c.b16 %v3126, %v3122
    %v3319 = vpack.c.b16 %v3127, %v3123
    %v3320 = vpack.c.b16 %v3128, %v3124
    %v3321 = vpack.c.b16 %v3129, %v3125
    %3514 = vmatpush.bf16.msra.mxu0 %v3158
    %3515 = vmatpush.bf16.msra.mxu0 %v3154
    %3516 = vmatpush.bf16.msra.mxu0 %v3150
    %3517 = vmatpush.bf16.msra.mxu0 %v3146
    %3518 = vmatpush.bf16.msra.mxu0 %v3142
    %3519 = vmatpush.bf16.msra.mxu0 %v3138
    %3520 = vmatpush.bf16.msra.mxu0 %v3134
    %3521 = vmatpush.bf16.msra.mxu0 %v3130
    %3522 = vmatmul.bf16.gmra.mxu0 %v2346
    %v3523 = vpop.f32.mrf.mxu0
    %v3524 = vadd.f32 %v2546, %v3523
    %v3525 = vpop.f32.mrf.mxu0
    %3526 = vdwg.mxu0
    %3527 = vmatpush.bf16.msra.mxu0 %v3190
    %3528 = vmatpush.bf16.msra.mxu0 %v3186
    %3529 = vmatpush.bf16.msra.mxu0 %v3182
    %3530 = vmatpush.bf16.msra.mxu0 %v3178
    %3531 = vmatpush.bf16.msra.mxu0 %v3174
    %3532 = vmatpush.bf16.msra.mxu0 %v3170
    %3533 = vmatpush.bf16.msra.mxu0 %v3166
    %3534 = vmatpush.bf16.msra.mxu0 %v3162
    %3535 = vmatmul.bf16.gmra.mxu0 %v2347
    %v3536 = vpop.f32.mrf.mxu0
    %v3537 = vadd.f32 %v3524, %v3536
    %v3538 = vpop.f32.mrf.mxu0
    %3539 = vdwg.mxu0
    %3540 = vmatpush.bf16.msra.mxu0 %v3222
    %3541 = vmatpush.bf16.msra.mxu0 %v3218
    %3542 = vmatpush.bf16.msra.mxu0 %v3214
    %3543 = vmatpush.bf16.msra.mxu0 %v3210
    %3544 = vmatpush.bf16.msra.mxu0 %v3206
    %3545 = vmatpush.bf16.msra.mxu0 %v3202
    %3546 = vmatpush.bf16.msra.mxu0 %v3198
    %3547 = vmatpush.bf16.msra.mxu0 %v3194
    %3548 = vmatmul.bf16.gmra.mxu0 %v2348
    %v3549 = vpop.f32.mrf.mxu0
    %v3550 = vadd.f32 %v3537, %v3549
    %v3551 = vpop.f32.mrf.mxu0
    %3552 = vdwg.mxu0
    %3553 = vmatpush.bf16.msra.mxu0 %v3254
    %3554 = vmatpush.bf16.msra.mxu0 %v3250
    %3555 = vmatpush.bf16.msra.mxu0 %v3246
    %3556 = vmatpush.bf16.msra.mxu0 %v3242
    %3557 = vmatpush.bf16.msra.mxu0 %v3238
    %3558 = vmatpush.bf16.msra.mxu0 %v3234
    %3559 = vmatpush.bf16.msra.mxu0 %v3230
    %3560 = vmatpush.bf16.msra.mxu0 %v3226
    %3561 = vmatmul.bf16.gmra.mxu0 %v2349
    %v3562 = vpop.f32.mrf.mxu0
    %v3563 = vadd.f32 %v3550, %v3562
    %v3564 = vpop.f32.mrf.mxu0
    %3565 = vdwg.mxu0
    %3566 = vmatpush.bf16.msra.mxu0 %v3286
    %3567 = vmatpush.bf16.msra.mxu0 %v3282
    %3568 = vmatpush.bf16.msra.mxu0 %v3278
    %3569 = vmatpush.bf16.msra.mxu0 %v3274
    %3570 = vmatpush.bf16.msra.mxu0 %v3270
    %3571 = vmatpush.bf16.msra.mxu0 %v3266
    %3572 = vmatpush.bf16.msra.mxu0 %v3262
    %3573 = vmatpush.bf16.msra.mxu0 %v3258
    %3574 = vmatmul.bf16.gmra.mxu0 %v2350
    %v3575 = vpop.f32.mrf.mxu0
    %v3576 = vadd.f32 %v3563, %v3575
    %v3577 = vpop.f32.mrf.mxu0
    %3578 = vdwg.mxu0
    %3579 = vmatpush.bf16.msra.mxu0 %v3318
    %3580 = vmatpush.bf16.msra.mxu0 %v3314
    %3581 = vmatpush.bf16.msra.mxu0 %v3310
    %3582 = vmatpush.bf16.msra.mxu0 %v3306
    %3583 = vmatpush.bf16.msra.mxu0 %v3302
    %3584 = vmatpush.bf16.msra.mxu0 %v3298
    %3585 = vmatpush.bf16.msra.mxu0 %v3294
    %3586 = vmatpush.bf16.msra.mxu0 %v3290
    %3587 = vmatmul.bf16.gmra.mxu0 %v2351
    %v3588 = vpop.f32.mrf.mxu0
    %v3589 = vadd.f32 %v3576, %v3588
    %v3590 = vpop.f32.mrf.mxu0
    %3591 = vdwg.mxu0
    %3592 = vmatpush.bf16.msra.mxu0 %v3159
    %3593 = vmatpush.bf16.msra.mxu0 %v3155
    %3594 = vmatpush.bf16.msra.mxu0 %v3151
    %3595 = vmatpush.bf16.msra.mxu0 %v3147
    %3596 = vmatpush.bf16.msra.mxu0 %v3143
    %3597 = vmatpush.bf16.msra.mxu0 %v3139
    %3598 = vmatpush.bf16.msra.mxu0 %v3135
    %3599 = vmatpush.bf16.msra.mxu0 %v3131
    %3600 = vmatmul.bf16.gmra.mxu0 %v2346
    %v3601 = vpop.f32.mrf.mxu0
    %v3602 = vadd.f32 %v2547, %v3601
    %v3603 = vpop.f32.mrf.mxu0
    %3604 = vdwg.mxu0
    %3605 = vmatpush.bf16.msra.mxu0 %v3191
    %3606 = vmatpush.bf16.msra.mxu0 %v3187
    %3607 = vmatpush.bf16.msra.mxu0 %v3183
    %3608 = vmatpush.bf16.msra.mxu0 %v3179
    %3609 = vmatpush.bf16.msra.mxu0 %v3175
    %3610 = vmatpush.bf16.msra.mxu0 %v3171
    %3611 = vmatpush.bf16.msra.mxu0 %v3167
    %3612 = vmatpush.bf16.msra.mxu0 %v3163
    %3613 = vmatmul.bf16.gmra.mxu0 %v2347
    %v3614 = vpop.f32.mrf.mxu0
    %v3615 = vadd.f32 %v3602, %v3614
    %v3616 = vpop.f32.mrf.mxu0
    %3617 = vdwg.mxu0
    %3618 = vmatpush.bf16.msra.mxu0 %v3223
    %3619 = vmatpush.bf16.msra.mxu0 %v3219
    %3620 = vmatpush.bf16.msra.mxu0 %v3215
    %3621 = vmatpush.bf16.msra.mxu0 %v3211
    %3622 = vmatpush.bf16.msra.mxu0 %v3207
    %3623 = vmatpush.bf16.msra.mxu0 %v3203
    %3624 = vmatpush.bf16.msra.mxu0 %v3199
    %3625 = vmatpush.bf16.msra.mxu0 %v3195
    %3626 = vmatmul.bf16.gmra.mxu0 %v2348
    %v3627 = vpop.f32.mrf.mxu0
    %v3628 = vadd.f32 %v3615, %v3627
    %v3629 = vpop.f32.mrf.mxu0
    %3630 = vdwg.mxu0
    %3631 = vmatpush.bf16.msra.mxu0 %v3255
    %3632 = vmatpush.bf16.msra.mxu0 %v3251
    %3633 = vmatpush.bf16.msra.mxu0 %v3247
    %3634 = vmatpush.bf16.msra.mxu0 %v3243
    %3635 = vmatpush.bf16.msra.mxu0 %v3239
    %3636 = vmatpush.bf16.msra.mxu0 %v3235
    %3637 = vmatpush.bf16.msra.mxu0 %v3231
    %3638 = vmatpush.bf16.msra.mxu0 %v3227
    %3639 = vmatmul.bf16.gmra.mxu0 %v2349
    %v3640 = vpop.f32.mrf.mxu0
    %v3641 = vadd.f32 %v3628, %v3640
    %v3642 = vpop.f32.mrf.mxu0
    %3643 = vdwg.mxu0
    %3644 = vmatpush.bf16.msra.mxu0 %v3287
    %3645 = vmatpush.bf16.msra.mxu0 %v3283
    %3646 = vmatpush.bf16.msra.mxu0 %v3279
    %3647 = vmatpush.bf16.msra.mxu0 %v3275
    %3648 = vmatpush.bf16.msra.mxu0 %v3271
    %3649 = vmatpush.bf16.msra.mxu0 %v3267
    %3650 = vmatpush.bf16.msra.mxu0 %v3263
    %3651 = vmatpush.bf16.msra.mxu0 %v3259
    %3652 = vmatmul.bf16.gmra.mxu0 %v2350
    %v3653 = vpop.f32.mrf.mxu0
    %v3654 = vadd.f32 %v3641, %v3653
    %v3655 = vpop.f32.mrf.mxu0
    %3656 = vdwg.mxu0
    %3657 = vmatpush.bf16.msra.mxu0 %v3319
    %3658 = vmatpush.bf16.msra.mxu0 %v3315
    %3659 = vmatpush.bf16.msra.mxu0 %v3311
    %3660 = vmatpush.bf16.msra.mxu0 %v3307
    %3661 = vmatpush.bf16.msra.mxu0 %v3303
    %3662 = vmatpush.bf16.msra.mxu0 %v3299
    %3663 = vmatpush.bf16.msra.mxu0 %v3295
    %3664 = vmatpush.bf16.msra.mxu0 %v3291
    %3665 = vmatmul.bf16.gmra.mxu0 %v2351
    %v3666 = vpop.f32.mrf.mxu0
    %v3667 = vadd.f32 %v3654, %v3666
    %v3668 = vpop.f32.mrf.mxu0
    %3669 = vdwg.mxu0
    %3670 = vmatpush.bf16.msra.mxu0 %v3160
    %3671 = vmatpush.bf16.msra.mxu0 %v3156
    %3672 = vmatpush.bf16.msra.mxu0 %v3152
    %3673 = vmatpush.bf16.msra.mxu0 %v3148
    %3674 = vmatpush.bf16.msra.mxu0 %v3144
    %3675 = vmatpush.bf16.msra.mxu0 %v3140
    %3676 = vmatpush.bf16.msra.mxu0 %v3136
    %3677 = vmatpush.bf16.msra.mxu0 %v3132
    %3678 = vmatmul.bf16.gmra.mxu0 %v2346
    %v3679 = vpop.f32.mrf.mxu0
    %v3680 = vadd.f32 %v2548, %v3679
    %v3681 = vpop.f32.mrf.mxu0
    %3682 = vdwg.mxu0
    %3683 = vmatpush.bf16.msra.mxu0 %v3192
    %3684 = vmatpush.bf16.msra.mxu0 %v3188
    %3685 = vmatpush.bf16.msra.mxu0 %v3184
    %3686 = vmatpush.bf16.msra.mxu0 %v3180
    %3687 = vmatpush.bf16.msra.mxu0 %v3176
    %3688 = vmatpush.bf16.msra.mxu0 %v3172
    %3689 = vmatpush.bf16.msra.mxu0 %v3168
    %3690 = vmatpush.bf16.msra.mxu0 %v3164
    %3691 = vmatmul.bf16.gmra.mxu0 %v2347
    %v3692 = vpop.f32.mrf.mxu0
    %v3693 = vadd.f32 %v3680, %v3692
    %v3694 = vpop.f32.mrf.mxu0
    %3695 = vdwg.mxu0
    %3696 = vmatpush.bf16.msra.mxu0 %v3224
    %3697 = vmatpush.bf16.msra.mxu0 %v3220
    %3698 = vmatpush.bf16.msra.mxu0 %v3216
    %3699 = vmatpush.bf16.msra.mxu0 %v3212
    %3700 = vmatpush.bf16.msra.mxu0 %v3208
    %3701 = vmatpush.bf16.msra.mxu0 %v3204
    %3702 = vmatpush.bf16.msra.mxu0 %v3200
    %3703 = vmatpush.bf16.msra.mxu0 %v3196
    %3704 = vmatmul.bf16.gmra.mxu0 %v2348
    %v3705 = vpop.f32.mrf.mxu0
    %v3706 = vadd.f32 %v3693, %v3705
    %v3707 = vpop.f32.mrf.mxu0
    %3708 = vdwg.mxu0
    %3709 = vmatpush.bf16.msra.mxu0 %v3256
    %3710 = vmatpush.bf16.msra.mxu0 %v3252
    %3711 = vmatpush.bf16.msra.mxu0 %v3248
    %3712 = vmatpush.bf16.msra.mxu0 %v3244
    %3713 = vmatpush.bf16.msra.mxu0 %v3240
    %3714 = vmatpush.bf16.msra.mxu0 %v3236
    %3715 = vmatpush.bf16.msra.mxu0 %v3232
    %3716 = vmatpush.bf16.msra.mxu0 %v3228
    %3717 = vmatmul.bf16.gmra.mxu0 %v2349
    %v3718 = vpop.f32.mrf.mxu0
    %v3719 = vadd.f32 %v3706, %v3718
    %v3720 = vpop.f32.mrf.mxu0
    %3721 = vdwg.mxu0
    %3722 = vmatpush.bf16.msra.mxu0 %v3288
    %3723 = vmatpush.bf16.msra.mxu0 %v3284
    %3724 = vmatpush.bf16.msra.mxu0 %v3280
    %3725 = vmatpush.bf16.msra.mxu0 %v3276
    %3726 = vmatpush.bf16.msra.mxu0 %v3272
    %3727 = vmatpush.bf16.msra.mxu0 %v3268
    %3728 = vmatpush.bf16.msra.mxu0 %v3264
    %3729 = vmatpush.bf16.msra.mxu0 %v3260
    %3730 = vmatmul.bf16.gmra.mxu0 %v2350
    %v3731 = vpop.f32.mrf.mxu0
    %v3732 = vadd.f32 %v3719, %v3731
    %v3733 = vpop.f32.mrf.mxu0
    %3734 = vdwg.mxu0
    %3735 = vmatpush.bf16.msra.mxu0 %v3320
    %3736 = vmatpush.bf16.msra.mxu0 %v3316
    %3737 = vmatpush.bf16.msra.mxu0 %v3312
    %3738 = vmatpush.bf16.msra.mxu0 %v3308
    %3739 = vmatpush.bf16.msra.mxu0 %v3304
    %3740 = vmatpush.bf16.msra.mxu0 %v3300
    %3741 = vmatpush.bf16.msra.mxu0 %v3296
    %3742 = vmatpush.bf16.msra.mxu0 %v3292
    %3743 = vmatmul.bf16.gmra.mxu0 %v2351
    %v3744 = vpop.f32.mrf.mxu0
    %v3745 = vadd.f32 %v3732, %v3744
    %v3746 = vpop.f32.mrf.mxu0
    %3747 = vdwg.mxu0
    %3748 = vmatpush.bf16.msra.mxu0 %v3161
    %3749 = vmatpush.bf16.msra.mxu0 %v3157
    %3750 = vmatpush.bf16.msra.mxu0 %v3153
    %3751 = vmatpush.bf16.msra.mxu0 %v3149
    %3752 = vmatpush.bf16.msra.mxu0 %v3145
    %3753 = vmatpush.bf16.msra.mxu0 %v3141
    %3754 = vmatpush.bf16.msra.mxu0 %v3137
    %3755 = vmatpush.bf16.msra.mxu0 %v3133
    %3756 = vmatmul.bf16.gmra.mxu0 %v2346
    %v3757 = vpop.f32.mrf.mxu0
    %v3758 = vadd.f32 %v2549, %v3757
    %v3759 = vpop.f32.mrf.mxu0
    %3760 = vdwg.mxu0
    %3761 = vmatpush.bf16.msra.mxu0 %v3193
    %3762 = vmatpush.bf16.msra.mxu0 %v3189
    %3763 = vmatpush.bf16.msra.mxu0 %v3185
    %3764 = vmatpush.bf16.msra.mxu0 %v3181
    %3765 = vmatpush.bf16.msra.mxu0 %v3177
    %3766 = vmatpush.bf16.msra.mxu0 %v3173
    %3767 = vmatpush.bf16.msra.mxu0 %v3169
    %3768 = vmatpush.bf16.msra.mxu0 %v3165
    %3769 = vmatmul.bf16.gmra.mxu0 %v2347
    %v3770 = vpop.f32.mrf.mxu0
    %v3771 = vadd.f32 %v3758, %v3770
    %v3772 = vpop.f32.mrf.mxu0
    %3773 = vdwg.mxu0
    %3774 = vmatpush.bf16.msra.mxu0 %v3225
    %3775 = vmatpush.bf16.msra.mxu0 %v3221
    %3776 = vmatpush.bf16.msra.mxu0 %v3217
    %3777 = vmatpush.bf16.msra.mxu0 %v3213
    %3778 = vmatpush.bf16.msra.mxu0 %v3209
    %3779 = vmatpush.bf16.msra.mxu0 %v3205
    %3780 = vmatpush.bf16.msra.mxu0 %v3201
    %3781 = vmatpush.bf16.msra.mxu0 %v3197
    %3782 = vmatmul.bf16.gmra.mxu0 %v2348
    %v3783 = vpop.f32.mrf.mxu0
    %v3784 = vadd.f32 %v3771, %v3783
    %v3785 = vpop.f32.mrf.mxu0
    %3786 = vdwg.mxu0
    %3787 = vmatpush.bf16.msra.mxu0 %v3257
    %3788 = vmatpush.bf16.msra.mxu0 %v3253
    %3789 = vmatpush.bf16.msra.mxu0 %v3249
    %3790 = vmatpush.bf16.msra.mxu0 %v3245
    %3791 = vmatpush.bf16.msra.mxu0 %v3241
    %3792 = vmatpush.bf16.msra.mxu0 %v3237
    %3793 = vmatpush.bf16.msra.mxu0 %v3233
    %3794 = vmatpush.bf16.msra.mxu0 %v3229
    %3795 = vmatmul.bf16.gmra.mxu0 %v2349
    %v3796 = vpop.f32.mrf.mxu0
    %v3797 = vadd.f32 %v3784, %v3796
    %v3798 = vpop.f32.mrf.mxu0
    %3799 = vdwg.mxu0
    %3800 = vmatpush.bf16.msra.mxu0 %v3289
    %3801 = vmatpush.bf16.msra.mxu0 %v3285
    %3802 = vmatpush.bf16.msra.mxu0 %v3281
    %3803 = vmatpush.bf16.msra.mxu0 %v3277
    %3804 = vmatpush.bf16.msra.mxu0 %v3273
    %3805 = vmatpush.bf16.msra.mxu0 %v3269
    %3806 = vmatpush.bf16.msra.mxu0 %v3265
    %3807 = vmatpush.bf16.msra.mxu0 %v3261
    %3808 = vmatmul.bf16.gmra.mxu0 %v2350
    %v3809 = vpop.f32.mrf.mxu0
    %v3810 = vadd.f32 %v3797, %v3809
    %v3811 = vpop.f32.mrf.mxu0
    %3812 = vdwg.mxu0
    %3813 = vmatpush.bf16.msra.mxu0 %v3321
    %3814 = vmatpush.bf16.msra.mxu0 %v3317
    %3815 = vmatpush.bf16.msra.mxu0 %v3313
    %3816 = vmatpush.bf16.msra.mxu0 %v3309
    %3817 = vmatpush.bf16.msra.mxu0 %v3305
    %3818 = vmatpush.bf16.msra.mxu0 %v3301
    %3819 = vmatpush.bf16.msra.mxu0 %v3297
    %3820 = vmatpush.bf16.msra.mxu0 %v3293
    %3821 = vmatmul.bf16.gmra.mxu0 %v2351
    %v3822 = vpop.f32.mrf.mxu0
    %v3823 = vadd.f32 %v3810, %v3822
    %v3824 = vpop.f32.mrf.mxu0
    %3825 = vdwg.mxu0
    %v3826 = vmax.f32 %v3589, 0.0
    %v3827 = vmax.f32 %v3667, 0.0
    %v3828 = vmax.f32 %v3745, 0.0
    %v3829 = vmax.f32 %v3823, 0.0
    %v3830 = vpack.c.bf16 %v3826, %v3826
    %v3831 = vpack.c.bf16 %v3827, %v3827
    %v3832 = vpack.c.bf16 %v3828, %v3828
    %v3833 = vpack.c.bf16 %v3829, %v3829
    %v3834 = vld [vmem:[#allocation10] sm:$0xf]
    %v3835 = vld [vmem:[#allocation10 + $0x4] sm:$0xf]
    %v3836 = vld [vmem:[#allocation10 + $0x8] sm:$0xf]
    %v3837 = vld [vmem:[#allocation10 + $0xc] sm:$0xf]
    %v3838 = vld [vmem:[#allocation10 + $0x10] sm:$0xf]
    %v3839 = vld [vmem:[#allocation10 + $0x14] sm:$0xf]
    %v3840 = vld [vmem:[#allocation10 + $0x18] sm:$0xf]
    %v3841 = vld [vmem:[#allocation10 + $0x1c] sm:$0xf]
    %v3842 = vld [vmem:[#allocation10 + $0x20] sm:$0xf]
    %v3843 = vld [vmem:[#allocation10 + $0x24] sm:$0xf]
    %v3844 = vld [vmem:[#allocation10 + $0x28] sm:$0xf]
    %v3845 = vld [vmem:[#allocation10 + $0x2c] sm:$0xf]
    %v3846 = vld [vmem:[#allocation10 + $0x30] sm:$0xf]
    %v3847 = vld [vmem:[#allocation10 + $0x34] sm:$0xf]
    %v3848 = vld [vmem:[#allocation10 + $0x38] sm:$0xf]
    %v3849 = vld [vmem:[#allocation10 + $0x3c] sm:$0xf]
    %v3850 = vld [vmem:[#allocation10 + $0x40] sm:$0xf]
    %v3851 = vld [vmem:[#allocation10 + $0x44] sm:$0xf]
    %v3852 = vld [vmem:[#allocation10 + $0x48] sm:$0xf]
    %v3853 = vld [vmem:[#allocation10 + $0x4c] sm:$0xf]
    %v3854 = vld [vmem:[#allocation10 + $0x50] sm:$0xf]
    %v3855 = vld [vmem:[#allocation10 + $0x54] sm:$0xf]
    %v3856 = vld [vmem:[#allocation10 + $0x58] sm:$0xf]
    %v3857 = vld [vmem:[#allocation10 + $0x5c] sm:$0xf]
    %v3858 = vld [vmem:[#allocation10 + $0x60] sm:$0xf]
    %v3859 = vld [vmem:[#allocation10 + $0x64] sm:$0xf]
    %v3860 = vld [vmem:[#allocation10 + $0x68] sm:$0xf]
    %v3861 = vld [vmem:[#allocation10 + $0x6c] sm:$0xf]
    %v3862 = vld [vmem:[#allocation10 + $0x70] sm:$0xf]
    %v3863 = vld [vmem:[#allocation10 + $0x74] sm:$0xf]
    %v3864 = vld [vmem:[#allocation10 + $0x78] sm:$0xf]
    %v3865 = vld [vmem:[#allocation10 + $0x7c] sm:$0xf]
    %v3866 = vld [vmem:[#allocation10 + $0x80] sm:$0xf]
    %v3867 = vld [vmem:[#allocation10 + $0x84] sm:$0xf]
    %v3868 = vld [vmem:[#allocation10 + $0x88] sm:$0xf]
    %v3869 = vld [vmem:[#allocation10 + $0x8c] sm:$0xf]
    %v3870 = vld [vmem:[#allocation10 + $0x90] sm:$0xf]
    %v3871 = vld [vmem:[#allocation10 + $0x94] sm:$0xf]
    %v3872 = vld [vmem:[#allocation10 + $0x98] sm:$0xf]
    %v3873 = vld [vmem:[#allocation10 + $0x9c] sm:$0xf]
    %v3874 = vld [vmem:[#allocation10 + $0xa0] sm:$0xf]
    %v3875 = vld [vmem:[#allocation10 + $0xa4] sm:$0xf]
    %v3876 = vld [vmem:[#allocation10 + $0xa8] sm:$0xf]
    %v3877 = vld [vmem:[#allocation10 + $0xac] sm:$0xf]
    %v3878 = vld [vmem:[#allocation10 + $0xb0] sm:$0xf]
    %v3879 = vld [vmem:[#allocation10 + $0xb4] sm:$0xf]
    %v3880 = vld [vmem:[#allocation10 + $0xb8] sm:$0xf]
    %v3881 = vld [vmem:[#allocation10 + $0xbc] sm:$0xf]
    %v3882 = vld [vmem:[#allocation10 + $0xc0] sm:$0xf]
    %v3883 = vld [vmem:[#allocation10 + $0xc4] sm:$0xf]
    %v3884 = vld [vmem:[#allocation10 + $0xc8] sm:$0xf]
    %v3885 = vld [vmem:[#allocation10 + $0xcc] sm:$0xf]
    %v3886 = vld [vmem:[#allocation10 + $0xd0] sm:$0xf]
    %v3887 = vld [vmem:[#allocation10 + $0xd4] sm:$0xf]
    %v3888 = vld [vmem:[#allocation10 + $0xd8] sm:$0xf]
    %v3889 = vld [vmem:[#allocation10 + $0xdc] sm:$0xf]
    %v3890 = vld [vmem:[#allocation10 + $0xe0] sm:$0xf]
    %v3891 = vld [vmem:[#allocation10 + $0xe4] sm:$0xf]
    %v3892 = vld [vmem:[#allocation10 + $0xe8] sm:$0xf]
    %v3893 = vld [vmem:[#allocation10 + $0xec] sm:$0xf]
    %v3894 = vld [vmem:[#allocation10 + $0xf0] sm:$0xf]
    %v3895 = vld [vmem:[#allocation10 + $0xf4] sm:$0xf]
    %v3896 = vld [vmem:[#allocation10 + $0xf8] sm:$0xf]
    %v3897 = vld [vmem:[#allocation10 + $0xfc] sm:$0xf]
    %v3898 = vld [vmem:[#allocation11] sm:$0x1]
    %v3900 = vperm.slane %v3898, 0
    %v3966 = vunpack.c.l.b16 %v3834
    %v3967 = vunpack.c.l.b16 %v3835
    %v3968 = vunpack.c.l.b16 %v3836
    %v3969 = vunpack.c.l.b16 %v3837
    %v3970 = vunpack.c.l.b16 %v3838
    %v3971 = vunpack.c.l.b16 %v3839
    %v3972 = vunpack.c.l.b16 %v3840
    %v3973 = vunpack.c.l.b16 %v3841
    %v3974 = vunpack.c.l.b16 %v3842
    %v3975 = vunpack.c.l.b16 %v3843
    %v3976 = vunpack.c.l.b16 %v3844
    %v3977 = vunpack.c.l.b16 %v3845
    %v3978 = vunpack.c.l.b16 %v3846
    %v3979 = vunpack.c.l.b16 %v3847
    %v3980 = vunpack.c.l.b16 %v3848
    %v3981 = vunpack.c.l.b16 %v3849
    %v3982 = vunpack.c.l.b16 %v3850
    %v3983 = vunpack.c.l.b16 %v3851
    %v3984 = vunpack.c.l.b16 %v3852
    %v3985 = vunpack.c.l.b16 %v3853
    %v3986 = vunpack.c.l.b16 %v3854
    %v3987 = vunpack.c.l.b16 %v3855
    %v3988 = vunpack.c.l.b16 %v3856
    %v3989 = vunpack.c.l.b16 %v3857
    %v3990 = vunpack.c.l.b16 %v3858
    %v3991 = vunpack.c.l.b16 %v3859
    %v3992 = vunpack.c.l.b16 %v3860
    %v3993 = vunpack.c.l.b16 %v3861
    %v3994 = vunpack.c.l.b16 %v3862
    %v3995 = vunpack.c.l.b16 %v3863
    %v3996 = vunpack.c.l.b16 %v3864
    %v3997 = vunpack.c.l.b16 %v3865
    %v3998 = vunpack.c.l.b16 %v3866
    %v3999 = vunpack.c.l.b16 %v3867
    %v4000 = vunpack.c.l.b16 %v3868
    %v4001 = vunpack.c.l.b16 %v3869
    %v4002 = vunpack.c.l.b16 %v3870
    %v4003 = vunpack.c.l.b16 %v3871
    %v4004 = vunpack.c.l.b16 %v3872
    %v4005 = vunpack.c.l.b16 %v3873
    %v4006 = vunpack.c.l.b16 %v3874
    %v4007 = vunpack.c.l.b16 %v3875
    %v4008 = vunpack.c.l.b16 %v3876
    %v4009 = vunpack.c.l.b16 %v3877
    %v4010 = vunpack.c.l.b16 %v3878
    %v4011 = vunpack.c.l.b16 %v3879
    %v4012 = vunpack.c.l.b16 %v3880
    %v4013 = vunpack.c.l.b16 %v3881
    %v4014 = vunpack.c.l.b16 %v3882
    %v4015 = vunpack.c.l.b16 %v3883
    %v4016 = vunpack.c.l.b16 %v3884
    %v4017 = vunpack.c.l.b16 %v3885
    %v4018 = vunpack.c.l.b16 %v3886
    %v4019 = vunpack.c.l.b16 %v3887
    %v4020 = vunpack.c.l.b16 %v3888
    %v4021 = vunpack.c.l.b16 %v3889
    %v4022 = vunpack.c.l.b16 %v3890
    %v4023 = vunpack.c.l.b16 %v3891
    %v4024 = vunpack.c.l.b16 %v3892
    %v4025 = vunpack.c.l.b16 %v3893
    %v4026 = vunpack.c.l.b16 %v3894
    %v4027 = vunpack.c.l.b16 %v3895
    %v4028 = vunpack.c.l.b16 %v3896
    %v4029 = vunpack.c.l.b16 %v3897
    %v4030 = vpack.c.b16 %v3967, %v3966
    %v4031 = vpack.c.b16 %v3969, %v3968
    %v4032 = vpack.c.b16 %v3971, %v3970
    %v4033 = vpack.c.b16 %v3973, %v3972
    %v4034 = vpack.c.b16 %v3975, %v3974
    %v4035 = vpack.c.b16 %v3977, %v3976
    %v4036 = vpack.c.b16 %v3979, %v3978
    %v4037 = vpack.c.b16 %v3981, %v3980
    %v4038 = vpack.c.b16 %v3983, %v3982
    %v4039 = vpack.c.b16 %v3985, %v3984
    %v4040 = vpack.c.b16 %v3987, %v3986
    %v4041 = vpack.c.b16 %v3989, %v3988
    %v4042 = vpack.c.b16 %v3991, %v3990
    %v4043 = vpack.c.b16 %v3993, %v3992
    %v4044 = vpack.c.b16 %v3995, %v3994
    %v4045 = vpack.c.b16 %v3997, %v3996
    %v4046 = vpack.c.b16 %v3999, %v3998
    %v4047 = vpack.c.b16 %v4001, %v4000
    %v4048 = vpack.c.b16 %v4003, %v4002
    %v4049 = vpack.c.b16 %v4005, %v4004
    %v4050 = vpack.c.b16 %v4007, %v4006
    %v4051 = vpack.c.b16 %v4009, %v4008
    %v4052 = vpack.c.b16 %v4011, %v4010
    %v4053 = vpack.c.b16 %v4013, %v4012
    %v4054 = vpack.c.b16 %v4015, %v4014
    %v4055 = vpack.c.b16 %v4017, %v4016
    %v4056 = vpack.c.b16 %v4019, %v4018
    %v4057 = vpack.c.b16 %v4021, %v4020
    %v4058 = vpack.c.b16 %v4023, %v4022
    %v4059 = vpack.c.b16 %v4025, %v4024
    %v4060 = vpack.c.b16 %v4027, %v4026
    %v4061 = vpack.c.b16 %v4029, %v4028
    %4094 = vmatpush.bf16.msra.mxu0 %v4037
    %4095 = vmatpush.bf16.msra.mxu0 %v4036
    %4096 = vmatpush.bf16.msra.mxu0 %v4035
    %4097 = vmatpush.bf16.msra.mxu0 %v4034
    %4098 = vmatpush.bf16.msra.mxu0 %v4033
    %4099 = vmatpush.bf16.msra.mxu0 %v4032
    %4100 = vmatpush.bf16.msra.mxu0 %v4031
    %4101 = vmatpush.bf16.msra.mxu0 %v4030
    %4102 = vmatmul.bf16.gmra.mxu0 %v3830
    %v4103 = vpop.f32.mrf.mxu0
    %v4104 = vadd.f32 %v3900, %v4103
    %v4105 = vpop.f32.mrf.mxu0
    %4106 = vdwg.mxu0
    %4107 = vmatpush.bf16.msra.mxu0 %v4045
    %4108 = vmatpush.bf16.msra.mxu0 %v4044
    %4109 = vmatpush.bf16.msra.mxu0 %v4043
    %4110 = vmatpush.bf16.msra.mxu0 %v4042
    %4111 = vmatpush.bf16.msra.mxu0 %v4041
    %4112 = vmatpush.bf16.msra.mxu0 %v4040
    %4113 = vmatpush.bf16.msra.mxu0 %v4039
    %4114 = vmatpush.bf16.msra.mxu0 %v4038
    %4115 = vmatmul.bf16.gmra.mxu0 %v3831
    %v4116 = vpop.f32.mrf.mxu0
    %v4117 = vadd.f32 %v4104, %v4116
    %v4118 = vpop.f32.mrf.mxu0
    %4119 = vdwg.mxu0
    %4120 = vmatpush.bf16.msra.mxu0 %v4053
    %4121 = vmatpush.bf16.msra.mxu0 %v4052
    %4122 = vmatpush.bf16.msra.mxu0 %v4051
    %4123 = vmatpush.bf16.msra.mxu0 %v4050
    %4124 = vmatpush.bf16.msra.mxu0 %v4049
    %4125 = vmatpush.bf16.msra.mxu0 %v4048
    %4126 = vmatpush.bf16.msra.mxu0 %v4047
    %4127 = vmatpush.bf16.msra.mxu0 %v4046
    %4128 = vmatmul.bf16.gmra.mxu0 %v3832
    %v4129 = vpop.f32.mrf.mxu0
    %v4130 = vadd.f32 %v4117, %v4129
    %v4131 = vpop.f32.mrf.mxu0
    %4132 = vdwg.mxu0
    %4133 = vmatpush.bf16.msra.mxu0 %v4061
    %4134 = vmatpush.bf16.msra.mxu0 %v4060
    %4135 = vmatpush.bf16.msra.mxu0 %v4059
    %4136 = vmatpush.bf16.msra.mxu0 %v4058
    %4137 = vmatpush.bf16.msra.mxu0 %v4057
    %4138 = vmatpush.bf16.msra.mxu0 %v4056
    %4139 = vmatpush.bf16.msra.mxu0 %v4055
    %4140 = vmatpush.bf16.msra.mxu0 %v4054
    %4141 = vmatmul.bf16.gmra.mxu0 %v3833
    %v4142 = vpop.f32.mrf.mxu0
    %v4143 = vadd.f32 %v4130, %v4142
    %v4144 = vpop.f32.mrf.mxu0
    %4145 = vdwg.mxu0
    %vm4146 = vcmask 1041408
    %v4147 = vsel %vm4146, %v4143, -inf
    %4148 = vmax.xlane.f32.xlu0 %v4147
    %v4149 = vpop.xlane.xlu0 %4148
    %v4150 = vsub.f32 %v4143, %v4149
    %v4151 = vmul.f32 %v4150, 1.442695
    %v4152 = vpow.pop %v4151
    %v4153 = vsel %vm4146, %v4152, 0.0
    %4154 = vadd.xlane.f32.xlu0 %v4153
    %v4155 = vpop.xlane.xlu0 %4154
    %v4156 = vlog2.pop %v4155
    %v4157 = vmul.f32 %v4156, 0.6931472
    %v4158 = vsub.f32 %v4150, %v4157
    %4159 = vst [vmem:[#allocation13] sm:$0x3] %v4158
    // Predicated region
    $region54: #{bert_arch_forward.23} parent=1 // pred_check
      _
    $region55: #{bert_arch_forward.23} parent=1 // pred_check_branch
      %4161 = sbr.rel (0) target = $region57
    $region56: #{bert_arch_forward.23} parent=1 // pred_region
      %4163 = vsyncadd [#allocation4], 0
      %s4165 = sshll.u32 [#allocation13], 4
      %s4166 = int_to_ptr.vmem [resolvable:$true] %s4165
      %s4167 = sshll.u32 %s7, 4
      %s4168 = int_to_ptr.hbm [resolvable:$true] %s4167
      %4170 = dma.vmem_to_hbm [thread:$0]  %s4166, 32, %s4168, [#allocation4]
    $region57: #{bert_arch_forward.23} parent=1 // pred_fallthru
      _
    // Predicated region
    $region58: #{bert_arch_forward.23} parent=1 // pred_check
      _
    $region59: #{bert_arch_forward.23} parent=1 // pred_check_branch
      %4172 = sbr.rel (0) target = $region61
    $region60: #{bert_arch_forward.23} parent=1 // pred_region
      %4174 = dma.done [#allocation4], 32
    $region61: #{bert_arch_forward.23} parent=1 // pred_fallthru
      _
    %4175 = vsyncpa [#allocation3], 1
    %4176 = vsyncpa [#allocation6], 1
    %4177 = vsyncpa [#allocation9], 1
    %4178 = vsyncpa [#allocation12], 1
    %4179 = vsyncpa [#allocation4], 1

</llo_original>
